<compile_context>
chip_gen: v7x
topology: tpu7x:2x2x1
jax: 0.10.0
libtpu: 0.0.40
codegen_flags: <defaults>
</compile_context>

<pallas_src>
import jax
import jax.numpy as jnp
from jax.experimental import pallas as pl
from jax.experimental.pallas import tpu as pltpu

LATENT_DIM = 20
HIDDEN_DIM = 400
OUTPUT_DIM = 784

# Padded (lane / MXU-friendly) dims used inside the kernel.
LATENT_PAD = 128   # 20  -> 128  (one lane tile)
HIDDEN_PAD = 512   # 400 -> 512  (4 lane tiles)
OUTPUT_PAD = 896   # 784 -> 896 = 7*128 (unmasked output stores)


def _round_up(x, m):
    return (x + m - 1) // m * m


def vae_decoder_kernel(z_ref, w1_ref, b1_ref, w2_ref, b2_ref, o_ref):
    """One batch tile, fully fused in VMEM.

    z_ref : (TB, LATENT_PAD)          bfloat16
    w1_ref: (LATENT_PAD, HIDDEN_PAD)  bfloat16   (transposed, padded torch weight)
    b1_ref: (1, HIDDEN_PAD)           float32
    w2_ref: (HIDDEN_PAD, OUTPUT_PAD)  bfloat16   (transposed, padded torch weight)
    b2_ref: (1, OUTPUT_PAD)           float32
    o_ref : (TB, OUTPUT_PAD)          float32 or bfloat16
    """
    # fc + ReLU: bf16 MXU matmul with f32 accumulation; bias/activation in f32.
    h = jnp.dot(z_ref[...], w1_ref[...], preferred_element_type=jnp.float32)
    h = jnp.maximum(h + b1_ref[...], 0.0)
    # fc_out + Sigmoid (sigmoid goes to the EUP slot, hidden under matmul/stores).
    logits = (
        jnp.dot(h.astype(jnp.bfloat16), w2_ref[...],
                preferred_element_type=jnp.float32)
        + b2_ref[...]
    )
    o_ref[...] = jax.nn.sigmoid(logits).astype(o_ref.dtype)


def prepare_params(w1, b1, w2, b2):
    """Pad + cast the params ONCE (hoisted out of the per-call hot path).

    Logical (unpadded) shapes, all f32:
      w1 (LATENT_DIM, HIDDEN_DIM)  = torch fc.weight.T
      b1 (1, HIDDEN_DIM)
      w2 (HIDDEN_DIM, OUTPUT_DIM)  = torch fc_out.weight.T
      b2 (1, OUTPUT_DIM)

    Zero padding is mathematically inert through matmul + bias + ReLU; padded
    output columns / batch rows are discarded outside the kernel.
    """
    w1p = jnp.zeros((LATENT_PAD, HIDDEN_PAD), jnp.float32).at[:LATENT_DIM, :HIDDEN_DIM].set(w1)
    b1p = jnp.zeros((1, HIDDEN_PAD), jnp.float32).at[:, :HIDDEN_DIM].set(b1)
    w2p = jnp.zeros((HIDDEN_PAD, OUTPUT_PAD), jnp.float32).at[:HIDDEN_DIM, :OUTPUT_DIM].set(w2)
    b2p = jnp.zeros((1, OUTPUT_PAD), jnp.float32).at[:, :OUTPUT_DIM].set(b2)
    # bf16 weights: halve the dominant weight HBM traffic, native MXU bf16 rate.
    return (w1p.astype(jnp.bfloat16), b1p, w2p.astype(jnp.bfloat16), b2p)


def vae_decoder_forward(z, params, *, tile_b=512, out_dtype=jnp.float32,
                        slice_output=True):
    """z: (B, LATENT_DIM) f32; params from prepare_params().

    Returns (B, OUTPUT_DIM) in out_dtype (or the padded (bp, OUTPUT_PAD)
    buffer if slice_output=False, letting the consumer fuse the un-pad slice).
    """
    w1p, b1p, w2p, b2p = params
    B = z.shape[0]

    # Batch tiling: tile is a multiple of 8 (sublane); pad B up to a tile multiple.
    tb = min(tile_b, _round_up(B, 8))
    bp = _round_up(B, tb)
    grid = (bp // tb,)

    # Only the (small) activation is padded/cast per call: (bp, 128) bf16.
    zp = jnp.zeros((bp, LATENT_PAD), jnp.bfloat16).at[:B, :LATENT_DIM].set(
        z.astype(jnp.bfloat16))

    out = pl.pallas_call(
        vae_decoder_kernel,
        out_shape=jax.ShapeDtypeStruct((bp, OUTPUT_PAD), out_dtype),
        grid=grid,
        in_specs=[
            pl.BlockSpec((tb, LATENT_PAD), lambda i: (i, 0)),
            # Weights/biases: constant index_map -> stay VMEM-resident across
            # batch tiles (DMA'd once, reused every grid step).
            # v7x note: add pipeline_mode=pl.Buffered(1) to these four specs to
            # drop the redundant second buffer, and use CORE_PARALLEL on the
            # batch axis to engage both TensorCores.
            pl.BlockSpec((LATENT_PAD, HIDDEN_PAD), lambda i: (0, 0)),
            pl.BlockSpec((1, HIDDEN_PAD), lambda i: (0, 0)),
            pl.BlockSpec((HIDDEN_PAD, OUTPUT_PAD), lambda i: (0, 0)),
            pl.BlockSpec((1, OUTPUT_PAD), lambda i: (0, 0)),
        ],
        out_specs=pl.BlockSpec((tb, OUTPUT_PAD), lambda i: (i, 0)),
        compiler_params=pltpu.CompilerParams(
            dimension_semantics=("parallel",),
            vmem_limit_bytes=32 << 20,   # tb=512 footprint ~6 MiB incl. double buffers
        ),
    )(zp, w1p, b1p, w2p, b2p)

    if not slice_output:
        return out
    return out[:B, :OUTPUT_DIM]


def init_params(key):
    """Deterministic synthetic init matching nn.Linear shapes (stored transposed).

    torch: fc.weight (400, 20),  fc.bias (400,)
           fc_out.weight (784, 400), fc_out.bias (784,)
    We store: w1 (20, 400), b1 (1, 400), w2 (400, 784), b2 (1, 784), all f32.
    """
    k1, k2, k3, k4 = jax.random.split(key, 4)
    lim1 = 1.0 / jnp.sqrt(jnp.float32(LATENT_DIM))
    lim2 = 1.0 / jnp.sqrt(jnp.float32(HIDDEN_DIM))
    w1 = jax.random.uniform(k1, (LATENT_DIM, HIDDEN_DIM), jnp.float32, -lim1, lim1)
    b1 = jax.random.uniform(k2, (1, HIDDEN_DIM), jnp.float32, -lim1, lim1)
    w2 = jax.random.uniform(k3, (HIDDEN_DIM, OUTPUT_DIM), jnp.float32, -lim2, lim2)
    b2 = jax.random.uniform(k4, (1, OUTPUT_DIM), jnp.float32, -lim2, lim2)
    return w1, b1, w2, b2


def reference_forward(z, w1, b1, w2, b2):
    h = jnp.maximum(z @ w1 + b1, 0.0)
    return jax.nn.sigmoid(h @ w2 + b2)


if __name__ == "__main__":
    key = jax.random.PRNGKey(0)
    kz, kp = jax.random.split(key)

    batch = 777  # exercises multi-tile grid (tb=512 -> 2 tiles) + tail padding/slicing
    z = jax.random.normal(kz, (batch, LATENT_DIM), jnp.float32)
    w1, b1, w2, b2 = init_params(kp)

    # One-time padded + bf16-cast params (hoisted out of the per-call path).
    params = prepare_params(w1, b1, w2, b2)

    # jit the wrapper so the per-call z padding and the output un-pad slice can
    # fuse with neighboring XLA ops instead of standing alone.
    fwd = jax.jit(vae_decoder_forward,
                  static_argnames=("tile_b", "out_dtype", "slice_output"))

    out = jax.block_until_ready(fwd(z, params))
    ref = reference_forward(z, w1, b1, w2, b2)

    assert out.shape == (batch, OUTPUT_DIM), out.shape
    assert out.dtype == jnp.float32, out.dtype
    # bf16 weights vs f32 reference -> loosened tolerance.
    max_err = float(jnp.max(jnp.abs(out - ref)))
    assert max_err < 2e-2, f"mismatch vs JAX reference (f32 out), max_err={max_err}"

    # Optional bf16-output path (halves the HBM writeback on v6e/v7x).
    out_bf16 = jax.block_until_ready(fwd(z, params, out_dtype=jnp.bfloat16))
    max_err_bf16 = float(jnp.max(jnp.abs(out_bf16.astype(jnp.float32) - ref)))
    assert max_err_bf16 < 3e-2, f"mismatch vs JAX reference (bf16 out), max_err={max_err_bf16}"

    print("KERNEL_OK")
</pallas_src>

<mosaic_0001>
module attributes {stable_mosaic.version = 11 : i64} {
  func.func @vae_decoder_kernel(%arg0: i32, %arg1: memref<512x128xbf16, #tpu.memory_space<vmem>>, %arg2: memref<128x512xbf16, #tpu.memory_space<vmem>>, %arg3: memref<1x512xf32, #tpu.memory_space<vmem>>, %arg4: memref<512x896xbf16, #tpu.memory_space<vmem>>, %arg5: memref<1x896xf32, #tpu.memory_space<vmem>>, %arg6: memref<512x896xf32, #tpu.memory_space<vmem>>) attributes {dimension_semantics = [#tpu.dimension_semantics<parallel>], iteration_bounds = array<i64: 2>, scalar_prefetch = 0 : i64, scratch_operands = 0 : i64, tpu.core_type = #tpu.core_type<tc>, window_params = [{transform_indices = @transform_0, window_bounds = array<i64: 512, 128>}, {pipeline_mode = #tpu.pipeline_mode<synchronous>, transform_indices = @transform_1, window_bounds = array<i64: 128, 512>}, {pipeline_mode = #tpu.pipeline_mode<synchronous>, transform_indices = @transform_2, window_bounds = array<i64: 1, 512>}, {pipeline_mode = #tpu.pipeline_mode<synchronous>, transform_indices = @transform_3, window_bounds = array<i64: 512, 896>}, {pipeline_mode = #tpu.pipeline_mode<synchronous>, transform_indices = @transform_4, window_bounds = array<i64: 1, 896>}, {transform_indices = @transform_5, window_bounds = array<i64: 512, 896>}]} {
    %c0 = arith.constant 0 : index
    %c0_0 = arith.constant 0 : index
    %0 = vector.load %arg1[%c0, %c0_0] : memref<512x128xbf16, #tpu.memory_space<vmem>>, vector<512x128xbf16>
    %c0_1 = arith.constant 0 : index
    %c0_2 = arith.constant 0 : index
    %1 = vector.load %arg2[%c0_1, %c0_2] : memref<128x512xbf16, #tpu.memory_space<vmem>>, vector<128x512xbf16>
    %cst = arith.constant dense<0.000000e+00> : vector<512x512xf32>
    %2 = tpu.matmul %0, %1, %cst {dimension_numbers = #tpu.dot_dimension_numbers<[1], [0], [0], [1], [0, 0, 1, 1], [], []>} : vector<512x128xbf16>, vector<128x512xbf16>, vector<512x512xf32> -> vector<512x512xf32>
    %c0_3 = arith.constant 0 : index
    %c0_4 = arith.constant 0 : index
    %3 = vector.load %arg3[%c0_3, %c0_4] : memref<1x512xf32, #tpu.memory_space<vmem>>, vector<1x512xf32>
    %4 = vector.broadcast %3 : vector<1x512xf32> to vector<512x512xf32>
    %5 = arith.addf %2, %4 : vector<512x512xf32>
    %cst_5 = arith.constant 0.000000e+00 : f32
    %6 = vector.broadcast %cst_5 : f32 to vector<512x512xf32>
    %7 = arith.maximumf %5, %6 : vector<512x512xf32>
    %8 = arith.truncf %7 : vector<512x512xf32> to vector<512x512xbf16>
    %c0_6 = arith.constant 0 : index
    %c0_7 = arith.constant 0 : index
    %9 = vector.load %arg4[%c0_6, %c0_7] : memref<512x896xbf16, #tpu.memory_space<vmem>>, vector<512x896xbf16>
    %cst_8 = arith.constant dense<0.000000e+00> : vector<512x896xf32>
    %10 = tpu.matmul %8, %9, %cst_8 {dimension_numbers = #tpu.dot_dimension_numbers<[1], [0], [0], [1], [0, 0, 1, 1], [], []>} : vector<512x512xbf16>, vector<512x896xbf16>, vector<512x896xf32> -> vector<512x896xf32>
    %c0_9 = arith.constant 0 : index
    %c0_10 = arith.constant 0 : index
    %11 = vector.load %arg5[%c0_9, %c0_10] : memref<1x896xf32, #tpu.memory_space<vmem>>, vector<1x896xf32>
    %12 = vector.broadcast %11 : vector<1x896xf32> to vector<512x896xf32>
    %13 = arith.addf %10, %12 : vector<512x896xf32>
    %14 = arith.negf %13 : vector<512x896xf32>
    %15 = math.exp %14 : vector<512x896xf32>
    %cst_11 = arith.constant 1.000000e+00 : f32
    %16 = vector.broadcast %cst_11 : f32 to vector<512x896xf32>
    %17 = arith.addf %16, %15 : vector<512x896xf32>
    %18 = arith.divf %16, %17 : vector<512x896xf32>
    %c0_12 = arith.constant 0 : index
    %c0_13 = arith.constant 0 : index
    %19 = vector.load %arg6[%c0_12, %c0_13] : memref<512x896xf32, #tpu.memory_space<vmem>>, vector<512x896xf32>
    tpu.vector_store %arg6[%c0_12, %c0_13], %18 {strides = array<i32>} : memref<512x896xf32, #tpu.memory_space<vmem>>, vector<512x896xf32>,
    return
  }
  func.func @transform_0(%arg0: i32) -> (i32, i32) {
    %c0_i32 = arith.constant 0 : i32
    %c0_i32_0 = arith.constant 0 : i32
    return %arg0, %c0_i32 : i32, i32
  }
  func.func @transform_1(%arg0: i32) -> (i32, i32) {
    %c0_i32 = arith.constant 0 : i32
    %c0_i32_0 = arith.constant 0 : i32
    %c0_i32_1 = arith.constant 0 : i32
    return %c0_i32, %c0_i32_0 : i32, i32
  }
  func.func @transform_2(%arg0: i32) -> (i32, i32) {
    %c0_i32 = arith.constant 0 : i32
    %c0_i32_0 = arith.constant 0 : i32
    %c0_i32_1 = arith.constant 0 : i32
    return %c0_i32, %c0_i32_0 : i32, i32
  }
  func.func @transform_3(%arg0: i32) -> (i32, i32) {
    %c0_i32 = arith.constant 0 : i32
    %c0_i32_0 = arith.constant 0 : i32
    %c0_i32_1 = arith.constant 0 : i32
    return %c0_i32, %c0_i32_0 : i32, i32
  }
  func.func @transform_4(%arg0: i32) -> (i32, i32) {
    %c0_i32 = arith.constant 0 : i32
    %c0_i32_0 = arith.constant 0 : i32
    %c0_i32_1 = arith.constant 0 : i32
    return %c0_i32, %c0_i32_0 : i32, i32
  }
  func.func @transform_5(%arg0: i32) -> (i32, i32) {
    %c0_i32 = arith.constant 0 : i32
    %c0_i32_0 = arith.constant 0 : i32
    return %arg0, %c0_i32 : i32, i32
  }
}

</mosaic_0001>

<llo_original>
// kernel: vae_decoder_forward.1
$region0: #{vae_decoder_forward.1}
  #allocation0 [shape = 'u32[]', space=smem, size = 0x4, offset = 0x4, fixed_abs, tag = 'smem constant byte address 0x4 - core index']
  #allocation1 [shape = 'u32[144,128]{1,0:T(1,128)}', space=vmem, size = 0x12000, scoped, tag = 'internal scratch']
  %s0 = inlined_call_operand.vmem [shape: bf16[1024,128], index: 0, kind: input, shape index: {}]
  %s1 = inlined_call_operand.hbm [shape: bf16[128,512], index: 1, kind: input, shape index: {}]
  %s2 = inlined_call_operand.hbm [shape: f32[1,512], index: 2, kind: input, shape index: {}]
  %s3 = inlined_call_operand.hbm [shape: bf16[512,896], index: 3, kind: input, shape index: {}]
  %s4 = inlined_call_operand.hbm [shape: f32[1,896], index: 4, kind: input, shape index: {}]
  %s5 = inlined_call_operand.vmem [shape: f32[1024,896], index: 5, kind: output, shape index: {}]
  %s6 = sld [smem:[#allocation0]]
  $region69: #{vae_decoder_forward.1} parent=0
    _
  %s8 = ssub.s32 1, %s6
  %s9 = scalar_select 0, %s8, %s6
  $region1: #{vae_decoder_forward.1} parent=0
    #allocation2 [shape = 'u8[131072]{0}', space=vmem, size = 0x20000, scoped, tag = 'input window, operand 1, single buffered']
    #allocation3 [shape = 's32[2]{0}', space=sflag, size = 0x8, scoped, tag = 'scoped memory for vae_decoder_forward.1']
    #allocation4 [shape = 'u8[2048]{0}', space=vmem, size = 0x800, scoped, tag = 'input window, operand 2, single buffered']
    #allocation5 [shape = 's32[1]{0}', space=sflag, size = 0x4, scoped, tag = 'scoped memory for vae_decoder_forward.1']
    #allocation6 [shape = 'u8[917504]{0}', space=vmem, size = 0xe0000, scoped, tag = 'input window, operand 3, single buffered']
    #allocation7 [shape = 'u8[3584]{0}', space=vmem, size = 0x1000, scoped, tag = 'input window, operand 4, single buffered']
    #allocation8 [shape = 's32[1]{0}', space=sflag, size = 0x4, scoped, tag = 'scoped memory for vae_decoder_forward.1']
    %10 = vsyncpa [#allocation3], 0
    %11 = vsyncpa [#allocation5], 0
    %12 = vsyncpa [#allocation8], 0
    loop: start=0, step=1, limit=4
    $region2: #{vae_decoder_forward.1} parent=1 // loop_pre_header
      _
    $region3: #{vae_decoder_forward.1} parent=1 // loop_header
      %s14 = sphi 0, %s18
      %p15 = scmp.ge.s32.totalorder %s14, 4
      %s24 = sphi 0, %s26
      %s27 = sphi 0, %s24
      %s28 = sphi 0, %s27
      %s44 = sphi 0, %s28
      %s48 = sphi 0, %s48
      %s50 = sphi 0, %s48
      %s51 = sphi 0, %s50
      %s65 = sphi 0, %s51
      %s69 = sphi 0, %s69
      %s71 = sphi 0, %s69
      %s72 = sphi 0, %s71
      %s86 = sphi 0, %s72
      %s90 = sphi 0, %s90
      %s92 = sphi 0, %s90
      %s93 = sphi 0, %s92
      %s107 = sphi 0, %s93
      %s111 = sphi 0, %s111
      %s113 = sphi 0, %s111
      %s114 = sphi 0, %s113
      %s128 = sphi 0, %s114
      %s134 = sphi 0, %s136
      %s137 = sphi 0, %s134
      %s138 = sphi 0, %s137
      %s154 = sphi 0, %s138
    $region4: #{vae_decoder_forward.1} parent=1 // loop_header_branch
      %17 = sbr.rel (%p15) target = $region8
    $region5: #{vae_decoder_forward.1} parent=1 // loop_body
      %s19 = ssub.s32 %s14, 1
      %s20 = ssub.s32 %s14, 2
      %s21 = sadd.s32 %s14, 1
      %s22 = ssub.s32 %s14, %s21
      %p23 = scmp.eq.s32.totalorder %s22, 0
      %s25 = sadd.s32 %s24, 1
      %s26 = scalar_select %p23, %s24, %s25
      %p29 = pneg %p23
      %p30 = scmp.eq.s32.totalorder %s14, 1
      %p31 = por %p29, %p30
      %p32 = scmp.ne.s32.totalorder %s24, %s27
      %p33 = scmp.eq.s32.totalorder %s14, 0
      %p34 = por %p32, %p33
      %p35 = scmp.ne.s32.totalorder %s24, %s27
      %p36 = scmp.eq.s32.totalorder %s19, 1
      %p37 = por %p35, %p36
      %p38 = scmp.ne.s32.totalorder %s27, %s28
      %p39 = scmp.eq.s32.totalorder %s19, 0
      %p40 = por %p38, %p39
      %p41 = scmp.ne.s32.totalorder %s27, %s28
      %p42 = scmp.eq.s32.totalorder %s20, 1
      %p43 = por %p41, %p42
      %p45 = scmp.ne.s32.totalorder %s28, %s44
      %p46 = scmp.eq.s32.totalorder %s20, 0
      %p47 = por %p45, %p46
      %s49 = sadd.s32 %s48, 1
      %p52 = scmp.eq.s32.totalorder %s14, 1
      %p53 = scmp.ne.s32.totalorder %s48, %s50
      %p54 = scmp.eq.s32.totalorder %s14, 0
      %p55 = por %p53, %p54
      %p56 = scmp.ne.s32.totalorder %s48, %s50
      %p57 = scmp.eq.s32.totalorder %s19, 1
      %p58 = por %p56, %p57
      %p59 = scmp.ne.s32.totalorder %s50, %s51
      %p60 = scmp.eq.s32.totalorder %s19, 0
      %p61 = por %p59, %p60
      %p62 = scmp.ne.s32.totalorder %s50, %s51
      %p63 = scmp.eq.s32.totalorder %s20, 1
      %p64 = por %p62, %p63
      %p66 = scmp.ne.s32.totalorder %s51, %s65
      %p67 = scmp.eq.s32.totalorder %s20, 0
      %p68 = por %p66, %p67
      %s70 = sadd.s32 %s69, 1
      %p73 = scmp.eq.s32.totalorder %s14, 1
      %p74 = scmp.ne.s32.totalorder %s69, %s71
      %p75 = scmp.eq.s32.totalorder %s14, 0
      %p76 = por %p74, %p75
      %p77 = scmp.ne.s32.totalorder %s69, %s71
      %p78 = scmp.eq.s32.totalorder %s19, 1
      %p79 = por %p77, %p78
      %p80 = scmp.ne.s32.totalorder %s71, %s72
      %p81 = scmp.eq.s32.totalorder %s19, 0
      %p82 = por %p80, %p81
      %p83 = scmp.ne.s32.totalorder %s71, %s72
      %p84 = scmp.eq.s32.totalorder %s20, 1
      %p85 = por %p83, %p84
      %p87 = scmp.ne.s32.totalorder %s72, %s86
      %p88 = scmp.eq.s32.totalorder %s20, 0
      %p89 = por %p87, %p88
      %s91 = sadd.s32 %s90, 1
      %p94 = scmp.eq.s32.totalorder %s14, 1
      %p95 = scmp.ne.s32.totalorder %s90, %s92
      %p96 = scmp.eq.s32.totalorder %s14, 0
      %p97 = por %p95, %p96
      %p98 = scmp.ne.s32.totalorder %s90, %s92
      %p99 = scmp.eq.s32.totalorder %s19, 1
      %p100 = por %p98, %p99
      %p101 = scmp.ne.s32.totalorder %s92, %s93
      %p102 = scmp.eq.s32.totalorder %s19, 0
      %p103 = por %p101, %p102
      %p104 = scmp.ne.s32.totalorder %s92, %s93
      %p105 = scmp.eq.s32.totalorder %s20, 1
      %p106 = por %p104, %p105
      %p108 = scmp.ne.s32.totalorder %s93, %s107
      %p109 = scmp.eq.s32.totalorder %s20, 0
      %p110 = por %p108, %p109
      %s112 = sadd.s32 %s111, 1
      %p115 = scmp.eq.s32.totalorder %s14, 1
      %p116 = scmp.ne.s32.totalorder %s111, %s113
      %p117 = scmp.eq.s32.totalorder %s14, 0
      %p118 = por %p116, %p117
      %p119 = scmp.ne.s32.totalorder %s111, %s113
      %p120 = scmp.eq.s32.totalorder %s19, 1
      %p121 = por %p119, %p120
      %p122 = scmp.ne.s32.totalorder %s113, %s114
      %p123 = scmp.eq.s32.totalorder %s19, 0
      %p124 = por %p122, %p123
      %p125 = scmp.ne.s32.totalorder %s113, %s114
      %p126 = scmp.eq.s32.totalorder %s20, 1
      %p127 = por %p125, %p126
      %p129 = scmp.ne.s32.totalorder %s114, %s128
      %p130 = scmp.eq.s32.totalorder %s20, 0
      %p131 = por %p129, %p130
      %s132 = ssub.s32 %s14, %s21
      %p133 = scmp.eq.s32.totalorder %s132, 0
      %s135 = sadd.s32 %s134, 1
      %s136 = scalar_select %p133, %s134, %s135
      %p139 = pneg %p133
      %p140 = scmp.eq.s32.totalorder %s14, 1
      %p141 = por %p139, %p140
      %p142 = scmp.ne.s32.totalorder %s134, %s137
      %p143 = scmp.eq.s32.totalorder %s14, 0
      %p144 = por %p142, %p143
      %p145 = scmp.ne.s32.totalorder %s134, %s137
      %p146 = scmp.eq.s32.totalorder %s19, 1
      %p147 = por %p145, %p146
      %p148 = scmp.ne.s32.totalorder %s137, %s138
      %p149 = scmp.eq.s32.totalorder %s19, 0
      %p150 = por %p148, %p149
      %p151 = scmp.ne.s32.totalorder %s137, %s138
      %p152 = scmp.eq.s32.totalorder %s20, 1
      %p153 = por %p151, %p152
      %p155 = scmp.ne.s32.totalorder %s138, %s154
      %p156 = scmp.eq.s32.totalorder %s20, 0
      %p157 = por %p155, %p156
      %p158 = scmp.le.s32.totalorder 1, %s14
      %p159 = scmp.lt.s32.totalorder %s14, 3
      %p160 = pnand %p158, %p159
      %p161 = pneg %p160
      // Predicated region
      $region9: #{vae_decoder_forward.1} parent=5 // pred_check
        _
      $region10: #{vae_decoder_forward.1} parent=5 // pred_check_branch
        %163 = sbr.rel (%p160) target = $region12
      $region11: #{vae_decoder_forward.1} parent=5 // pred_region
        %s164 = ssub.s32 %s14, 1
        // Predicated region
        $region13: #{vae_decoder_forward.1} parent=11 // pred_check
          %p165 = pneg %p61
        $region14: #{vae_decoder_forward.1} parent=11 // pred_check_branch
          %167 = sbr.rel (%p165) target = $region16
        $region15: #{vae_decoder_forward.1} parent=11 // pred_region
          %s169 = ssub.s32 4096, 4096
          %170 = vsyncadd [#allocation3], %s169
          %s171 = sshll.u32 [#allocation2], 4
          %s172 = int_to_ptr.vmem [resolvable:$true] %s171
          %177 = dma.hbm_to_vmem [thread:$0]  %s1, 4096, %s172, [#allocation3], 256, 256, 16
        $region16: #{vae_decoder_forward.1} parent=11 // pred_fallthru
          _
        // Predicated region
        $region17: #{vae_decoder_forward.1} parent=11 // pred_check
          %p178 = pneg %p82
        $region18: #{vae_decoder_forward.1} parent=11 // pred_check_branch
          %180 = sbr.rel (%p178) target = $region20
        $region19: #{vae_decoder_forward.1} parent=11 // pred_region
          %s182 = ssub.s32 64, 64
          %183 = vsyncadd [#allocation5], %s182
          %s185 = sshll.u32 [#allocation4], 4
          %s186 = int_to_ptr.vmem [resolvable:$true] %s185
          %188 = dma.hbm_to_vmem [thread:$0]  %s2, 64, %s186, [#allocation5]
        $region20: #{vae_decoder_forward.1} parent=11 // pred_fallthru
          _
        // Predicated region
        $region21: #{vae_decoder_forward.1} parent=11 // pred_check
          %p189 = pneg %p103
        $region22: #{vae_decoder_forward.1} parent=11 // pred_check_branch
          %191 = sbr.rel (%p189) target = $region24
        $region23: #{vae_decoder_forward.1} parent=11 // pred_region
          %s193 = ssub.s32 28672, 28672
          %194 = vsyncadd [#allocation5], %s193
          %s195 = sshll.u32 [#allocation6], 4
          %s196 = int_to_ptr.vmem [resolvable:$true] %s195
          %201 = dma.hbm_to_vmem [thread:$0]  %s3, 28672, %s196, [#allocation5], 448, 448, 28
        $region24: #{vae_decoder_forward.1} parent=11 // pred_fallthru
          _
        // Predicated region
        $region25: #{vae_decoder_forward.1} parent=11 // pred_check
          %p202 = pneg %p124
        $region26: #{vae_decoder_forward.1} parent=11 // pred_check_branch
          %204 = sbr.rel (%p202) target = $region28
        $region27: #{vae_decoder_forward.1} parent=11 // pred_region
          %s206 = ssub.s32 112, 112
          %207 = vsyncadd [#allocation8], %s206
          %s209 = sshll.u32 [#allocation7], 4
          %s210 = int_to_ptr.vmem [resolvable:$true] %s209
          %212 = dma.hbm_to_vmem [thread:$0]  %s4, 112, %s210, [#allocation8]
        $region28: #{vae_decoder_forward.1} parent=11 // pred_fallthru
          _
      $region12: #{vae_decoder_forward.1} parent=5 // pred_fallthru
        _
      %p213 = scmp.lt.s32.totalorder %s14, 2
      // Predicated region
      $region29: #{vae_decoder_forward.1} parent=5 // pred_check
        %p214 = pneg %p213
      $region30: #{vae_decoder_forward.1} parent=5 // pred_check_branch
        %216 = sbr.rel (%p214) target = $region32
      $region31: #{vae_decoder_forward.1} parent=5 // pred_region
        // Predicated region
        $region33: #{vae_decoder_forward.1} parent=31 // pred_check
          %p217 = pneg %p34
        $region34: #{vae_decoder_forward.1} parent=31 // pred_check_branch
          %219 = sbr.rel (%p217) target = $region36
        $region35: #{vae_decoder_forward.1} parent=31 // pred_region
          %s220 = smul.u32 64, %s14
          %p221 = scmp.lt.s32.totalorder %s220, 127
          %s222 = scalar_select %p221, %s220, 127
          %s223 = smul.addr %s222, 4
          %s224 = scalar_lea.vmem %s0, %s223
          %s225 = smul.u32 64, %s14
        $region36: #{vae_decoder_forward.1} parent=31 // pred_fallthru
          _
      $region32: #{vae_decoder_forward.1} parent=5 // pred_fallthru
        _
      %p226 = scmp.le.s32.totalorder 1, %s14
      %p227 = scmp.lt.s32.totalorder %s14, 3
      %p228 = pnand %p226, %p227
      %p229 = pneg %p228
      // Predicated region
      $region37: #{vae_decoder_forward.1} parent=5 // pred_check
        _
      $region38: #{vae_decoder_forward.1} parent=5 // pred_check_branch
        %231 = sbr.rel (%p228) target = $region40
      $region39: #{vae_decoder_forward.1} parent=5 // pred_region
        %s232 = ssub.s32 %s14, 1
        // Predicated region
        $region41: #{vae_decoder_forward.1} parent=39 // pred_check
          %p233 = pneg %p61
        $region42: #{vae_decoder_forward.1} parent=39 // pred_check_branch
          %235 = sbr.rel (%p233) target = $region44
        $region43: #{vae_decoder_forward.1} parent=39 // pred_region
          %236 = dma.done [#allocation3], 4096
        $region44: #{vae_decoder_forward.1} parent=39 // pred_fallthru
          _
        // Predicated region
        $region45: #{vae_decoder_forward.1} parent=39 // pred_check
          %p237 = pneg %p82
        $region46: #{vae_decoder_forward.1} parent=39 // pred_check_branch
          %239 = sbr.rel (%p237) target = $region48
        $region47: #{vae_decoder_forward.1} parent=39 // pred_region
          %240 = dma.done [#allocation5], 64
        $region48: #{vae_decoder_forward.1} parent=39 // pred_fallthru
          _
        // Predicated region
        $region49: #{vae_decoder_forward.1} parent=39 // pred_check
          %p241 = pneg %p103
        $region50: #{vae_decoder_forward.1} parent=39 // pred_check_branch
          %243 = sbr.rel (%p241) target = $region52
        $region51: #{vae_decoder_forward.1} parent=39 // pred_region
          %244 = dma.done [#allocation5], 28672
        $region52: #{vae_decoder_forward.1} parent=39 // pred_fallthru
          _
        // Predicated region
        $region53: #{vae_decoder_forward.1} parent=39 // pred_check
          %p245 = pneg %p124
        $region54: #{vae_decoder_forward.1} parent=39 // pred_check_branch
          %247 = sbr.rel (%p245) target = $region56
        $region55: #{vae_decoder_forward.1} parent=39 // pred_region
          %248 = dma.done [#allocation8], 112
        $region56: #{vae_decoder_forward.1} parent=39 // pred_fallthru
          _
        %s249 = smul.u32 64, %s19
        %p250 = scmp.lt.s32.totalorder %s249, 127
        %s251 = scalar_select %p250, %s249, 127
        %s252 = smul.addr %s251, 4
        %s253 = scalar_lea.vmem %s0, %s252
        %p254 = pneg %p40
        %p255 = pneg %p37
        %p256 = pneg %p61
        %p257 = pneg %p58
        %p258 = pneg %p82
        %p259 = pneg %p79
        %p260 = pneg %p103
        %p261 = pneg %p100
        %p262 = pneg %p124
        %p263 = pneg %p121
        %p264 = pneg %p150
        %p265 = pneg %p147
        %s266 = smul.u32 64, %s19
        %p267 = scmp.lt.s32.totalorder %s266, 127
        %s268 = scalar_select %p267, %s266, 127
        %s269 = smul.addr %s268, 7
        %s270 = smul.addr %s269, 8
        %s271 = scalar_lea.vmem %s5, %s270
        %s272 = smul.u32 64, %s19
        %p273 = scmp.lt.s32.totalorder %s272, 127
        %s274 = scalar_select %p273, %s272, 127
        %s275 = smul.addr %s274, 4
        %s276 = scalar_lea.vmem %s0, %s275
        %s277 = smul.u32 64, %s19
        %s278 = smul.u32 64, %s19
        %p279 = scmp.lt.s32.totalorder %s278, 127
        %s280 = scalar_select %p279, %s278, 127
        %s281 = smul.addr %s280, 7
        %s282 = smul.addr %s281, 8
        %s283 = scalar_lea.vmem %s5, %s282
        %s284 = smul.u32 64, %s19
        %v286 = vld [vmem:[%s276] sm:$0xf]
        %v287 = vld [vmem:[%s276 + $0x4] sm:$0xf]
        %v288 = vld [vmem:[%s276 + $0x8] sm:$0xf]
        %v289 = vld [vmem:[%s276 + $0xc] sm:$0xf]
        %v290 = vld [vmem:[%s276 + $0x10] sm:$0xf]
        %v291 = vld [vmem:[%s276 + $0x14] sm:$0xf]
        %v292 = vld [vmem:[%s276 + $0x18] sm:$0xf]
        %v293 = vld [vmem:[%s276 + $0x1c] sm:$0xf]
        %v294 = vld [vmem:[%s276 + $0x20] sm:$0xf]
        %v295 = vld [vmem:[%s276 + $0x24] sm:$0xf]
        %v296 = vld [vmem:[%s276 + $0x28] sm:$0xf]
        %v297 = vld [vmem:[%s276 + $0x2c] sm:$0xf]
        %v298 = vld [vmem:[%s276 + $0x30] sm:$0xf]
        %v299 = vld [vmem:[%s276 + $0x34] sm:$0xf]
        %v300 = vld [vmem:[%s276 + $0x38] sm:$0xf]
        %v301 = vld [vmem:[%s276 + $0x3c] sm:$0xf]
        %v302 = vld [vmem:[%s276 + $0x40] sm:$0xf]
        %v303 = vld [vmem:[%s276 + $0x44] sm:$0xf]
        %v304 = vld [vmem:[%s276 + $0x48] sm:$0xf]
        %v305 = vld [vmem:[%s276 + $0x4c] sm:$0xf]
        %v306 = vld [vmem:[%s276 + $0x50] sm:$0xf]
        %v307 = vld [vmem:[%s276 + $0x54] sm:$0xf]
        %v308 = vld [vmem:[%s276 + $0x58] sm:$0xf]
        %v309 = vld [vmem:[%s276 + $0x5c] sm:$0xf]
        %v310 = vld [vmem:[%s276 + $0x60] sm:$0xf]
        %v311 = vld [vmem:[%s276 + $0x64] sm:$0xf]
        %v312 = vld [vmem:[%s276 + $0x68] sm:$0xf]
        %v313 = vld [vmem:[%s276 + $0x6c] sm:$0xf]
        %v314 = vld [vmem:[%s276 + $0x70] sm:$0xf]
        %v315 = vld [vmem:[%s276 + $0x74] sm:$0xf]
        %v316 = vld [vmem:[%s276 + $0x78] sm:$0xf]
        %v317 = vld [vmem:[%s276 + $0x7c] sm:$0xf]
        %v318 = vld [vmem:[%s276 + $0x80] sm:$0xf]
        %v319 = vld [vmem:[%s276 + $0x84] sm:$0xf]
        %v320 = vld [vmem:[%s276 + $0x88] sm:$0xf]
        %v321 = vld [vmem:[%s276 + $0x8c] sm:$0xf]
        %v322 = vld [vmem:[%s276 + $0x90] sm:$0xf]
        %v323 = vld [vmem:[%s276 + $0x94] sm:$0xf]
        %v324 = vld [vmem:[%s276 + $0x98] sm:$0xf]
        %v325 = vld [vmem:[%s276 + $0x9c] sm:$0xf]
        %v326 = vld [vmem:[%s276 + $0xa0] sm:$0xf]
        %v327 = vld [vmem:[%s276 + $0xa4] sm:$0xf]
        %v328 = vld [vmem:[%s276 + $0xa8] sm:$0xf]
        %v329 = vld [vmem:[%s276 + $0xac] sm:$0xf]
        %v330 = vld [vmem:[%s276 + $0xb0] sm:$0xf]
        %v331 = vld [vmem:[%s276 + $0xb4] sm:$0xf]
        %v332 = vld [vmem:[%s276 + $0xb8] sm:$0xf]
        %v333 = vld [vmem:[%s276 + $0xbc] sm:$0xf]
        %v334 = vld [vmem:[%s276 + $0xc0] sm:$0xf]
        %v335 = vld [vmem:[%s276 + $0xc4] sm:$0xf]
        %v336 = vld [vmem:[%s276 + $0xc8] sm:$0xf]
        %v337 = vld [vmem:[%s276 + $0xcc] sm:$0xf]
        %v338 = vld [vmem:[%s276 + $0xd0] sm:$0xf]
        %v339 = vld [vmem:[%s276 + $0xd4] sm:$0xf]
        %v340 = vld [vmem:[%s276 + $0xd8] sm:$0xf]
        %v341 = vld [vmem:[%s276 + $0xdc] sm:$0xf]
        %v342 = vld [vmem:[%s276 + $0xe0] sm:$0xf]
        %v343 = vld [vmem:[%s276 + $0xe4] sm:$0xf]
        %v344 = vld [vmem:[%s276 + $0xe8] sm:$0xf]
        %v345 = vld [vmem:[%s276 + $0xec] sm:$0xf]
        %v346 = vld [vmem:[%s276 + $0xf0] sm:$0xf]
        %v347 = vld [vmem:[%s276 + $0xf4] sm:$0xf]
        %v348 = vld [vmem:[%s276 + $0xf8] sm:$0xf]
        %v349 = vld [vmem:[%s276 + $0xfc] sm:$0xf]
        %v350 = vld [vmem:[#allocation2] sm:$0xff]
        %v351 = vld [vmem:[#allocation2 + $0x8] sm:$0xff]
        %v352 = vld [vmem:[#allocation2 + $0x10] sm:$0xff]
        %v353 = vld [vmem:[#allocation2 + $0x18] sm:$0xff]
        %v354 = vld [vmem:[#allocation2 + $0x20] sm:$0xff]
        %v355 = vld [vmem:[#allocation2 + $0x28] sm:$0xff]
        %v356 = vld [vmem:[#allocation2 + $0x30] sm:$0xff]
        %v357 = vld [vmem:[#allocation2 + $0x38] sm:$0xff]
        %v358 = vld [vmem:[#allocation2 + $0x40] sm:$0xff]
        %v359 = vld [vmem:[#allocation2 + $0x48] sm:$0xff]
        %v360 = vld [vmem:[#allocation2 + $0x50] sm:$0xff]
        %v361 = vld [vmem:[#allocation2 + $0x58] sm:$0xff]
        %v362 = vld [vmem:[#allocation2 + $0x60] sm:$0xff]
        %v363 = vld [vmem:[#allocation2 + $0x68] sm:$0xff]
        %v364 = vld [vmem:[#allocation2 + $0x70] sm:$0xff]
        %v365 = vld [vmem:[#allocation2 + $0x78] sm:$0xff]
        %v366 = vld [vmem:[#allocation2 + $0x80] sm:$0xff]
        %v367 = vld [vmem:[#allocation2 + $0x88] sm:$0xff]
        %v368 = vld [vmem:[#allocation2 + $0x90] sm:$0xff]
        %v369 = vld [vmem:[#allocation2 + $0x98] sm:$0xff]
        %v370 = vld [vmem:[#allocation2 + $0xa0] sm:$0xff]
        %v371 = vld [vmem:[#allocation2 + $0xa8] sm:$0xff]
        %v372 = vld [vmem:[#allocation2 + $0xb0] sm:$0xff]
        %v373 = vld [vmem:[#allocation2 + $0xb8] sm:$0xff]
        %v374 = vld [vmem:[#allocation2 + $0xc0] sm:$0xff]
        %v375 = vld [vmem:[#allocation2 + $0xc8] sm:$0xff]
        %v376 = vld [vmem:[#allocation2 + $0xd0] sm:$0xff]
        %v377 = vld [vmem:[#allocation2 + $0xd8] sm:$0xff]
        %v378 = vld [vmem:[#allocation2 + $0xe0] sm:$0xff]
        %v379 = vld [vmem:[#allocation2 + $0xe8] sm:$0xff]
        %v380 = vld [vmem:[#allocation2 + $0xf0] sm:$0xff]
        %v381 = vld [vmem:[#allocation2 + $0xf8] sm:$0xff]
        %v382 = vld [vmem:[#allocation4] sm:$0xf]
        %v384 = vlaneseq
        %v385 = vshrl.u32 %v384, 7
        %v386 = vsub.s32 0, %v385
        %v387 = vrot.slane %v382, %v386
        %v388 = vlaneseq
        %v389 = vshrl.u32 %v388, 7
        %v390 = vsub.s32 1, %v389
        %v391 = vrot.slane %v382, %v390
        %v392 = vlaneseq
        %v393 = vshrl.u32 %v392, 7
        %v394 = vsub.s32 2, %v393
        %v395 = vrot.slane %v382, %v394
        %v396 = vlaneseq
        %v397 = vshrl.u32 %v396, 7
        %v398 = vsub.s32 3, %v397
        %v399 = vrot.slane %v382, %v398
        %v468 = vunpack.c.l.b16 %v286
        %v469 = vunpack.c.l.b16 %v287
        %v470 = vunpack.c.l.b16 %v288
        %v471 = vunpack.c.l.b16 %v289
        %v472 = vunpack.c.l.b16 %v290
        %v473 = vunpack.c.l.b16 %v291
        %v474 = vunpack.c.l.b16 %v292
        %v475 = vunpack.c.l.b16 %v293
        %v476 = vunpack.c.l.b16 %v294
        %v477 = vunpack.c.l.b16 %v295
        %v478 = vunpack.c.l.b16 %v296
        %v479 = vunpack.c.l.b16 %v297
        %v480 = vunpack.c.l.b16 %v298
        %v481 = vunpack.c.l.b16 %v299
        %v482 = vunpack.c.l.b16 %v300
        %v483 = vunpack.c.l.b16 %v301
        %v484 = vunpack.c.l.b16 %v302
        %v485 = vunpack.c.l.b16 %v303
        %v486 = vunpack.c.l.b16 %v304
        %v487 = vunpack.c.l.b16 %v305
        %v488 = vunpack.c.l.b16 %v306
        %v489 = vunpack.c.l.b16 %v307
        %v490 = vunpack.c.l.b16 %v308
        %v491 = vunpack.c.l.b16 %v309
        %v492 = vunpack.c.l.b16 %v310
        %v493 = vunpack.c.l.b16 %v311
        %v494 = vunpack.c.l.b16 %v312
        %v495 = vunpack.c.l.b16 %v313
        %v496 = vunpack.c.l.b16 %v314
        %v497 = vunpack.c.l.b16 %v315
        %v498 = vunpack.c.l.b16 %v316
        %v499 = vunpack.c.l.b16 %v317
        %v500 = vunpack.c.l.b16 %v318
        %v501 = vunpack.c.l.b16 %v319
        %v502 = vunpack.c.l.b16 %v320
        %v503 = vunpack.c.l.b16 %v321
        %v504 = vunpack.c.l.b16 %v322
        %v505 = vunpack.c.l.b16 %v323
        %v506 = vunpack.c.l.b16 %v324
        %v507 = vunpack.c.l.b16 %v325
        %v508 = vunpack.c.l.b16 %v326
        %v509 = vunpack.c.l.b16 %v327
        %v510 = vunpack.c.l.b16 %v328
        %v511 = vunpack.c.l.b16 %v329
        %v512 = vunpack.c.l.b16 %v330
        %v513 = vunpack.c.l.b16 %v331
        %v514 = vunpack.c.l.b16 %v332
        %v515 = vunpack.c.l.b16 %v333
        %v516 = vunpack.c.l.b16 %v334
        %v517 = vunpack.c.l.b16 %v335
        %v518 = vunpack.c.l.b16 %v336
        %v519 = vunpack.c.l.b16 %v337
        %v520 = vunpack.c.l.b16 %v338
        %v521 = vunpack.c.l.b16 %v339
        %v522 = vunpack.c.l.b16 %v340
        %v523 = vunpack.c.l.b16 %v341
        %v524 = vunpack.c.l.b16 %v342
        %v525 = vunpack.c.l.b16 %v343
        %v526 = vunpack.c.l.b16 %v344
        %v527 = vunpack.c.l.b16 %v345
        %v528 = vunpack.c.l.b16 %v346
        %v529 = vunpack.c.l.b16 %v347
        %v530 = vunpack.c.l.b16 %v348
        %v531 = vunpack.c.l.b16 %v349
        %v532 = vpack.c.b16 %v469, %v468
        %v533 = vpack.c.b16 %v471, %v470
        %v534 = vpack.c.b16 %v473, %v472
        %v535 = vpack.c.b16 %v475, %v474
        %v536 = vpack.c.b16 %v477, %v476
        %v537 = vpack.c.b16 %v479, %v478
        %v538 = vpack.c.b16 %v481, %v480
        %v539 = vpack.c.b16 %v483, %v482
        %v540 = vpack.c.b16 %v485, %v484
        %v541 = vpack.c.b16 %v487, %v486
        %v542 = vpack.c.b16 %v489, %v488
        %v543 = vpack.c.b16 %v491, %v490
        %v544 = vpack.c.b16 %v493, %v492
        %v545 = vpack.c.b16 %v495, %v494
        %v546 = vpack.c.b16 %v497, %v496
        %v547 = vpack.c.b16 %v499, %v498
        %v548 = vpack.c.b16 %v501, %v500
        %v549 = vpack.c.b16 %v503, %v502
        %v550 = vpack.c.b16 %v505, %v504
        %v551 = vpack.c.b16 %v507, %v506
        %v552 = vpack.c.b16 %v509, %v508
        %v553 = vpack.c.b16 %v511, %v510
        %v554 = vpack.c.b16 %v513, %v512
        %v555 = vpack.c.b16 %v515, %v514
        %v556 = vpack.c.b16 %v517, %v516
        %v557 = vpack.c.b16 %v519, %v518
        %v558 = vpack.c.b16 %v521, %v520
        %v559 = vpack.c.b16 %v523, %v522
        %v560 = vpack.c.b16 %v525, %v524
        %v561 = vpack.c.b16 %v527, %v526
        %v562 = vpack.c.b16 %v529, %v528
        %v563 = vpack.c.b16 %v531, %v530
        %v628 = vunpack.c.l.b16 %v350
        %v629 = vunpack.c.h.b16 %v350
        %v630 = vunpack.c.l.b16 %v351
        %v631 = vunpack.c.h.b16 %v351
        %v632 = vunpack.c.l.b16 %v352
        %v633 = vunpack.c.h.b16 %v352
        %v634 = vunpack.c.l.b16 %v353
        %v635 = vunpack.c.h.b16 %v353
        %v636 = vunpack.c.l.b16 %v354
        %v637 = vunpack.c.h.b16 %v354
        %v638 = vunpack.c.l.b16 %v355
        %v639 = vunpack.c.h.b16 %v355
        %v640 = vunpack.c.l.b16 %v356
        %v641 = vunpack.c.h.b16 %v356
        %v642 = vunpack.c.l.b16 %v357
        %v643 = vunpack.c.h.b16 %v357
        %v644 = vunpack.c.l.b16 %v358
        %v645 = vunpack.c.h.b16 %v358
        %v646 = vunpack.c.l.b16 %v359
        %v647 = vunpack.c.h.b16 %v359
        %v648 = vunpack.c.l.b16 %v360
        %v649 = vunpack.c.h.b16 %v360
        %v650 = vunpack.c.l.b16 %v361
        %v651 = vunpack.c.h.b16 %v361
        %v652 = vunpack.c.l.b16 %v362
        %v653 = vunpack.c.h.b16 %v362
        %v654 = vunpack.c.l.b16 %v363
        %v655 = vunpack.c.h.b16 %v363
        %v656 = vunpack.c.l.b16 %v364
        %v657 = vunpack.c.h.b16 %v364
        %v658 = vunpack.c.l.b16 %v365
        %v659 = vunpack.c.h.b16 %v365
        %v660 = vunpack.c.l.b16 %v366
        %v661 = vunpack.c.h.b16 %v366
        %v662 = vunpack.c.l.b16 %v367
        %v663 = vunpack.c.h.b16 %v367
        %v664 = vunpack.c.l.b16 %v368
        %v665 = vunpack.c.h.b16 %v368
        %v666 = vunpack.c.l.b16 %v369
        %v667 = vunpack.c.h.b16 %v369
        %v668 = vunpack.c.l.b16 %v370
        %v669 = vunpack.c.h.b16 %v370
        %v670 = vunpack.c.l.b16 %v371
        %v671 = vunpack.c.h.b16 %v371
        %v672 = vunpack.c.l.b16 %v372
        %v673 = vunpack.c.h.b16 %v372
        %v674 = vunpack.c.l.b16 %v373
        %v675 = vunpack.c.h.b16 %v373
        %v676 = vunpack.c.l.b16 %v374
        %v677 = vunpack.c.h.b16 %v374
        %v678 = vunpack.c.l.b16 %v375
        %v679 = vunpack.c.h.b16 %v375
        %v680 = vunpack.c.l.b16 %v376
        %v681 = vunpack.c.h.b16 %v376
        %v682 = vunpack.c.l.b16 %v377
        %v683 = vunpack.c.h.b16 %v377
        %v684 = vunpack.c.l.b16 %v378
        %v685 = vunpack.c.h.b16 %v378
        %v686 = vunpack.c.l.b16 %v379
        %v687 = vunpack.c.h.b16 %v379
        %v688 = vunpack.c.l.b16 %v380
        %v689 = vunpack.c.h.b16 %v380
        %v690 = vunpack.c.l.b16 %v381
        %v691 = vunpack.c.h.b16 %v381
        %v692 = vpack.c.b16 %v632, %v628
        %v693 = vpack.c.b16 %v633, %v629
        %v694 = vpack.c.b16 %v634, %v630
        %v695 = vpack.c.b16 %v635, %v631
        %v696 = vpack.c.b16 %v640, %v636
        %v697 = vpack.c.b16 %v641, %v637
        %v698 = vpack.c.b16 %v642, %v638
        %v699 = vpack.c.b16 %v643, %v639
        %v700 = vpack.c.b16 %v648, %v644
        %v701 = vpack.c.b16 %v649, %v645
        %v702 = vpack.c.b16 %v650, %v646
        %v703 = vpack.c.b16 %v651, %v647
        %v704 = vpack.c.b16 %v656, %v652
        %v705 = vpack.c.b16 %v657, %v653
        %v706 = vpack.c.b16 %v658, %v654
        %v707 = vpack.c.b16 %v659, %v655
        %v708 = vpack.c.b16 %v664, %v660
        %v709 = vpack.c.b16 %v665, %v661
        %v710 = vpack.c.b16 %v666, %v662
        %v711 = vpack.c.b16 %v667, %v663
        %v712 = vpack.c.b16 %v672, %v668
        %v713 = vpack.c.b16 %v673, %v669
        %v714 = vpack.c.b16 %v674, %v670
        %v715 = vpack.c.b16 %v675, %v671
        %v716 = vpack.c.b16 %v680, %v676
        %v717 = vpack.c.b16 %v681, %v677
        %v718 = vpack.c.b16 %v682, %v678
        %v719 = vpack.c.b16 %v683, %v679
        %v720 = vpack.c.b16 %v688, %v684
        %v721 = vpack.c.b16 %v689, %v685
        %v722 = vpack.c.b16 %v690, %v686
        %v723 = vpack.c.b16 %v691, %v687
        %756 = vmatprep.subr.bf16.mxu0 %v693
        %757 = vmatpush1.bf16.msra.mxu0 %v692
        %758 = vmatprep.subr.bf16.mxu0 %v697
        %759 = vmatpush1.bf16.msra.mxu0 %v696
        %760 = vmatprep.subr.bf16.mxu0 %v701
        %761 = vmatpush1.bf16.msra.mxu0 %v700
        %762 = vmatprep.subr.bf16.mxu0 %v705
        %763 = vmatpush1.bf16.msra.mxu0 %v704
        %764 = vmatprep.subr.bf16.mxu0 %v709
        %765 = vmatpush1.bf16.msra.mxu0 %v708
        %766 = vmatprep.subr.bf16.mxu0 %v713
        %767 = vmatpush1.bf16.msra.mxu0 %v712
        %768 = vmatprep.subr.bf16.mxu0 %v717
        %769 = vmatpush1.bf16.msra.mxu0 %v716
        %770 = vmatprep.subr.bf16.mxu0 %v721
        %771 = vmatpush1.bf16.msra.mxu0 %v720
        %772 = vmatprep.subr.bf16.mxu0 0
        %773 = vmatpush1.bf16.msra.mxu0 0
        %774 = vmatprep.subr.bf16.mxu0 0
        %775 = vmatpush1.bf16.msra.mxu0 0
        %776 = vmatprep.subr.bf16.mxu0 0
        %777 = vmatpush1.bf16.msra.mxu0 0
        %778 = vmatprep.subr.bf16.mxu0 0
        %779 = vmatpush1.bf16.msra.mxu0 0
        %780 = vmatprep.subr.bf16.mxu0 0
        %781 = vmatpush1.bf16.msra.mxu0 0
        %782 = vmatprep.subr.bf16.mxu0 0
        %783 = vmatpush1.bf16.msra.mxu0 0
        %784 = vmatprep.subr.bf16.mxu0 0
        %785 = vmatpush1.bf16.msra.mxu0 0
        %786 = vmatprep.subr.bf16.mxu0 0
        %787 = vmatpush1.bf16.msra.mxu0 0
        %788 = vmatprep.mubr.bf16.mxu0 0
        %789 = vmatmul.mubr.bf16.gmra.mrb[0].mxu0 %v532
        %v790 = vpop.f32.mrb[0].mxu0
        %v791 = vadd.f32 %v387, %v790
        %v792 = vpop.f32.mrb[0].mxu0
        %v793 = vadd.f32 %v391, %v792
        %v794 = vpop.f32.mrb[0].mxu0
        %v795 = vadd.f32 %v387, %v794
        %v796 = vpop.f32.mrb[0].mxu0
        %v797 = vadd.f32 %v391, %v796
        %798 = vmatprep.mubr.bf16.mxu0 0
        %799 = vmatmul.mubr.bf16.gmra.mrb[0].mxu0 %v533
        %v800 = vpop.f32.mrb[0].mxu0
        %v801 = vadd.f32 %v387, %v800
        %v802 = vpop.f32.mrb[0].mxu0
        %v803 = vadd.f32 %v391, %v802
        %v804 = vpop.f32.mrb[0].mxu0
        %v805 = vadd.f32 %v387, %v804
        %v806 = vpop.f32.mrb[0].mxu0
        %v807 = vadd.f32 %v391, %v806
        %808 = vmatprep.mubr.bf16.mxu0 0
        %809 = vmatmul.mubr.bf16.gmra.mrb[0].mxu0 %v534
        %v810 = vpop.f32.mrb[0].mxu0
        %v811 = vadd.f32 %v387, %v810
        %v812 = vpop.f32.mrb[0].mxu0
        %v813 = vadd.f32 %v391, %v812
        %v814 = vpop.f32.mrb[0].mxu0
        %v815 = vadd.f32 %v387, %v814
        %v816 = vpop.f32.mrb[0].mxu0
        %v817 = vadd.f32 %v391, %v816
        %818 = vmatprep.mubr.bf16.mxu0 0
        %819 = vmatmul.mubr.bf16.gmra.mrb[0].mxu0 %v535
        %v820 = vpop.f32.mrb[0].mxu0
        %v821 = vadd.f32 %v387, %v820
        %v822 = vpop.f32.mrb[0].mxu0
        %v823 = vadd.f32 %v391, %v822
        %v824 = vpop.f32.mrb[0].mxu0
        %v825 = vadd.f32 %v387, %v824
        %v826 = vpop.f32.mrb[0].mxu0
        %v827 = vadd.f32 %v391, %v826
        %828 = vmatprep.mubr.bf16.mxu0 0
        %829 = vmatmul.mubr.bf16.gmra.mrb[0].mxu0 %v536
        %v830 = vpop.f32.mrb[0].mxu0
        %v831 = vadd.f32 %v387, %v830
        %v832 = vpop.f32.mrb[0].mxu0
        %v833 = vadd.f32 %v391, %v832
        %v834 = vpop.f32.mrb[0].mxu0
        %v835 = vadd.f32 %v387, %v834
        %v836 = vpop.f32.mrb[0].mxu0
        %v837 = vadd.f32 %v391, %v836
        %838 = vmatprep.mubr.bf16.mxu0 0
        %839 = vmatmul.mubr.bf16.gmra.mrb[0].mxu0 %v537
        %v840 = vpop.f32.mrb[0].mxu0
        %v841 = vadd.f32 %v387, %v840
        %v842 = vpop.f32.mrb[0].mxu0
        %v843 = vadd.f32 %v391, %v842
        %v844 = vpop.f32.mrb[0].mxu0
        %v845 = vadd.f32 %v387, %v844
        %v846 = vpop.f32.mrb[0].mxu0
        %v847 = vadd.f32 %v391, %v846
        %848 = vmatprep.mubr.bf16.mxu0 0
        %849 = vmatmul.mubr.bf16.gmra.mrb[0].mxu0 %v538
        %v850 = vpop.f32.mrb[0].mxu0
        %v851 = vadd.f32 %v387, %v850
        %v852 = vpop.f32.mrb[0].mxu0
        %v853 = vadd.f32 %v391, %v852
        %v854 = vpop.f32.mrb[0].mxu0
        %v855 = vadd.f32 %v387, %v854
        %v856 = vpop.f32.mrb[0].mxu0
        %v857 = vadd.f32 %v391, %v856
        %858 = vmatprep.mubr.bf16.mxu0 0
        %859 = vmatmul.mubr.bf16.gmra.mrb[0].mxu0 %v539
        %v860 = vpop.f32.mrb[0].mxu0
        %v861 = vadd.f32 %v387, %v860
        %v862 = vpop.f32.mrb[0].mxu0
        %v863 = vadd.f32 %v391, %v862
        %v864 = vpop.f32.mrb[0].mxu0
        %v865 = vadd.f32 %v387, %v864
        %v866 = vpop.f32.mrb[0].mxu0
        %v867 = vadd.f32 %v391, %v866
        %868 = vmatprep.mubr.bf16.mxu0 0
        %869 = vmatmul.mubr.bf16.gmra.mrb[0].mxu0 %v540
        %v870 = vpop.f32.mrb[0].mxu0
        %v871 = vadd.f32 %v387, %v870
        %v872 = vpop.f32.mrb[0].mxu0
        %v873 = vadd.f32 %v391, %v872
        %v874 = vpop.f32.mrb[0].mxu0
        %v875 = vadd.f32 %v387, %v874
        %v876 = vpop.f32.mrb[0].mxu0
        %v877 = vadd.f32 %v391, %v876
        %878 = vmatprep.mubr.bf16.mxu0 0
        %879 = vmatmul.mubr.bf16.gmra.mrb[0].mxu0 %v541
        %v880 = vpop.f32.mrb[0].mxu0
        %v881 = vadd.f32 %v387, %v880
        %v882 = vpop.f32.mrb[0].mxu0
        %v883 = vadd.f32 %v391, %v882
        %v884 = vpop.f32.mrb[0].mxu0
        %v885 = vadd.f32 %v387, %v884
        %v886 = vpop.f32.mrb[0].mxu0
        %v887 = vadd.f32 %v391, %v886
        %888 = vmatprep.mubr.bf16.mxu0 0
        %889 = vmatmul.mubr.bf16.gmra.mrb[0].mxu0 %v542
        %v890 = vpop.f32.mrb[0].mxu0
        %v891 = vadd.f32 %v387, %v890
        %v892 = vpop.f32.mrb[0].mxu0
        %v893 = vadd.f32 %v391, %v892
        %v894 = vpop.f32.mrb[0].mxu0
        %v895 = vadd.f32 %v387, %v894
        %v896 = vpop.f32.mrb[0].mxu0
        %v897 = vadd.f32 %v391, %v896
        %898 = vmatprep.mubr.bf16.mxu0 0
        %899 = vmatmul.mubr.bf16.gmra.mrb[0].mxu0 %v543
        %v900 = vpop.f32.mrb[0].mxu0
        %v901 = vadd.f32 %v387, %v900
        %v902 = vpop.f32.mrb[0].mxu0
        %v903 = vadd.f32 %v391, %v902
        %v904 = vpop.f32.mrb[0].mxu0
        %v905 = vadd.f32 %v387, %v904
        %v906 = vpop.f32.mrb[0].mxu0
        %v907 = vadd.f32 %v391, %v906
        %908 = vmatprep.mubr.bf16.mxu0 0
        %909 = vmatmul.mubr.bf16.gmra.mrb[0].mxu0 %v544
        %v910 = vpop.f32.mrb[0].mxu0
        %v911 = vadd.f32 %v387, %v910
        %v912 = vpop.f32.mrb[0].mxu0
        %v913 = vadd.f32 %v391, %v912
        %v914 = vpop.f32.mrb[0].mxu0
        %v915 = vadd.f32 %v387, %v914
        %v916 = vpop.f32.mrb[0].mxu0
        %v917 = vadd.f32 %v391, %v916
        %918 = vmatprep.mubr.bf16.mxu0 0
        %919 = vmatmul.mubr.bf16.gmra.mrb[0].mxu0 %v545
        %v920 = vpop.f32.mrb[0].mxu0
        %v921 = vadd.f32 %v387, %v920
        %v922 = vpop.f32.mrb[0].mxu0
        %v923 = vadd.f32 %v391, %v922
        %v924 = vpop.f32.mrb[0].mxu0
        %v925 = vadd.f32 %v387, %v924
        %v926 = vpop.f32.mrb[0].mxu0
        %v927 = vadd.f32 %v391, %v926
        %928 = vmatprep.mubr.bf16.mxu0 0
        %929 = vmatmul.mubr.bf16.gmra.mrb[0].mxu0 %v546
        %v930 = vpop.f32.mrb[0].mxu0
        %v931 = vadd.f32 %v387, %v930
        %v932 = vpop.f32.mrb[0].mxu0
        %v933 = vadd.f32 %v391, %v932
        %v934 = vpop.f32.mrb[0].mxu0
        %v935 = vadd.f32 %v387, %v934
        %v936 = vpop.f32.mrb[0].mxu0
        %v937 = vadd.f32 %v391, %v936
        %938 = vmatprep.mubr.bf16.mxu0 0
        %939 = vmatmul.mubr.bf16.gmra.mrb[0].mxu0 %v547
        %v940 = vpop.f32.mrb[0].mxu0
        %v941 = vadd.f32 %v387, %v940
        %v942 = vpop.f32.mrb[0].mxu0
        %v943 = vadd.f32 %v391, %v942
        %v944 = vpop.f32.mrb[0].mxu0
        %v945 = vadd.f32 %v387, %v944
        %v946 = vpop.f32.mrb[0].mxu0
        %v947 = vadd.f32 %v391, %v946
        %948 = vmatprep.mubr.bf16.mxu0 0
        %949 = vmatmul.mubr.bf16.gmra.mrb[0].mxu0 %v548
        %v950 = vpop.f32.mrb[0].mxu0
        %v951 = vadd.f32 %v387, %v950
        %v952 = vpop.f32.mrb[0].mxu0
        %v953 = vadd.f32 %v391, %v952
        %v954 = vpop.f32.mrb[0].mxu0
        %v955 = vadd.f32 %v387, %v954
        %v956 = vpop.f32.mrb[0].mxu0
        %v957 = vadd.f32 %v391, %v956
        %958 = vmatprep.mubr.bf16.mxu0 0
        %959 = vmatmul.mubr.bf16.gmra.mrb[0].mxu0 %v549
        %v960 = vpop.f32.mrb[0].mxu0
        %v961 = vadd.f32 %v387, %v960
        %v962 = vpop.f32.mrb[0].mxu0
        %v963 = vadd.f32 %v391, %v962
        %v964 = vpop.f32.mrb[0].mxu0
        %v965 = vadd.f32 %v387, %v964
        %v966 = vpop.f32.mrb[0].mxu0
        %v967 = vadd.f32 %v391, %v966
        %968 = vmatprep.mubr.bf16.mxu0 0
        %969 = vmatmul.mubr.bf16.gmra.mrb[0].mxu0 %v550
        %v970 = vpop.f32.mrb[0].mxu0
        %v971 = vadd.f32 %v387, %v970
        %v972 = vpop.f32.mrb[0].mxu0
        %v973 = vadd.f32 %v391, %v972
        %v974 = vpop.f32.mrb[0].mxu0
        %v975 = vadd.f32 %v387, %v974
        %v976 = vpop.f32.mrb[0].mxu0
        %v977 = vadd.f32 %v391, %v976
        %978 = vmatprep.mubr.bf16.mxu0 0
        %979 = vmatmul.mubr.bf16.gmra.mrb[0].mxu0 %v551
        %v980 = vpop.f32.mrb[0].mxu0
        %v981 = vadd.f32 %v387, %v980
        %v982 = vpop.f32.mrb[0].mxu0
        %v983 = vadd.f32 %v391, %v982
        %v984 = vpop.f32.mrb[0].mxu0
        %v985 = vadd.f32 %v387, %v984
        %v986 = vpop.f32.mrb[0].mxu0
        %v987 = vadd.f32 %v391, %v986
        %988 = vmatprep.mubr.bf16.mxu0 0
        %989 = vmatmul.mubr.bf16.gmra.mrb[0].mxu0 %v552
        %v990 = vpop.f32.mrb[0].mxu0
        %v991 = vadd.f32 %v387, %v990
        %v992 = vpop.f32.mrb[0].mxu0
        %v993 = vadd.f32 %v391, %v992
        %v994 = vpop.f32.mrb[0].mxu0
        %v995 = vadd.f32 %v387, %v994
        %v996 = vpop.f32.mrb[0].mxu0
        %v997 = vadd.f32 %v391, %v996
        %998 = vmatprep.mubr.bf16.mxu0 0
        %999 = vmatmul.mubr.bf16.gmra.mrb[0].mxu0 %v553
        %v1000 = vpop.f32.mrb[0].mxu0
        %v1001 = vadd.f32 %v387, %v1000
        %v1002 = vpop.f32.mrb[0].mxu0
        %v1003 = vadd.f32 %v391, %v1002
        %v1004 = vpop.f32.mrb[0].mxu0
        %v1005 = vadd.f32 %v387, %v1004
        %v1006 = vpop.f32.mrb[0].mxu0
        %v1007 = vadd.f32 %v391, %v1006
        %1008 = vmatprep.mubr.bf16.mxu0 0
        %1009 = vmatmul.mubr.bf16.gmra.mrb[0].mxu0 %v554
        %v1010 = vpop.f32.mrb[0].mxu0
        %v1011 = vadd.f32 %v387, %v1010
        %v1012 = vpop.f32.mrb[0].mxu0
        %v1013 = vadd.f32 %v391, %v1012
        %v1014 = vpop.f32.mrb[0].mxu0
        %v1015 = vadd.f32 %v387, %v1014
        %v1016 = vpop.f32.mrb[0].mxu0
        %v1017 = vadd.f32 %v391, %v1016
        %1018 = vmatprep.mubr.bf16.mxu0 0
        %1019 = vmatmul.mubr.bf16.gmra.mrb[0].mxu0 %v555
        %v1020 = vpop.f32.mrb[0].mxu0
        %v1021 = vadd.f32 %v387, %v1020
        %v1022 = vpop.f32.mrb[0].mxu0
        %v1023 = vadd.f32 %v391, %v1022
        %v1024 = vpop.f32.mrb[0].mxu0
        %v1025 = vadd.f32 %v387, %v1024
        %v1026 = vpop.f32.mrb[0].mxu0
        %v1027 = vadd.f32 %v391, %v1026
        %1028 = vmatprep.mubr.bf16.mxu0 0
        %1029 = vmatmul.mubr.bf16.gmra.mrb[0].mxu0 %v556
        %v1030 = vpop.f32.mrb[0].mxu0
        %v1031 = vadd.f32 %v387, %v1030
        %v1032 = vpop.f32.mrb[0].mxu0
        %v1033 = vadd.f32 %v391, %v1032
        %v1034 = vpop.f32.mrb[0].mxu0
        %v1035 = vadd.f32 %v387, %v1034
        %v1036 = vpop.f32.mrb[0].mxu0
        %v1037 = vadd.f32 %v391, %v1036
        %1038 = vmatprep.mubr.bf16.mxu0 0
        %1039 = vmatmul.mubr.bf16.gmra.mrb[0].mxu0 %v557
        %v1040 = vpop.f32.mrb[0].mxu0
        %v1041 = vadd.f32 %v387, %v1040
        %v1042 = vpop.f32.mrb[0].mxu0
        %v1043 = vadd.f32 %v391, %v1042
        %v1044 = vpop.f32.mrb[0].mxu0
        %v1045 = vadd.f32 %v387, %v1044
        %v1046 = vpop.f32.mrb[0].mxu0
        %v1047 = vadd.f32 %v391, %v1046
        %1048 = vmatprep.mubr.bf16.mxu0 0
        %1049 = vmatmul.mubr.bf16.gmra.mrb[0].mxu0 %v558
        %v1050 = vpop.f32.mrb[0].mxu0
        %v1051 = vadd.f32 %v387, %v1050
        %v1052 = vpop.f32.mrb[0].mxu0
        %v1053 = vadd.f32 %v391, %v1052
        %v1054 = vpop.f32.mrb[0].mxu0
        %v1055 = vadd.f32 %v387, %v1054
        %v1056 = vpop.f32.mrb[0].mxu0
        %v1057 = vadd.f32 %v391, %v1056
        %1058 = vmatprep.mubr.bf16.mxu0 0
        %1059 = vmatmul.mubr.bf16.gmra.mrb[0].mxu0 %v559
        %v1060 = vpop.f32.mrb[0].mxu0
        %v1061 = vadd.f32 %v387, %v1060
        %v1062 = vpop.f32.mrb[0].mxu0
        %v1063 = vadd.f32 %v391, %v1062
        %v1064 = vpop.f32.mrb[0].mxu0
        %v1065 = vadd.f32 %v387, %v1064
        %v1066 = vpop.f32.mrb[0].mxu0
        %v1067 = vadd.f32 %v391, %v1066
        %1068 = vmatprep.mubr.bf16.mxu0 0
        %1069 = vmatmul.mubr.bf16.gmra.mrb[0].mxu0 %v560
        %v1070 = vpop.f32.mrb[0].mxu0
        %v1071 = vadd.f32 %v387, %v1070
        %v1072 = vpop.f32.mrb[0].mxu0
        %v1073 = vadd.f32 %v391, %v1072
        %v1074 = vpop.f32.mrb[0].mxu0
        %v1075 = vadd.f32 %v387, %v1074
        %v1076 = vpop.f32.mrb[0].mxu0
        %v1077 = vadd.f32 %v391, %v1076
        %1078 = vmatprep.mubr.bf16.mxu0 0
        %1079 = vmatmul.mubr.bf16.gmra.mrb[0].mxu0 %v561
        %v1080 = vpop.f32.mrb[0].mxu0
        %v1081 = vadd.f32 %v387, %v1080
        %v1082 = vpop.f32.mrb[0].mxu0
        %v1083 = vadd.f32 %v391, %v1082
        %v1084 = vpop.f32.mrb[0].mxu0
        %v1085 = vadd.f32 %v387, %v1084
        %v1086 = vpop.f32.mrb[0].mxu0
        %v1087 = vadd.f32 %v391, %v1086
        %1088 = vmatprep.mubr.bf16.mxu0 0
        %1089 = vmatmul.mubr.bf16.gmra.mrb[0].mxu0 %v562
        %v1090 = vpop.f32.mrb[0].mxu0
        %v1091 = vadd.f32 %v387, %v1090
        %v1092 = vpop.f32.mrb[0].mxu0
        %v1093 = vadd.f32 %v391, %v1092
        %v1094 = vpop.f32.mrb[0].mxu0
        %v1095 = vadd.f32 %v387, %v1094
        %v1096 = vpop.f32.mrb[0].mxu0
        %v1097 = vadd.f32 %v391, %v1096
        %1098 = vmatprep.mubr.bf16.mxu0 0
        %1099 = vmatmul.mubr.bf16.gmra.mrb[0].mxu0 %v563
        %v1100 = vpop.f32.mrb[0].mxu0
        %v1101 = vadd.f32 %v387, %v1100
        %v1102 = vpop.f32.mrb[0].mxu0
        %v1103 = vadd.f32 %v391, %v1102
        %v1104 = vpop.f32.mrb[0].mxu0
        %v1105 = vadd.f32 %v387, %v1104
        %v1106 = vpop.f32.mrb[0].mxu0
        %v1107 = vadd.f32 %v391, %v1106
        %1108 = vdwg.mxu0
        %1109 = vmatprep.subr.bf16.mxu0 %v695
        %1110 = vmatpush1.bf16.msra.mxu0 %v694
        %1111 = vmatprep.subr.bf16.mxu0 %v699
        %1112 = vmatpush1.bf16.msra.mxu0 %v698
        %1113 = vmatprep.subr.bf16.mxu0 %v703
        %1114 = vmatpush1.bf16.msra.mxu0 %v702
        %1115 = vmatprep.subr.bf16.mxu0 %v707
        %1116 = vmatpush1.bf16.msra.mxu0 %v706
        %1117 = vmatprep.subr.bf16.mxu0 %v711
        %1118 = vmatpush1.bf16.msra.mxu0 %v710
        %1119 = vmatprep.subr.bf16.mxu0 %v715
        %1120 = vmatpush1.bf16.msra.mxu0 %v714
        %1121 = vmatprep.subr.bf16.mxu0 %v719
        %1122 = vmatpush1.bf16.msra.mxu0 %v718
        %1123 = vmatprep.subr.bf16.mxu0 %v723
        %1124 = vmatpush1.bf16.msra.mxu0 %v722
        %1125 = vmatprep.subr.bf16.mxu0 0
        %1126 = vmatpush1.bf16.msra.mxu0 0
        %1127 = vmatprep.subr.bf16.mxu0 0
        %1128 = vmatpush1.bf16.msra.mxu0 0
        %1129 = vmatprep.subr.bf16.mxu0 0
        %1130 = vmatpush1.bf16.msra.mxu0 0
        %1131 = vmatprep.subr.bf16.mxu0 0
        %1132 = vmatpush1.bf16.msra.mxu0 0
        %1133 = vmatprep.subr.bf16.mxu0 0
        %1134 = vmatpush1.bf16.msra.mxu0 0
        %1135 = vmatprep.subr.bf16.mxu0 0
        %1136 = vmatpush1.bf16.msra.mxu0 0
        %1137 = vmatprep.subr.bf16.mxu0 0
        %1138 = vmatpush1.bf16.msra.mxu0 0
        %1139 = vmatprep.subr.bf16.mxu0 0
        %1140 = vmatpush1.bf16.msra.mxu0 0
        %1141 = vmatprep.mubr.bf16.mxu0 0
        %1142 = vmatmul.mubr.bf16.gmra.mrb[0].mxu0 %v532
        %v1143 = vpop.f32.mrb[0].mxu0
        %v1144 = vadd.f32 %v395, %v1143
        %v1145 = vpop.f32.mrb[0].mxu0
        %v1146 = vadd.f32 %v399, %v1145
        %v1147 = vpop.f32.mrb[0].mxu0
        %v1148 = vadd.f32 %v395, %v1147
        %v1149 = vpop.f32.mrb[0].mxu0
        %v1150 = vadd.f32 %v399, %v1149
        %1151 = vmatprep.mubr.bf16.mxu0 0
        %1152 = vmatmul.mubr.bf16.gmra.mrb[0].mxu0 %v533
        %v1153 = vpop.f32.mrb[0].mxu0
        %v1154 = vadd.f32 %v395, %v1153
        %v1155 = vpop.f32.mrb[0].mxu0
        %v1156 = vadd.f32 %v399, %v1155
        %v1157 = vpop.f32.mrb[0].mxu0
        %v1158 = vadd.f32 %v395, %v1157
        %v1159 = vpop.f32.mrb[0].mxu0
        %v1160 = vadd.f32 %v399, %v1159
        %1161 = vmatprep.mubr.bf16.mxu0 0
        %1162 = vmatmul.mubr.bf16.gmra.mrb[0].mxu0 %v534
        %v1163 = vpop.f32.mrb[0].mxu0
        %v1164 = vadd.f32 %v395, %v1163
        %v1165 = vpop.f32.mrb[0].mxu0
        %v1166 = vadd.f32 %v399, %v1165
        %v1167 = vpop.f32.mrb[0].mxu0
        %v1168 = vadd.f32 %v395, %v1167
        %v1169 = vpop.f32.mrb[0].mxu0
        %v1170 = vadd.f32 %v399, %v1169
        %1171 = vmatprep.mubr.bf16.mxu0 0
        %1172 = vmatmul.mubr.bf16.gmra.mrb[0].mxu0 %v535
        %v1173 = vpop.f32.mrb[0].mxu0
        %v1174 = vadd.f32 %v395, %v1173
        %v1175 = vpop.f32.mrb[0].mxu0
        %v1176 = vadd.f32 %v399, %v1175
        %v1177 = vpop.f32.mrb[0].mxu0
        %v1178 = vadd.f32 %v395, %v1177
        %v1179 = vpop.f32.mrb[0].mxu0
        %v1180 = vadd.f32 %v399, %v1179
        %1181 = vmatprep.mubr.bf16.mxu0 0
        %1182 = vmatmul.mubr.bf16.gmra.mrb[0].mxu0 %v536
        %v1183 = vpop.f32.mrb[0].mxu0
        %v1184 = vadd.f32 %v395, %v1183
        %v1185 = vpop.f32.mrb[0].mxu0
        %v1186 = vadd.f32 %v399, %v1185
        %v1187 = vpop.f32.mrb[0].mxu0
        %v1188 = vadd.f32 %v395, %v1187
        %v1189 = vpop.f32.mrb[0].mxu0
        %v1190 = vadd.f32 %v399, %v1189
        %1191 = vmatprep.mubr.bf16.mxu0 0
        %1192 = vmatmul.mubr.bf16.gmra.mrb[0].mxu0 %v537
        %v1193 = vpop.f32.mrb[0].mxu0
        %v1194 = vadd.f32 %v395, %v1193
        %v1195 = vpop.f32.mrb[0].mxu0
        %v1196 = vadd.f32 %v399, %v1195
        %v1197 = vpop.f32.mrb[0].mxu0
        %v1198 = vadd.f32 %v395, %v1197
        %v1199 = vpop.f32.mrb[0].mxu0
        %v1200 = vadd.f32 %v399, %v1199
        %1201 = vmatprep.mubr.bf16.mxu0 0
        %1202 = vmatmul.mubr.bf16.gmra.mrb[0].mxu0 %v538
        %v1203 = vpop.f32.mrb[0].mxu0
        %v1204 = vadd.f32 %v395, %v1203
        %v1205 = vpop.f32.mrb[0].mxu0
        %v1206 = vadd.f32 %v399, %v1205
        %v1207 = vpop.f32.mrb[0].mxu0
        %v1208 = vadd.f32 %v395, %v1207
        %v1209 = vpop.f32.mrb[0].mxu0
        %v1210 = vadd.f32 %v399, %v1209
        %1211 = vmatprep.mubr.bf16.mxu0 0
        %1212 = vmatmul.mubr.bf16.gmra.mrb[0].mxu0 %v539
        %v1213 = vpop.f32.mrb[0].mxu0
        %v1214 = vadd.f32 %v395, %v1213
        %v1215 = vpop.f32.mrb[0].mxu0
        %v1216 = vadd.f32 %v399, %v1215
        %v1217 = vpop.f32.mrb[0].mxu0
        %v1218 = vadd.f32 %v395, %v1217
        %v1219 = vpop.f32.mrb[0].mxu0
        %v1220 = vadd.f32 %v399, %v1219
        %1221 = vmatprep.mubr.bf16.mxu0 0
        %1222 = vmatmul.mubr.bf16.gmra.mrb[0].mxu0 %v540
        %v1223 = vpop.f32.mrb[0].mxu0
        %v1224 = vadd.f32 %v395, %v1223
        %v1225 = vpop.f32.mrb[0].mxu0
        %v1226 = vadd.f32 %v399, %v1225
        %v1227 = vpop.f32.mrb[0].mxu0
        %v1228 = vadd.f32 %v395, %v1227
        %v1229 = vpop.f32.mrb[0].mxu0
        %v1230 = vadd.f32 %v399, %v1229
        %1231 = vmatprep.mubr.bf16.mxu0 0
        %1232 = vmatmul.mubr.bf16.gmra.mrb[0].mxu0 %v541
        %v1233 = vpop.f32.mrb[0].mxu0
        %v1234 = vadd.f32 %v395, %v1233
        %v1235 = vpop.f32.mrb[0].mxu0
        %v1236 = vadd.f32 %v399, %v1235
        %v1237 = vpop.f32.mrb[0].mxu0
        %v1238 = vadd.f32 %v395, %v1237
        %v1239 = vpop.f32.mrb[0].mxu0
        %v1240 = vadd.f32 %v399, %v1239
        %1241 = vmatprep.mubr.bf16.mxu0 0
        %1242 = vmatmul.mubr.bf16.gmra.mrb[0].mxu0 %v542
        %v1243 = vpop.f32.mrb[0].mxu0
        %v1244 = vadd.f32 %v395, %v1243
        %v1245 = vpop.f32.mrb[0].mxu0
        %v1246 = vadd.f32 %v399, %v1245
        %v1247 = vpop.f32.mrb[0].mxu0
        %v1248 = vadd.f32 %v395, %v1247
        %v1249 = vpop.f32.mrb[0].mxu0
        %v1250 = vadd.f32 %v399, %v1249
        %1251 = vmatprep.mubr.bf16.mxu0 0
        %1252 = vmatmul.mubr.bf16.gmra.mrb[0].mxu0 %v543
        %v1253 = vpop.f32.mrb[0].mxu0
        %v1254 = vadd.f32 %v395, %v1253
        %v1255 = vpop.f32.mrb[0].mxu0
        %v1256 = vadd.f32 %v399, %v1255
        %v1257 = vpop.f32.mrb[0].mxu0
        %v1258 = vadd.f32 %v395, %v1257
        %v1259 = vpop.f32.mrb[0].mxu0
        %v1260 = vadd.f32 %v399, %v1259
        %1261 = vmatprep.mubr.bf16.mxu0 0
        %1262 = vmatmul.mubr.bf16.gmra.mrb[0].mxu0 %v544
        %v1263 = vpop.f32.mrb[0].mxu0
        %v1264 = vadd.f32 %v395, %v1263
        %v1265 = vpop.f32.mrb[0].mxu0
        %v1266 = vadd.f32 %v399, %v1265
        %v1267 = vpop.f32.mrb[0].mxu0
        %v1268 = vadd.f32 %v395, %v1267
        %v1269 = vpop.f32.mrb[0].mxu0
        %v1270 = vadd.f32 %v399, %v1269
        %1271 = vmatprep.mubr.bf16.mxu0 0
        %1272 = vmatmul.mubr.bf16.gmra.mrb[0].mxu0 %v545
        %v1273 = vpop.f32.mrb[0].mxu0
        %v1274 = vadd.f32 %v395, %v1273
        %v1275 = vpop.f32.mrb[0].mxu0
        %v1276 = vadd.f32 %v399, %v1275
        %v1277 = vpop.f32.mrb[0].mxu0
        %v1278 = vadd.f32 %v395, %v1277
        %v1279 = vpop.f32.mrb[0].mxu0
        %v1280 = vadd.f32 %v399, %v1279
        %1281 = vmatprep.mubr.bf16.mxu0 0
        %1282 = vmatmul.mubr.bf16.gmra.mrb[0].mxu0 %v546
        %v1283 = vpop.f32.mrb[0].mxu0
        %v1284 = vadd.f32 %v395, %v1283
        %v1285 = vpop.f32.mrb[0].mxu0
        %v1286 = vadd.f32 %v399, %v1285
        %v1287 = vpop.f32.mrb[0].mxu0
        %v1288 = vadd.f32 %v395, %v1287
        %v1289 = vpop.f32.mrb[0].mxu0
        %v1290 = vadd.f32 %v399, %v1289
        %1291 = vmatprep.mubr.bf16.mxu0 0
        %1292 = vmatmul.mubr.bf16.gmra.mrb[0].mxu0 %v547
        %v1293 = vpop.f32.mrb[0].mxu0
        %v1294 = vadd.f32 %v395, %v1293
        %v1295 = vpop.f32.mrb[0].mxu0
        %v1296 = vadd.f32 %v399, %v1295
        %v1297 = vpop.f32.mrb[0].mxu0
        %v1298 = vadd.f32 %v395, %v1297
        %v1299 = vpop.f32.mrb[0].mxu0
        %v1300 = vadd.f32 %v399, %v1299
        %1301 = vmatprep.mubr.bf16.mxu0 0
        %1302 = vmatmul.mubr.bf16.gmra.mrb[0].mxu0 %v548
        %v1303 = vpop.f32.mrb[0].mxu0
        %v1304 = vadd.f32 %v395, %v1303
        %v1305 = vpop.f32.mrb[0].mxu0
        %v1306 = vadd.f32 %v399, %v1305
        %v1307 = vpop.f32.mrb[0].mxu0
        %v1308 = vadd.f32 %v395, %v1307
        %v1309 = vpop.f32.mrb[0].mxu0
        %v1310 = vadd.f32 %v399, %v1309
        %1311 = vmatprep.mubr.bf16.mxu0 0
        %1312 = vmatmul.mubr.bf16.gmra.mrb[0].mxu0 %v549
        %v1313 = vpop.f32.mrb[0].mxu0
        %v1314 = vadd.f32 %v395, %v1313
        %v1315 = vpop.f32.mrb[0].mxu0
        %v1316 = vadd.f32 %v399, %v1315
        %v1317 = vpop.f32.mrb[0].mxu0
        %v1318 = vadd.f32 %v395, %v1317
        %v1319 = vpop.f32.mrb[0].mxu0
        %v1320 = vadd.f32 %v399, %v1319
        %1321 = vmatprep.mubr.bf16.mxu0 0
        %1322 = vmatmul.mubr.bf16.gmra.mrb[0].mxu0 %v550
        %v1323 = vpop.f32.mrb[0].mxu0
        %v1324 = vadd.f32 %v395, %v1323
        %v1325 = vpop.f32.mrb[0].mxu0
        %v1326 = vadd.f32 %v399, %v1325
        %v1327 = vpop.f32.mrb[0].mxu0
        %v1328 = vadd.f32 %v395, %v1327
        %v1329 = vpop.f32.mrb[0].mxu0
        %v1330 = vadd.f32 %v399, %v1329
        %1331 = vmatprep.mubr.bf16.mxu0 0
        %1332 = vmatmul.mubr.bf16.gmra.mrb[0].mxu0 %v551
        %v1333 = vpop.f32.mrb[0].mxu0
        %v1334 = vadd.f32 %v395, %v1333
        %v1335 = vpop.f32.mrb[0].mxu0
        %v1336 = vadd.f32 %v399, %v1335
        %v1337 = vpop.f32.mrb[0].mxu0
        %v1338 = vadd.f32 %v395, %v1337
        %v1339 = vpop.f32.mrb[0].mxu0
        %v1340 = vadd.f32 %v399, %v1339
        %1341 = vmatprep.mubr.bf16.mxu0 0
        %1342 = vmatmul.mubr.bf16.gmra.mrb[0].mxu0 %v552
        %v1343 = vpop.f32.mrb[0].mxu0
        %v1344 = vadd.f32 %v395, %v1343
        %v1345 = vpop.f32.mrb[0].mxu0
        %v1346 = vadd.f32 %v399, %v1345
        %v1347 = vpop.f32.mrb[0].mxu0
        %v1348 = vadd.f32 %v395, %v1347
        %v1349 = vpop.f32.mrb[0].mxu0
        %v1350 = vadd.f32 %v399, %v1349
        %1351 = vmatprep.mubr.bf16.mxu0 0
        %1352 = vmatmul.mubr.bf16.gmra.mrb[0].mxu0 %v553
        %v1353 = vpop.f32.mrb[0].mxu0
        %v1354 = vadd.f32 %v395, %v1353
        %v1355 = vpop.f32.mrb[0].mxu0
        %v1356 = vadd.f32 %v399, %v1355
        %v1357 = vpop.f32.mrb[0].mxu0
        %v1358 = vadd.f32 %v395, %v1357
        %v1359 = vpop.f32.mrb[0].mxu0
        %v1360 = vadd.f32 %v399, %v1359
        %1361 = vmatprep.mubr.bf16.mxu0 0
        %1362 = vmatmul.mubr.bf16.gmra.mrb[0].mxu0 %v554
        %v1363 = vpop.f32.mrb[0].mxu0
        %v1364 = vadd.f32 %v395, %v1363
        %v1365 = vpop.f32.mrb[0].mxu0
        %v1366 = vadd.f32 %v399, %v1365
        %v1367 = vpop.f32.mrb[0].mxu0
        %v1368 = vadd.f32 %v395, %v1367
        %v1369 = vpop.f32.mrb[0].mxu0
        %v1370 = vadd.f32 %v399, %v1369
        %1371 = vmatprep.mubr.bf16.mxu0 0
        %1372 = vmatmul.mubr.bf16.gmra.mrb[0].mxu0 %v555
        %v1373 = vpop.f32.mrb[0].mxu0
        %v1374 = vadd.f32 %v395, %v1373
        %v1375 = vpop.f32.mrb[0].mxu0
        %v1376 = vadd.f32 %v399, %v1375
        %v1377 = vpop.f32.mrb[0].mxu0
        %v1378 = vadd.f32 %v395, %v1377
        %v1379 = vpop.f32.mrb[0].mxu0
        %v1380 = vadd.f32 %v399, %v1379
        %1381 = vmatprep.mubr.bf16.mxu0 0
        %1382 = vmatmul.mubr.bf16.gmra.mrb[0].mxu0 %v556
        %v1383 = vpop.f32.mrb[0].mxu0
        %v1384 = vadd.f32 %v395, %v1383
        %v1385 = vpop.f32.mrb[0].mxu0
        %v1386 = vadd.f32 %v399, %v1385
        %v1387 = vpop.f32.mrb[0].mxu0
        %v1388 = vadd.f32 %v395, %v1387
        %v1389 = vpop.f32.mrb[0].mxu0
        %v1390 = vadd.f32 %v399, %v1389
        %1391 = vmatprep.mubr.bf16.mxu0 0
        %1392 = vmatmul.mubr.bf16.gmra.mrb[0].mxu0 %v557
        %v1393 = vpop.f32.mrb[0].mxu0
        %v1394 = vadd.f32 %v395, %v1393
        %v1395 = vpop.f32.mrb[0].mxu0
        %v1396 = vadd.f32 %v399, %v1395
        %v1397 = vpop.f32.mrb[0].mxu0
        %v1398 = vadd.f32 %v395, %v1397
        %v1399 = vpop.f32.mrb[0].mxu0
        %v1400 = vadd.f32 %v399, %v1399
        %1401 = vmatprep.mubr.bf16.mxu0 0
        %1402 = vmatmul.mubr.bf16.gmra.mrb[0].mxu0 %v558
        %v1403 = vpop.f32.mrb[0].mxu0
        %v1404 = vadd.f32 %v395, %v1403
        %v1405 = vpop.f32.mrb[0].mxu0
        %v1406 = vadd.f32 %v399, %v1405
        %v1407 = vpop.f32.mrb[0].mxu0
        %v1408 = vadd.f32 %v395, %v1407
        %v1409 = vpop.f32.mrb[0].mxu0
        %v1410 = vadd.f32 %v399, %v1409
        %1411 = vmatprep.mubr.bf16.mxu0 0
        %1412 = vmatmul.mubr.bf16.gmra.mrb[0].mxu0 %v559
        %v1413 = vpop.f32.mrb[0].mxu0
        %v1414 = vadd.f32 %v395, %v1413
        %v1415 = vpop.f32.mrb[0].mxu0
        %v1416 = vadd.f32 %v399, %v1415
        %v1417 = vpop.f32.mrb[0].mxu0
        %v1418 = vadd.f32 %v395, %v1417
        %v1419 = vpop.f32.mrb[0].mxu0
        %v1420 = vadd.f32 %v399, %v1419
        %1421 = vmatprep.mubr.bf16.mxu0 0
        %1422 = vmatmul.mubr.bf16.gmra.mrb[0].mxu0 %v560
        %v1423 = vpop.f32.mrb[0].mxu0
        %v1424 = vadd.f32 %v395, %v1423
        %v1425 = vpop.f32.mrb[0].mxu0
        %v1426 = vadd.f32 %v399, %v1425
        %v1427 = vpop.f32.mrb[0].mxu0
        %v1428 = vadd.f32 %v395, %v1427
        %v1429 = vpop.f32.mrb[0].mxu0
        %v1430 = vadd.f32 %v399, %v1429
        %1431 = vmatprep.mubr.bf16.mxu0 0
        %1432 = vmatmul.mubr.bf16.gmra.mrb[0].mxu0 %v561
        %v1433 = vpop.f32.mrb[0].mxu0
        %v1434 = vadd.f32 %v395, %v1433
        %v1435 = vpop.f32.mrb[0].mxu0
        %v1436 = vadd.f32 %v399, %v1435
        %v1437 = vpop.f32.mrb[0].mxu0
        %v1438 = vadd.f32 %v395, %v1437
        %v1439 = vpop.f32.mrb[0].mxu0
        %v1440 = vadd.f32 %v399, %v1439
        %1441 = vmatprep.mubr.bf16.mxu0 0
        %1442 = vmatmul.mubr.bf16.gmra.mrb[0].mxu0 %v562
        %v1443 = vpop.f32.mrb[0].mxu0
        %v1444 = vadd.f32 %v395, %v1443
        %v1445 = vpop.f32.mrb[0].mxu0
        %v1446 = vadd.f32 %v399, %v1445
        %v1447 = vpop.f32.mrb[0].mxu0
        %v1448 = vadd.f32 %v395, %v1447
        %v1449 = vpop.f32.mrb[0].mxu0
        %v1450 = vadd.f32 %v399, %v1449
        %1451 = vmatprep.mubr.bf16.mxu0 0
        %1452 = vmatmul.mubr.bf16.gmra.mrb[0].mxu0 %v563
        %v1453 = vpop.f32.mrb[0].mxu0
        %v1454 = vadd.f32 %v395, %v1453
        %v1455 = vpop.f32.mrb[0].mxu0
        %v1456 = vadd.f32 %v399, %v1455
        %v1457 = vpop.f32.mrb[0].mxu0
        %v1458 = vadd.f32 %v395, %v1457
        %v1459 = vpop.f32.mrb[0].mxu0
        %v1460 = vadd.f32 %v399, %v1459
        %1461 = vdwg.mxu0
        %v1462 = vmax.f32 %v791, 0.0
        %v1463 = vmax.f32 %v793, 0.0
        %v1464 = vmax.f32 %v1144, 0.0
        %v1465 = vmax.f32 %v1146, 0.0
        %v1466 = vmax.f32 %v795, 0.0
        %v1467 = vmax.f32 %v797, 0.0
        %v1468 = vmax.f32 %v1148, 0.0
        %v1469 = vmax.f32 %v1150, 0.0
        %v1470 = vmax.f32 %v801, 0.0
        %v1471 = vmax.f32 %v803, 0.0
        %v1472 = vmax.f32 %v1154, 0.0
        %v1473 = vmax.f32 %v1156, 0.0
        %v1474 = vmax.f32 %v805, 0.0
        %v1475 = vmax.f32 %v807, 0.0
        %v1476 = vmax.f32 %v1158, 0.0
        %v1477 = vmax.f32 %v1160, 0.0
        %v1478 = vmax.f32 %v811, 0.0
        %v1479 = vmax.f32 %v813, 0.0
        %v1480 = vmax.f32 %v1164, 0.0
        %v1481 = vmax.f32 %v1166, 0.0
        %v1482 = vmax.f32 %v815, 0.0
        %v1483 = vmax.f32 %v817, 0.0
        %v1484 = vmax.f32 %v1168, 0.0
        %v1485 = vmax.f32 %v1170, 0.0
        %v1486 = vmax.f32 %v821, 0.0
        %v1487 = vmax.f32 %v823, 0.0
        %v1488 = vmax.f32 %v1174, 0.0
        %v1489 = vmax.f32 %v1176, 0.0
        %v1490 = vmax.f32 %v825, 0.0
        %v1491 = vmax.f32 %v827, 0.0
        %v1492 = vmax.f32 %v1178, 0.0
        %v1493 = vmax.f32 %v1180, 0.0
        %v1494 = vmax.f32 %v831, 0.0
        %v1495 = vmax.f32 %v833, 0.0
        %v1496 = vmax.f32 %v1184, 0.0
        %v1497 = vmax.f32 %v1186, 0.0
        %v1498 = vmax.f32 %v835, 0.0
        %v1499 = vmax.f32 %v837, 0.0
        %v1500 = vmax.f32 %v1188, 0.0
        %v1501 = vmax.f32 %v1190, 0.0
        %v1502 = vmax.f32 %v841, 0.0
        %v1503 = vmax.f32 %v843, 0.0
        %v1504 = vmax.f32 %v1194, 0.0
        %v1505 = vmax.f32 %v1196, 0.0
        %v1506 = vmax.f32 %v845, 0.0
        %v1507 = vmax.f32 %v847, 0.0
        %v1508 = vmax.f32 %v1198, 0.0
        %v1509 = vmax.f32 %v1200, 0.0
        %v1510 = vmax.f32 %v851, 0.0
        %v1511 = vmax.f32 %v853, 0.0
        %v1512 = vmax.f32 %v1204, 0.0
        %v1513 = vmax.f32 %v1206, 0.0
        %v1514 = vmax.f32 %v855, 0.0
        %v1515 = vmax.f32 %v857, 0.0
        %v1516 = vmax.f32 %v1208, 0.0
        %v1517 = vmax.f32 %v1210, 0.0
        %v1518 = vmax.f32 %v861, 0.0
        %v1519 = vmax.f32 %v863, 0.0
        %v1520 = vmax.f32 %v1214, 0.0
        %v1521 = vmax.f32 %v1216, 0.0
        %v1522 = vmax.f32 %v865, 0.0
        %v1523 = vmax.f32 %v867, 0.0
        %v1524 = vmax.f32 %v1218, 0.0
        %v1525 = vmax.f32 %v1220, 0.0
        %v1526 = vmax.f32 %v871, 0.0
        %v1527 = vmax.f32 %v873, 0.0
        %v1528 = vmax.f32 %v1224, 0.0
        %v1529 = vmax.f32 %v1226, 0.0
        %v1530 = vmax.f32 %v875, 0.0
        %v1531 = vmax.f32 %v877, 0.0
        %v1532 = vmax.f32 %v1228, 0.0
        %v1533 = vmax.f32 %v1230, 0.0
        %v1534 = vmax.f32 %v881, 0.0
        %v1535 = vmax.f32 %v883, 0.0
        %v1536 = vmax.f32 %v1234, 0.0
        %v1537 = vmax.f32 %v1236, 0.0
        %v1538 = vmax.f32 %v885, 0.0
        %v1539 = vmax.f32 %v887, 0.0
        %v1540 = vmax.f32 %v1238, 0.0
        %v1541 = vmax.f32 %v1240, 0.0
        %v1542 = vmax.f32 %v891, 0.0
        %v1543 = vmax.f32 %v893, 0.0
        %v1544 = vmax.f32 %v1244, 0.0
        %v1545 = vmax.f32 %v1246, 0.0
        %v1546 = vmax.f32 %v895, 0.0
        %v1547 = vmax.f32 %v897, 0.0
        %v1548 = vmax.f32 %v1248, 0.0
        %v1549 = vmax.f32 %v1250, 0.0
        %v1550 = vmax.f32 %v901, 0.0
        %v1551 = vmax.f32 %v903, 0.0
        %v1552 = vmax.f32 %v1254, 0.0
        %v1553 = vmax.f32 %v1256, 0.0
        %v1554 = vmax.f32 %v905, 0.0
        %v1555 = vmax.f32 %v907, 0.0
        %v1556 = vmax.f32 %v1258, 0.0
        %v1557 = vmax.f32 %v1260, 0.0
        %v1558 = vmax.f32 %v911, 0.0
        %v1559 = vmax.f32 %v913, 0.0
        %v1560 = vmax.f32 %v1264, 0.0
        %v1561 = vmax.f32 %v1266, 0.0
        %v1562 = vmax.f32 %v915, 0.0
        %v1563 = vmax.f32 %v917, 0.0
        %v1564 = vmax.f32 %v1268, 0.0
        %v1565 = vmax.f32 %v1270, 0.0
        %v1566 = vmax.f32 %v921, 0.0
        %v1567 = vmax.f32 %v923, 0.0
        %v1568 = vmax.f32 %v1274, 0.0
        %v1569 = vmax.f32 %v1276, 0.0
        %v1570 = vmax.f32 %v925, 0.0
        %v1571 = vmax.f32 %v927, 0.0
        %v1572 = vmax.f32 %v1278, 0.0
        %v1573 = vmax.f32 %v1280, 0.0
        %v1574 = vmax.f32 %v931, 0.0
        %v1575 = vmax.f32 %v933, 0.0
        %v1576 = vmax.f32 %v1284, 0.0
        %v1577 = vmax.f32 %v1286, 0.0
        %v1578 = vmax.f32 %v935, 0.0
        %v1579 = vmax.f32 %v937, 0.0
        %v1580 = vmax.f32 %v1288, 0.0
        %v1581 = vmax.f32 %v1290, 0.0
        %v1582 = vmax.f32 %v941, 0.0
        %v1583 = vmax.f32 %v943, 0.0
        %v1584 = vmax.f32 %v1294, 0.0
        %v1585 = vmax.f32 %v1296, 0.0
        %v1586 = vmax.f32 %v945, 0.0
        %v1587 = vmax.f32 %v947, 0.0
        %v1588 = vmax.f32 %v1298, 0.0
        %v1589 = vmax.f32 %v1300, 0.0
        %v1590 = vmax.f32 %v951, 0.0
        %v1591 = vmax.f32 %v953, 0.0
        %v1592 = vmax.f32 %v1304, 0.0
        %v1593 = vmax.f32 %v1306, 0.0
        %v1594 = vmax.f32 %v955, 0.0
        %v1595 = vmax.f32 %v957, 0.0
        %v1596 = vmax.f32 %v1308, 0.0
        %v1597 = vmax.f32 %v1310, 0.0
        %v1598 = vmax.f32 %v961, 0.0
        %v1599 = vmax.f32 %v963, 0.0
        %v1600 = vmax.f32 %v1314, 0.0
        %v1601 = vmax.f32 %v1316, 0.0
        %v1602 = vmax.f32 %v965, 0.0
        %v1603 = vmax.f32 %v967, 0.0
        %v1604 = vmax.f32 %v1318, 0.0
        %v1605 = vmax.f32 %v1320, 0.0
        %v1606 = vmax.f32 %v971, 0.0
        %v1607 = vmax.f32 %v973, 0.0
        %v1608 = vmax.f32 %v1324, 0.0
        %v1609 = vmax.f32 %v1326, 0.0
        %v1610 = vmax.f32 %v975, 0.0
        %v1611 = vmax.f32 %v977, 0.0
        %v1612 = vmax.f32 %v1328, 0.0
        %v1613 = vmax.f32 %v1330, 0.0
        %v1614 = vmax.f32 %v981, 0.0
        %v1615 = vmax.f32 %v983, 0.0
        %v1616 = vmax.f32 %v1334, 0.0
        %v1617 = vmax.f32 %v1336, 0.0
        %v1618 = vmax.f32 %v985, 0.0
        %v1619 = vmax.f32 %v987, 0.0
        %v1620 = vmax.f32 %v1338, 0.0
        %v1621 = vmax.f32 %v1340, 0.0
        %v1622 = vmax.f32 %v991, 0.0
        %v1623 = vmax.f32 %v993, 0.0
        %v1624 = vmax.f32 %v1344, 0.0
        %v1625 = vmax.f32 %v1346, 0.0
        %v1626 = vmax.f32 %v995, 0.0
        %v1627 = vmax.f32 %v997, 0.0
        %v1628 = vmax.f32 %v1348, 0.0
        %v1629 = vmax.f32 %v1350, 0.0
        %v1630 = vmax.f32 %v1001, 0.0
        %v1631 = vmax.f32 %v1003, 0.0
        %v1632 = vmax.f32 %v1354, 0.0
        %v1633 = vmax.f32 %v1356, 0.0
        %v1634 = vmax.f32 %v1005, 0.0
        %v1635 = vmax.f32 %v1007, 0.0
        %v1636 = vmax.f32 %v1358, 0.0
        %v1637 = vmax.f32 %v1360, 0.0
        %v1638 = vmax.f32 %v1011, 0.0
        %v1639 = vmax.f32 %v1013, 0.0
        %v1640 = vmax.f32 %v1364, 0.0
        %v1641 = vmax.f32 %v1366, 0.0
        %v1642 = vmax.f32 %v1015, 0.0
        %v1643 = vmax.f32 %v1017, 0.0
        %v1644 = vmax.f32 %v1368, 0.0
        %v1645 = vmax.f32 %v1370, 0.0
        %v1646 = vmax.f32 %v1021, 0.0
        %v1647 = vmax.f32 %v1023, 0.0
        %v1648 = vmax.f32 %v1374, 0.0
        %v1649 = vmax.f32 %v1376, 0.0
        %v1650 = vmax.f32 %v1025, 0.0
        %v1651 = vmax.f32 %v1027, 0.0
        %v1652 = vmax.f32 %v1378, 0.0
        %v1653 = vmax.f32 %v1380, 0.0
        %v1654 = vmax.f32 %v1031, 0.0
        %v1655 = vmax.f32 %v1033, 0.0
        %v1656 = vmax.f32 %v1384, 0.0
        %v1657 = vmax.f32 %v1386, 0.0
        %v1658 = vmax.f32 %v1035, 0.0
        %v1659 = vmax.f32 %v1037, 0.0
        %v1660 = vmax.f32 %v1388, 0.0
        %v1661 = vmax.f32 %v1390, 0.0
        %v1662 = vmax.f32 %v1041, 0.0
        %v1663 = vmax.f32 %v1043, 0.0
        %v1664 = vmax.f32 %v1394, 0.0
        %v1665 = vmax.f32 %v1396, 0.0
        %v1666 = vmax.f32 %v1045, 0.0
        %v1667 = vmax.f32 %v1047, 0.0
        %v1668 = vmax.f32 %v1398, 0.0
        %v1669 = vmax.f32 %v1400, 0.0
        %v1670 = vmax.f32 %v1051, 0.0
        %v1671 = vmax.f32 %v1053, 0.0
        %v1672 = vmax.f32 %v1404, 0.0
        %v1673 = vmax.f32 %v1406, 0.0
        %v1674 = vmax.f32 %v1055, 0.0
        %v1675 = vmax.f32 %v1057, 0.0
        %v1676 = vmax.f32 %v1408, 0.0
        %v1677 = vmax.f32 %v1410, 0.0
        %v1678 = vmax.f32 %v1061, 0.0
        %v1679 = vmax.f32 %v1063, 0.0
        %v1680 = vmax.f32 %v1414, 0.0
        %v1681 = vmax.f32 %v1416, 0.0
        %v1682 = vmax.f32 %v1065, 0.0
        %v1683 = vmax.f32 %v1067, 0.0
        %v1684 = vmax.f32 %v1418, 0.0
        %v1685 = vmax.f32 %v1420, 0.0
        %v1686 = vmax.f32 %v1071, 0.0
        %v1687 = vmax.f32 %v1073, 0.0
        %v1688 = vmax.f32 %v1424, 0.0
        %v1689 = vmax.f32 %v1426, 0.0
        %v1690 = vmax.f32 %v1075, 0.0
        %v1691 = vmax.f32 %v1077, 0.0
        %v1692 = vmax.f32 %v1428, 0.0
        %v1693 = vmax.f32 %v1430, 0.0
        %v1694 = vmax.f32 %v1081, 0.0
        %v1695 = vmax.f32 %v1083, 0.0
        %v1696 = vmax.f32 %v1434, 0.0
        %v1697 = vmax.f32 %v1436, 0.0
        %v1698 = vmax.f32 %v1085, 0.0
        %v1699 = vmax.f32 %v1087, 0.0
        %v1700 = vmax.f32 %v1438, 0.0
        %v1701 = vmax.f32 %v1440, 0.0
        %v1702 = vmax.f32 %v1091, 0.0
        %v1703 = vmax.f32 %v1093, 0.0
        %v1704 = vmax.f32 %v1444, 0.0
        %v1705 = vmax.f32 %v1446, 0.0
        %v1706 = vmax.f32 %v1095, 0.0
        %v1707 = vmax.f32 %v1097, 0.0
        %v1708 = vmax.f32 %v1448, 0.0
        %v1709 = vmax.f32 %v1450, 0.0
        %v1710 = vmax.f32 %v1101, 0.0
        %v1711 = vmax.f32 %v1103, 0.0
        %v1712 = vmax.f32 %v1454, 0.0
        %v1713 = vmax.f32 %v1456, 0.0
        %v1714 = vmax.f32 %v1105, 0.0
        %v1715 = vmax.f32 %v1107, 0.0
        %v1716 = vmax.f32 %v1458, 0.0
        %v1717 = vmax.f32 %v1460, 0.0
        %v1718 = vpack.c.bf16 %v1466, %v1462
        %v1719 = vpack.c.bf16 %v1467, %v1463
        %v1720 = vpack.c.bf16 %v1468, %v1464
        %v1721 = vpack.c.bf16 %v1469, %v1465
        %v1722 = vpack.c.bf16 %v1474, %v1470
        %v1723 = vpack.c.bf16 %v1475, %v1471
        %v1724 = vpack.c.bf16 %v1476, %v1472
        %v1725 = vpack.c.bf16 %v1477, %v1473
        %v1726 = vpack.c.bf16 %v1482, %v1478
        %v1727 = vpack.c.bf16 %v1483, %v1479
        %v1728 = vpack.c.bf16 %v1484, %v1480
        %v1729 = vpack.c.bf16 %v1485, %v1481
        %v1730 = vpack.c.bf16 %v1490, %v1486
        %v1731 = vpack.c.bf16 %v1491, %v1487
        %v1732 = vpack.c.bf16 %v1492, %v1488
        %v1733 = vpack.c.bf16 %v1493, %v1489
        %v1734 = vpack.c.bf16 %v1498, %v1494
        %v1735 = vpack.c.bf16 %v1499, %v1495
        %v1736 = vpack.c.bf16 %v1500, %v1496
        %v1737 = vpack.c.bf16 %v1501, %v1497
        %v1738 = vpack.c.bf16 %v1506, %v1502
        %v1739 = vpack.c.bf16 %v1507, %v1503
        %v1740 = vpack.c.bf16 %v1508, %v1504
        %v1741 = vpack.c.bf16 %v1509, %v1505
        %v1742 = vpack.c.bf16 %v1514, %v1510
        %v1743 = vpack.c.bf16 %v1515, %v1511
        %v1744 = vpack.c.bf16 %v1516, %v1512
        %v1745 = vpack.c.bf16 %v1517, %v1513
        %v1746 = vpack.c.bf16 %v1522, %v1518
        %v1747 = vpack.c.bf16 %v1523, %v1519
        %v1748 = vpack.c.bf16 %v1524, %v1520
        %v1749 = vpack.c.bf16 %v1525, %v1521
        %v1750 = vpack.c.bf16 %v1530, %v1526
        %v1751 = vpack.c.bf16 %v1531, %v1527
        %v1752 = vpack.c.bf16 %v1532, %v1528
        %v1753 = vpack.c.bf16 %v1533, %v1529
        %v1754 = vpack.c.bf16 %v1538, %v1534
        %v1755 = vpack.c.bf16 %v1539, %v1535
        %v1756 = vpack.c.bf16 %v1540, %v1536
        %v1757 = vpack.c.bf16 %v1541, %v1537
        %v1758 = vpack.c.bf16 %v1546, %v1542
        %v1759 = vpack.c.bf16 %v1547, %v1543
        %v1760 = vpack.c.bf16 %v1548, %v1544
        %v1761 = vpack.c.bf16 %v1549, %v1545
        %v1762 = vpack.c.bf16 %v1554, %v1550
        %v1763 = vpack.c.bf16 %v1555, %v1551
        %v1764 = vpack.c.bf16 %v1556, %v1552
        %v1765 = vpack.c.bf16 %v1557, %v1553
        %v1766 = vpack.c.bf16 %v1562, %v1558
        %v1767 = vpack.c.bf16 %v1563, %v1559
        %v1768 = vpack.c.bf16 %v1564, %v1560
        %v1769 = vpack.c.bf16 %v1565, %v1561
        %v1770 = vpack.c.bf16 %v1570, %v1566
        %v1771 = vpack.c.bf16 %v1571, %v1567
        %v1772 = vpack.c.bf16 %v1572, %v1568
        %v1773 = vpack.c.bf16 %v1573, %v1569
        %v1774 = vpack.c.bf16 %v1578, %v1574
        %v1775 = vpack.c.bf16 %v1579, %v1575
        %v1776 = vpack.c.bf16 %v1580, %v1576
        %v1777 = vpack.c.bf16 %v1581, %v1577
        %v1778 = vpack.c.bf16 %v1586, %v1582
        %v1779 = vpack.c.bf16 %v1587, %v1583
        %v1780 = vpack.c.bf16 %v1588, %v1584
        %v1781 = vpack.c.bf16 %v1589, %v1585
        %v1782 = vpack.c.bf16 %v1594, %v1590
        %v1783 = vpack.c.bf16 %v1595, %v1591
        %v1784 = vpack.c.bf16 %v1596, %v1592
        %v1785 = vpack.c.bf16 %v1597, %v1593
        %v1786 = vpack.c.bf16 %v1602, %v1598
        %v1787 = vpack.c.bf16 %v1603, %v1599
        %v1788 = vpack.c.bf16 %v1604, %v1600
        %v1789 = vpack.c.bf16 %v1605, %v1601
        %v1790 = vpack.c.bf16 %v1610, %v1606
        %v1791 = vpack.c.bf16 %v1611, %v1607
        %v1792 = vpack.c.bf16 %v1612, %v1608
        %v1793 = vpack.c.bf16 %v1613, %v1609
        %v1794 = vpack.c.bf16 %v1618, %v1614
        %v1795 = vpack.c.bf16 %v1619, %v1615
        %v1796 = vpack.c.bf16 %v1620, %v1616
        %v1797 = vpack.c.bf16 %v1621, %v1617
        %v1798 = vpack.c.bf16 %v1626, %v1622
        %v1799 = vpack.c.bf16 %v1627, %v1623
        %v1800 = vpack.c.bf16 %v1628, %v1624
        %v1801 = vpack.c.bf16 %v1629, %v1625
        %v1802 = vpack.c.bf16 %v1634, %v1630
        %v1803 = vpack.c.bf16 %v1635, %v1631
        %v1804 = vpack.c.bf16 %v1636, %v1632
        %v1805 = vpack.c.bf16 %v1637, %v1633
        %v1806 = vpack.c.bf16 %v1642, %v1638
        %v1807 = vpack.c.bf16 %v1643, %v1639
        %v1808 = vpack.c.bf16 %v1644, %v1640
        %v1809 = vpack.c.bf16 %v1645, %v1641
        %v1810 = vpack.c.bf16 %v1650, %v1646
        %v1811 = vpack.c.bf16 %v1651, %v1647
        %v1812 = vpack.c.bf16 %v1652, %v1648
        %v1813 = vpack.c.bf16 %v1653, %v1649
        %v1814 = vpack.c.bf16 %v1658, %v1654
        %v1815 = vpack.c.bf16 %v1659, %v1655
        %v1816 = vpack.c.bf16 %v1660, %v1656
        %v1817 = vpack.c.bf16 %v1661, %v1657
        %v1818 = vpack.c.bf16 %v1666, %v1662
        %v1819 = vpack.c.bf16 %v1667, %v1663
        %v1820 = vpack.c.bf16 %v1668, %v1664
        %v1821 = vpack.c.bf16 %v1669, %v1665
        %v1822 = vpack.c.bf16 %v1674, %v1670
        %v1823 = vpack.c.bf16 %v1675, %v1671
        %v1824 = vpack.c.bf16 %v1676, %v1672
        %v1825 = vpack.c.bf16 %v1677, %v1673
        %v1826 = vpack.c.bf16 %v1682, %v1678
        %v1827 = vpack.c.bf16 %v1683, %v1679
        %v1828 = vpack.c.bf16 %v1684, %v1680
        %v1829 = vpack.c.bf16 %v1685, %v1681
        %v1830 = vpack.c.bf16 %v1690, %v1686
        %v1831 = vpack.c.bf16 %v1691, %v1687
        %v1832 = vpack.c.bf16 %v1692, %v1688
        %v1833 = vpack.c.bf16 %v1693, %v1689
        %v1834 = vpack.c.bf16 %v1698, %v1694
        %v1835 = vpack.c.bf16 %v1699, %v1695
        %v1836 = vpack.c.bf16 %v1700, %v1696
        %v1837 = vpack.c.bf16 %v1701, %v1697
        %v1838 = vpack.c.bf16 %v1706, %v1702
        %v1839 = vpack.c.bf16 %v1707, %v1703
        %v1840 = vpack.c.bf16 %v1708, %v1704
        %v1841 = vpack.c.bf16 %v1709, %v1705
        %v1842 = vpack.c.bf16 %v1714, %v1710
        %v1843 = vpack.c.bf16 %v1715, %v1711
        %v1844 = vpack.c.bf16 %v1716, %v1712
        %v1845 = vpack.c.bf16 %v1717, %v1713
        %v1846 = vld [vmem:[#allocation6] sm:$0xff]
        %v1847 = vld [vmem:[#allocation6 + $0x8] sm:$0xff]
        %v1848 = vld [vmem:[#allocation6 + $0x10] sm:$0xff]
        %v1849 = vld [vmem:[#allocation6 + $0x18] sm:$0xf]
        %v1850 = vld [vmem:[#allocation6 + $0x1c] sm:$0xff]
        %v1851 = vld [vmem:[#allocation6 + $0x24] sm:$0xff]
        %v1852 = vld [vmem:[#allocation6 + $0x2c] sm:$0xff]
        %v1853 = vld [vmem:[#allocation6 + $0x34] sm:$0xf]
        %v1854 = vld [vmem:[#allocation6 + $0x38] sm:$0xff]
        %v1855 = vld [vmem:[#allocation6 + $0x40] sm:$0xff]
        %v1856 = vld [vmem:[#allocation6 + $0x48] sm:$0xff]
        %v1857 = vld [vmem:[#allocation6 + $0x50] sm:$0xf]
        %v1858 = vld [vmem:[#allocation6 + $0x54] sm:$0xff]
        %v1859 = vld [vmem:[#allocation6 + $0x5c] sm:$0xff]
        %v1860 = vld [vmem:[#allocation6 + $0x64] sm:$0xff]
        %v1861 = vld [vmem:[#allocation6 + $0x6c] sm:$0xf]
        %v1862 = vld [vmem:[#allocation6 + $0x70] sm:$0xff]
        %v1863 = vld [vmem:[#allocation6 + $0x78] sm:$0xff]
        %v1864 = vld [vmem:[#allocation6 + $0x80] sm:$0xff]
        %v1865 = vld [vmem:[#allocation6 + $0x88] sm:$0xf]
        %v1866 = vld [vmem:[#allocation6 + $0x8c] sm:$0xff]
        %v1867 = vld [vmem:[#allocation6 + $0x94] sm:$0xff]
        %v1868 = vld [vmem:[#allocation6 + $0x9c] sm:$0xff]
        %v1869 = vld [vmem:[#allocation6 + $0xa4] sm:$0xf]
        %v1870 = vld [vmem:[#allocation6 + $0xa8] sm:$0xff]
        %v1871 = vld [vmem:[#allocation6 + $0xb0] sm:$0xff]
        %v1872 = vld [vmem:[#allocation6 + $0xb8] sm:$0xff]
        %v1873 = vld [vmem:[#allocation6 + $0xc0] sm:$0xf]
        %v1874 = vld [vmem:[#allocation6 + $0xc4] sm:$0xff]
        %v1875 = vld [vmem:[#allocation6 + $0xcc] sm:$0xff]
        %v1876 = vld [vmem:[#allocation6 + $0xd4] sm:$0xff]
        %v1877 = vld [vmem:[#allocation6 + $0xdc] sm:$0xf]
        %v1878 = vld [vmem:[#allocation6 + $0xe0] sm:$0xff]
        %v1879 = vld [vmem:[#allocation6 + $0xe8] sm:$0xff]
        %v1880 = vld [vmem:[#allocation6 + $0xf0] sm:$0xff]
        %v1881 = vld [vmem:[#allocation6 + $0xf8] sm:$0xf]
        %v1882 = vld [vmem:[#allocation6 + $0xfc] sm:$0xff]
        %v1883 = vld [vmem:[#allocation6 + $0x104] sm:$0xff]
        %v1884 = vld [vmem:[#allocation6 + $0x10c] sm:$0xff]
        %v1885 = vld [vmem:[#allocation6 + $0x114] sm:$0xf]
        %v1886 = vld [vmem:[#allocation6 + $0x118] sm:$0xff]
        %v1887 = vld [vmem:[#allocation6 + $0x120] sm:$0xff]
        %v1888 = vld [vmem:[#allocation6 + $0x128] sm:$0xff]
        %v1889 = vld [vmem:[#allocation6 + $0x130] sm:$0xf]
        %v1890 = vld [vmem:[#allocation6 + $0x134] sm:$0xff]
        %v1891 = vld [vmem:[#allocation6 + $0x13c] sm:$0xff]
        %v1892 = vld [vmem:[#allocation6 + $0x144] sm:$0xff]
        %v1893 = vld [vmem:[#allocation6 + $0x14c] sm:$0xf]
        %v1894 = vld [vmem:[#allocation6 + $0x150] sm:$0xff]
        %v1895 = vld [vmem:[#allocation6 + $0x158] sm:$0xff]
        %v1896 = vld [vmem:[#allocation6 + $0x160] sm:$0xff]
        %v1897 = vld [vmem:[#allocation6 + $0x168] sm:$0xf]
        %v1898 = vld [vmem:[#allocation6 + $0x16c] sm:$0xff]
        %v1899 = vld [vmem:[#allocation6 + $0x174] sm:$0xff]
        %v1900 = vld [vmem:[#allocation6 + $0x17c] sm:$0xff]
        %v1901 = vld [vmem:[#allocation6 + $0x184] sm:$0xf]
        %v1902 = vld [vmem:[#allocation6 + $0x188] sm:$0xff]
        %v1903 = vld [vmem:[#allocation6 + $0x190] sm:$0xff]
        %v1904 = vld [vmem:[#allocation6 + $0x198] sm:$0xff]
        %v1905 = vld [vmem:[#allocation6 + $0x1a0] sm:$0xf]
        %v1906 = vld [vmem:[#allocation6 + $0x1a4] sm:$0xff]
        %v1907 = vld [vmem:[#allocation6 + $0x1ac] sm:$0xff]
        %v1908 = vld [vmem:[#allocation6 + $0x1b4] sm:$0xff]
        %v1909 = vld [vmem:[#allocation6 + $0x1bc] sm:$0xf]
        %v1910 = vld [vmem:[#allocation6 + $0x1c0] sm:$0xff]
        %v1911 = vld [vmem:[#allocation6 + $0x1c8] sm:$0xff]
        %v1912 = vld [vmem:[#allocation6 + $0x1d0] sm:$0xff]
        %v1913 = vld [vmem:[#allocation6 + $0x1d8] sm:$0xf]
        %v1914 = vld [vmem:[#allocation6 + $0x1dc] sm:$0xff]
        %v1915 = vld [vmem:[#allocation6 + $0x1e4] sm:$0xff]
        %v1916 = vld [vmem:[#allocation6 + $0x1ec] sm:$0xff]
        %v1917 = vld [vmem:[#allocation6 + $0x1f4] sm:$0xf]
        %v1918 = vld [vmem:[#allocation6 + $0x1f8] sm:$0xff]
        %v1919 = vld [vmem:[#allocation6 + $0x200] sm:$0xff]
        %v1920 = vld [vmem:[#allocation6 + $0x208] sm:$0xff]
        %v1921 = vld [vmem:[#allocation6 + $0x210] sm:$0xf]
        %v1922 = vld [vmem:[#allocation6 + $0x214] sm:$0xff]
        %v1923 = vld [vmem:[#allocation6 + $0x21c] sm:$0xff]
        %v1924 = vld [vmem:[#allocation6 + $0x224] sm:$0xff]
        %v1925 = vld [vmem:[#allocation6 + $0x22c] sm:$0xf]
        %v1926 = vld [vmem:[#allocation6 + $0x230] sm:$0xff]
        %v1927 = vld [vmem:[#allocation6 + $0x238] sm:$0xff]
        %v1928 = vld [vmem:[#allocation6 + $0x240] sm:$0xff]
        %v1929 = vld [vmem:[#allocation6 + $0x248] sm:$0xf]
        %v1930 = vld [vmem:[#allocation6 + $0x24c] sm:$0xff]
        %v1931 = vld [vmem:[#allocation6 + $0x254] sm:$0xff]
        %v1932 = vld [vmem:[#allocation6 + $0x25c] sm:$0xff]
        %v1933 = vld [vmem:[#allocation6 + $0x264] sm:$0xf]
        %v1934 = vld [vmem:[#allocation6 + $0x268] sm:$0xff]
        %v1935 = vld [vmem:[#allocation6 + $0x270] sm:$0xff]
        %v1936 = vld [vmem:[#allocation6 + $0x278] sm:$0xff]
        %v1937 = vld [vmem:[#allocation6 + $0x280] sm:$0xf]
        %v1938 = vld [vmem:[#allocation6 + $0x284] sm:$0xff]
        %v1939 = vld [vmem:[#allocation6 + $0x28c] sm:$0xff]
        %v1940 = vld [vmem:[#allocation6 + $0x294] sm:$0xff]
        %v1941 = vld [vmem:[#allocation6 + $0x29c] sm:$0xf]
        %v1942 = vld [vmem:[#allocation6 + $0x2a0] sm:$0xff]
        %v1943 = vld [vmem:[#allocation6 + $0x2a8] sm:$0xff]
        %v1944 = vld [vmem:[#allocation6 + $0x2b0] sm:$0xff]
        %v1945 = vld [vmem:[#allocation6 + $0x2b8] sm:$0xf]
        %v1946 = vld [vmem:[#allocation6 + $0x2bc] sm:$0xff]
        %v1947 = vld [vmem:[#allocation6 + $0x2c4] sm:$0xff]
        %v1948 = vld [vmem:[#allocation6 + $0x2cc] sm:$0xff]
        %v1949 = vld [vmem:[#allocation6 + $0x2d4] sm:$0xf]
        %v1950 = vld [vmem:[#allocation6 + $0x2d8] sm:$0xff]
        %v1951 = vld [vmem:[#allocation6 + $0x2e0] sm:$0xff]
        %v1952 = vld [vmem:[#allocation6 + $0x2e8] sm:$0xff]
        %v1953 = vld [vmem:[#allocation6 + $0x2f0] sm:$0xf]
        %v1954 = vld [vmem:[#allocation6 + $0x2f4] sm:$0xff]
        %v1955 = vld [vmem:[#allocation6 + $0x2fc] sm:$0xff]
        %v1956 = vld [vmem:[#allocation6 + $0x304] sm:$0xff]
        %v1957 = vld [vmem:[#allocation6 + $0x30c] sm:$0xf]
        %v1958 = vld [vmem:[#allocation6 + $0x310] sm:$0xff]
        %v1959 = vld [vmem:[#allocation6 + $0x318] sm:$0xff]
        %v1960 = vld [vmem:[#allocation6 + $0x320] sm:$0xff]
        %v1961 = vld [vmem:[#allocation6 + $0x328] sm:$0xf]
        %v1962 = vld [vmem:[#allocation6 + $0x32c] sm:$0xff]
        %v1963 = vld [vmem:[#allocation6 + $0x334] sm:$0xff]
        %v1964 = vld [vmem:[#allocation6 + $0x33c] sm:$0xff]
        %v1965 = vld [vmem:[#allocation6 + $0x344] sm:$0xf]
        %v1966 = vld [vmem:[#allocation6 + $0x348] sm:$0xff]
        %v1967 = vld [vmem:[#allocation6 + $0x350] sm:$0xff]
        %v1968 = vld [vmem:[#allocation6 + $0x358] sm:$0xff]
        %v1969 = vld [vmem:[#allocation6 + $0x360] sm:$0xf]
        %v1970 = vld [vmem:[#allocation6 + $0x364] sm:$0xff]
        %v1971 = vld [vmem:[#allocation6 + $0x36c] sm:$0xff]
        %v1972 = vld [vmem:[#allocation6 + $0x374] sm:$0xff]
        %v1973 = vld [vmem:[#allocation6 + $0x37c] sm:$0xf]
        %v1974 = vld [vmem:[#allocation6 + $0x380] sm:$0xff]
        %v1975 = vld [vmem:[#allocation6 + $0x388] sm:$0xff]
        %v1976 = vld [vmem:[#allocation6 + $0x390] sm:$0xff]
        %v1977 = vld [vmem:[#allocation6 + $0x398] sm:$0xf]
        %v1978 = vld [vmem:[#allocation6 + $0x39c] sm:$0xff]
        %v1979 = vld [vmem:[#allocation6 + $0x3a4] sm:$0xff]
        %v1980 = vld [vmem:[#allocation6 + $0x3ac] sm:$0xff]
        %v1981 = vld [vmem:[#allocation6 + $0x3b4] sm:$0xf]
        %v1982 = vld [vmem:[#allocation6 + $0x3b8] sm:$0xff]
        %v1983 = vld [vmem:[#allocation6 + $0x3c0] sm:$0xff]
        %v1984 = vld [vmem:[#allocation6 + $0x3c8] sm:$0xff]
        %v1985 = vld [vmem:[#allocation6 + $0x3d0] sm:$0xf]
        %v1986 = vld [vmem:[#allocation6 + $0x3d4] sm:$0xff]
        %v1987 = vld [vmem:[#allocation6 + $0x3dc] sm:$0xff]
        %v1988 = vld [vmem:[#allocation6 + $0x3e4] sm:$0xff]
        %v1989 = vld [vmem:[#allocation6 + $0x3ec] sm:$0xf]
        %v1990 = vld [vmem:[#allocation6 + $0x3f0] sm:$0xff]
        %v1991 = vld [vmem:[#allocation6 + $0x3f8] sm:$0xff]
        %v1992 = vld [vmem:[#allocation6 + $0x400] sm:$0xff]
        %v1993 = vld [vmem:[#allocation6 + $0x408] sm:$0xf]
        %v1994 = vld [vmem:[#allocation6 + $0x40c] sm:$0xff]
        %v1995 = vld [vmem:[#allocation6 + $0x414] sm:$0xff]
        %v1996 = vld [vmem:[#allocation6 + $0x41c] sm:$0xff]
        %v1997 = vld [vmem:[#allocation6 + $0x424] sm:$0xf]
        %v1998 = vld [vmem:[#allocation6 + $0x428] sm:$0xff]
        %v1999 = vld [vmem:[#allocation6 + $0x430] sm:$0xff]
        %v2000 = vld [vmem:[#allocation6 + $0x438] sm:$0xff]
        %v2001 = vld [vmem:[#allocation6 + $0x440] sm:$0xf]
        %v2002 = vld [vmem:[#allocation6 + $0x444] sm:$0xff]
        %v2003 = vld [vmem:[#allocation6 + $0x44c] sm:$0xff]
        %v2004 = vld [vmem:[#allocation6 + $0x454] sm:$0xff]
        %v2005 = vld [vmem:[#allocation6 + $0x45c] sm:$0xf]
        %v2006 = vld [vmem:[#allocation6 + $0x460] sm:$0xff]
        %v2007 = vld [vmem:[#allocation6 + $0x468] sm:$0xff]
        %v2008 = vld [vmem:[#allocation6 + $0x470] sm:$0xff]
        %v2009 = vld [vmem:[#allocation6 + $0x478] sm:$0xf]
        %v2010 = vld [vmem:[#allocation6 + $0x47c] sm:$0xff]
        %v2011 = vld [vmem:[#allocation6 + $0x484] sm:$0xff]
        %v2012 = vld [vmem:[#allocation6 + $0x48c] sm:$0xff]
        %v2013 = vld [vmem:[#allocation6 + $0x494] sm:$0xf]
        %v2014 = vld [vmem:[#allocation6 + $0x498] sm:$0xff]
        %v2015 = vld [vmem:[#allocation6 + $0x4a0] sm:$0xff]
        %v2016 = vld [vmem:[#allocation6 + $0x4a8] sm:$0xff]
        %v2017 = vld [vmem:[#allocation6 + $0x4b0] sm:$0xf]
        %v2018 = vld [vmem:[#allocation6 + $0x4b4] sm:$0xff]
        %v2019 = vld [vmem:[#allocation6 + $0x4bc] sm:$0xff]
        %v2020 = vld [vmem:[#allocation6 + $0x4c4] sm:$0xff]
        %v2021 = vld [vmem:[#allocation6 + $0x4cc] sm:$0xf]
        %v2022 = vld [vmem:[#allocation6 + $0x4d0] sm:$0xff]
        %v2023 = vld [vmem:[#allocation6 + $0x4d8] sm:$0xff]
        %v2024 = vld [vmem:[#allocation6 + $0x4e0] sm:$0xff]
        %v2025 = vld [vmem:[#allocation6 + $0x4e8] sm:$0xf]
        %v2026 = vld [vmem:[#allocation6 + $0x4ec] sm:$0xff]
        %v2027 = vld [vmem:[#allocation6 + $0x4f4] sm:$0xff]
        %v2028 = vld [vmem:[#allocation6 + $0x4fc] sm:$0xff]
        %v2029 = vld [vmem:[#allocation6 + $0x504] sm:$0xf]
        %v2030 = vld [vmem:[#allocation6 + $0x508] sm:$0xff]
        %v2031 = vld [vmem:[#allocation6 + $0x510] sm:$0xff]
        %v2032 = vld [vmem:[#allocation6 + $0x518] sm:$0xff]
        %v2033 = vld [vmem:[#allocation6 + $0x520] sm:$0xf]
        %v2034 = vld [vmem:[#allocation6 + $0x524] sm:$0xff]
        %v2035 = vld [vmem:[#allocation6 + $0x52c] sm:$0xff]
        %v2036 = vld [vmem:[#allocation6 + $0x534] sm:$0xff]
        %v2037 = vld [vmem:[#allocation6 + $0x53c] sm:$0xf]
        %v2038 = vld [vmem:[#allocation6 + $0x540] sm:$0xff]
        %v2039 = vld [vmem:[#allocation6 + $0x548] sm:$0xff]
        %v2040 = vld [vmem:[#allocation6 + $0x550] sm:$0xff]
        %v2041 = vld [vmem:[#allocation6 + $0x558] sm:$0xf]
        %v2042 = vld [vmem:[#allocation6 + $0x55c] sm:$0xff]
        %v2043 = vld [vmem:[#allocation6 + $0x564] sm:$0xff]
        %v2044 = vld [vmem:[#allocation6 + $0x56c] sm:$0xff]
        %v2045 = vld [vmem:[#allocation6 + $0x574] sm:$0xf]
        %v2046 = vld [vmem:[#allocation6 + $0x578] sm:$0xff]
        %v2047 = vld [vmem:[#allocation6 + $0x580] sm:$0xff]
        %v2048 = vld [vmem:[#allocation6 + $0x588] sm:$0xff]
        %v2049 = vld [vmem:[#allocation6 + $0x590] sm:$0xf]
        %v2050 = vld [vmem:[#allocation6 + $0x594] sm:$0xff]
        %v2051 = vld [vmem:[#allocation6 + $0x59c] sm:$0xff]
        %v2052 = vld [vmem:[#allocation6 + $0x5a4] sm:$0xff]
        %v2053 = vld [vmem:[#allocation6 + $0x5ac] sm:$0xf]
        %v2054 = vld [vmem:[#allocation6 + $0x5b0] sm:$0xff]
        %v2055 = vld [vmem:[#allocation6 + $0x5b8] sm:$0xff]
        %v2056 = vld [vmem:[#allocation6 + $0x5c0] sm:$0xff]
        %v2057 = vld [vmem:[#allocation6 + $0x5c8] sm:$0xf]
        %v2058 = vld [vmem:[#allocation6 + $0x5cc] sm:$0xff]
        %v2059 = vld [vmem:[#allocation6 + $0x5d4] sm:$0xff]
        %v2060 = vld [vmem:[#allocation6 + $0x5dc] sm:$0xff]
        %v2061 = vld [vmem:[#allocation6 + $0x5e4] sm:$0xf]
        %v2062 = vld [vmem:[#allocation6 + $0x5e8] sm:$0xff]
        %v2063 = vld [vmem:[#allocation6 + $0x5f0] sm:$0xff]
        %v2064 = vld [vmem:[#allocation6 + $0x5f8] sm:$0xff]
        %v2065 = vld [vmem:[#allocation6 + $0x600] sm:$0xf]
        %v2066 = vld [vmem:[#allocation6 + $0x604] sm:$0xff]
        %v2067 = vld [vmem:[#allocation6 + $0x60c] sm:$0xff]
        %v2068 = vld [vmem:[#allocation6 + $0x614] sm:$0xff]
        %v2069 = vld [vmem:[#allocation6 + $0x61c] sm:$0xf]
        %v2070 = vld [vmem:[#allocation6 + $0x620] sm:$0xff]
        %v2071 = vld [vmem:[#allocation6 + $0x628] sm:$0xff]
        %v2072 = vld [vmem:[#allocation6 + $0x630] sm:$0xff]
        %v2073 = vld [vmem:[#allocation6 + $0x638] sm:$0xf]
        %v2074 = vld [vmem:[#allocation6 + $0x63c] sm:$0xff]
        %v2075 = vld [vmem:[#allocation6 + $0x644] sm:$0xff]
        %v2076 = vld [vmem:[#allocation6 + $0x64c] sm:$0xff]
        %v2077 = vld [vmem:[#allocation6 + $0x654] sm:$0xf]
        %v2078 = vld [vmem:[#allocation6 + $0x658] sm:$0xff]
        %v2079 = vld [vmem:[#allocation6 + $0x660] sm:$0xff]
        %v2080 = vld [vmem:[#allocation6 + $0x668] sm:$0xff]
        %v2081 = vld [vmem:[#allocation6 + $0x670] sm:$0xf]
        %v2082 = vld [vmem:[#allocation6 + $0x674] sm:$0xff]
        %v2083 = vld [vmem:[#allocation6 + $0x67c] sm:$0xff]
        %v2084 = vld [vmem:[#allocation6 + $0x684] sm:$0xff]
        %v2085 = vld [vmem:[#allocation6 + $0x68c] sm:$0xf]
        %v2086 = vld [vmem:[#allocation6 + $0x690] sm:$0xff]
        %v2087 = vld [vmem:[#allocation6 + $0x698] sm:$0xff]
        %v2088 = vld [vmem:[#allocation6 + $0x6a0] sm:$0xff]
        %v2089 = vld [vmem:[#allocation6 + $0x6a8] sm:$0xf]
        %v2090 = vld [vmem:[#allocation6 + $0x6ac] sm:$0xff]
        %v2091 = vld [vmem:[#allocation6 + $0x6b4] sm:$0xff]
        %v2092 = vld [vmem:[#allocation6 + $0x6bc] sm:$0xff]
        %v2093 = vld [vmem:[#allocation6 + $0x6c4] sm:$0xf]
        %v2094 = vld [vmem:[#allocation6 + $0x6c8] sm:$0xff]
        %v2095 = vld [vmem:[#allocation6 + $0x6d0] sm:$0xff]
        %v2096 = vld [vmem:[#allocation6 + $0x6d8] sm:$0xff]
        %v2097 = vld [vmem:[#allocation6 + $0x6e0] sm:$0xf]
        %v2098 = vld [vmem:[#allocation6 + $0x6e4] sm:$0xff]
        %v2099 = vld [vmem:[#allocation6 + $0x6ec] sm:$0xff]
        %v2100 = vld [vmem:[#allocation6 + $0x6f4] sm:$0xff]
        %v2101 = vld [vmem:[#allocation6 + $0x6fc] sm:$0xf]
        %v2102 = vld [vmem:[#allocation7] sm:$0xff]
        %v2104 = vlaneseq
        %v2105 = vshrl.u32 %v2104, 7
        %v2106 = vsub.s32 0, %v2105
        %v2107 = vrot.slane %v2102, %v2106
        %v2108 = vlaneseq
        %v2109 = vshrl.u32 %v2108, 7
        %v2110 = vsub.s32 1, %v2109
        %v2111 = vrot.slane %v2102, %v2110
        %v2112 = vlaneseq
        %v2113 = vshrl.u32 %v2112, 7
        %v2114 = vsub.s32 2, %v2113
        %v2115 = vrot.slane %v2102, %v2114
        %v2116 = vlaneseq
        %v2117 = vshrl.u32 %v2116, 7
        %v2118 = vsub.s32 3, %v2117
        %v2119 = vrot.slane %v2102, %v2118
        %v2120 = vlaneseq
        %v2121 = vshrl.u32 %v2120, 7
        %v2122 = vsub.s32 4, %v2121
        %v2123 = vrot.slane %v2102, %v2122
        %v2124 = vlaneseq
        %v2125 = vshrl.u32 %v2124, 7
        %v2126 = vsub.s32 5, %v2125
        %v2127 = vrot.slane %v2102, %v2126
        %v2128 = vlaneseq
        %v2129 = vshrl.u32 %v2128, 7
        %v2130 = vsub.s32 6, %v2129
        %v2131 = vrot.slane %v2102, %v2130
        %v2395 = vunpack.c.l.b16 %v1846
        %v2396 = vunpack.c.h.b16 %v1846
        %v2397 = vunpack.c.l.b16 %v1847
        %v2398 = vunpack.c.h.b16 %v1847
        %v2399 = vunpack.c.l.b16 %v1848
        %v2400 = vunpack.c.h.b16 %v1848
        %v2401 = vunpack.c.l.b16 %v1849
        %v2402 = vunpack.c.l.b16 %v1850
        %v2403 = vunpack.c.h.b16 %v1850
        %v2404 = vunpack.c.l.b16 %v1851
        %v2405 = vunpack.c.h.b16 %v1851
        %v2406 = vunpack.c.l.b16 %v1852
        %v2407 = vunpack.c.h.b16 %v1852
        %v2408 = vunpack.c.l.b16 %v1853
        %v2409 = vunpack.c.l.b16 %v1854
        %v2410 = vunpack.c.h.b16 %v1854
        %v2411 = vunpack.c.l.b16 %v1855
        %v2412 = vunpack.c.h.b16 %v1855
        %v2413 = vunpack.c.l.b16 %v1856
        %v2414 = vunpack.c.h.b16 %v1856
        %v2415 = vunpack.c.l.b16 %v1857
        %v2416 = vunpack.c.l.b16 %v1858
        %v2417 = vunpack.c.h.b16 %v1858
        %v2418 = vunpack.c.l.b16 %v1859
        %v2419 = vunpack.c.h.b16 %v1859
        %v2420 = vunpack.c.l.b16 %v1860
        %v2421 = vunpack.c.h.b16 %v1860
        %v2422 = vunpack.c.l.b16 %v1861
        %v2423 = vunpack.c.l.b16 %v1862
        %v2424 = vunpack.c.h.b16 %v1862
        %v2425 = vunpack.c.l.b16 %v1863
        %v2426 = vunpack.c.h.b16 %v1863
        %v2427 = vunpack.c.l.b16 %v1864
        %v2428 = vunpack.c.h.b16 %v1864
        %v2429 = vunpack.c.l.b16 %v1865
        %v2430 = vunpack.c.l.b16 %v1866
        %v2431 = vunpack.c.h.b16 %v1866
        %v2432 = vunpack.c.l.b16 %v1867
        %v2433 = vunpack.c.h.b16 %v1867
        %v2434 = vunpack.c.l.b16 %v1868
        %v2435 = vunpack.c.h.b16 %v1868
        %v2436 = vunpack.c.l.b16 %v1869
        %v2437 = vunpack.c.l.b16 %v1870
        %v2438 = vunpack.c.h.b16 %v1870
        %v2439 = vunpack.c.l.b16 %v1871
        %v2440 = vunpack.c.h.b16 %v1871
        %v2441 = vunpack.c.l.b16 %v1872
        %v2442 = vunpack.c.h.b16 %v1872
        %v2443 = vunpack.c.l.b16 %v1873
        %v2444 = vunpack.c.l.b16 %v1874
        %v2445 = vunpack.c.h.b16 %v1874
        %v2446 = vunpack.c.l.b16 %v1875
        %v2447 = vunpack.c.h.b16 %v1875
        %v2448 = vunpack.c.l.b16 %v1876
        %v2449 = vunpack.c.h.b16 %v1876
        %v2450 = vunpack.c.l.b16 %v1877
        %v2451 = vunpack.c.l.b16 %v1878
        %v2452 = vunpack.c.h.b16 %v1878
        %v2453 = vunpack.c.l.b16 %v1879
        %v2454 = vunpack.c.h.b16 %v1879
        %v2455 = vunpack.c.l.b16 %v1880
        %v2456 = vunpack.c.h.b16 %v1880
        %v2457 = vunpack.c.l.b16 %v1881
        %v2458 = vunpack.c.l.b16 %v1882
        %v2459 = vunpack.c.h.b16 %v1882
        %v2460 = vunpack.c.l.b16 %v1883
        %v2461 = vunpack.c.h.b16 %v1883
        %v2462 = vunpack.c.l.b16 %v1884
        %v2463 = vunpack.c.h.b16 %v1884
        %v2464 = vunpack.c.l.b16 %v1885
        %v2465 = vunpack.c.l.b16 %v1886
        %v2466 = vunpack.c.h.b16 %v1886
        %v2467 = vunpack.c.l.b16 %v1887
        %v2468 = vunpack.c.h.b16 %v1887
        %v2469 = vunpack.c.l.b16 %v1888
        %v2470 = vunpack.c.h.b16 %v1888
        %v2471 = vunpack.c.l.b16 %v1889
        %v2472 = vunpack.c.l.b16 %v1890
        %v2473 = vunpack.c.h.b16 %v1890
        %v2474 = vunpack.c.l.b16 %v1891
        %v2475 = vunpack.c.h.b16 %v1891
        %v2476 = vunpack.c.l.b16 %v1892
        %v2477 = vunpack.c.h.b16 %v1892
        %v2478 = vunpack.c.l.b16 %v1893
        %v2479 = vunpack.c.l.b16 %v1894
        %v2480 = vunpack.c.h.b16 %v1894
        %v2481 = vunpack.c.l.b16 %v1895
        %v2482 = vunpack.c.h.b16 %v1895
        %v2483 = vunpack.c.l.b16 %v1896
        %v2484 = vunpack.c.h.b16 %v1896
        %v2485 = vunpack.c.l.b16 %v1897
        %v2486 = vunpack.c.l.b16 %v1898
        %v2487 = vunpack.c.h.b16 %v1898
        %v2488 = vunpack.c.l.b16 %v1899
        %v2489 = vunpack.c.h.b16 %v1899
        %v2490 = vunpack.c.l.b16 %v1900
        %v2491 = vunpack.c.h.b16 %v1900
        %v2492 = vunpack.c.l.b16 %v1901
        %v2493 = vunpack.c.l.b16 %v1902
        %v2494 = vunpack.c.h.b16 %v1902
        %v2495 = vunpack.c.l.b16 %v1903
        %v2496 = vunpack.c.h.b16 %v1903
        %v2497 = vunpack.c.l.b16 %v1904
        %v2498 = vunpack.c.h.b16 %v1904
        %v2499 = vunpack.c.l.b16 %v1905
        %v2500 = vunpack.c.l.b16 %v1906
        %v2501 = vunpack.c.h.b16 %v1906
        %v2502 = vunpack.c.l.b16 %v1907
        %v2503 = vunpack.c.h.b16 %v1907
        %v2504 = vunpack.c.l.b16 %v1908
        %v2505 = vunpack.c.h.b16 %v1908
        %v2506 = vunpack.c.l.b16 %v1909
        %v2507 = vunpack.c.l.b16 %v1910
        %v2508 = vunpack.c.h.b16 %v1910
        %v2509 = vunpack.c.l.b16 %v1911
        %v2510 = vunpack.c.h.b16 %v1911
        %v2511 = vunpack.c.l.b16 %v1912
        %v2512 = vunpack.c.h.b16 %v1912
        %v2513 = vunpack.c.l.b16 %v1913
        %v2514 = vunpack.c.l.b16 %v1914
        %v2515 = vunpack.c.h.b16 %v1914
        %v2516 = vunpack.c.l.b16 %v1915
        %v2517 = vunpack.c.h.b16 %v1915
        %v2518 = vunpack.c.l.b16 %v1916
        %v2519 = vunpack.c.h.b16 %v1916
        %v2520 = vunpack.c.l.b16 %v1917
        %v2521 = vunpack.c.l.b16 %v1918
        %v2522 = vunpack.c.h.b16 %v1918
        %v2523 = vunpack.c.l.b16 %v1919
        %v2524 = vunpack.c.h.b16 %v1919
        %v2525 = vunpack.c.l.b16 %v1920
        %v2526 = vunpack.c.h.b16 %v1920
        %v2527 = vunpack.c.l.b16 %v1921
        %v2528 = vunpack.c.l.b16 %v1922
        %v2529 = vunpack.c.h.b16 %v1922
        %v2530 = vunpack.c.l.b16 %v1923
        %v2531 = vunpack.c.h.b16 %v1923
        %v2532 = vunpack.c.l.b16 %v1924
        %v2533 = vunpack.c.h.b16 %v1924
        %v2534 = vunpack.c.l.b16 %v1925
        %v2535 = vunpack.c.l.b16 %v1926
        %v2536 = vunpack.c.h.b16 %v1926
        %v2537 = vunpack.c.l.b16 %v1927
        %v2538 = vunpack.c.h.b16 %v1927
        %v2539 = vunpack.c.l.b16 %v1928
        %v2540 = vunpack.c.h.b16 %v1928
        %v2541 = vunpack.c.l.b16 %v1929
        %v2542 = vunpack.c.l.b16 %v1930
        %v2543 = vunpack.c.h.b16 %v1930
        %v2544 = vunpack.c.l.b16 %v1931
        %v2545 = vunpack.c.h.b16 %v1931
        %v2546 = vunpack.c.l.b16 %v1932
        %v2547 = vunpack.c.h.b16 %v1932
        %v2548 = vunpack.c.l.b16 %v1933
        %v2549 = vunpack.c.l.b16 %v1934
        %v2550 = vunpack.c.h.b16 %v1934
        %v2551 = vunpack.c.l.b16 %v1935
        %v2552 = vunpack.c.h.b16 %v1935
        %v2553 = vunpack.c.l.b16 %v1936
        %v2554 = vunpack.c.h.b16 %v1936
        %v2555 = vunpack.c.l.b16 %v1937
        %v2556 = vunpack.c.l.b16 %v1938
        %v2557 = vunpack.c.h.b16 %v1938
        %v2558 = vunpack.c.l.b16 %v1939
        %v2559 = vunpack.c.h.b16 %v1939
        %v2560 = vunpack.c.l.b16 %v1940
        %v2561 = vunpack.c.h.b16 %v1940
        %v2562 = vunpack.c.l.b16 %v1941
        %v2563 = vunpack.c.l.b16 %v1942
        %v2564 = vunpack.c.h.b16 %v1942
        %v2565 = vunpack.c.l.b16 %v1943
        %v2566 = vunpack.c.h.b16 %v1943
        %v2567 = vunpack.c.l.b16 %v1944
        %v2568 = vunpack.c.h.b16 %v1944
        %v2569 = vunpack.c.l.b16 %v1945
        %v2570 = vunpack.c.l.b16 %v1946
        %v2571 = vunpack.c.h.b16 %v1946
        %v2572 = vunpack.c.l.b16 %v1947
        %v2573 = vunpack.c.h.b16 %v1947
        %v2574 = vunpack.c.l.b16 %v1948
        %v2575 = vunpack.c.h.b16 %v1948
        %v2576 = vunpack.c.l.b16 %v1949
        %v2577 = vunpack.c.l.b16 %v1950
        %v2578 = vunpack.c.h.b16 %v1950
        %v2579 = vunpack.c.l.b16 %v1951
        %v2580 = vunpack.c.h.b16 %v1951
        %v2581 = vunpack.c.l.b16 %v1952
        %v2582 = vunpack.c.h.b16 %v1952
        %v2583 = vunpack.c.l.b16 %v1953
        %v2584 = vunpack.c.l.b16 %v1954
        %v2585 = vunpack.c.h.b16 %v1954
        %v2586 = vunpack.c.l.b16 %v1955
        %v2587 = vunpack.c.h.b16 %v1955
        %v2588 = vunpack.c.l.b16 %v1956
        %v2589 = vunpack.c.h.b16 %v1956
        %v2590 = vunpack.c.l.b16 %v1957
        %v2591 = vunpack.c.l.b16 %v1958
        %v2592 = vunpack.c.h.b16 %v1958
        %v2593 = vunpack.c.l.b16 %v1959
        %v2594 = vunpack.c.h.b16 %v1959
        %v2595 = vunpack.c.l.b16 %v1960
        %v2596 = vunpack.c.h.b16 %v1960
        %v2597 = vunpack.c.l.b16 %v1961
        %v2598 = vunpack.c.l.b16 %v1962
        %v2599 = vunpack.c.h.b16 %v1962
        %v2600 = vunpack.c.l.b16 %v1963
        %v2601 = vunpack.c.h.b16 %v1963
        %v2602 = vunpack.c.l.b16 %v1964
        %v2603 = vunpack.c.h.b16 %v1964
        %v2604 = vunpack.c.l.b16 %v1965
        %v2605 = vunpack.c.l.b16 %v1966
        %v2606 = vunpack.c.h.b16 %v1966
        %v2607 = vunpack.c.l.b16 %v1967
        %v2608 = vunpack.c.h.b16 %v1967
        %v2609 = vunpack.c.l.b16 %v1968
        %v2610 = vunpack.c.h.b16 %v1968
        %v2611 = vunpack.c.l.b16 %v1969
        %v2612 = vunpack.c.l.b16 %v1970
        %v2613 = vunpack.c.h.b16 %v1970
        %v2614 = vunpack.c.l.b16 %v1971
        %v2615 = vunpack.c.h.b16 %v1971
        %v2616 = vunpack.c.l.b16 %v1972
        %v2617 = vunpack.c.h.b16 %v1972
        %v2618 = vunpack.c.l.b16 %v1973
        %v2619 = vunpack.c.l.b16 %v1974
        %v2620 = vunpack.c.h.b16 %v1974
        %v2621 = vunpack.c.l.b16 %v1975
        %v2622 = vunpack.c.h.b16 %v1975
        %v2623 = vunpack.c.l.b16 %v1976
        %v2624 = vunpack.c.h.b16 %v1976
        %v2625 = vunpack.c.l.b16 %v1977
        %v2626 = vunpack.c.l.b16 %v1978
        %v2627 = vunpack.c.h.b16 %v1978
        %v2628 = vunpack.c.l.b16 %v1979
        %v2629 = vunpack.c.h.b16 %v1979
        %v2630 = vunpack.c.l.b16 %v1980
        %v2631 = vunpack.c.h.b16 %v1980
        %v2632 = vunpack.c.l.b16 %v1981
        %v2633 = vunpack.c.l.b16 %v1982
        %v2634 = vunpack.c.h.b16 %v1982
        %v2635 = vunpack.c.l.b16 %v1983
        %v2636 = vunpack.c.h.b16 %v1983
        %v2637 = vunpack.c.l.b16 %v1984
        %v2638 = vunpack.c.h.b16 %v1984
        %v2639 = vunpack.c.l.b16 %v1985
        %v2640 = vunpack.c.l.b16 %v1986
        %v2641 = vunpack.c.h.b16 %v1986
        %v2642 = vunpack.c.l.b16 %v1987
        %v2643 = vunpack.c.h.b16 %v1987
        %v2644 = vunpack.c.l.b16 %v1988
        %v2645 = vunpack.c.h.b16 %v1988
        %v2646 = vunpack.c.l.b16 %v1989
        %v2647 = vunpack.c.l.b16 %v1990
        %v2648 = vunpack.c.h.b16 %v1990
        %v2649 = vunpack.c.l.b16 %v1991
        %v2650 = vunpack.c.h.b16 %v1991
        %v2651 = vunpack.c.l.b16 %v1992
        %v2652 = vunpack.c.h.b16 %v1992
        %v2653 = vunpack.c.l.b16 %v1993
        %v2654 = vunpack.c.l.b16 %v1994
        %v2655 = vunpack.c.h.b16 %v1994
        %v2656 = vunpack.c.l.b16 %v1995
        %v2657 = vunpack.c.h.b16 %v1995
        %v2658 = vunpack.c.l.b16 %v1996
        %v2659 = vunpack.c.h.b16 %v1996
        %v2660 = vunpack.c.l.b16 %v1997
        %v2661 = vunpack.c.l.b16 %v1998
        %v2662 = vunpack.c.h.b16 %v1998
        %v2663 = vunpack.c.l.b16 %v1999
        %v2664 = vunpack.c.h.b16 %v1999
        %v2665 = vunpack.c.l.b16 %v2000
        %v2666 = vunpack.c.h.b16 %v2000
        %v2667 = vunpack.c.l.b16 %v2001
        %v2668 = vunpack.c.l.b16 %v2002
        %v2669 = vunpack.c.h.b16 %v2002
        %v2670 = vunpack.c.l.b16 %v2003
        %v2671 = vunpack.c.h.b16 %v2003
        %v2672 = vunpack.c.l.b16 %v2004
        %v2673 = vunpack.c.h.b16 %v2004
        %v2674 = vunpack.c.l.b16 %v2005
        %v2675 = vunpack.c.l.b16 %v2006
        %v2676 = vunpack.c.h.b16 %v2006
        %v2677 = vunpack.c.l.b16 %v2007
        %v2678 = vunpack.c.h.b16 %v2007
        %v2679 = vunpack.c.l.b16 %v2008
        %v2680 = vunpack.c.h.b16 %v2008
        %v2681 = vunpack.c.l.b16 %v2009
        %v2682 = vunpack.c.l.b16 %v2010
        %v2683 = vunpack.c.h.b16 %v2010
        %v2684 = vunpack.c.l.b16 %v2011
        %v2685 = vunpack.c.h.b16 %v2011
        %v2686 = vunpack.c.l.b16 %v2012
        %v2687 = vunpack.c.h.b16 %v2012
        %v2688 = vunpack.c.l.b16 %v2013
        %v2689 = vunpack.c.l.b16 %v2014
        %v2690 = vunpack.c.h.b16 %v2014
        %v2691 = vunpack.c.l.b16 %v2015
        %v2692 = vunpack.c.h.b16 %v2015
        %v2693 = vunpack.c.l.b16 %v2016
        %v2694 = vunpack.c.h.b16 %v2016
        %v2695 = vunpack.c.l.b16 %v2017
        %v2696 = vunpack.c.l.b16 %v2018
        %v2697 = vunpack.c.h.b16 %v2018
        %v2698 = vunpack.c.l.b16 %v2019
        %v2699 = vunpack.c.h.b16 %v2019
        %v2700 = vunpack.c.l.b16 %v2020
        %v2701 = vunpack.c.h.b16 %v2020
        %v2702 = vunpack.c.l.b16 %v2021
        %v2703 = vunpack.c.l.b16 %v2022
        %v2704 = vunpack.c.h.b16 %v2022
        %v2705 = vunpack.c.l.b16 %v2023
        %v2706 = vunpack.c.h.b16 %v2023
        %v2707 = vunpack.c.l.b16 %v2024
        %v2708 = vunpack.c.h.b16 %v2024
        %v2709 = vunpack.c.l.b16 %v2025
        %v2710 = vunpack.c.l.b16 %v2026
        %v2711 = vunpack.c.h.b16 %v2026
        %v2712 = vunpack.c.l.b16 %v2027
        %v2713 = vunpack.c.h.b16 %v2027
        %v2714 = vunpack.c.l.b16 %v2028
        %v2715 = vunpack.c.h.b16 %v2028
        %v2716 = vunpack.c.l.b16 %v2029
        %v2717 = vunpack.c.l.b16 %v2030
        %v2718 = vunpack.c.h.b16 %v2030
        %v2719 = vunpack.c.l.b16 %v2031
        %v2720 = vunpack.c.h.b16 %v2031
        %v2721 = vunpack.c.l.b16 %v2032
        %v2722 = vunpack.c.h.b16 %v2032
        %v2723 = vunpack.c.l.b16 %v2033
        %v2724 = vunpack.c.l.b16 %v2034
        %v2725 = vunpack.c.h.b16 %v2034
        %v2726 = vunpack.c.l.b16 %v2035
        %v2727 = vunpack.c.h.b16 %v2035
        %v2728 = vunpack.c.l.b16 %v2036
        %v2729 = vunpack.c.h.b16 %v2036
        %v2730 = vunpack.c.l.b16 %v2037
        %v2731 = vunpack.c.l.b16 %v2038
        %v2732 = vunpack.c.h.b16 %v2038
        %v2733 = vunpack.c.l.b16 %v2039
        %v2734 = vunpack.c.h.b16 %v2039
        %v2735 = vunpack.c.l.b16 %v2040
        %v2736 = vunpack.c.h.b16 %v2040
        %v2737 = vunpack.c.l.b16 %v2041
        %v2738 = vunpack.c.l.b16 %v2042
        %v2739 = vunpack.c.h.b16 %v2042
        %v2740 = vunpack.c.l.b16 %v2043
        %v2741 = vunpack.c.h.b16 %v2043
        %v2742 = vunpack.c.l.b16 %v2044
        %v2743 = vunpack.c.h.b16 %v2044
        %v2744 = vunpack.c.l.b16 %v2045
        %v2745 = vunpack.c.l.b16 %v2046
        %v2746 = vunpack.c.h.b16 %v2046
        %v2747 = vunpack.c.l.b16 %v2047
        %v2748 = vunpack.c.h.b16 %v2047
        %v2749 = vunpack.c.l.b16 %v2048
        %v2750 = vunpack.c.h.b16 %v2048
        %v2751 = vunpack.c.l.b16 %v2049
        %v2752 = vunpack.c.l.b16 %v2050
        %v2753 = vunpack.c.h.b16 %v2050
        %v2754 = vunpack.c.l.b16 %v2051
        %v2755 = vunpack.c.h.b16 %v2051
        %v2756 = vunpack.c.l.b16 %v2052
        %v2757 = vunpack.c.h.b16 %v2052
        %v2758 = vunpack.c.l.b16 %v2053
        %v2759 = vunpack.c.l.b16 %v2054
        %v2760 = vunpack.c.h.b16 %v2054
        %v2761 = vunpack.c.l.b16 %v2055
        %v2762 = vunpack.c.h.b16 %v2055
        %v2763 = vunpack.c.l.b16 %v2056
        %v2764 = vunpack.c.h.b16 %v2056
        %v2765 = vunpack.c.l.b16 %v2057
        %v2766 = vunpack.c.l.b16 %v2058
        %v2767 = vunpack.c.h.b16 %v2058
        %v2768 = vunpack.c.l.b16 %v2059
        %v2769 = vunpack.c.h.b16 %v2059
        %v2770 = vunpack.c.l.b16 %v2060
        %v2771 = vunpack.c.h.b16 %v2060
        %v2772 = vunpack.c.l.b16 %v2061
        %v2773 = vunpack.c.l.b16 %v2062
        %v2774 = vunpack.c.h.b16 %v2062
        %v2775 = vunpack.c.l.b16 %v2063
        %v2776 = vunpack.c.h.b16 %v2063
        %v2777 = vunpack.c.l.b16 %v2064
        %v2778 = vunpack.c.h.b16 %v2064
        %v2779 = vunpack.c.l.b16 %v2065
        %v2780 = vunpack.c.l.b16 %v2066
        %v2781 = vunpack.c.h.b16 %v2066
        %v2782 = vunpack.c.l.b16 %v2067
        %v2783 = vunpack.c.h.b16 %v2067
        %v2784 = vunpack.c.l.b16 %v2068
        %v2785 = vunpack.c.h.b16 %v2068
        %v2786 = vunpack.c.l.b16 %v2069
        %v2787 = vunpack.c.l.b16 %v2070
        %v2788 = vunpack.c.h.b16 %v2070
        %v2789 = vunpack.c.l.b16 %v2071
        %v2790 = vunpack.c.h.b16 %v2071
        %v2791 = vunpack.c.l.b16 %v2072
        %v2792 = vunpack.c.h.b16 %v2072
        %v2793 = vunpack.c.l.b16 %v2073
        %v2794 = vunpack.c.l.b16 %v2074
        %v2795 = vunpack.c.h.b16 %v2074
        %v2796 = vunpack.c.l.b16 %v2075
        %v2797 = vunpack.c.h.b16 %v2075
        %v2798 = vunpack.c.l.b16 %v2076
        %v2799 = vunpack.c.h.b16 %v2076
        %v2800 = vunpack.c.l.b16 %v2077
        %v2801 = vunpack.c.l.b16 %v2078
        %v2802 = vunpack.c.h.b16 %v2078
        %v2803 = vunpack.c.l.b16 %v2079
        %v2804 = vunpack.c.h.b16 %v2079
        %v2805 = vunpack.c.l.b16 %v2080
        %v2806 = vunpack.c.h.b16 %v2080
        %v2807 = vunpack.c.l.b16 %v2081
        %v2808 = vunpack.c.l.b16 %v2082
        %v2809 = vunpack.c.h.b16 %v2082
        %v2810 = vunpack.c.l.b16 %v2083
        %v2811 = vunpack.c.h.b16 %v2083
        %v2812 = vunpack.c.l.b16 %v2084
        %v2813 = vunpack.c.h.b16 %v2084
        %v2814 = vunpack.c.l.b16 %v2085
        %v2815 = vunpack.c.l.b16 %v2086
        %v2816 = vunpack.c.h.b16 %v2086
        %v2817 = vunpack.c.l.b16 %v2087
        %v2818 = vunpack.c.h.b16 %v2087
        %v2819 = vunpack.c.l.b16 %v2088
        %v2820 = vunpack.c.h.b16 %v2088
        %v2821 = vunpack.c.l.b16 %v2089
        %v2822 = vunpack.c.l.b16 %v2090
        %v2823 = vunpack.c.h.b16 %v2090
        %v2824 = vunpack.c.l.b16 %v2091
        %v2825 = vunpack.c.h.b16 %v2091
        %v2826 = vunpack.c.l.b16 %v2092
        %v2827 = vunpack.c.h.b16 %v2092
        %v2828 = vunpack.c.l.b16 %v2093
        %v2829 = vunpack.c.l.b16 %v2094
        %v2830 = vunpack.c.h.b16 %v2094
        %v2831 = vunpack.c.l.b16 %v2095
        %v2832 = vunpack.c.h.b16 %v2095
        %v2833 = vunpack.c.l.b16 %v2096
        %v2834 = vunpack.c.h.b16 %v2096
        %v2835 = vunpack.c.l.b16 %v2097
        %v2836 = vunpack.c.l.b16 %v2098
        %v2837 = vunpack.c.h.b16 %v2098
        %v2838 = vunpack.c.l.b16 %v2099
        %v2839 = vunpack.c.h.b16 %v2099
        %v2840 = vunpack.c.l.b16 %v2100
        %v2841 = vunpack.c.h.b16 %v2100
        %v2842 = vunpack.c.l.b16 %v2101
        %v2843 = vpack.c.b16 %v2402, %v2395
        %v2844 = vpack.c.b16 %v2403, %v2396
        %v2845 = vpack.c.b16 %v2404, %v2397
        %v2846 = vpack.c.b16 %v2405, %v2398
        %v2847 = vpack.c.b16 %v2406, %v2399
        %v2848 = vpack.c.b16 %v2407, %v2400
        %v2849 = vpack.c.b16 %v2408, %v2401
        %v2850 = vpack.c.b16 %v2416, %v2409
        %v2851 = vpack.c.b16 %v2417, %v2410
        %v2852 = vpack.c.b16 %v2418, %v2411
        %v2853 = vpack.c.b16 %v2419, %v2412
        %v2854 = vpack.c.b16 %v2420, %v2413
        %v2855 = vpack.c.b16 %v2421, %v2414
        %v2856 = vpack.c.b16 %v2422, %v2415
        %v2857 = vpack.c.b16 %v2430, %v2423
        %v2858 = vpack.c.b16 %v2431, %v2424
        %v2859 = vpack.c.b16 %v2432, %v2425
        %v2860 = vpack.c.b16 %v2433, %v2426
        %v2861 = vpack.c.b16 %v2434, %v2427
        %v2862 = vpack.c.b16 %v2435, %v2428
        %v2863 = vpack.c.b16 %v2436, %v2429
        %v2864 = vpack.c.b16 %v2444, %v2437
        %v2865 = vpack.c.b16 %v2445, %v2438
        %v2866 = vpack.c.b16 %v2446, %v2439
        %v2867 = vpack.c.b16 %v2447, %v2440
        %v2868 = vpack.c.b16 %v2448, %v2441
        %v2869 = vpack.c.b16 %v2449, %v2442
        %v2870 = vpack.c.b16 %v2450, %v2443
        %v2871 = vpack.c.b16 %v2458, %v2451
        %v2872 = vpack.c.b16 %v2459, %v2452
        %v2873 = vpack.c.b16 %v2460, %v2453
        %v2874 = vpack.c.b16 %v2461, %v2454
        %v2875 = vpack.c.b16 %v2462, %v2455
        %v2876 = vpack.c.b16 %v2463, %v2456
        %v2877 = vpack.c.b16 %v2464, %v2457
        %v2878 = vpack.c.b16 %v2472, %v2465
        %v2879 = vpack.c.b16 %v2473, %v2466
        %v2880 = vpack.c.b16 %v2474, %v2467
        %v2881 = vpack.c.b16 %v2475, %v2468
        %v2882 = vpack.c.b16 %v2476, %v2469
        %v2883 = vpack.c.b16 %v2477, %v2470
        %v2884 = vpack.c.b16 %v2478, %v2471
        %v2885 = vpack.c.b16 %v2486, %v2479
        %v2886 = vpack.c.b16 %v2487, %v2480
        %v2887 = vpack.c.b16 %v2488, %v2481
        %v2888 = vpack.c.b16 %v2489, %v2482
        %v2889 = vpack.c.b16 %v2490, %v2483
        %v2890 = vpack.c.b16 %v2491, %v2484
        %v2891 = vpack.c.b16 %v2492, %v2485
        %v2892 = vpack.c.b16 %v2500, %v2493
        %v2893 = vpack.c.b16 %v2501, %v2494
        %v2894 = vpack.c.b16 %v2502, %v2495
        %v2895 = vpack.c.b16 %v2503, %v2496
        %v2896 = vpack.c.b16 %v2504, %v2497
        %v2897 = vpack.c.b16 %v2505, %v2498
        %v2898 = vpack.c.b16 %v2506, %v2499
        %v2899 = vpack.c.b16 %v2514, %v2507
        %v2900 = vpack.c.b16 %v2515, %v2508
        %v2901 = vpack.c.b16 %v2516, %v2509
        %v2902 = vpack.c.b16 %v2517, %v2510
        %v2903 = vpack.c.b16 %v2518, %v2511
        %v2904 = vpack.c.b16 %v2519, %v2512
        %v2905 = vpack.c.b16 %v2520, %v2513
        %v2906 = vpack.c.b16 %v2528, %v2521
        %v2907 = vpack.c.b16 %v2529, %v2522
        %v2908 = vpack.c.b16 %v2530, %v2523
        %v2909 = vpack.c.b16 %v2531, %v2524
        %v2910 = vpack.c.b16 %v2532, %v2525
        %v2911 = vpack.c.b16 %v2533, %v2526
        %v2912 = vpack.c.b16 %v2534, %v2527
        %v2913 = vpack.c.b16 %v2542, %v2535
        %v2914 = vpack.c.b16 %v2543, %v2536
        %v2915 = vpack.c.b16 %v2544, %v2537
        %v2916 = vpack.c.b16 %v2545, %v2538
        %v2917 = vpack.c.b16 %v2546, %v2539
        %v2918 = vpack.c.b16 %v2547, %v2540
        %v2919 = vpack.c.b16 %v2548, %v2541
        %v2920 = vpack.c.b16 %v2556, %v2549
        %v2921 = vpack.c.b16 %v2557, %v2550
        %v2922 = vpack.c.b16 %v2558, %v2551
        %v2923 = vpack.c.b16 %v2559, %v2552
        %v2924 = vpack.c.b16 %v2560, %v2553
        %v2925 = vpack.c.b16 %v2561, %v2554
        %v2926 = vpack.c.b16 %v2562, %v2555
        %v2927 = vpack.c.b16 %v2570, %v2563
        %v2928 = vpack.c.b16 %v2571, %v2564
        %v2929 = vpack.c.b16 %v2572, %v2565
        %v2930 = vpack.c.b16 %v2573, %v2566
        %v2931 = vpack.c.b16 %v2574, %v2567
        %v2932 = vpack.c.b16 %v2575, %v2568
        %v2933 = vpack.c.b16 %v2576, %v2569
        %v2934 = vpack.c.b16 %v2584, %v2577
        %v2935 = vpack.c.b16 %v2585, %v2578
        %v2936 = vpack.c.b16 %v2586, %v2579
        %v2937 = vpack.c.b16 %v2587, %v2580
        %v2938 = vpack.c.b16 %v2588, %v2581
        %v2939 = vpack.c.b16 %v2589, %v2582
        %v2940 = vpack.c.b16 %v2590, %v2583
        %v2941 = vpack.c.b16 %v2598, %v2591
        %v2942 = vpack.c.b16 %v2599, %v2592
        %v2943 = vpack.c.b16 %v2600, %v2593
        %v2944 = vpack.c.b16 %v2601, %v2594
        %v2945 = vpack.c.b16 %v2602, %v2595
        %v2946 = vpack.c.b16 %v2603, %v2596
        %v2947 = vpack.c.b16 %v2604, %v2597
        %v2948 = vpack.c.b16 %v2612, %v2605
        %v2949 = vpack.c.b16 %v2613, %v2606
        %v2950 = vpack.c.b16 %v2614, %v2607
        %v2951 = vpack.c.b16 %v2615, %v2608
        %v2952 = vpack.c.b16 %v2616, %v2609
        %v2953 = vpack.c.b16 %v2617, %v2610
        %v2954 = vpack.c.b16 %v2618, %v2611
        %v2955 = vpack.c.b16 %v2626, %v2619
        %v2956 = vpack.c.b16 %v2627, %v2620
        %v2957 = vpack.c.b16 %v2628, %v2621
        %v2958 = vpack.c.b16 %v2629, %v2622
        %v2959 = vpack.c.b16 %v2630, %v2623
        %v2960 = vpack.c.b16 %v2631, %v2624
        %v2961 = vpack.c.b16 %v2632, %v2625
        %v2962 = vpack.c.b16 %v2640, %v2633
        %v2963 = vpack.c.b16 %v2641, %v2634
        %v2964 = vpack.c.b16 %v2642, %v2635
        %v2965 = vpack.c.b16 %v2643, %v2636
        %v2966 = vpack.c.b16 %v2644, %v2637
        %v2967 = vpack.c.b16 %v2645, %v2638
        %v2968 = vpack.c.b16 %v2646, %v2639
        %v2969 = vpack.c.b16 %v2654, %v2647
        %v2970 = vpack.c.b16 %v2655, %v2648
        %v2971 = vpack.c.b16 %v2656, %v2649
        %v2972 = vpack.c.b16 %v2657, %v2650
        %v2973 = vpack.c.b16 %v2658, %v2651
        %v2974 = vpack.c.b16 %v2659, %v2652
        %v2975 = vpack.c.b16 %v2660, %v2653
        %v2976 = vpack.c.b16 %v2668, %v2661
        %v2977 = vpack.c.b16 %v2669, %v2662
        %v2978 = vpack.c.b16 %v2670, %v2663
        %v2979 = vpack.c.b16 %v2671, %v2664
        %v2980 = vpack.c.b16 %v2672, %v2665
        %v2981 = vpack.c.b16 %v2673, %v2666
        %v2982 = vpack.c.b16 %v2674, %v2667
        %v2983 = vpack.c.b16 %v2682, %v2675
        %v2984 = vpack.c.b16 %v2683, %v2676
        %v2985 = vpack.c.b16 %v2684, %v2677
        %v2986 = vpack.c.b16 %v2685, %v2678
        %v2987 = vpack.c.b16 %v2686, %v2679
        %v2988 = vpack.c.b16 %v2687, %v2680
        %v2989 = vpack.c.b16 %v2688, %v2681
        %v2990 = vpack.c.b16 %v2696, %v2689
        %v2991 = vpack.c.b16 %v2697, %v2690
        %v2992 = vpack.c.b16 %v2698, %v2691
        %v2993 = vpack.c.b16 %v2699, %v2692
        %v2994 = vpack.c.b16 %v2700, %v2693
        %v2995 = vpack.c.b16 %v2701, %v2694
        %v2996 = vpack.c.b16 %v2702, %v2695
        %v2997 = vpack.c.b16 %v2710, %v2703
        %v2998 = vpack.c.b16 %v2711, %v2704
        %v2999 = vpack.c.b16 %v2712, %v2705
        %v3000 = vpack.c.b16 %v2713, %v2706
        %v3001 = vpack.c.b16 %v2714, %v2707
        %v3002 = vpack.c.b16 %v2715, %v2708
        %v3003 = vpack.c.b16 %v2716, %v2709
        %v3004 = vpack.c.b16 %v2724, %v2717
        %v3005 = vpack.c.b16 %v2725, %v2718
        %v3006 = vpack.c.b16 %v2726, %v2719
        %v3007 = vpack.c.b16 %v2727, %v2720
        %v3008 = vpack.c.b16 %v2728, %v2721
        %v3009 = vpack.c.b16 %v2729, %v2722
        %v3010 = vpack.c.b16 %v2730, %v2723
        %v3011 = vpack.c.b16 %v2738, %v2731
        %v3012 = vpack.c.b16 %v2739, %v2732
        %v3013 = vpack.c.b16 %v2740, %v2733
        %v3014 = vpack.c.b16 %v2741, %v2734
        %v3015 = vpack.c.b16 %v2742, %v2735
        %v3016 = vpack.c.b16 %v2743, %v2736
        %v3017 = vpack.c.b16 %v2744, %v2737
        %v3018 = vpack.c.b16 %v2752, %v2745
        %v3019 = vpack.c.b16 %v2753, %v2746
        %v3020 = vpack.c.b16 %v2754, %v2747
        %v3021 = vpack.c.b16 %v2755, %v2748
        %v3022 = vpack.c.b16 %v2756, %v2749
        %v3023 = vpack.c.b16 %v2757, %v2750
        %v3024 = vpack.c.b16 %v2758, %v2751
        %v3025 = vpack.c.b16 %v2766, %v2759
        %v3026 = vpack.c.b16 %v2767, %v2760
        %v3027 = vpack.c.b16 %v2768, %v2761
        %v3028 = vpack.c.b16 %v2769, %v2762
        %v3029 = vpack.c.b16 %v2770, %v2763
        %v3030 = vpack.c.b16 %v2771, %v2764
        %v3031 = vpack.c.b16 %v2772, %v2765
        %v3032 = vpack.c.b16 %v2780, %v2773
        %v3033 = vpack.c.b16 %v2781, %v2774
        %v3034 = vpack.c.b16 %v2782, %v2775
        %v3035 = vpack.c.b16 %v2783, %v2776
        %v3036 = vpack.c.b16 %v2784, %v2777
        %v3037 = vpack.c.b16 %v2785, %v2778
        %v3038 = vpack.c.b16 %v2786, %v2779
        %v3039 = vpack.c.b16 %v2794, %v2787
        %v3040 = vpack.c.b16 %v2795, %v2788
        %v3041 = vpack.c.b16 %v2796, %v2789
        %v3042 = vpack.c.b16 %v2797, %v2790
        %v3043 = vpack.c.b16 %v2798, %v2791
        %v3044 = vpack.c.b16 %v2799, %v2792
        %v3045 = vpack.c.b16 %v2800, %v2793
        %v3046 = vpack.c.b16 %v2808, %v2801
        %v3047 = vpack.c.b16 %v2809, %v2802
        %v3048 = vpack.c.b16 %v2810, %v2803
        %v3049 = vpack.c.b16 %v2811, %v2804
        %v3050 = vpack.c.b16 %v2812, %v2805
        %v3051 = vpack.c.b16 %v2813, %v2806
        %v3052 = vpack.c.b16 %v2814, %v2807
        %v3053 = vpack.c.b16 %v2822, %v2815
        %v3054 = vpack.c.b16 %v2823, %v2816
        %v3055 = vpack.c.b16 %v2824, %v2817
        %v3056 = vpack.c.b16 %v2825, %v2818
        %v3057 = vpack.c.b16 %v2826, %v2819
        %v3058 = vpack.c.b16 %v2827, %v2820
        %v3059 = vpack.c.b16 %v2828, %v2821
        %v3060 = vpack.c.b16 %v2836, %v2829
        %v3061 = vpack.c.b16 %v2837, %v2830
        %v3062 = vpack.c.b16 %v2838, %v2831
        %v3063 = vpack.c.b16 %v2839, %v2832
        %v3064 = vpack.c.b16 %v2840, %v2833
        %v3065 = vpack.c.b16 %v2841, %v2834
        %v3066 = vpack.c.b16 %v2842, %v2835
        %3291 = vmatprep.subr.bf16.mxu0 %v2844
        %3292 = vmatpush1.bf16.msra.mxu0 %v2843
        %3293 = vmatprep.subr.bf16.mxu0 %v2851
        %3294 = vmatpush1.bf16.msra.mxu0 %v2850
        %3295 = vmatprep.subr.bf16.mxu0 %v2858
        %3296 = vmatpush1.bf16.msra.mxu0 %v2857
        %3297 = vmatprep.subr.bf16.mxu0 %v2865
        %3298 = vmatpush1.bf16.msra.mxu0 %v2864
        %3299 = vmatprep.subr.bf16.mxu0 %v2872
        %3300 = vmatpush1.bf16.msra.mxu0 %v2871
        %3301 = vmatprep.subr.bf16.mxu0 %v2879
        %3302 = vmatpush1.bf16.msra.mxu0 %v2878
        %3303 = vmatprep.subr.bf16.mxu0 %v2886
        %3304 = vmatpush1.bf16.msra.mxu0 %v2885
        %3305 = vmatprep.subr.bf16.mxu0 %v2893
        %3306 = vmatpush1.bf16.msra.mxu0 %v2892
        %3307 = vmatprep.subr.bf16.mxu0 %v2900
        %3308 = vmatpush1.bf16.msra.mxu0 %v2899
        %3309 = vmatprep.subr.bf16.mxu0 %v2907
        %3310 = vmatpush1.bf16.msra.mxu0 %v2906
        %3311 = vmatprep.subr.bf16.mxu0 %v2914
        %3312 = vmatpush1.bf16.msra.mxu0 %v2913
        %3313 = vmatprep.subr.bf16.mxu0 %v2921
        %3314 = vmatpush1.bf16.msra.mxu0 %v2920
        %3315 = vmatprep.subr.bf16.mxu0 %v2928
        %3316 = vmatpush1.bf16.msra.mxu0 %v2927
        %3317 = vmatprep.subr.bf16.mxu0 %v2935
        %3318 = vmatpush1.bf16.msra.mxu0 %v2934
        %3319 = vmatprep.subr.bf16.mxu0 %v2942
        %3320 = vmatpush1.bf16.msra.mxu0 %v2941
        %3321 = vmatprep.subr.bf16.mxu0 %v2949
        %3322 = vmatpush1.bf16.msra.mxu0 %v2948
        %3323 = vmatprep.mubr.bf16.mxu0 %v1719
        %3324 = vmatmul.mubr.bf16.gmra.mrb[0].mxu0 %v1718
        %v3325 = vpop.f32.mrb[0].mxu0
        %v3326 = vadd.f32 %v2107, %v3325
        %v3327 = vpop.f32.mrb[0].mxu0
        %v3328 = vadd.f32 %v2111, %v3327
        %v3329 = vpop.f32.mrb[0].mxu0
        %v3330 = vadd.f32 %v2107, %v3329
        %v3331 = vpop.f32.mrb[0].mxu0
        %v3332 = vadd.f32 %v2111, %v3331
        %3333 = vmatprep.mubr.bf16.mxu0 %v1723
        %3334 = vmatmul.mubr.bf16.gmra.mrb[0].mxu0 %v1722
        %v3335 = vpop.f32.mrb[0].mxu0
        %v3336 = vadd.f32 %v2107, %v3335
        %v3337 = vpop.f32.mrb[0].mxu0
        %v3338 = vadd.f32 %v2111, %v3337
        %v3339 = vpop.f32.mrb[0].mxu0
        %v3340 = vadd.f32 %v2107, %v3339
        %v3341 = vpop.f32.mrb[0].mxu0
        %v3342 = vadd.f32 %v2111, %v3341
        %3343 = vmatprep.mubr.bf16.mxu0 %v1727
        %3344 = vmatmul.mubr.bf16.gmra.mrb[0].mxu0 %v1726
        %v3345 = vpop.f32.mrb[0].mxu0
        %v3346 = vadd.f32 %v2107, %v3345
        %v3347 = vpop.f32.mrb[0].mxu0
        %v3348 = vadd.f32 %v2111, %v3347
        %v3349 = vpop.f32.mrb[0].mxu0
        %v3350 = vadd.f32 %v2107, %v3349
        %v3351 = vpop.f32.mrb[0].mxu0
        %v3352 = vadd.f32 %v2111, %v3351
        %3353 = vmatprep.mubr.bf16.mxu0 %v1731
        %3354 = vmatmul.mubr.bf16.gmra.mrb[0].mxu0 %v1730
        %v3355 = vpop.f32.mrb[0].mxu0
        %v3356 = vadd.f32 %v2107, %v3355
        %v3357 = vpop.f32.mrb[0].mxu0
        %v3358 = vadd.f32 %v2111, %v3357
        %v3359 = vpop.f32.mrb[0].mxu0
        %v3360 = vadd.f32 %v2107, %v3359
        %v3361 = vpop.f32.mrb[0].mxu0
        %v3362 = vadd.f32 %v2111, %v3361
        %3363 = vmatprep.mubr.bf16.mxu0 %v1735
        %3364 = vmatmul.mubr.bf16.gmra.mrb[0].mxu0 %v1734
        %v3365 = vpop.f32.mrb[0].mxu0
        %v3366 = vadd.f32 %v2107, %v3365
        %v3367 = vpop.f32.mrb[0].mxu0
        %v3368 = vadd.f32 %v2111, %v3367
        %v3369 = vpop.f32.mrb[0].mxu0
        %v3370 = vadd.f32 %v2107, %v3369
        %v3371 = vpop.f32.mrb[0].mxu0
        %v3372 = vadd.f32 %v2111, %v3371
        %3373 = vmatprep.mubr.bf16.mxu0 %v1739
        %3374 = vmatmul.mubr.bf16.gmra.mrb[0].mxu0 %v1738
        %v3375 = vpop.f32.mrb[0].mxu0
        %v3376 = vadd.f32 %v2107, %v3375
        %v3377 = vpop.f32.mrb[0].mxu0
        %v3378 = vadd.f32 %v2111, %v3377
        %v3379 = vpop.f32.mrb[0].mxu0
        %v3380 = vadd.f32 %v2107, %v3379
        %v3381 = vpop.f32.mrb[0].mxu0
        %v3382 = vadd.f32 %v2111, %v3381
        %3383 = vmatprep.mubr.bf16.mxu0 %v1743
        %3384 = vmatmul.mubr.bf16.gmra.mrb[0].mxu0 %v1742
        %v3385 = vpop.f32.mrb[0].mxu0
        %v3386 = vadd.f32 %v2107, %v3385
        %v3387 = vpop.f32.mrb[0].mxu0
        %v3388 = vadd.f32 %v2111, %v3387
        %v3389 = vpop.f32.mrb[0].mxu0
        %v3390 = vadd.f32 %v2107, %v3389
        %v3391 = vpop.f32.mrb[0].mxu0
        %v3392 = vadd.f32 %v2111, %v3391
        %3393 = vmatprep.mubr.bf16.mxu0 %v1747
        %3394 = vmatmul.mubr.bf16.gmra.mrb[0].mxu0 %v1746
        %v3395 = vpop.f32.mrb[0].mxu0
        %v3396 = vadd.f32 %v2107, %v3395
        %v3397 = vpop.f32.mrb[0].mxu0
        %v3398 = vadd.f32 %v2111, %v3397
        %v3399 = vpop.f32.mrb[0].mxu0
        %v3400 = vadd.f32 %v2107, %v3399
        %v3401 = vpop.f32.mrb[0].mxu0
        %v3402 = vadd.f32 %v2111, %v3401
        %3403 = vmatprep.mubr.bf16.mxu0 %v1751
        %3404 = vmatmul.mubr.bf16.gmra.mrb[0].mxu0 %v1750
        %v3405 = vpop.f32.mrb[0].mxu0
        %v3406 = vadd.f32 %v2107, %v3405
        %v3407 = vpop.f32.mrb[0].mxu0
        %v3408 = vadd.f32 %v2111, %v3407
        %v3409 = vpop.f32.mrb[0].mxu0
        %v3410 = vadd.f32 %v2107, %v3409
        %v3411 = vpop.f32.mrb[0].mxu0
        %v3412 = vadd.f32 %v2111, %v3411
        %3413 = vmatprep.mubr.bf16.mxu0 %v1755
        %3414 = vmatmul.mubr.bf16.gmra.mrb[0].mxu0 %v1754
        %v3415 = vpop.f32.mrb[0].mxu0
        %v3416 = vadd.f32 %v2107, %v3415
        %v3417 = vpop.f32.mrb[0].mxu0
        %v3418 = vadd.f32 %v2111, %v3417
        %v3419 = vpop.f32.mrb[0].mxu0
        %v3420 = vadd.f32 %v2107, %v3419
        %v3421 = vpop.f32.mrb[0].mxu0
        %v3422 = vadd.f32 %v2111, %v3421
        %3423 = vmatprep.mubr.bf16.mxu0 %v1759
        %3424 = vmatmul.mubr.bf16.gmra.mrb[0].mxu0 %v1758
        %v3425 = vpop.f32.mrb[0].mxu0
        %v3426 = vadd.f32 %v2107, %v3425
        %v3427 = vpop.f32.mrb[0].mxu0
        %v3428 = vadd.f32 %v2111, %v3427
        %v3429 = vpop.f32.mrb[0].mxu0
        %v3430 = vadd.f32 %v2107, %v3429
        %v3431 = vpop.f32.mrb[0].mxu0
        %v3432 = vadd.f32 %v2111, %v3431
        %3433 = vmatprep.mubr.bf16.mxu0 %v1763
        %3434 = vmatmul.mubr.bf16.gmra.mrb[0].mxu0 %v1762
        %v3435 = vpop.f32.mrb[0].mxu0
        %v3436 = vadd.f32 %v2107, %v3435
        %v3437 = vpop.f32.mrb[0].mxu0
        %v3438 = vadd.f32 %v2111, %v3437
        %v3439 = vpop.f32.mrb[0].mxu0
        %v3440 = vadd.f32 %v2107, %v3439
        %v3441 = vpop.f32.mrb[0].mxu0
        %v3442 = vadd.f32 %v2111, %v3441
        %3443 = vmatprep.mubr.bf16.mxu0 %v1767
        %3444 = vmatmul.mubr.bf16.gmra.mrb[0].mxu0 %v1766
        %v3445 = vpop.f32.mrb[0].mxu0
        %v3446 = vadd.f32 %v2107, %v3445
        %v3447 = vpop.f32.mrb[0].mxu0
        %v3448 = vadd.f32 %v2111, %v3447
        %v3449 = vpop.f32.mrb[0].mxu0
        %v3450 = vadd.f32 %v2107, %v3449
        %v3451 = vpop.f32.mrb[0].mxu0
        %v3452 = vadd.f32 %v2111, %v3451
        %3453 = vmatprep.mubr.bf16.mxu0 %v1771
        %3454 = vmatmul.mubr.bf16.gmra.mrb[0].mxu0 %v1770
        %v3455 = vpop.f32.mrb[0].mxu0
        %v3456 = vadd.f32 %v2107, %v3455
        %v3457 = vpop.f32.mrb[0].mxu0
        %v3458 = vadd.f32 %v2111, %v3457
        %v3459 = vpop.f32.mrb[0].mxu0
        %v3460 = vadd.f32 %v2107, %v3459
        %v3461 = vpop.f32.mrb[0].mxu0
        %v3462 = vadd.f32 %v2111, %v3461
        %3463 = vmatprep.mubr.bf16.mxu0 %v1775
        %3464 = vmatmul.mubr.bf16.gmra.mrb[0].mxu0 %v1774
        %v3465 = vpop.f32.mrb[0].mxu0
        %v3466 = vadd.f32 %v2107, %v3465
        %v3467 = vpop.f32.mrb[0].mxu0
        %v3468 = vadd.f32 %v2111, %v3467
        %v3469 = vpop.f32.mrb[0].mxu0
        %v3470 = vadd.f32 %v2107, %v3469
        %v3471 = vpop.f32.mrb[0].mxu0
        %v3472 = vadd.f32 %v2111, %v3471
        %3473 = vmatprep.mubr.bf16.mxu0 %v1779
        %3474 = vmatmul.mubr.bf16.gmra.mrb[0].mxu0 %v1778
        %v3475 = vpop.f32.mrb[0].mxu0
        %v3476 = vadd.f32 %v2107, %v3475
        %v3477 = vpop.f32.mrb[0].mxu0
        %v3478 = vadd.f32 %v2111, %v3477
        %v3479 = vpop.f32.mrb[0].mxu0
        %v3480 = vadd.f32 %v2107, %v3479
        %v3481 = vpop.f32.mrb[0].mxu0
        %v3482 = vadd.f32 %v2111, %v3481
        %3483 = vmatprep.mubr.bf16.mxu0 %v1783
        %3484 = vmatmul.mubr.bf16.gmra.mrb[0].mxu0 %v1782
        %v3485 = vpop.f32.mrb[0].mxu0
        %v3486 = vadd.f32 %v2107, %v3485
        %v3487 = vpop.f32.mrb[0].mxu0
        %v3488 = vadd.f32 %v2111, %v3487
        %v3489 = vpop.f32.mrb[0].mxu0
        %v3490 = vadd.f32 %v2107, %v3489
        %v3491 = vpop.f32.mrb[0].mxu0
        %v3492 = vadd.f32 %v2111, %v3491
        %3493 = vmatprep.mubr.bf16.mxu0 %v1787
        %3494 = vmatmul.mubr.bf16.gmra.mrb[0].mxu0 %v1786
        %v3495 = vpop.f32.mrb[0].mxu0
        %v3496 = vadd.f32 %v2107, %v3495
        %v3497 = vpop.f32.mrb[0].mxu0
        %v3498 = vadd.f32 %v2111, %v3497
        %v3499 = vpop.f32.mrb[0].mxu0
        %v3500 = vadd.f32 %v2107, %v3499
        %v3501 = vpop.f32.mrb[0].mxu0
        %v3502 = vadd.f32 %v2111, %v3501
        %3503 = vmatprep.mubr.bf16.mxu0 %v1791
        %3504 = vmatmul.mubr.bf16.gmra.mrb[0].mxu0 %v1790
        %v3505 = vpop.f32.mrb[0].mxu0
        %v3506 = vadd.f32 %v2107, %v3505
        %v3507 = vpop.f32.mrb[0].mxu0
        %v3508 = vadd.f32 %v2111, %v3507
        %v3509 = vpop.f32.mrb[0].mxu0
        %v3510 = vadd.f32 %v2107, %v3509
        %v3511 = vpop.f32.mrb[0].mxu0
        %v3512 = vadd.f32 %v2111, %v3511
        %3513 = vmatprep.mubr.bf16.mxu0 %v1795
        %3514 = vmatmul.mubr.bf16.gmra.mrb[0].mxu0 %v1794
        %v3515 = vpop.f32.mrb[0].mxu0
        %v3516 = vadd.f32 %v2107, %v3515
        %v3517 = vpop.f32.mrb[0].mxu0
        %v3518 = vadd.f32 %v2111, %v3517
        %v3519 = vpop.f32.mrb[0].mxu0
        %v3520 = vadd.f32 %v2107, %v3519
        %v3521 = vpop.f32.mrb[0].mxu0
        %v3522 = vadd.f32 %v2111, %v3521
        %3523 = vmatprep.mubr.bf16.mxu0 %v1799
        %3524 = vmatmul.mubr.bf16.gmra.mrb[0].mxu0 %v1798
        %v3525 = vpop.f32.mrb[0].mxu0
        %v3526 = vadd.f32 %v2107, %v3525
        %v3527 = vpop.f32.mrb[0].mxu0
        %v3528 = vadd.f32 %v2111, %v3527
        %v3529 = vpop.f32.mrb[0].mxu0
        %v3530 = vadd.f32 %v2107, %v3529
        %v3531 = vpop.f32.mrb[0].mxu0
        %v3532 = vadd.f32 %v2111, %v3531
        %3533 = vmatprep.mubr.bf16.mxu0 %v1803
        %3534 = vmatmul.mubr.bf16.gmra.mrb[0].mxu0 %v1802
        %v3535 = vpop.f32.mrb[0].mxu0
        %v3536 = vadd.f32 %v2107, %v3535
        %v3537 = vpop.f32.mrb[0].mxu0
        %v3538 = vadd.f32 %v2111, %v3537
        %v3539 = vpop.f32.mrb[0].mxu0
        %v3540 = vadd.f32 %v2107, %v3539
        %v3541 = vpop.f32.mrb[0].mxu0
        %v3542 = vadd.f32 %v2111, %v3541
        %3543 = vmatprep.mubr.bf16.mxu0 %v1807
        %3544 = vmatmul.mubr.bf16.gmra.mrb[0].mxu0 %v1806
        %v3545 = vpop.f32.mrb[0].mxu0
        %v3546 = vadd.f32 %v2107, %v3545
        %v3547 = vpop.f32.mrb[0].mxu0
        %v3548 = vadd.f32 %v2111, %v3547
        %v3549 = vpop.f32.mrb[0].mxu0
        %v3550 = vadd.f32 %v2107, %v3549
        %v3551 = vpop.f32.mrb[0].mxu0
        %v3552 = vadd.f32 %v2111, %v3551
        %3553 = vmatprep.mubr.bf16.mxu0 %v1811
        %3554 = vmatmul.mubr.bf16.gmra.mrb[0].mxu0 %v1810
        %v3555 = vpop.f32.mrb[0].mxu0
        %v3556 = vadd.f32 %v2107, %v3555
        %v3557 = vpop.f32.mrb[0].mxu0
        %v3558 = vadd.f32 %v2111, %v3557
        %v3559 = vpop.f32.mrb[0].mxu0
        %v3560 = vadd.f32 %v2107, %v3559
        %v3561 = vpop.f32.mrb[0].mxu0
        %v3562 = vadd.f32 %v2111, %v3561
        %3563 = vmatprep.mubr.bf16.mxu0 %v1815
        %3564 = vmatmul.mubr.bf16.gmra.mrb[0].mxu0 %v1814
        %v3565 = vpop.f32.mrb[0].mxu0
        %v3566 = vadd.f32 %v2107, %v3565
        %v3567 = vpop.f32.mrb[0].mxu0
        %v3568 = vadd.f32 %v2111, %v3567
        %v3569 = vpop.f32.mrb[0].mxu0
        %v3570 = vadd.f32 %v2107, %v3569
        %v3571 = vpop.f32.mrb[0].mxu0
        %v3572 = vadd.f32 %v2111, %v3571
        %3573 = vmatprep.mubr.bf16.mxu0 %v1819
        %3574 = vmatmul.mubr.bf16.gmra.mrb[0].mxu0 %v1818
        %v3575 = vpop.f32.mrb[0].mxu0
        %v3576 = vadd.f32 %v2107, %v3575
        %v3577 = vpop.f32.mrb[0].mxu0
        %v3578 = vadd.f32 %v2111, %v3577
        %v3579 = vpop.f32.mrb[0].mxu0
        %v3580 = vadd.f32 %v2107, %v3579
        %v3581 = vpop.f32.mrb[0].mxu0
        %v3582 = vadd.f32 %v2111, %v3581
        %3583 = vmatprep.mubr.bf16.mxu0 %v1823
        %3584 = vmatmul.mubr.bf16.gmra.mrb[0].mxu0 %v1822
        %v3585 = vpop.f32.mrb[0].mxu0
        %v3586 = vadd.f32 %v2107, %v3585
        %v3587 = vpop.f32.mrb[0].mxu0
        %v3588 = vadd.f32 %v2111, %v3587
        %v3589 = vpop.f32.mrb[0].mxu0
        %v3590 = vadd.f32 %v2107, %v3589
        %v3591 = vpop.f32.mrb[0].mxu0
        %v3592 = vadd.f32 %v2111, %v3591
        %3593 = vmatprep.mubr.bf16.mxu0 %v1827
        %3594 = vmatmul.mubr.bf16.gmra.mrb[0].mxu0 %v1826
        %v3595 = vpop.f32.mrb[0].mxu0
        %v3596 = vadd.f32 %v2107, %v3595
        %v3597 = vpop.f32.mrb[0].mxu0
        %v3598 = vadd.f32 %v2111, %v3597
        %v3599 = vpop.f32.mrb[0].mxu0
        %v3600 = vadd.f32 %v2107, %v3599
        %v3601 = vpop.f32.mrb[0].mxu0
        %v3602 = vadd.f32 %v2111, %v3601
        %3603 = vmatprep.mubr.bf16.mxu0 %v1831
        %3604 = vmatmul.mubr.bf16.gmra.mrb[0].mxu0 %v1830
        %v3605 = vpop.f32.mrb[0].mxu0
        %v3606 = vadd.f32 %v2107, %v3605
        %v3607 = vpop.f32.mrb[0].mxu0
        %v3608 = vadd.f32 %v2111, %v3607
        %v3609 = vpop.f32.mrb[0].mxu0
        %v3610 = vadd.f32 %v2107, %v3609
        %v3611 = vpop.f32.mrb[0].mxu0
        %v3612 = vadd.f32 %v2111, %v3611
        %3613 = vmatprep.mubr.bf16.mxu0 %v1835
        %3614 = vmatmul.mubr.bf16.gmra.mrb[0].mxu0 %v1834
        %v3615 = vpop.f32.mrb[0].mxu0
        %v3616 = vadd.f32 %v2107, %v3615
        %v3617 = vpop.f32.mrb[0].mxu0
        %v3618 = vadd.f32 %v2111, %v3617
        %v3619 = vpop.f32.mrb[0].mxu0
        %v3620 = vadd.f32 %v2107, %v3619
        %v3621 = vpop.f32.mrb[0].mxu0
        %v3622 = vadd.f32 %v2111, %v3621
        %3623 = vmatprep.mubr.bf16.mxu0 %v1839
        %3624 = vmatmul.mubr.bf16.gmra.mrb[0].mxu0 %v1838
        %v3625 = vpop.f32.mrb[0].mxu0
        %v3626 = vadd.f32 %v2107, %v3625
        %v3627 = vpop.f32.mrb[0].mxu0
        %v3628 = vadd.f32 %v2111, %v3627
        %v3629 = vpop.f32.mrb[0].mxu0
        %v3630 = vadd.f32 %v2107, %v3629
        %v3631 = vpop.f32.mrb[0].mxu0
        %v3632 = vadd.f32 %v2111, %v3631
        %3633 = vmatprep.mubr.bf16.mxu0 %v1843
        %3634 = vmatmul.mubr.bf16.gmra.mrb[0].mxu0 %v1842
        %v3635 = vpop.f32.mrb[0].mxu0
        %v3636 = vadd.f32 %v2107, %v3635
        %v3637 = vpop.f32.mrb[0].mxu0
        %v3638 = vadd.f32 %v2111, %v3637
        %v3639 = vpop.f32.mrb[0].mxu0
        %v3640 = vadd.f32 %v2107, %v3639
        %v3641 = vpop.f32.mrb[0].mxu0
        %v3642 = vadd.f32 %v2111, %v3641
        %3643 = vdwg.mxu0
        %3644 = vmatprep.subr.bf16.mxu0 %v2956
        %3645 = vmatpush1.bf16.msra.mxu0 %v2955
        %3646 = vmatprep.subr.bf16.mxu0 %v2963
        %3647 = vmatpush1.bf16.msra.mxu0 %v2962
        %3648 = vmatprep.subr.bf16.mxu0 %v2970
        %3649 = vmatpush1.bf16.msra.mxu0 %v2969
        %3650 = vmatprep.subr.bf16.mxu0 %v2977
        %3651 = vmatpush1.bf16.msra.mxu0 %v2976
        %3652 = vmatprep.subr.bf16.mxu0 %v2984
        %3653 = vmatpush1.bf16.msra.mxu0 %v2983
        %3654 = vmatprep.subr.bf16.mxu0 %v2991
        %3655 = vmatpush1.bf16.msra.mxu0 %v2990
        %3656 = vmatprep.subr.bf16.mxu0 %v2998
        %3657 = vmatpush1.bf16.msra.mxu0 %v2997
        %3658 = vmatprep.subr.bf16.mxu0 %v3005
        %3659 = vmatpush1.bf16.msra.mxu0 %v3004
        %3660 = vmatprep.subr.bf16.mxu0 %v3012
        %3661 = vmatpush1.bf16.msra.mxu0 %v3011
        %3662 = vmatprep.subr.bf16.mxu0 %v3019
        %3663 = vmatpush1.bf16.msra.mxu0 %v3018
        %3664 = vmatprep.subr.bf16.mxu0 %v3026
        %3665 = vmatpush1.bf16.msra.mxu0 %v3025
        %3666 = vmatprep.subr.bf16.mxu0 %v3033
        %3667 = vmatpush1.bf16.msra.mxu0 %v3032
        %3668 = vmatprep.subr.bf16.mxu0 %v3040
        %3669 = vmatpush1.bf16.msra.mxu0 %v3039
        %3670 = vmatprep.subr.bf16.mxu0 %v3047
        %3671 = vmatpush1.bf16.msra.mxu0 %v3046
        %3672 = vmatprep.subr.bf16.mxu0 %v3054
        %3673 = vmatpush1.bf16.msra.mxu0 %v3053
        %3674 = vmatprep.subr.bf16.mxu0 %v3061
        %3675 = vmatpush1.bf16.msra.mxu0 %v3060
        %3676 = vmatprep.mubr.bf16.mxu0 %v1721
        %3677 = vmatmul.mubr.bf16.gmra.mrb[0].mxu0 %v1720
        %v3678 = vpop.f32.mrb[0].mxu0
        %v3679 = vadd.f32 %v3326, %v3678
        %v3680 = vpop.f32.mrb[0].mxu0
        %v3681 = vadd.f32 %v3328, %v3680
        %v3682 = vpop.f32.mrb[0].mxu0
        %v3683 = vadd.f32 %v3330, %v3682
        %v3684 = vpop.f32.mrb[0].mxu0
        %v3685 = vadd.f32 %v3332, %v3684
        %3686 = vmatprep.mubr.bf16.mxu0 %v1725
        %3687 = vmatmul.mubr.bf16.gmra.mrb[0].mxu0 %v1724
        %v3688 = vpop.f32.mrb[0].mxu0
        %v3689 = vadd.f32 %v3336, %v3688
        %v3690 = vpop.f32.mrb[0].mxu0
        %v3691 = vadd.f32 %v3338, %v3690
        %v3692 = vpop.f32.mrb[0].mxu0
        %v3693 = vadd.f32 %v3340, %v3692
        %v3694 = vpop.f32.mrb[0].mxu0
        %v3695 = vadd.f32 %v3342, %v3694
        %3696 = vmatprep.mubr.bf16.mxu0 %v1729
        %3697 = vmatmul.mubr.bf16.gmra.mrb[0].mxu0 %v1728
        %v3698 = vpop.f32.mrb[0].mxu0
        %v3699 = vadd.f32 %v3346, %v3698
        %v3700 = vpop.f32.mrb[0].mxu0
        %v3701 = vadd.f32 %v3348, %v3700
        %v3702 = vpop.f32.mrb[0].mxu0
        %v3703 = vadd.f32 %v3350, %v3702
        %v3704 = vpop.f32.mrb[0].mxu0
        %v3705 = vadd.f32 %v3352, %v3704
        %3706 = vmatprep.mubr.bf16.mxu0 %v1733
        %3707 = vmatmul.mubr.bf16.gmra.mrb[0].mxu0 %v1732
        %v3708 = vpop.f32.mrb[0].mxu0
        %v3709 = vadd.f32 %v3356, %v3708
        %v3710 = vpop.f32.mrb[0].mxu0
        %v3711 = vadd.f32 %v3358, %v3710
        %v3712 = vpop.f32.mrb[0].mxu0
        %v3713 = vadd.f32 %v3360, %v3712
        %v3714 = vpop.f32.mrb[0].mxu0
        %v3715 = vadd.f32 %v3362, %v3714
        %3716 = vmatprep.mubr.bf16.mxu0 %v1737
        %3717 = vmatmul.mubr.bf16.gmra.mrb[0].mxu0 %v1736
        %v3718 = vpop.f32.mrb[0].mxu0
        %v3719 = vadd.f32 %v3366, %v3718
        %v3720 = vpop.f32.mrb[0].mxu0
        %v3721 = vadd.f32 %v3368, %v3720
        %v3722 = vpop.f32.mrb[0].mxu0
        %v3723 = vadd.f32 %v3370, %v3722
        %v3724 = vpop.f32.mrb[0].mxu0
        %v3725 = vadd.f32 %v3372, %v3724
        %3726 = vmatprep.mubr.bf16.mxu0 %v1741
        %3727 = vmatmul.mubr.bf16.gmra.mrb[0].mxu0 %v1740
        %v3728 = vpop.f32.mrb[0].mxu0
        %v3729 = vadd.f32 %v3376, %v3728
        %v3730 = vpop.f32.mrb[0].mxu0
        %v3731 = vadd.f32 %v3378, %v3730
        %v3732 = vpop.f32.mrb[0].mxu0
        %v3733 = vadd.f32 %v3380, %v3732
        %v3734 = vpop.f32.mrb[0].mxu0
        %v3735 = vadd.f32 %v3382, %v3734
        %3736 = vmatprep.mubr.bf16.mxu0 %v1745
        %3737 = vmatmul.mubr.bf16.gmra.mrb[0].mxu0 %v1744
        %v3738 = vpop.f32.mrb[0].mxu0
        %v3739 = vadd.f32 %v3386, %v3738
        %v3740 = vpop.f32.mrb[0].mxu0
        %v3741 = vadd.f32 %v3388, %v3740
        %v3742 = vpop.f32.mrb[0].mxu0
        %v3743 = vadd.f32 %v3390, %v3742
        %v3744 = vpop.f32.mrb[0].mxu0
        %v3745 = vadd.f32 %v3392, %v3744
        %3746 = vmatprep.mubr.bf16.mxu0 %v1749
        %3747 = vmatmul.mubr.bf16.gmra.mrb[0].mxu0 %v1748
        %v3748 = vpop.f32.mrb[0].mxu0
        %v3749 = vadd.f32 %v3396, %v3748
        %v3750 = vpop.f32.mrb[0].mxu0
        %v3751 = vadd.f32 %v3398, %v3750
        %v3752 = vpop.f32.mrb[0].mxu0
        %v3753 = vadd.f32 %v3400, %v3752
        %v3754 = vpop.f32.mrb[0].mxu0
        %v3755 = vadd.f32 %v3402, %v3754
        %3756 = vmatprep.mubr.bf16.mxu0 %v1753
        %3757 = vmatmul.mubr.bf16.gmra.mrb[0].mxu0 %v1752
        %v3758 = vpop.f32.mrb[0].mxu0
        %v3759 = vadd.f32 %v3406, %v3758
        %v3760 = vpop.f32.mrb[0].mxu0
        %v3761 = vadd.f32 %v3408, %v3760
        %v3762 = vpop.f32.mrb[0].mxu0
        %v3763 = vadd.f32 %v3410, %v3762
        %v3764 = vpop.f32.mrb[0].mxu0
        %v3765 = vadd.f32 %v3412, %v3764
        %3766 = vmatprep.mubr.bf16.mxu0 %v1757
        %3767 = vmatmul.mubr.bf16.gmra.mrb[0].mxu0 %v1756
        %v3768 = vpop.f32.mrb[0].mxu0
        %v3769 = vadd.f32 %v3416, %v3768
        %v3770 = vpop.f32.mrb[0].mxu0
        %v3771 = vadd.f32 %v3418, %v3770
        %v3772 = vpop.f32.mrb[0].mxu0
        %v3773 = vadd.f32 %v3420, %v3772
        %v3774 = vpop.f32.mrb[0].mxu0
        %v3775 = vadd.f32 %v3422, %v3774
        %3776 = vmatprep.mubr.bf16.mxu0 %v1761
        %3777 = vmatmul.mubr.bf16.gmra.mrb[0].mxu0 %v1760
        %v3778 = vpop.f32.mrb[0].mxu0
        %v3779 = vadd.f32 %v3426, %v3778
        %v3780 = vpop.f32.mrb[0].mxu0
        %v3781 = vadd.f32 %v3428, %v3780
        %v3782 = vpop.f32.mrb[0].mxu0
        %v3783 = vadd.f32 %v3430, %v3782
        %v3784 = vpop.f32.mrb[0].mxu0
        %v3785 = vadd.f32 %v3432, %v3784
        %3786 = vmatprep.mubr.bf16.mxu0 %v1765
        %3787 = vmatmul.mubr.bf16.gmra.mrb[0].mxu0 %v1764
        %v3788 = vpop.f32.mrb[0].mxu0
        %v3789 = vadd.f32 %v3436, %v3788
        %v3790 = vpop.f32.mrb[0].mxu0
        %v3791 = vadd.f32 %v3438, %v3790
        %v3792 = vpop.f32.mrb[0].mxu0
        %v3793 = vadd.f32 %v3440, %v3792
        %v3794 = vpop.f32.mrb[0].mxu0
        %v3795 = vadd.f32 %v3442, %v3794
        %3796 = vmatprep.mubr.bf16.mxu0 %v1769
        %3797 = vmatmul.mubr.bf16.gmra.mrb[0].mxu0 %v1768
        %v3798 = vpop.f32.mrb[0].mxu0
        %v3799 = vadd.f32 %v3446, %v3798
        %v3800 = vpop.f32.mrb[0].mxu0
        %v3801 = vadd.f32 %v3448, %v3800
        %v3802 = vpop.f32.mrb[0].mxu0
        %v3803 = vadd.f32 %v3450, %v3802
        %v3804 = vpop.f32.mrb[0].mxu0
        %v3805 = vadd.f32 %v3452, %v3804
        %3806 = vmatprep.mubr.bf16.mxu0 %v1773
        %3807 = vmatmul.mubr.bf16.gmra.mrb[0].mxu0 %v1772
        %v3808 = vpop.f32.mrb[0].mxu0
        %v3809 = vadd.f32 %v3456, %v3808
        %v3810 = vpop.f32.mrb[0].mxu0
        %v3811 = vadd.f32 %v3458, %v3810
        %v3812 = vpop.f32.mrb[0].mxu0
        %v3813 = vadd.f32 %v3460, %v3812
        %v3814 = vpop.f32.mrb[0].mxu0
        %v3815 = vadd.f32 %v3462, %v3814
        %3816 = vmatprep.mubr.bf16.mxu0 %v1777
        %3817 = vmatmul.mubr.bf16.gmra.mrb[0].mxu0 %v1776
        %v3818 = vpop.f32.mrb[0].mxu0
        %v3819 = vadd.f32 %v3466, %v3818
        %v3820 = vpop.f32.mrb[0].mxu0
        %v3821 = vadd.f32 %v3468, %v3820
        %v3822 = vpop.f32.mrb[0].mxu0
        %v3823 = vadd.f32 %v3470, %v3822
        %v3824 = vpop.f32.mrb[0].mxu0
        %v3825 = vadd.f32 %v3472, %v3824
        %3826 = vmatprep.mubr.bf16.mxu0 %v1781
        %3827 = vmatmul.mubr.bf16.gmra.mrb[0].mxu0 %v1780
        %v3828 = vpop.f32.mrb[0].mxu0
        %v3829 = vadd.f32 %v3476, %v3828
        %v3830 = vpop.f32.mrb[0].mxu0
        %v3831 = vadd.f32 %v3478, %v3830
        %v3832 = vpop.f32.mrb[0].mxu0
        %v3833 = vadd.f32 %v3480, %v3832
        %v3834 = vpop.f32.mrb[0].mxu0
        %v3835 = vadd.f32 %v3482, %v3834
        %3836 = vmatprep.mubr.bf16.mxu0 %v1785
        %3837 = vmatmul.mubr.bf16.gmra.mrb[0].mxu0 %v1784
        %v3838 = vpop.f32.mrb[0].mxu0
        %v3839 = vadd.f32 %v3486, %v3838
        %v3840 = vpop.f32.mrb[0].mxu0
        %v3841 = vadd.f32 %v3488, %v3840
        %v3842 = vpop.f32.mrb[0].mxu0
        %v3843 = vadd.f32 %v3490, %v3842
        %v3844 = vpop.f32.mrb[0].mxu0
        %v3845 = vadd.f32 %v3492, %v3844
        %3846 = vmatprep.mubr.bf16.mxu0 %v1789
        %3847 = vmatmul.mubr.bf16.gmra.mrb[0].mxu0 %v1788
        %v3848 = vpop.f32.mrb[0].mxu0
        %v3849 = vadd.f32 %v3496, %v3848
        %v3850 = vpop.f32.mrb[0].mxu0
        %v3851 = vadd.f32 %v3498, %v3850
        %v3852 = vpop.f32.mrb[0].mxu0
        %v3853 = vadd.f32 %v3500, %v3852
        %v3854 = vpop.f32.mrb[0].mxu0
        %v3855 = vadd.f32 %v3502, %v3854
        %3856 = vmatprep.mubr.bf16.mxu0 %v1793
        %3857 = vmatmul.mubr.bf16.gmra.mrb[0].mxu0 %v1792
        %v3858 = vpop.f32.mrb[0].mxu0
        %v3859 = vadd.f32 %v3506, %v3858
        %v3860 = vpop.f32.mrb[0].mxu0
        %v3861 = vadd.f32 %v3508, %v3860
        %v3862 = vpop.f32.mrb[0].mxu0
        %v3863 = vadd.f32 %v3510, %v3862
        %v3864 = vpop.f32.mrb[0].mxu0
        %v3865 = vadd.f32 %v3512, %v3864
        %3866 = vmatprep.mubr.bf16.mxu0 %v1797
        %3867 = vmatmul.mubr.bf16.gmra.mrb[0].mxu0 %v1796
        %v3868 = vpop.f32.mrb[0].mxu0
        %v3869 = vadd.f32 %v3516, %v3868
        %v3870 = vpop.f32.mrb[0].mxu0
        %v3871 = vadd.f32 %v3518, %v3870
        %v3872 = vpop.f32.mrb[0].mxu0
        %v3873 = vadd.f32 %v3520, %v3872
        %v3874 = vpop.f32.mrb[0].mxu0
        %v3875 = vadd.f32 %v3522, %v3874
        %3876 = vmatprep.mubr.bf16.mxu0 %v1801
        %3877 = vmatmul.mubr.bf16.gmra.mrb[0].mxu0 %v1800
        %v3878 = vpop.f32.mrb[0].mxu0
        %v3879 = vadd.f32 %v3526, %v3878
        %v3880 = vpop.f32.mrb[0].mxu0
        %v3881 = vadd.f32 %v3528, %v3880
        %v3882 = vpop.f32.mrb[0].mxu0
        %v3883 = vadd.f32 %v3530, %v3882
        %v3884 = vpop.f32.mrb[0].mxu0
        %v3885 = vadd.f32 %v3532, %v3884
        %3886 = vmatprep.mubr.bf16.mxu0 %v1805
        %3887 = vmatmul.mubr.bf16.gmra.mrb[0].mxu0 %v1804
        %v3888 = vpop.f32.mrb[0].mxu0
        %v3889 = vadd.f32 %v3536, %v3888
        %v3890 = vpop.f32.mrb[0].mxu0
        %v3891 = vadd.f32 %v3538, %v3890
        %v3892 = vpop.f32.mrb[0].mxu0
        %v3893 = vadd.f32 %v3540, %v3892
        %v3894 = vpop.f32.mrb[0].mxu0
        %v3895 = vadd.f32 %v3542, %v3894
        %3896 = vmatprep.mubr.bf16.mxu0 %v1809
        %3897 = vmatmul.mubr.bf16.gmra.mrb[0].mxu0 %v1808
        %v3898 = vpop.f32.mrb[0].mxu0
        %v3899 = vadd.f32 %v3546, %v3898
        %v3900 = vpop.f32.mrb[0].mxu0
        %v3901 = vadd.f32 %v3548, %v3900
        %v3902 = vpop.f32.mrb[0].mxu0
        %v3903 = vadd.f32 %v3550, %v3902
        %v3904 = vpop.f32.mrb[0].mxu0
        %v3905 = vadd.f32 %v3552, %v3904
        %3906 = vmatprep.mubr.bf16.mxu0 %v1813
        %3907 = vmatmul.mubr.bf16.gmra.mrb[0].mxu0 %v1812
        %v3908 = vpop.f32.mrb[0].mxu0
        %v3909 = vadd.f32 %v3556, %v3908
        %v3910 = vpop.f32.mrb[0].mxu0
        %v3911 = vadd.f32 %v3558, %v3910
        %v3912 = vpop.f32.mrb[0].mxu0
        %v3913 = vadd.f32 %v3560, %v3912
        %v3914 = vpop.f32.mrb[0].mxu0
        %v3915 = vadd.f32 %v3562, %v3914
        %3916 = vmatprep.mubr.bf16.mxu0 %v1817
        %3917 = vmatmul.mubr.bf16.gmra.mrb[0].mxu0 %v1816
        %v3918 = vpop.f32.mrb[0].mxu0
        %v3919 = vadd.f32 %v3566, %v3918
        %v3920 = vpop.f32.mrb[0].mxu0
        %v3921 = vadd.f32 %v3568, %v3920
        %v3922 = vpop.f32.mrb[0].mxu0
        %v3923 = vadd.f32 %v3570, %v3922
        %v3924 = vpop.f32.mrb[0].mxu0
        %v3925 = vadd.f32 %v3572, %v3924
        %3926 = vmatprep.mubr.bf16.mxu0 %v1821
        %3927 = vmatmul.mubr.bf16.gmra.mrb[0].mxu0 %v1820
        %v3928 = vpop.f32.mrb[0].mxu0
        %v3929 = vadd.f32 %v3576, %v3928
        %v3930 = vpop.f32.mrb[0].mxu0
        %v3931 = vadd.f32 %v3578, %v3930
        %v3932 = vpop.f32.mrb[0].mxu0
        %v3933 = vadd.f32 %v3580, %v3932
        %v3934 = vpop.f32.mrb[0].mxu0
        %v3935 = vadd.f32 %v3582, %v3934
        %3936 = vmatprep.mubr.bf16.mxu0 %v1825
        %3937 = vmatmul.mubr.bf16.gmra.mrb[0].mxu0 %v1824
        %v3938 = vpop.f32.mrb[0].mxu0
        %v3939 = vadd.f32 %v3586, %v3938
        %v3940 = vpop.f32.mrb[0].mxu0
        %v3941 = vadd.f32 %v3588, %v3940
        %v3942 = vpop.f32.mrb[0].mxu0
        %v3943 = vadd.f32 %v3590, %v3942
        %v3944 = vpop.f32.mrb[0].mxu0
        %v3945 = vadd.f32 %v3592, %v3944
        %3946 = vmatprep.mubr.bf16.mxu0 %v1829
        %3947 = vmatmul.mubr.bf16.gmra.mrb[0].mxu0 %v1828
        %v3948 = vpop.f32.mrb[0].mxu0
        %v3949 = vadd.f32 %v3596, %v3948
        %v3950 = vpop.f32.mrb[0].mxu0
        %v3951 = vadd.f32 %v3598, %v3950
        %v3952 = vpop.f32.mrb[0].mxu0
        %v3953 = vadd.f32 %v3600, %v3952
        %v3954 = vpop.f32.mrb[0].mxu0
        %v3955 = vadd.f32 %v3602, %v3954
        %3956 = vmatprep.mubr.bf16.mxu0 %v1833
        %3957 = vmatmul.mubr.bf16.gmra.mrb[0].mxu0 %v1832
        %v3958 = vpop.f32.mrb[0].mxu0
        %v3959 = vadd.f32 %v3606, %v3958
        %v3960 = vpop.f32.mrb[0].mxu0
        %v3961 = vadd.f32 %v3608, %v3960
        %v3962 = vpop.f32.mrb[0].mxu0
        %v3963 = vadd.f32 %v3610, %v3962
        %v3964 = vpop.f32.mrb[0].mxu0
        %v3965 = vadd.f32 %v3612, %v3964
        %3966 = vmatprep.mubr.bf16.mxu0 %v1837
        %3967 = vmatmul.mubr.bf16.gmra.mrb[0].mxu0 %v1836
        %v3968 = vpop.f32.mrb[0].mxu0
        %v3969 = vadd.f32 %v3616, %v3968
        %v3970 = vpop.f32.mrb[0].mxu0
        %v3971 = vadd.f32 %v3618, %v3970
        %v3972 = vpop.f32.mrb[0].mxu0
        %v3973 = vadd.f32 %v3620, %v3972
        %v3974 = vpop.f32.mrb[0].mxu0
        %v3975 = vadd.f32 %v3622, %v3974
        %3976 = vmatprep.mubr.bf16.mxu0 %v1841
        %3977 = vmatmul.mubr.bf16.gmra.mrb[0].mxu0 %v1840
        %v3978 = vpop.f32.mrb[0].mxu0
        %v3979 = vadd.f32 %v3626, %v3978
        %v3980 = vpop.f32.mrb[0].mxu0
        %v3981 = vadd.f32 %v3628, %v3980
        %v3982 = vpop.f32.mrb[0].mxu0
        %v3983 = vadd.f32 %v3630, %v3982
        %v3984 = vpop.f32.mrb[0].mxu0
        %v3985 = vadd.f32 %v3632, %v3984
        %3986 = vmatprep.mubr.bf16.mxu0 %v1845
        %3987 = vmatmul.mubr.bf16.gmra.mrb[0].mxu0 %v1844
        %v3988 = vpop.f32.mrb[0].mxu0
        %v3989 = vadd.f32 %v3636, %v3988
        %v3990 = vpop.f32.mrb[0].mxu0
        %v3991 = vadd.f32 %v3638, %v3990
        %v3992 = vpop.f32.mrb[0].mxu0
        %v3993 = vadd.f32 %v3640, %v3992
        %v3994 = vpop.f32.mrb[0].mxu0
        %v3995 = vadd.f32 %v3642, %v3994
        %3996 = vdwg.mxu0
        %3997 = vmatprep.subr.bf16.mxu0 %v2846
        %3998 = vmatpush1.bf16.msra.mxu0 %v2845
        %3999 = vmatprep.subr.bf16.mxu0 %v2853
        %4000 = vmatpush1.bf16.msra.mxu0 %v2852
        %4001 = vmatprep.subr.bf16.mxu0 %v2860
        %4002 = vmatpush1.bf16.msra.mxu0 %v2859
        %4003 = vmatprep.subr.bf16.mxu0 %v2867
        %4004 = vmatpush1.bf16.msra.mxu0 %v2866
        %4005 = vmatprep.subr.bf16.mxu0 %v2874
        %4006 = vmatpush1.bf16.msra.mxu0 %v2873
        %4007 = vmatprep.subr.bf16.mxu0 %v2881
        %4008 = vmatpush1.bf16.msra.mxu0 %v2880
        %4009 = vmatprep.subr.bf16.mxu0 %v2888
        %4010 = vmatpush1.bf16.msra.mxu0 %v2887
        %4011 = vmatprep.subr.bf16.mxu0 %v2895
        %4012 = vmatpush1.bf16.msra.mxu0 %v2894
        %4013 = vmatprep.subr.bf16.mxu0 %v2902
        %4014 = vmatpush1.bf16.msra.mxu0 %v2901
        %4015 = vmatprep.subr.bf16.mxu0 %v2909
        %4016 = vmatpush1.bf16.msra.mxu0 %v2908
        %4017 = vmatprep.subr.bf16.mxu0 %v2916
        %4018 = vmatpush1.bf16.msra.mxu0 %v2915
        %4019 = vmatprep.subr.bf16.mxu0 %v2923
        %4020 = vmatpush1.bf16.msra.mxu0 %v2922
        %4021 = vmatprep.subr.bf16.mxu0 %v2930
        %4022 = vmatpush1.bf16.msra.mxu0 %v2929
        %4023 = vmatprep.subr.bf16.mxu0 %v2937
        %4024 = vmatpush1.bf16.msra.mxu0 %v2936
        %4025 = vmatprep.subr.bf16.mxu0 %v2944
        %4026 = vmatpush1.bf16.msra.mxu0 %v2943
        %4027 = vmatprep.subr.bf16.mxu0 %v2951
        %4028 = vmatpush1.bf16.msra.mxu0 %v2950
        %4029 = vmatprep.mubr.bf16.mxu0 %v1719
        %4030 = vmatmul.mubr.bf16.gmra.mrb[0].mxu0 %v1718
        %v4031 = vpop.f32.mrb[0].mxu0
        %v4032 = vadd.f32 %v2115, %v4031
        %v4033 = vpop.f32.mrb[0].mxu0
        %v4034 = vadd.f32 %v2119, %v4033
        %v4035 = vpop.f32.mrb[0].mxu0
        %v4036 = vadd.f32 %v2115, %v4035
        %v4037 = vpop.f32.mrb[0].mxu0
        %v4038 = vadd.f32 %v2119, %v4037
        %4039 = vmatprep.mubr.bf16.mxu0 %v1723
        %4040 = vmatmul.mubr.bf16.gmra.mrb[0].mxu0 %v1722
        %v4041 = vpop.f32.mrb[0].mxu0
        %v4042 = vadd.f32 %v2115, %v4041
        %v4043 = vpop.f32.mrb[0].mxu0
        %v4044 = vadd.f32 %v2119, %v4043
        %v4045 = vpop.f32.mrb[0].mxu0
        %v4046 = vadd.f32 %v2115, %v4045
        %v4047 = vpop.f32.mrb[0].mxu0
        %v4048 = vadd.f32 %v2119, %v4047
        %4049 = vmatprep.mubr.bf16.mxu0 %v1727
        %4050 = vmatmul.mubr.bf16.gmra.mrb[0].mxu0 %v1726
        %v4051 = vpop.f32.mrb[0].mxu0
        %v4052 = vadd.f32 %v2115, %v4051
        %v4053 = vpop.f32.mrb[0].mxu0
        %v4054 = vadd.f32 %v2119, %v4053
        %v4055 = vpop.f32.mrb[0].mxu0
        %v4056 = vadd.f32 %v2115, %v4055
        %v4057 = vpop.f32.mrb[0].mxu0
        %v4058 = vadd.f32 %v2119, %v4057
        %4059 = vmatprep.mubr.bf16.mxu0 %v1731
        %4060 = vmatmul.mubr.bf16.gmra.mrb[0].mxu0 %v1730
        %v4061 = vpop.f32.mrb[0].mxu0
        %v4062 = vadd.f32 %v2115, %v4061
        %v4063 = vpop.f32.mrb[0].mxu0
        %v4064 = vadd.f32 %v2119, %v4063
        %v4065 = vpop.f32.mrb[0].mxu0
        %v4066 = vadd.f32 %v2115, %v4065
        %v4067 = vpop.f32.mrb[0].mxu0
        %v4068 = vadd.f32 %v2119, %v4067
        %4069 = vmatprep.mubr.bf16.mxu0 %v1735
        %4070 = vmatmul.mubr.bf16.gmra.mrb[0].mxu0 %v1734
        %v4071 = vpop.f32.mrb[0].mxu0
        %v4072 = vadd.f32 %v2115, %v4071
        %v4073 = vpop.f32.mrb[0].mxu0
        %v4074 = vadd.f32 %v2119, %v4073
        %v4075 = vpop.f32.mrb[0].mxu0
        %v4076 = vadd.f32 %v2115, %v4075
        %v4077 = vpop.f32.mrb[0].mxu0
        %v4078 = vadd.f32 %v2119, %v4077
        %4079 = vmatprep.mubr.bf16.mxu0 %v1739
        %4080 = vmatmul.mubr.bf16.gmra.mrb[0].mxu0 %v1738
        %v4081 = vpop.f32.mrb[0].mxu0
        %v4082 = vadd.f32 %v2115, %v4081
        %v4083 = vpop.f32.mrb[0].mxu0
        %v4084 = vadd.f32 %v2119, %v4083
        %v4085 = vpop.f32.mrb[0].mxu0
        %v4086 = vadd.f32 %v2115, %v4085
        %v4087 = vpop.f32.mrb[0].mxu0
        %v4088 = vadd.f32 %v2119, %v4087
        %4089 = vmatprep.mubr.bf16.mxu0 %v1743
        %4090 = vmatmul.mubr.bf16.gmra.mrb[0].mxu0 %v1742
        %v4091 = vpop.f32.mrb[0].mxu0
        %v4092 = vadd.f32 %v2115, %v4091
        %v4093 = vpop.f32.mrb[0].mxu0
        %v4094 = vadd.f32 %v2119, %v4093
        %v4095 = vpop.f32.mrb[0].mxu0
        %v4096 = vadd.f32 %v2115, %v4095
        %v4097 = vpop.f32.mrb[0].mxu0
        %v4098 = vadd.f32 %v2119, %v4097
        %4099 = vmatprep.mubr.bf16.mxu0 %v1747
        %4100 = vmatmul.mubr.bf16.gmra.mrb[0].mxu0 %v1746
        %v4101 = vpop.f32.mrb[0].mxu0
        %v4102 = vadd.f32 %v2115, %v4101
        %v4103 = vpop.f32.mrb[0].mxu0
        %v4104 = vadd.f32 %v2119, %v4103
        %v4105 = vpop.f32.mrb[0].mxu0
        %v4106 = vadd.f32 %v2115, %v4105
        %v4107 = vpop.f32.mrb[0].mxu0
        %v4108 = vadd.f32 %v2119, %v4107
        %4109 = vmatprep.mubr.bf16.mxu0 %v1751
        %4110 = vmatmul.mubr.bf16.gmra.mrb[0].mxu0 %v1750
        %v4111 = vpop.f32.mrb[0].mxu0
        %v4112 = vadd.f32 %v2115, %v4111
        %v4113 = vpop.f32.mrb[0].mxu0
        %v4114 = vadd.f32 %v2119, %v4113
        %v4115 = vpop.f32.mrb[0].mxu0
        %v4116 = vadd.f32 %v2115, %v4115
        %v4117 = vpop.f32.mrb[0].mxu0
        %v4118 = vadd.f32 %v2119, %v4117
        %4119 = vmatprep.mubr.bf16.mxu0 %v1755
        %4120 = vmatmul.mubr.bf16.gmra.mrb[0].mxu0 %v1754
        %v4121 = vpop.f32.mrb[0].mxu0
        %v4122 = vadd.f32 %v2115, %v4121
        %v4123 = vpop.f32.mrb[0].mxu0
        %v4124 = vadd.f32 %v2119, %v4123
        %v4125 = vpop.f32.mrb[0].mxu0
        %v4126 = vadd.f32 %v2115, %v4125
        %v4127 = vpop.f32.mrb[0].mxu0
        %v4128 = vadd.f32 %v2119, %v4127
        %4129 = vmatprep.mubr.bf16.mxu0 %v1759
        %4130 = vmatmul.mubr.bf16.gmra.mrb[0].mxu0 %v1758
        %v4131 = vpop.f32.mrb[0].mxu0
        %v4132 = vadd.f32 %v2115, %v4131
        %v4133 = vpop.f32.mrb[0].mxu0
        %v4134 = vadd.f32 %v2119, %v4133
        %v4135 = vpop.f32.mrb[0].mxu0
        %v4136 = vadd.f32 %v2115, %v4135
        %v4137 = vpop.f32.mrb[0].mxu0
        %v4138 = vadd.f32 %v2119, %v4137
        %4139 = vmatprep.mubr.bf16.mxu0 %v1763
        %4140 = vmatmul.mubr.bf16.gmra.mrb[0].mxu0 %v1762
        %v4141 = vpop.f32.mrb[0].mxu0
        %v4142 = vadd.f32 %v2115, %v4141
        %v4143 = vpop.f32.mrb[0].mxu0
        %v4144 = vadd.f32 %v2119, %v4143
        %v4145 = vpop.f32.mrb[0].mxu0
        %v4146 = vadd.f32 %v2115, %v4145
        %v4147 = vpop.f32.mrb[0].mxu0
        %v4148 = vadd.f32 %v2119, %v4147
        %4149 = vmatprep.mubr.bf16.mxu0 %v1767
        %4150 = vmatmul.mubr.bf16.gmra.mrb[0].mxu0 %v1766
        %v4151 = vpop.f32.mrb[0].mxu0
        %v4152 = vadd.f32 %v2115, %v4151
        %v4153 = vpop.f32.mrb[0].mxu0
        %v4154 = vadd.f32 %v2119, %v4153
        %v4155 = vpop.f32.mrb[0].mxu0
        %v4156 = vadd.f32 %v2115, %v4155
        %v4157 = vpop.f32.mrb[0].mxu0
        %v4158 = vadd.f32 %v2119, %v4157
        %4159 = vmatprep.mubr.bf16.mxu0 %v1771
        %4160 = vmatmul.mubr.bf16.gmra.mrb[0].mxu0 %v1770
        %v4161 = vpop.f32.mrb[0].mxu0
        %v4162 = vadd.f32 %v2115, %v4161
        %v4163 = vpop.f32.mrb[0].mxu0
        %v4164 = vadd.f32 %v2119, %v4163
        %v4165 = vpop.f32.mrb[0].mxu0
        %v4166 = vadd.f32 %v2115, %v4165
        %v4167 = vpop.f32.mrb[0].mxu0
        %v4168 = vadd.f32 %v2119, %v4167
        %4169 = vmatprep.mubr.bf16.mxu0 %v1775
        %4170 = vmatmul.mubr.bf16.gmra.mrb[0].mxu0 %v1774
        %v4171 = vpop.f32.mrb[0].mxu0
        %v4172 = vadd.f32 %v2115, %v4171
        %v4173 = vpop.f32.mrb[0].mxu0
        %v4174 = vadd.f32 %v2119, %v4173
        %v4175 = vpop.f32.mrb[0].mxu0
        %v4176 = vadd.f32 %v2115, %v4175
        %v4177 = vpop.f32.mrb[0].mxu0
        %v4178 = vadd.f32 %v2119, %v4177
        %4179 = vmatprep.mubr.bf16.mxu0 %v1779
        %4180 = vmatmul.mubr.bf16.gmra.mrb[0].mxu0 %v1778
        %v4181 = vpop.f32.mrb[0].mxu0
        %v4182 = vadd.f32 %v2115, %v4181
        %v4183 = vpop.f32.mrb[0].mxu0
        %v4184 = vadd.f32 %v2119, %v4183
        %v4185 = vpop.f32.mrb[0].mxu0
        %v4186 = vadd.f32 %v2115, %v4185
        %v4187 = vpop.f32.mrb[0].mxu0
        %v4188 = vadd.f32 %v2119, %v4187
        %4189 = vmatprep.mubr.bf16.mxu0 %v1783
        %4190 = vmatmul.mubr.bf16.gmra.mrb[0].mxu0 %v1782
        %v4191 = vpop.f32.mrb[0].mxu0
        %v4192 = vadd.f32 %v2115, %v4191
        %v4193 = vpop.f32.mrb[0].mxu0
        %v4194 = vadd.f32 %v2119, %v4193
        %v4195 = vpop.f32.mrb[0].mxu0
        %v4196 = vadd.f32 %v2115, %v4195
        %v4197 = vpop.f32.mrb[0].mxu0
        %v4198 = vadd.f32 %v2119, %v4197
        %4199 = vmatprep.mubr.bf16.mxu0 %v1787
        %4200 = vmatmul.mubr.bf16.gmra.mrb[0].mxu0 %v1786
        %v4201 = vpop.f32.mrb[0].mxu0
        %v4202 = vadd.f32 %v2115, %v4201
        %v4203 = vpop.f32.mrb[0].mxu0
        %v4204 = vadd.f32 %v2119, %v4203
        %v4205 = vpop.f32.mrb[0].mxu0
        %v4206 = vadd.f32 %v2115, %v4205
        %v4207 = vpop.f32.mrb[0].mxu0
        %v4208 = vadd.f32 %v2119, %v4207
        %4209 = vmatprep.mubr.bf16.mxu0 %v1791
        %4210 = vmatmul.mubr.bf16.gmra.mrb[0].mxu0 %v1790
        %v4211 = vpop.f32.mrb[0].mxu0
        %v4212 = vadd.f32 %v2115, %v4211
        %v4213 = vpop.f32.mrb[0].mxu0
        %v4214 = vadd.f32 %v2119, %v4213
        %v4215 = vpop.f32.mrb[0].mxu0
        %v4216 = vadd.f32 %v2115, %v4215
        %v4217 = vpop.f32.mrb[0].mxu0
        %v4218 = vadd.f32 %v2119, %v4217
        %4219 = vmatprep.mubr.bf16.mxu0 %v1795
        %4220 = vmatmul.mubr.bf16.gmra.mrb[0].mxu0 %v1794
        %v4221 = vpop.f32.mrb[0].mxu0
        %v4222 = vadd.f32 %v2115, %v4221
        %v4223 = vpop.f32.mrb[0].mxu0
        %v4224 = vadd.f32 %v2119, %v4223
        %v4225 = vpop.f32.mrb[0].mxu0
        %v4226 = vadd.f32 %v2115, %v4225
        %v4227 = vpop.f32.mrb[0].mxu0
        %v4228 = vadd.f32 %v2119, %v4227
        %4229 = vmatprep.mubr.bf16.mxu0 %v1799
        %4230 = vmatmul.mubr.bf16.gmra.mrb[0].mxu0 %v1798
        %v4231 = vpop.f32.mrb[0].mxu0
        %v4232 = vadd.f32 %v2115, %v4231
        %v4233 = vpop.f32.mrb[0].mxu0
        %v4234 = vadd.f32 %v2119, %v4233
        %v4235 = vpop.f32.mrb[0].mxu0
        %v4236 = vadd.f32 %v2115, %v4235
        %v4237 = vpop.f32.mrb[0].mxu0
        %v4238 = vadd.f32 %v2119, %v4237
        %4239 = vmatprep.mubr.bf16.mxu0 %v1803
        %4240 = vmatmul.mubr.bf16.gmra.mrb[0].mxu0 %v1802
        %v4241 = vpop.f32.mrb[0].mxu0
        %v4242 = vadd.f32 %v2115, %v4241
        %v4243 = vpop.f32.mrb[0].mxu0
        %v4244 = vadd.f32 %v2119, %v4243
        %v4245 = vpop.f32.mrb[0].mxu0
        %v4246 = vadd.f32 %v2115, %v4245
        %v4247 = vpop.f32.mrb[0].mxu0
        %v4248 = vadd.f32 %v2119, %v4247
        %4249 = vmatprep.mubr.bf16.mxu0 %v1807
        %4250 = vmatmul.mubr.bf16.gmra.mrb[0].mxu0 %v1806
        %v4251 = vpop.f32.mrb[0].mxu0
        %v4252 = vadd.f32 %v2115, %v4251
        %v4253 = vpop.f32.mrb[0].mxu0
        %v4254 = vadd.f32 %v2119, %v4253
        %v4255 = vpop.f32.mrb[0].mxu0
        %v4256 = vadd.f32 %v2115, %v4255
        %v4257 = vpop.f32.mrb[0].mxu0
        %v4258 = vadd.f32 %v2119, %v4257
        %4259 = vmatprep.mubr.bf16.mxu0 %v1811
        %4260 = vmatmul.mubr.bf16.gmra.mrb[0].mxu0 %v1810
        %v4261 = vpop.f32.mrb[0].mxu0
        %v4262 = vadd.f32 %v2115, %v4261
        %v4263 = vpop.f32.mrb[0].mxu0
        %v4264 = vadd.f32 %v2119, %v4263
        %v4265 = vpop.f32.mrb[0].mxu0
        %v4266 = vadd.f32 %v2115, %v4265
        %v4267 = vpop.f32.mrb[0].mxu0
        %v4268 = vadd.f32 %v2119, %v4267
        %4269 = vmatprep.mubr.bf16.mxu0 %v1815
        %4270 = vmatmul.mubr.bf16.gmra.mrb[0].mxu0 %v1814
        %v4271 = vpop.f32.mrb[0].mxu0
        %v4272 = vadd.f32 %v2115, %v4271
        %v4273 = vpop.f32.mrb[0].mxu0
        %v4274 = vadd.f32 %v2119, %v4273
        %v4275 = vpop.f32.mrb[0].mxu0
        %v4276 = vadd.f32 %v2115, %v4275
        %v4277 = vpop.f32.mrb[0].mxu0
        %v4278 = vadd.f32 %v2119, %v4277
        %4279 = vmatprep.mubr.bf16.mxu0 %v1819
        %4280 = vmatmul.mubr.bf16.gmra.mrb[0].mxu0 %v1818
        %v4281 = vpop.f32.mrb[0].mxu0
        %v4282 = vadd.f32 %v2115, %v4281
        %v4283 = vpop.f32.mrb[0].mxu0
        %v4284 = vadd.f32 %v2119, %v4283
        %v4285 = vpop.f32.mrb[0].mxu0
        %v4286 = vadd.f32 %v2115, %v4285
        %v4287 = vpop.f32.mrb[0].mxu0
        %v4288 = vadd.f32 %v2119, %v4287
        %4289 = vmatprep.mubr.bf16.mxu0 %v1823
        %4290 = vmatmul.mubr.bf16.gmra.mrb[0].mxu0 %v1822
        %v4291 = vpop.f32.mrb[0].mxu0
        %v4292 = vadd.f32 %v2115, %v4291
        %v4293 = vpop.f32.mrb[0].mxu0
        %v4294 = vadd.f32 %v2119, %v4293
        %v4295 = vpop.f32.mrb[0].mxu0
        %v4296 = vadd.f32 %v2115, %v4295
        %v4297 = vpop.f32.mrb[0].mxu0
        %v4298 = vadd.f32 %v2119, %v4297
        %4299 = vmatprep.mubr.bf16.mxu0 %v1827
        %4300 = vmatmul.mubr.bf16.gmra.mrb[0].mxu0 %v1826
        %v4301 = vpop.f32.mrb[0].mxu0
        %v4302 = vadd.f32 %v2115, %v4301
        %v4303 = vpop.f32.mrb[0].mxu0
        %v4304 = vadd.f32 %v2119, %v4303
        %v4305 = vpop.f32.mrb[0].mxu0
        %v4306 = vadd.f32 %v2115, %v4305
        %v4307 = vpop.f32.mrb[0].mxu0
        %v4308 = vadd.f32 %v2119, %v4307
        %4309 = vmatprep.mubr.bf16.mxu0 %v1831
        %4310 = vmatmul.mubr.bf16.gmra.mrb[0].mxu0 %v1830
        %v4311 = vpop.f32.mrb[0].mxu0
        %v4312 = vadd.f32 %v2115, %v4311
        %v4313 = vpop.f32.mrb[0].mxu0
        %v4314 = vadd.f32 %v2119, %v4313
        %v4315 = vpop.f32.mrb[0].mxu0
        %v4316 = vadd.f32 %v2115, %v4315
        %v4317 = vpop.f32.mrb[0].mxu0
        %v4318 = vadd.f32 %v2119, %v4317
        %4319 = vmatprep.mubr.bf16.mxu0 %v1835
        %4320 = vmatmul.mubr.bf16.gmra.mrb[0].mxu0 %v1834
        %v4321 = vpop.f32.mrb[0].mxu0
        %v4322 = vadd.f32 %v2115, %v4321
        %v4323 = vpop.f32.mrb[0].mxu0
        %v4324 = vadd.f32 %v2119, %v4323
        %v4325 = vpop.f32.mrb[0].mxu0
        %v4326 = vadd.f32 %v2115, %v4325
        %v4327 = vpop.f32.mrb[0].mxu0
        %v4328 = vadd.f32 %v2119, %v4327
        %4329 = vmatprep.mubr.bf16.mxu0 %v1839
        %4330 = vmatmul.mubr.bf16.gmra.mrb[0].mxu0 %v1838
        %v4331 = vpop.f32.mrb[0].mxu0
        %v4332 = vadd.f32 %v2115, %v4331
        %v4333 = vpop.f32.mrb[0].mxu0
        %v4334 = vadd.f32 %v2119, %v4333
        %v4335 = vpop.f32.mrb[0].mxu0
        %v4336 = vadd.f32 %v2115, %v4335
        %v4337 = vpop.f32.mrb[0].mxu0
        %v4338 = vadd.f32 %v2119, %v4337
        %4339 = vmatprep.mubr.bf16.mxu0 %v1843
        %4340 = vmatmul.mubr.bf16.gmra.mrb[0].mxu0 %v1842
        %v4341 = vpop.f32.mrb[0].mxu0
        %v4342 = vadd.f32 %v2115, %v4341
        %v4343 = vpop.f32.mrb[0].mxu0
        %v4344 = vadd.f32 %v2119, %v4343
        %v4345 = vpop.f32.mrb[0].mxu0
        %v4346 = vadd.f32 %v2115, %v4345
        %v4347 = vpop.f32.mrb[0].mxu0
        %v4348 = vadd.f32 %v2119, %v4347
        %4349 = vdwg.mxu0
        %4350 = vmatprep.subr.bf16.mxu0 %v2958
        %4351 = vmatpush1.bf16.msra.mxu0 %v2957
        %4352 = vmatprep.subr.bf16.mxu0 %v2965
        %4353 = vmatpush1.bf16.msra.mxu0 %v2964
        %4354 = vmatprep.subr.bf16.mxu0 %v2972
        %4355 = vmatpush1.bf16.msra.mxu0 %v2971
        %4356 = vmatprep.subr.bf16.mxu0 %v2979
        %4357 = vmatpush1.bf16.msra.mxu0 %v2978
        %4358 = vmatprep.subr.bf16.mxu0 %v2986
        %4359 = vmatpush1.bf16.msra.mxu0 %v2985
        %4360 = vmatprep.subr.bf16.mxu0 %v2993
        %4361 = vmatpush1.bf16.msra.mxu0 %v2992
        %4362 = vmatprep.subr.bf16.mxu0 %v3000
        %4363 = vmatpush1.bf16.msra.mxu0 %v2999
        %4364 = vmatprep.subr.bf16.mxu0 %v3007
        %4365 = vmatpush1.bf16.msra.mxu0 %v3006
        %4366 = vmatprep.subr.bf16.mxu0 %v3014
        %4367 = vmatpush1.bf16.msra.mxu0 %v3013
        %4368 = vmatprep.subr.bf16.mxu0 %v3021
        %4369 = vmatpush1.bf16.msra.mxu0 %v3020
        %4370 = vmatprep.subr.bf16.mxu0 %v3028
        %4371 = vmatpush1.bf16.msra.mxu0 %v3027
        %4372 = vmatprep.subr.bf16.mxu0 %v3035
        %4373 = vmatpush1.bf16.msra.mxu0 %v3034
        %4374 = vmatprep.subr.bf16.mxu0 %v3042
        %4375 = vmatpush1.bf16.msra.mxu0 %v3041
        %4376 = vmatprep.subr.bf16.mxu0 %v3049
        %4377 = vmatpush1.bf16.msra.mxu0 %v3048
        %4378 = vmatprep.subr.bf16.mxu0 %v3056
        %4379 = vmatpush1.bf16.msra.mxu0 %v3055
        %4380 = vmatprep.subr.bf16.mxu0 %v3063
        %4381 = vmatpush1.bf16.msra.mxu0 %v3062
        %4382 = vmatprep.mubr.bf16.mxu0 %v1721
        %4383 = vmatmul.mubr.bf16.gmra.mrb[0].mxu0 %v1720
        %v4384 = vpop.f32.mrb[0].mxu0
        %v4385 = vadd.f32 %v4032, %v4384
        %v4386 = vpop.f32.mrb[0].mxu0
        %v4387 = vadd.f32 %v4034, %v4386
        %v4388 = vpop.f32.mrb[0].mxu0
        %v4389 = vadd.f32 %v4036, %v4388
        %v4390 = vpop.f32.mrb[0].mxu0
        %v4391 = vadd.f32 %v4038, %v4390
        %4392 = vmatprep.mubr.bf16.mxu0 %v1725
        %4393 = vmatmul.mubr.bf16.gmra.mrb[0].mxu0 %v1724
        %v4394 = vpop.f32.mrb[0].mxu0
        %v4395 = vadd.f32 %v4042, %v4394
        %v4396 = vpop.f32.mrb[0].mxu0
        %v4397 = vadd.f32 %v4044, %v4396
        %v4398 = vpop.f32.mrb[0].mxu0
        %v4399 = vadd.f32 %v4046, %v4398
        %v4400 = vpop.f32.mrb[0].mxu0
        %v4401 = vadd.f32 %v4048, %v4400
        %4402 = vmatprep.mubr.bf16.mxu0 %v1729
        %4403 = vmatmul.mubr.bf16.gmra.mrb[0].mxu0 %v1728
        %v4404 = vpop.f32.mrb[0].mxu0
        %v4405 = vadd.f32 %v4052, %v4404
        %v4406 = vpop.f32.mrb[0].mxu0
        %v4407 = vadd.f32 %v4054, %v4406
        %v4408 = vpop.f32.mrb[0].mxu0
        %v4409 = vadd.f32 %v4056, %v4408
        %v4410 = vpop.f32.mrb[0].mxu0
        %v4411 = vadd.f32 %v4058, %v4410
        %4412 = vmatprep.mubr.bf16.mxu0 %v1733
        %4413 = vmatmul.mubr.bf16.gmra.mrb[0].mxu0 %v1732
        %v4414 = vpop.f32.mrb[0].mxu0
        %v4415 = vadd.f32 %v4062, %v4414
        %v4416 = vpop.f32.mrb[0].mxu0
        %v4417 = vadd.f32 %v4064, %v4416
        %v4418 = vpop.f32.mrb[0].mxu0
        %v4419 = vadd.f32 %v4066, %v4418
        %v4420 = vpop.f32.mrb[0].mxu0
        %v4421 = vadd.f32 %v4068, %v4420
        %4422 = vmatprep.mubr.bf16.mxu0 %v1737
        %4423 = vmatmul.mubr.bf16.gmra.mrb[0].mxu0 %v1736
        %v4424 = vpop.f32.mrb[0].mxu0
        %v4425 = vadd.f32 %v4072, %v4424
        %v4426 = vpop.f32.mrb[0].mxu0
        %v4427 = vadd.f32 %v4074, %v4426
        %v4428 = vpop.f32.mrb[0].mxu0
        %v4429 = vadd.f32 %v4076, %v4428
        %v4430 = vpop.f32.mrb[0].mxu0
        %v4431 = vadd.f32 %v4078, %v4430
        %4432 = vmatprep.mubr.bf16.mxu0 %v1741
        %4433 = vmatmul.mubr.bf16.gmra.mrb[0].mxu0 %v1740
        %v4434 = vpop.f32.mrb[0].mxu0
        %v4435 = vadd.f32 %v4082, %v4434
        %v4436 = vpop.f32.mrb[0].mxu0
        %v4437 = vadd.f32 %v4084, %v4436
        %v4438 = vpop.f32.mrb[0].mxu0
        %v4439 = vadd.f32 %v4086, %v4438
        %v4440 = vpop.f32.mrb[0].mxu0
        %v4441 = vadd.f32 %v4088, %v4440
        %4442 = vmatprep.mubr.bf16.mxu0 %v1745
        %4443 = vmatmul.mubr.bf16.gmra.mrb[0].mxu0 %v1744
        %v4444 = vpop.f32.mrb[0].mxu0
        %v4445 = vadd.f32 %v4092, %v4444
        %v4446 = vpop.f32.mrb[0].mxu0
        %v4447 = vadd.f32 %v4094, %v4446
        %v4448 = vpop.f32.mrb[0].mxu0
        %v4449 = vadd.f32 %v4096, %v4448
        %v4450 = vpop.f32.mrb[0].mxu0
        %v4451 = vadd.f32 %v4098, %v4450
        %4452 = vmatprep.mubr.bf16.mxu0 %v1749
        %4453 = vmatmul.mubr.bf16.gmra.mrb[0].mxu0 %v1748
        %v4454 = vpop.f32.mrb[0].mxu0
        %v4455 = vadd.f32 %v4102, %v4454
        %v4456 = vpop.f32.mrb[0].mxu0
        %v4457 = vadd.f32 %v4104, %v4456
        %v4458 = vpop.f32.mrb[0].mxu0
        %v4459 = vadd.f32 %v4106, %v4458
        %v4460 = vpop.f32.mrb[0].mxu0
        %v4461 = vadd.f32 %v4108, %v4460
        %4462 = vmatprep.mubr.bf16.mxu0 %v1753
        %4463 = vmatmul.mubr.bf16.gmra.mrb[0].mxu0 %v1752
        %v4464 = vpop.f32.mrb[0].mxu0
        %v4465 = vadd.f32 %v4112, %v4464
        %v4466 = vpop.f32.mrb[0].mxu0
        %v4467 = vadd.f32 %v4114, %v4466
        %v4468 = vpop.f32.mrb[0].mxu0
        %v4469 = vadd.f32 %v4116, %v4468
        %v4470 = vpop.f32.mrb[0].mxu0
        %v4471 = vadd.f32 %v4118, %v4470
        %4472 = vmatprep.mubr.bf16.mxu0 %v1757
        %4473 = vmatmul.mubr.bf16.gmra.mrb[0].mxu0 %v1756
        %v4474 = vpop.f32.mrb[0].mxu0
        %v4475 = vadd.f32 %v4122, %v4474
        %v4476 = vpop.f32.mrb[0].mxu0
        %v4477 = vadd.f32 %v4124, %v4476
        %v4478 = vpop.f32.mrb[0].mxu0
        %v4479 = vadd.f32 %v4126, %v4478
        %v4480 = vpop.f32.mrb[0].mxu0
        %v4481 = vadd.f32 %v4128, %v4480
        %4482 = vmatprep.mubr.bf16.mxu0 %v1761
        %4483 = vmatmul.mubr.bf16.gmra.mrb[0].mxu0 %v1760
        %v4484 = vpop.f32.mrb[0].mxu0
        %v4485 = vadd.f32 %v4132, %v4484
        %v4486 = vpop.f32.mrb[0].mxu0
        %v4487 = vadd.f32 %v4134, %v4486
        %v4488 = vpop.f32.mrb[0].mxu0
        %v4489 = vadd.f32 %v4136, %v4488
        %v4490 = vpop.f32.mrb[0].mxu0
        %v4491 = vadd.f32 %v4138, %v4490
        %4492 = vmatprep.mubr.bf16.mxu0 %v1765
        %4493 = vmatmul.mubr.bf16.gmra.mrb[0].mxu0 %v1764
        %v4494 = vpop.f32.mrb[0].mxu0
        %v4495 = vadd.f32 %v4142, %v4494
        %v4496 = vpop.f32.mrb[0].mxu0
        %v4497 = vadd.f32 %v4144, %v4496
        %v4498 = vpop.f32.mrb[0].mxu0
        %v4499 = vadd.f32 %v4146, %v4498
        %v4500 = vpop.f32.mrb[0].mxu0
        %v4501 = vadd.f32 %v4148, %v4500
        %4502 = vmatprep.mubr.bf16.mxu0 %v1769
        %4503 = vmatmul.mubr.bf16.gmra.mrb[0].mxu0 %v1768
        %v4504 = vpop.f32.mrb[0].mxu0
        %v4505 = vadd.f32 %v4152, %v4504
        %v4506 = vpop.f32.mrb[0].mxu0
        %v4507 = vadd.f32 %v4154, %v4506
        %v4508 = vpop.f32.mrb[0].mxu0
        %v4509 = vadd.f32 %v4156, %v4508
        %v4510 = vpop.f32.mrb[0].mxu0
        %v4511 = vadd.f32 %v4158, %v4510
        %4512 = vmatprep.mubr.bf16.mxu0 %v1773
        %4513 = vmatmul.mubr.bf16.gmra.mrb[0].mxu0 %v1772
        %v4514 = vpop.f32.mrb[0].mxu0
        %v4515 = vadd.f32 %v4162, %v4514
        %v4516 = vpop.f32.mrb[0].mxu0
        %v4517 = vadd.f32 %v4164, %v4516
        %v4518 = vpop.f32.mrb[0].mxu0
        %v4519 = vadd.f32 %v4166, %v4518
        %v4520 = vpop.f32.mrb[0].mxu0
        %v4521 = vadd.f32 %v4168, %v4520
        %4522 = vmatprep.mubr.bf16.mxu0 %v1777
        %4523 = vmatmul.mubr.bf16.gmra.mrb[0].mxu0 %v1776
        %v4524 = vpop.f32.mrb[0].mxu0
        %v4525 = vadd.f32 %v4172, %v4524
        %v4526 = vpop.f32.mrb[0].mxu0
        %v4527 = vadd.f32 %v4174, %v4526
        %v4528 = vpop.f32.mrb[0].mxu0
        %v4529 = vadd.f32 %v4176, %v4528
        %v4530 = vpop.f32.mrb[0].mxu0
        %v4531 = vadd.f32 %v4178, %v4530
        %4532 = vmatprep.mubr.bf16.mxu0 %v1781
        %4533 = vmatmul.mubr.bf16.gmra.mrb[0].mxu0 %v1780
        %v4534 = vpop.f32.mrb[0].mxu0
        %v4535 = vadd.f32 %v4182, %v4534
        %v4536 = vpop.f32.mrb[0].mxu0
        %v4537 = vadd.f32 %v4184, %v4536
        %v4538 = vpop.f32.mrb[0].mxu0
        %v4539 = vadd.f32 %v4186, %v4538
        %v4540 = vpop.f32.mrb[0].mxu0
        %v4541 = vadd.f32 %v4188, %v4540
        %4542 = vmatprep.mubr.bf16.mxu0 %v1785
        %4543 = vmatmul.mubr.bf16.gmra.mrb[0].mxu0 %v1784
        %v4544 = vpop.f32.mrb[0].mxu0
        %v4545 = vadd.f32 %v4192, %v4544
        %v4546 = vpop.f32.mrb[0].mxu0
        %v4547 = vadd.f32 %v4194, %v4546
        %v4548 = vpop.f32.mrb[0].mxu0
        %v4549 = vadd.f32 %v4196, %v4548
        %v4550 = vpop.f32.mrb[0].mxu0
        %v4551 = vadd.f32 %v4198, %v4550
        %4552 = vmatprep.mubr.bf16.mxu0 %v1789
        %4553 = vmatmul.mubr.bf16.gmra.mrb[0].mxu0 %v1788
        %v4554 = vpop.f32.mrb[0].mxu0
        %v4555 = vadd.f32 %v4202, %v4554
        %v4556 = vpop.f32.mrb[0].mxu0
        %v4557 = vadd.f32 %v4204, %v4556
        %v4558 = vpop.f32.mrb[0].mxu0
        %v4559 = vadd.f32 %v4206, %v4558
        %v4560 = vpop.f32.mrb[0].mxu0
        %v4561 = vadd.f32 %v4208, %v4560
        %4562 = vmatprep.mubr.bf16.mxu0 %v1793
        %4563 = vmatmul.mubr.bf16.gmra.mrb[0].mxu0 %v1792
        %v4564 = vpop.f32.mrb[0].mxu0
        %v4565 = vadd.f32 %v4212, %v4564
        %v4566 = vpop.f32.mrb[0].mxu0
        %v4567 = vadd.f32 %v4214, %v4566
        %v4568 = vpop.f32.mrb[0].mxu0
        %v4569 = vadd.f32 %v4216, %v4568
        %v4570 = vpop.f32.mrb[0].mxu0
        %v4571 = vadd.f32 %v4218, %v4570
        %4572 = vmatprep.mubr.bf16.mxu0 %v1797
        %4573 = vmatmul.mubr.bf16.gmra.mrb[0].mxu0 %v1796
        %v4574 = vpop.f32.mrb[0].mxu0
        %v4575 = vadd.f32 %v4222, %v4574
        %v4576 = vpop.f32.mrb[0].mxu0
        %v4577 = vadd.f32 %v4224, %v4576
        %v4578 = vpop.f32.mrb[0].mxu0
        %v4579 = vadd.f32 %v4226, %v4578
        %v4580 = vpop.f32.mrb[0].mxu0
        %v4581 = vadd.f32 %v4228, %v4580
        %4582 = vmatprep.mubr.bf16.mxu0 %v1801
        %4583 = vmatmul.mubr.bf16.gmra.mrb[0].mxu0 %v1800
        %v4584 = vpop.f32.mrb[0].mxu0
        %v4585 = vadd.f32 %v4232, %v4584
        %v4586 = vpop.f32.mrb[0].mxu0
        %v4587 = vadd.f32 %v4234, %v4586
        %v4588 = vpop.f32.mrb[0].mxu0
        %v4589 = vadd.f32 %v4236, %v4588
        %v4590 = vpop.f32.mrb[0].mxu0
        %v4591 = vadd.f32 %v4238, %v4590
        %4592 = vmatprep.mubr.bf16.mxu0 %v1805
        %4593 = vmatmul.mubr.bf16.gmra.mrb[0].mxu0 %v1804
        %v4594 = vpop.f32.mrb[0].mxu0
        %v4595 = vadd.f32 %v4242, %v4594
        %v4596 = vpop.f32.mrb[0].mxu0
        %v4597 = vadd.f32 %v4244, %v4596
        %v4598 = vpop.f32.mrb[0].mxu0
        %v4599 = vadd.f32 %v4246, %v4598
        %v4600 = vpop.f32.mrb[0].mxu0
        %v4601 = vadd.f32 %v4248, %v4600
        %4602 = vmatprep.mubr.bf16.mxu0 %v1809
        %4603 = vmatmul.mubr.bf16.gmra.mrb[0].mxu0 %v1808
        %v4604 = vpop.f32.mrb[0].mxu0
        %v4605 = vadd.f32 %v4252, %v4604
        %v4606 = vpop.f32.mrb[0].mxu0
        %v4607 = vadd.f32 %v4254, %v4606
        %v4608 = vpop.f32.mrb[0].mxu0
        %v4609 = vadd.f32 %v4256, %v4608
        %v4610 = vpop.f32.mrb[0].mxu0
        %v4611 = vadd.f32 %v4258, %v4610
        %4612 = vmatprep.mubr.bf16.mxu0 %v1813
        %4613 = vmatmul.mubr.bf16.gmra.mrb[0].mxu0 %v1812
        %v4614 = vpop.f32.mrb[0].mxu0
        %v4615 = vadd.f32 %v4262, %v4614
        %v4616 = vpop.f32.mrb[0].mxu0
        %v4617 = vadd.f32 %v4264, %v4616
        %v4618 = vpop.f32.mrb[0].mxu0
        %v4619 = vadd.f32 %v4266, %v4618
        %v4620 = vpop.f32.mrb[0].mxu0
        %v4621 = vadd.f32 %v4268, %v4620
        %4622 = vmatprep.mubr.bf16.mxu0 %v1817
        %4623 = vmatmul.mubr.bf16.gmra.mrb[0].mxu0 %v1816
        %v4624 = vpop.f32.mrb[0].mxu0
        %v4625 = vadd.f32 %v4272, %v4624
        %v4626 = vpop.f32.mrb[0].mxu0
        %v4627 = vadd.f32 %v4274, %v4626
        %v4628 = vpop.f32.mrb[0].mxu0
        %v4629 = vadd.f32 %v4276, %v4628
        %v4630 = vpop.f32.mrb[0].mxu0
        %v4631 = vadd.f32 %v4278, %v4630
        %4632 = vmatprep.mubr.bf16.mxu0 %v1821
        %4633 = vmatmul.mubr.bf16.gmra.mrb[0].mxu0 %v1820
        %v4634 = vpop.f32.mrb[0].mxu0
        %v4635 = vadd.f32 %v4282, %v4634
        %v4636 = vpop.f32.mrb[0].mxu0
        %v4637 = vadd.f32 %v4284, %v4636
        %v4638 = vpop.f32.mrb[0].mxu0
        %v4639 = vadd.f32 %v4286, %v4638
        %v4640 = vpop.f32.mrb[0].mxu0
        %v4641 = vadd.f32 %v4288, %v4640
        %4642 = vmatprep.mubr.bf16.mxu0 %v1825
        %4643 = vmatmul.mubr.bf16.gmra.mrb[0].mxu0 %v1824
        %v4644 = vpop.f32.mrb[0].mxu0
        %v4645 = vadd.f32 %v4292, %v4644
        %v4646 = vpop.f32.mrb[0].mxu0
        %v4647 = vadd.f32 %v4294, %v4646
        %v4648 = vpop.f32.mrb[0].mxu0
        %v4649 = vadd.f32 %v4296, %v4648
        %v4650 = vpop.f32.mrb[0].mxu0
        %v4651 = vadd.f32 %v4298, %v4650
        %4652 = vmatprep.mubr.bf16.mxu0 %v1829
        %4653 = vmatmul.mubr.bf16.gmra.mrb[0].mxu0 %v1828
        %v4654 = vpop.f32.mrb[0].mxu0
        %v4655 = vadd.f32 %v4302, %v4654
        %v4656 = vpop.f32.mrb[0].mxu0
        %v4657 = vadd.f32 %v4304, %v4656
        %v4658 = vpop.f32.mrb[0].mxu0
        %v4659 = vadd.f32 %v4306, %v4658
        %v4660 = vpop.f32.mrb[0].mxu0
        %v4661 = vadd.f32 %v4308, %v4660
        %4662 = vmatprep.mubr.bf16.mxu0 %v1833
        %4663 = vmatmul.mubr.bf16.gmra.mrb[0].mxu0 %v1832
        %v4664 = vpop.f32.mrb[0].mxu0
        %v4665 = vadd.f32 %v4312, %v4664
        %v4666 = vpop.f32.mrb[0].mxu0
        %v4667 = vadd.f32 %v4314, %v4666
        %v4668 = vpop.f32.mrb[0].mxu0
        %v4669 = vadd.f32 %v4316, %v4668
        %v4670 = vpop.f32.mrb[0].mxu0
        %v4671 = vadd.f32 %v4318, %v4670
        %4672 = vmatprep.mubr.bf16.mxu0 %v1837
        %4673 = vmatmul.mubr.bf16.gmra.mrb[0].mxu0 %v1836
        %v4674 = vpop.f32.mrb[0].mxu0
        %v4675 = vadd.f32 %v4322, %v4674
        %v4676 = vpop.f32.mrb[0].mxu0
        %v4677 = vadd.f32 %v4324, %v4676
        %v4678 = vpop.f32.mrb[0].mxu0
        %v4679 = vadd.f32 %v4326, %v4678
        %v4680 = vpop.f32.mrb[0].mxu0
        %v4681 = vadd.f32 %v4328, %v4680
        %4682 = vmatprep.mubr.bf16.mxu0 %v1841
        %4683 = vmatmul.mubr.bf16.gmra.mrb[0].mxu0 %v1840
        %v4684 = vpop.f32.mrb[0].mxu0
        %v4685 = vadd.f32 %v4332, %v4684
        %v4686 = vpop.f32.mrb[0].mxu0
        %v4687 = vadd.f32 %v4334, %v4686
        %v4688 = vpop.f32.mrb[0].mxu0
        %v4689 = vadd.f32 %v4336, %v4688
        %v4690 = vpop.f32.mrb[0].mxu0
        %v4691 = vadd.f32 %v4338, %v4690
        %4692 = vmatprep.mubr.bf16.mxu0 %v1845
        %4693 = vmatmul.mubr.bf16.gmra.mrb[0].mxu0 %v1844
        %v4694 = vpop.f32.mrb[0].mxu0
        %v4695 = vadd.f32 %v4342, %v4694
        %v4696 = vpop.f32.mrb[0].mxu0
        %v4697 = vadd.f32 %v4344, %v4696
        %v4698 = vpop.f32.mrb[0].mxu0
        %v4699 = vadd.f32 %v4346, %v4698
        %v4700 = vpop.f32.mrb[0].mxu0
        %v4701 = vadd.f32 %v4348, %v4700
        %4702 = vdwg.mxu0
        %4703 = vmatprep.subr.bf16.mxu0 %v2848
        %4704 = vmatpush1.bf16.msra.mxu0 %v2847
        %4705 = vmatprep.subr.bf16.mxu0 %v2855
        %4706 = vmatpush1.bf16.msra.mxu0 %v2854
        %4707 = vmatprep.subr.bf16.mxu0 %v2862
        %4708 = vmatpush1.bf16.msra.mxu0 %v2861
        %4709 = vmatprep.subr.bf16.mxu0 %v2869
        %4710 = vmatpush1.bf16.msra.mxu0 %v2868
        %4711 = vmatprep.subr.bf16.mxu0 %v2876
        %4712 = vmatpush1.bf16.msra.mxu0 %v2875
        %4713 = vmatprep.subr.bf16.mxu0 %v2883
        %4714 = vmatpush1.bf16.msra.mxu0 %v2882
        %4715 = vmatprep.subr.bf16.mxu0 %v2890
        %4716 = vmatpush1.bf16.msra.mxu0 %v2889
        %4717 = vmatprep.subr.bf16.mxu0 %v2897
        %4718 = vmatpush1.bf16.msra.mxu0 %v2896
        %4719 = vmatprep.subr.bf16.mxu0 %v2904
        %4720 = vmatpush1.bf16.msra.mxu0 %v2903
        %4721 = vmatprep.subr.bf16.mxu0 %v2911
        %4722 = vmatpush1.bf16.msra.mxu0 %v2910
        %4723 = vmatprep.subr.bf16.mxu0 %v2918
        %4724 = vmatpush1.bf16.msra.mxu0 %v2917
        %4725 = vmatprep.subr.bf16.mxu0 %v2925
        %4726 = vmatpush1.bf16.msra.mxu0 %v2924
        %4727 = vmatprep.subr.bf16.mxu0 %v2932
        %4728 = vmatpush1.bf16.msra.mxu0 %v2931
        %4729 = vmatprep.subr.bf16.mxu0 %v2939
        %4730 = vmatpush1.bf16.msra.mxu0 %v2938
        %4731 = vmatprep.subr.bf16.mxu0 %v2946
        %4732 = vmatpush1.bf16.msra.mxu0 %v2945
        %4733 = vmatprep.subr.bf16.mxu0 %v2953
        %4734 = vmatpush1.bf16.msra.mxu0 %v2952
        %4735 = vmatprep.mubr.bf16.mxu0 %v1719
        %4736 = vmatmul.mubr.bf16.gmra.mrb[0].mxu0 %v1718
        %v4737 = vpop.f32.mrb[0].mxu0
        %v4738 = vadd.f32 %v2123, %v4737
        %v4739 = vpop.f32.mrb[0].mxu0
        %v4740 = vadd.f32 %v2127, %v4739
        %v4741 = vpop.f32.mrb[0].mxu0
        %v4742 = vadd.f32 %v2123, %v4741
        %v4743 = vpop.f32.mrb[0].mxu0
        %v4744 = vadd.f32 %v2127, %v4743
        %4745 = vmatprep.mubr.bf16.mxu0 %v1723
        %4746 = vmatmul.mubr.bf16.gmra.mrb[0].mxu0 %v1722
        %v4747 = vpop.f32.mrb[0].mxu0
        %v4748 = vadd.f32 %v2123, %v4747
        %v4749 = vpop.f32.mrb[0].mxu0
        %v4750 = vadd.f32 %v2127, %v4749
        %v4751 = vpop.f32.mrb[0].mxu0
        %v4752 = vadd.f32 %v2123, %v4751
        %v4753 = vpop.f32.mrb[0].mxu0
        %v4754 = vadd.f32 %v2127, %v4753
        %4755 = vmatprep.mubr.bf16.mxu0 %v1727
        %4756 = vmatmul.mubr.bf16.gmra.mrb[0].mxu0 %v1726
        %v4757 = vpop.f32.mrb[0].mxu0
        %v4758 = vadd.f32 %v2123, %v4757
        %v4759 = vpop.f32.mrb[0].mxu0
        %v4760 = vadd.f32 %v2127, %v4759
        %v4761 = vpop.f32.mrb[0].mxu0
        %v4762 = vadd.f32 %v2123, %v4761
        %v4763 = vpop.f32.mrb[0].mxu0
        %v4764 = vadd.f32 %v2127, %v4763
        %4765 = vmatprep.mubr.bf16.mxu0 %v1731
        %4766 = vmatmul.mubr.bf16.gmra.mrb[0].mxu0 %v1730
        %v4767 = vpop.f32.mrb[0].mxu0
        %v4768 = vadd.f32 %v2123, %v4767
        %v4769 = vpop.f32.mrb[0].mxu0
        %v4770 = vadd.f32 %v2127, %v4769
        %v4771 = vpop.f32.mrb[0].mxu0
        %v4772 = vadd.f32 %v2123, %v4771
        %v4773 = vpop.f32.mrb[0].mxu0
        %v4774 = vadd.f32 %v2127, %v4773
        %4775 = vmatprep.mubr.bf16.mxu0 %v1735
        %4776 = vmatmul.mubr.bf16.gmra.mrb[0].mxu0 %v1734
        %v4777 = vpop.f32.mrb[0].mxu0
        %v4778 = vadd.f32 %v2123, %v4777
        %v4779 = vpop.f32.mrb[0].mxu0
        %v4780 = vadd.f32 %v2127, %v4779
        %v4781 = vpop.f32.mrb[0].mxu0
        %v4782 = vadd.f32 %v2123, %v4781
        %v4783 = vpop.f32.mrb[0].mxu0
        %v4784 = vadd.f32 %v2127, %v4783
        %4785 = vmatprep.mubr.bf16.mxu0 %v1739
        %4786 = vmatmul.mubr.bf16.gmra.mrb[0].mxu0 %v1738
        %v4787 = vpop.f32.mrb[0].mxu0
        %v4788 = vadd.f32 %v2123, %v4787
        %v4789 = vpop.f32.mrb[0].mxu0
        %v4790 = vadd.f32 %v2127, %v4789
        %v4791 = vpop.f32.mrb[0].mxu0
        %v4792 = vadd.f32 %v2123, %v4791
        %v4793 = vpop.f32.mrb[0].mxu0
        %v4794 = vadd.f32 %v2127, %v4793
        %4795 = vmatprep.mubr.bf16.mxu0 %v1743
        %4796 = vmatmul.mubr.bf16.gmra.mrb[0].mxu0 %v1742
        %v4797 = vpop.f32.mrb[0].mxu0
        %v4798 = vadd.f32 %v2123, %v4797
        %v4799 = vpop.f32.mrb[0].mxu0
        %v4800 = vadd.f32 %v2127, %v4799
        %v4801 = vpop.f32.mrb[0].mxu0
        %v4802 = vadd.f32 %v2123, %v4801
        %v4803 = vpop.f32.mrb[0].mxu0
        %v4804 = vadd.f32 %v2127, %v4803
        %4805 = vmatprep.mubr.bf16.mxu0 %v1747
        %4806 = vmatmul.mubr.bf16.gmra.mrb[0].mxu0 %v1746
        %v4807 = vpop.f32.mrb[0].mxu0
        %v4808 = vadd.f32 %v2123, %v4807
        %v4809 = vpop.f32.mrb[0].mxu0
        %v4810 = vadd.f32 %v2127, %v4809
        %v4811 = vpop.f32.mrb[0].mxu0
        %v4812 = vadd.f32 %v2123, %v4811
        %v4813 = vpop.f32.mrb[0].mxu0
        %v4814 = vadd.f32 %v2127, %v4813
        %4815 = vmatprep.mubr.bf16.mxu0 %v1751
        %4816 = vmatmul.mubr.bf16.gmra.mrb[0].mxu0 %v1750
        %v4817 = vpop.f32.mrb[0].mxu0
        %v4818 = vadd.f32 %v2123, %v4817
        %v4819 = vpop.f32.mrb[0].mxu0
        %v4820 = vadd.f32 %v2127, %v4819
        %v4821 = vpop.f32.mrb[0].mxu0
        %v4822 = vadd.f32 %v2123, %v4821
        %v4823 = vpop.f32.mrb[0].mxu0
        %v4824 = vadd.f32 %v2127, %v4823
        %4825 = vmatprep.mubr.bf16.mxu0 %v1755
        %4826 = vmatmul.mubr.bf16.gmra.mrb[0].mxu0 %v1754
        %v4827 = vpop.f32.mrb[0].mxu0
        %v4828 = vadd.f32 %v2123, %v4827
        %v4829 = vpop.f32.mrb[0].mxu0
        %v4830 = vadd.f32 %v2127, %v4829
        %v4831 = vpop.f32.mrb[0].mxu0
        %v4832 = vadd.f32 %v2123, %v4831
        %v4833 = vpop.f32.mrb[0].mxu0
        %v4834 = vadd.f32 %v2127, %v4833
        %4835 = vmatprep.mubr.bf16.mxu0 %v1759
        %4836 = vmatmul.mubr.bf16.gmra.mrb[0].mxu0 %v1758
        %v4837 = vpop.f32.mrb[0].mxu0
        %v4838 = vadd.f32 %v2123, %v4837
        %v4839 = vpop.f32.mrb[0].mxu0
        %v4840 = vadd.f32 %v2127, %v4839
        %v4841 = vpop.f32.mrb[0].mxu0
        %v4842 = vadd.f32 %v2123, %v4841
        %v4843 = vpop.f32.mrb[0].mxu0
        %v4844 = vadd.f32 %v2127, %v4843
        %4845 = vmatprep.mubr.bf16.mxu0 %v1763
        %4846 = vmatmul.mubr.bf16.gmra.mrb[0].mxu0 %v1762
        %v4847 = vpop.f32.mrb[0].mxu0
        %v4848 = vadd.f32 %v2123, %v4847
        %v4849 = vpop.f32.mrb[0].mxu0
        %v4850 = vadd.f32 %v2127, %v4849
        %v4851 = vpop.f32.mrb[0].mxu0
        %v4852 = vadd.f32 %v2123, %v4851
        %v4853 = vpop.f32.mrb[0].mxu0
        %v4854 = vadd.f32 %v2127, %v4853
        %4855 = vmatprep.mubr.bf16.mxu0 %v1767
        %4856 = vmatmul.mubr.bf16.gmra.mrb[0].mxu0 %v1766
        %v4857 = vpop.f32.mrb[0].mxu0
        %v4858 = vadd.f32 %v2123, %v4857
        %v4859 = vpop.f32.mrb[0].mxu0
        %v4860 = vadd.f32 %v2127, %v4859
        %v4861 = vpop.f32.mrb[0].mxu0
        %v4862 = vadd.f32 %v2123, %v4861
        %v4863 = vpop.f32.mrb[0].mxu0
        %v4864 = vadd.f32 %v2127, %v4863
        %4865 = vmatprep.mubr.bf16.mxu0 %v1771
        %4866 = vmatmul.mubr.bf16.gmra.mrb[0].mxu0 %v1770
        %v4867 = vpop.f32.mrb[0].mxu0
        %v4868 = vadd.f32 %v2123, %v4867
        %v4869 = vpop.f32.mrb[0].mxu0
        %v4870 = vadd.f32 %v2127, %v4869
        %v4871 = vpop.f32.mrb[0].mxu0
        %v4872 = vadd.f32 %v2123, %v4871
        %v4873 = vpop.f32.mrb[0].mxu0
        %v4874 = vadd.f32 %v2127, %v4873
        %4875 = vmatprep.mubr.bf16.mxu0 %v1775
        %4876 = vmatmul.mubr.bf16.gmra.mrb[0].mxu0 %v1774
        %v4877 = vpop.f32.mrb[0].mxu0
        %v4878 = vadd.f32 %v2123, %v4877
        %v4879 = vpop.f32.mrb[0].mxu0
        %v4880 = vadd.f32 %v2127, %v4879
        %v4881 = vpop.f32.mrb[0].mxu0
        %v4882 = vadd.f32 %v2123, %v4881
        %v4883 = vpop.f32.mrb[0].mxu0
        %v4884 = vadd.f32 %v2127, %v4883
        %4885 = vmatprep.mubr.bf16.mxu0 %v1779
        %4886 = vmatmul.mubr.bf16.gmra.mrb[0].mxu0 %v1778
        %v4887 = vpop.f32.mrb[0].mxu0
        %v4888 = vadd.f32 %v2123, %v4887
        %v4889 = vpop.f32.mrb[0].mxu0
        %v4890 = vadd.f32 %v2127, %v4889
        %v4891 = vpop.f32.mrb[0].mxu0
        %v4892 = vadd.f32 %v2123, %v4891
        %v4893 = vpop.f32.mrb[0].mxu0
        %v4894 = vadd.f32 %v2127, %v4893
        %4895 = vmatprep.mubr.bf16.mxu0 %v1783
        %4896 = vmatmul.mubr.bf16.gmra.mrb[0].mxu0 %v1782
        %v4897 = vpop.f32.mrb[0].mxu0
        %v4898 = vadd.f32 %v2123, %v4897
        %v4899 = vpop.f32.mrb[0].mxu0
        %v4900 = vadd.f32 %v2127, %v4899
        %v4901 = vpop.f32.mrb[0].mxu0
        %v4902 = vadd.f32 %v2123, %v4901
        %v4903 = vpop.f32.mrb[0].mxu0
        %v4904 = vadd.f32 %v2127, %v4903
        %4905 = vmatprep.mubr.bf16.mxu0 %v1787
        %4906 = vmatmul.mubr.bf16.gmra.mrb[0].mxu0 %v1786
        %v4907 = vpop.f32.mrb[0].mxu0
        %v4908 = vadd.f32 %v2123, %v4907
        %v4909 = vpop.f32.mrb[0].mxu0
        %v4910 = vadd.f32 %v2127, %v4909
        %v4911 = vpop.f32.mrb[0].mxu0
        %v4912 = vadd.f32 %v2123, %v4911
        %v4913 = vpop.f32.mrb[0].mxu0
        %v4914 = vadd.f32 %v2127, %v4913
        %4915 = vmatprep.mubr.bf16.mxu0 %v1791
        %4916 = vmatmul.mubr.bf16.gmra.mrb[0].mxu0 %v1790
        %v4917 = vpop.f32.mrb[0].mxu0
        %v4918 = vadd.f32 %v2123, %v4917
        %v4919 = vpop.f32.mrb[0].mxu0
        %v4920 = vadd.f32 %v2127, %v4919
        %v4921 = vpop.f32.mrb[0].mxu0
        %v4922 = vadd.f32 %v2123, %v4921
        %v4923 = vpop.f32.mrb[0].mxu0
        %v4924 = vadd.f32 %v2127, %v4923
        %4925 = vmatprep.mubr.bf16.mxu0 %v1795
        %4926 = vmatmul.mubr.bf16.gmra.mrb[0].mxu0 %v1794
        %v4927 = vpop.f32.mrb[0].mxu0
        %v4928 = vadd.f32 %v2123, %v4927
        %v4929 = vpop.f32.mrb[0].mxu0
        %v4930 = vadd.f32 %v2127, %v4929
        %v4931 = vpop.f32.mrb[0].mxu0
        %v4932 = vadd.f32 %v2123, %v4931
        %v4933 = vpop.f32.mrb[0].mxu0
        %v4934 = vadd.f32 %v2127, %v4933
        %4935 = vmatprep.mubr.bf16.mxu0 %v1799
        %4936 = vmatmul.mubr.bf16.gmra.mrb[0].mxu0 %v1798
        %v4937 = vpop.f32.mrb[0].mxu0
        %v4938 = vadd.f32 %v2123, %v4937
        %v4939 = vpop.f32.mrb[0].mxu0
        %v4940 = vadd.f32 %v2127, %v4939
        %v4941 = vpop.f32.mrb[0].mxu0
        %v4942 = vadd.f32 %v2123, %v4941
        %v4943 = vpop.f32.mrb[0].mxu0
        %v4944 = vadd.f32 %v2127, %v4943
        %4945 = vmatprep.mubr.bf16.mxu0 %v1803
        %4946 = vmatmul.mubr.bf16.gmra.mrb[0].mxu0 %v1802
        %v4947 = vpop.f32.mrb[0].mxu0
        %v4948 = vadd.f32 %v2123, %v4947
        %v4949 = vpop.f32.mrb[0].mxu0
        %v4950 = vadd.f32 %v2127, %v4949
        %v4951 = vpop.f32.mrb[0].mxu0
        %v4952 = vadd.f32 %v2123, %v4951
        %v4953 = vpop.f32.mrb[0].mxu0
        %v4954 = vadd.f32 %v2127, %v4953
        %4955 = vmatprep.mubr.bf16.mxu0 %v1807
        %4956 = vmatmul.mubr.bf16.gmra.mrb[0].mxu0 %v1806
        %v4957 = vpop.f32.mrb[0].mxu0
        %v4958 = vadd.f32 %v2123, %v4957
        %v4959 = vpop.f32.mrb[0].mxu0
        %v4960 = vadd.f32 %v2127, %v4959
        %v4961 = vpop.f32.mrb[0].mxu0
        %v4962 = vadd.f32 %v2123, %v4961
        %v4963 = vpop.f32.mrb[0].mxu0
        %v4964 = vadd.f32 %v2127, %v4963
        %4965 = vmatprep.mubr.bf16.mxu0 %v1811
        %4966 = vmatmul.mubr.bf16.gmra.mrb[0].mxu0 %v1810
        %v4967 = vpop.f32.mrb[0].mxu0
        %v4968 = vadd.f32 %v2123, %v4967
        %v4969 = vpop.f32.mrb[0].mxu0
        %v4970 = vadd.f32 %v2127, %v4969
        %v4971 = vpop.f32.mrb[0].mxu0
        %v4972 = vadd.f32 %v2123, %v4971
        %v4973 = vpop.f32.mrb[0].mxu0
        %v4974 = vadd.f32 %v2127, %v4973
        %4975 = vmatprep.mubr.bf16.mxu0 %v1815
        %4976 = vmatmul.mubr.bf16.gmra.mrb[0].mxu0 %v1814
        %v4977 = vpop.f32.mrb[0].mxu0
        %v4978 = vadd.f32 %v2123, %v4977
        %v4979 = vpop.f32.mrb[0].mxu0
        %v4980 = vadd.f32 %v2127, %v4979
        %v4981 = vpop.f32.mrb[0].mxu0
        %v4982 = vadd.f32 %v2123, %v4981
        %v4983 = vpop.f32.mrb[0].mxu0
        %v4984 = vadd.f32 %v2127, %v4983
        %4985 = vmatprep.mubr.bf16.mxu0 %v1819
        %4986 = vmatmul.mubr.bf16.gmra.mrb[0].mxu0 %v1818
        %v4987 = vpop.f32.mrb[0].mxu0
        %v4988 = vadd.f32 %v2123, %v4987
        %v4989 = vpop.f32.mrb[0].mxu0
        %v4990 = vadd.f32 %v2127, %v4989
        %v4991 = vpop.f32.mrb[0].mxu0
        %v4992 = vadd.f32 %v2123, %v4991
        %v4993 = vpop.f32.mrb[0].mxu0
        %v4994 = vadd.f32 %v2127, %v4993
        %4995 = vmatprep.mubr.bf16.mxu0 %v1823
        %4996 = vmatmul.mubr.bf16.gmra.mrb[0].mxu0 %v1822
        %v4997 = vpop.f32.mrb[0].mxu0
        %v4998 = vadd.f32 %v2123, %v4997
        %v4999 = vpop.f32.mrb[0].mxu0
        %v5000 = vadd.f32 %v2127, %v4999
        %v5001 = vpop.f32.mrb[0].mxu0
        %v5002 = vadd.f32 %v2123, %v5001
        %v5003 = vpop.f32.mrb[0].mxu0
        %v5004 = vadd.f32 %v2127, %v5003
        %5005 = vmatprep.mubr.bf16.mxu0 %v1827
        %5006 = vmatmul.mubr.bf16.gmra.mrb[0].mxu0 %v1826
        %v5007 = vpop.f32.mrb[0].mxu0
        %v5008 = vadd.f32 %v2123, %v5007
        %v5009 = vpop.f32.mrb[0].mxu0
        %v5010 = vadd.f32 %v2127, %v5009
        %v5011 = vpop.f32.mrb[0].mxu0
        %v5012 = vadd.f32 %v2123, %v5011
        %v5013 = vpop.f32.mrb[0].mxu0
        %v5014 = vadd.f32 %v2127, %v5013
        %5015 = vmatprep.mubr.bf16.mxu0 %v1831
        %5016 = vmatmul.mubr.bf16.gmra.mrb[0].mxu0 %v1830
        %v5017 = vpop.f32.mrb[0].mxu0
        %v5018 = vadd.f32 %v2123, %v5017
        %v5019 = vpop.f32.mrb[0].mxu0
        %v5020 = vadd.f32 %v2127, %v5019
        %v5021 = vpop.f32.mrb[0].mxu0
        %v5022 = vadd.f32 %v2123, %v5021
        %v5023 = vpop.f32.mrb[0].mxu0
        %v5024 = vadd.f32 %v2127, %v5023
        %5025 = vmatprep.mubr.bf16.mxu0 %v1835
        %5026 = vmatmul.mubr.bf16.gmra.mrb[0].mxu0 %v1834
        %v5027 = vpop.f32.mrb[0].mxu0
        %v5028 = vadd.f32 %v2123, %v5027
        %v5029 = vpop.f32.mrb[0].mxu0
        %v5030 = vadd.f32 %v2127, %v5029
        %v5031 = vpop.f32.mrb[0].mxu0
        %v5032 = vadd.f32 %v2123, %v5031
        %v5033 = vpop.f32.mrb[0].mxu0
        %v5034 = vadd.f32 %v2127, %v5033
        %5035 = vmatprep.mubr.bf16.mxu0 %v1839
        %5036 = vmatmul.mubr.bf16.gmra.mrb[0].mxu0 %v1838
        %v5037 = vpop.f32.mrb[0].mxu0
        %v5038 = vadd.f32 %v2123, %v5037
        %v5039 = vpop.f32.mrb[0].mxu0
        %v5040 = vadd.f32 %v2127, %v5039
        %v5041 = vpop.f32.mrb[0].mxu0
        %v5042 = vadd.f32 %v2123, %v5041
        %v5043 = vpop.f32.mrb[0].mxu0
        %v5044 = vadd.f32 %v2127, %v5043
        %5045 = vmatprep.mubr.bf16.mxu0 %v1843
        %5046 = vmatmul.mubr.bf16.gmra.mrb[0].mxu0 %v1842
        %v5047 = vpop.f32.mrb[0].mxu0
        %v5048 = vadd.f32 %v2123, %v5047
        %v5049 = vpop.f32.mrb[0].mxu0
        %v5050 = vadd.f32 %v2127, %v5049
        %v5051 = vpop.f32.mrb[0].mxu0
        %v5052 = vadd.f32 %v2123, %v5051
        %v5053 = vpop.f32.mrb[0].mxu0
        %v5054 = vadd.f32 %v2127, %v5053
        %5055 = vdwg.mxu0
        %5056 = vmatprep.subr.bf16.mxu0 %v2960
        %5057 = vmatpush1.bf16.msra.mxu0 %v2959
        %5058 = vmatprep.subr.bf16.mxu0 %v2967
        %5059 = vmatpush1.bf16.msra.mxu0 %v2966
        %5060 = vmatprep.subr.bf16.mxu0 %v2974
        %5061 = vmatpush1.bf16.msra.mxu0 %v2973
        %5062 = vmatprep.subr.bf16.mxu0 %v2981
        %5063 = vmatpush1.bf16.msra.mxu0 %v2980
        %5064 = vmatprep.subr.bf16.mxu0 %v2988
        %5065 = vmatpush1.bf16.msra.mxu0 %v2987
        %5066 = vmatprep.subr.bf16.mxu0 %v2995
        %5067 = vmatpush1.bf16.msra.mxu0 %v2994
        %5068 = vmatprep.subr.bf16.mxu0 %v3002
        %5069 = vmatpush1.bf16.msra.mxu0 %v3001
        %5070 = vmatprep.subr.bf16.mxu0 %v3009
        %5071 = vmatpush1.bf16.msra.mxu0 %v3008
        %5072 = vmatprep.subr.bf16.mxu0 %v3016
        %5073 = vmatpush1.bf16.msra.mxu0 %v3015
        %5074 = vmatprep.subr.bf16.mxu0 %v3023
        %5075 = vmatpush1.bf16.msra.mxu0 %v3022
        %5076 = vmatprep.subr.bf16.mxu0 %v3030
        %5077 = vmatpush1.bf16.msra.mxu0 %v3029
        %5078 = vmatprep.subr.bf16.mxu0 %v3037
        %5079 = vmatpush1.bf16.msra.mxu0 %v3036
        %5080 = vmatprep.subr.bf16.mxu0 %v3044
        %5081 = vmatpush1.bf16.msra.mxu0 %v3043
        %5082 = vmatprep.subr.bf16.mxu0 %v3051
        %5083 = vmatpush1.bf16.msra.mxu0 %v3050
        %5084 = vmatprep.subr.bf16.mxu0 %v3058
        %5085 = vmatpush1.bf16.msra.mxu0 %v3057
        %5086 = vmatprep.subr.bf16.mxu0 %v3065
        %5087 = vmatpush1.bf16.msra.mxu0 %v3064
        %5088 = vmatprep.mubr.bf16.mxu0 %v1721
        %5089 = vmatmul.mubr.bf16.gmra.mrb[0].mxu0 %v1720
        %v5090 = vpop.f32.mrb[0].mxu0
        %v5091 = vadd.f32 %v4738, %v5090
        %v5092 = vpop.f32.mrb[0].mxu0
        %v5093 = vadd.f32 %v4740, %v5092
        %v5094 = vpop.f32.mrb[0].mxu0
        %v5095 = vadd.f32 %v4742, %v5094
        %v5096 = vpop.f32.mrb[0].mxu0
        %v5097 = vadd.f32 %v4744, %v5096
        %5098 = vmatprep.mubr.bf16.mxu0 %v1725
        %5099 = vmatmul.mubr.bf16.gmra.mrb[0].mxu0 %v1724
        %v5100 = vpop.f32.mrb[0].mxu0
        %v5101 = vadd.f32 %v4748, %v5100
        %v5102 = vpop.f32.mrb[0].mxu0
        %v5103 = vadd.f32 %v4750, %v5102
        %v5104 = vpop.f32.mrb[0].mxu0
        %v5105 = vadd.f32 %v4752, %v5104
        %v5106 = vpop.f32.mrb[0].mxu0
        %v5107 = vadd.f32 %v4754, %v5106
        %5108 = vmatprep.mubr.bf16.mxu0 %v1729
        %5109 = vmatmul.mubr.bf16.gmra.mrb[0].mxu0 %v1728
        %v5110 = vpop.f32.mrb[0].mxu0
        %v5111 = vadd.f32 %v4758, %v5110
        %v5112 = vpop.f32.mrb[0].mxu0
        %v5113 = vadd.f32 %v4760, %v5112
        %v5114 = vpop.f32.mrb[0].mxu0
        %v5115 = vadd.f32 %v4762, %v5114
        %v5116 = vpop.f32.mrb[0].mxu0
        %v5117 = vadd.f32 %v4764, %v5116
        %5118 = vmatprep.mubr.bf16.mxu0 %v1733
        %5119 = vmatmul.mubr.bf16.gmra.mrb[0].mxu0 %v1732
        %v5120 = vpop.f32.mrb[0].mxu0
        %v5121 = vadd.f32 %v4768, %v5120
        %v5122 = vpop.f32.mrb[0].mxu0
        %v5123 = vadd.f32 %v4770, %v5122
        %v5124 = vpop.f32.mrb[0].mxu0
        %v5125 = vadd.f32 %v4772, %v5124
        %v5126 = vpop.f32.mrb[0].mxu0
        %v5127 = vadd.f32 %v4774, %v5126
        %5128 = vmatprep.mubr.bf16.mxu0 %v1737
        %5129 = vmatmul.mubr.bf16.gmra.mrb[0].mxu0 %v1736
        %v5130 = vpop.f32.mrb[0].mxu0
        %v5131 = vadd.f32 %v4778, %v5130
        %v5132 = vpop.f32.mrb[0].mxu0
        %v5133 = vadd.f32 %v4780, %v5132
        %v5134 = vpop.f32.mrb[0].mxu0
        %v5135 = vadd.f32 %v4782, %v5134
        %v5136 = vpop.f32.mrb[0].mxu0
        %v5137 = vadd.f32 %v4784, %v5136
        %5138 = vmatprep.mubr.bf16.mxu0 %v1741
        %5139 = vmatmul.mubr.bf16.gmra.mrb[0].mxu0 %v1740
        %v5140 = vpop.f32.mrb[0].mxu0
        %v5141 = vadd.f32 %v4788, %v5140
        %v5142 = vpop.f32.mrb[0].mxu0
        %v5143 = vadd.f32 %v4790, %v5142
        %v5144 = vpop.f32.mrb[0].mxu0
        %v5145 = vadd.f32 %v4792, %v5144
        %v5146 = vpop.f32.mrb[0].mxu0
        %v5147 = vadd.f32 %v4794, %v5146
        %5148 = vmatprep.mubr.bf16.mxu0 %v1745
        %5149 = vmatmul.mubr.bf16.gmra.mrb[0].mxu0 %v1744
        %v5150 = vpop.f32.mrb[0].mxu0
        %v5151 = vadd.f32 %v4798, %v5150
        %v5152 = vpop.f32.mrb[0].mxu0
        %v5153 = vadd.f32 %v4800, %v5152
        %v5154 = vpop.f32.mrb[0].mxu0
        %v5155 = vadd.f32 %v4802, %v5154
        %v5156 = vpop.f32.mrb[0].mxu0
        %v5157 = vadd.f32 %v4804, %v5156
        %5158 = vmatprep.mubr.bf16.mxu0 %v1749
        %5159 = vmatmul.mubr.bf16.gmra.mrb[0].mxu0 %v1748
        %v5160 = vpop.f32.mrb[0].mxu0
        %v5161 = vadd.f32 %v4808, %v5160
        %v5162 = vpop.f32.mrb[0].mxu0
        %v5163 = vadd.f32 %v4810, %v5162
        %v5164 = vpop.f32.mrb[0].mxu0
        %v5165 = vadd.f32 %v4812, %v5164
        %v5166 = vpop.f32.mrb[0].mxu0
        %v5167 = vadd.f32 %v4814, %v5166
        %5168 = vmatprep.mubr.bf16.mxu0 %v1753
        %5169 = vmatmul.mubr.bf16.gmra.mrb[0].mxu0 %v1752
        %v5170 = vpop.f32.mrb[0].mxu0
        %v5171 = vadd.f32 %v4818, %v5170
        %v5172 = vpop.f32.mrb[0].mxu0
        %v5173 = vadd.f32 %v4820, %v5172
        %v5174 = vpop.f32.mrb[0].mxu0
        %v5175 = vadd.f32 %v4822, %v5174
        %v5176 = vpop.f32.mrb[0].mxu0
        %v5177 = vadd.f32 %v4824, %v5176
        %5178 = vmatprep.mubr.bf16.mxu0 %v1757
        %5179 = vmatmul.mubr.bf16.gmra.mrb[0].mxu0 %v1756
        %v5180 = vpop.f32.mrb[0].mxu0
        %v5181 = vadd.f32 %v4828, %v5180
        %v5182 = vpop.f32.mrb[0].mxu0
        %v5183 = vadd.f32 %v4830, %v5182
        %v5184 = vpop.f32.mrb[0].mxu0
        %v5185 = vadd.f32 %v4832, %v5184
        %v5186 = vpop.f32.mrb[0].mxu0
        %v5187 = vadd.f32 %v4834, %v5186
        %5188 = vmatprep.mubr.bf16.mxu0 %v1761
        %5189 = vmatmul.mubr.bf16.gmra.mrb[0].mxu0 %v1760
        %v5190 = vpop.f32.mrb[0].mxu0
        %v5191 = vadd.f32 %v4838, %v5190
        %v5192 = vpop.f32.mrb[0].mxu0
        %v5193 = vadd.f32 %v4840, %v5192
        %v5194 = vpop.f32.mrb[0].mxu0
        %v5195 = vadd.f32 %v4842, %v5194
        %v5196 = vpop.f32.mrb[0].mxu0
        %v5197 = vadd.f32 %v4844, %v5196
        %5198 = vmatprep.mubr.bf16.mxu0 %v1765
        %5199 = vmatmul.mubr.bf16.gmra.mrb[0].mxu0 %v1764
        %v5200 = vpop.f32.mrb[0].mxu0
        %v5201 = vadd.f32 %v4848, %v5200
        %v5202 = vpop.f32.mrb[0].mxu0
        %v5203 = vadd.f32 %v4850, %v5202
        %v5204 = vpop.f32.mrb[0].mxu0
        %v5205 = vadd.f32 %v4852, %v5204
        %v5206 = vpop.f32.mrb[0].mxu0
        %v5207 = vadd.f32 %v4854, %v5206
        %5208 = vmatprep.mubr.bf16.mxu0 %v1769
        %5209 = vmatmul.mubr.bf16.gmra.mrb[0].mxu0 %v1768
        %v5210 = vpop.f32.mrb[0].mxu0
        %v5211 = vadd.f32 %v4858, %v5210
        %v5212 = vpop.f32.mrb[0].mxu0
        %v5213 = vadd.f32 %v4860, %v5212
        %v5214 = vpop.f32.mrb[0].mxu0
        %v5215 = vadd.f32 %v4862, %v5214
        %v5216 = vpop.f32.mrb[0].mxu0
        %v5217 = vadd.f32 %v4864, %v5216
        %5218 = vmatprep.mubr.bf16.mxu0 %v1773
        %5219 = vmatmul.mubr.bf16.gmra.mrb[0].mxu0 %v1772
        %v5220 = vpop.f32.mrb[0].mxu0
        %v5221 = vadd.f32 %v4868, %v5220
        %v5222 = vpop.f32.mrb[0].mxu0
        %v5223 = vadd.f32 %v4870, %v5222
        %v5224 = vpop.f32.mrb[0].mxu0
        %v5225 = vadd.f32 %v4872, %v5224
        %v5226 = vpop.f32.mrb[0].mxu0
        %v5227 = vadd.f32 %v4874, %v5226
        %5228 = vmatprep.mubr.bf16.mxu0 %v1777
        %5229 = vmatmul.mubr.bf16.gmra.mrb[0].mxu0 %v1776
        %v5230 = vpop.f32.mrb[0].mxu0
        %v5231 = vadd.f32 %v4878, %v5230
        %v5232 = vpop.f32.mrb[0].mxu0
        %v5233 = vadd.f32 %v4880, %v5232
        %v5234 = vpop.f32.mrb[0].mxu0
        %v5235 = vadd.f32 %v4882, %v5234
        %v5236 = vpop.f32.mrb[0].mxu0
        %v5237 = vadd.f32 %v4884, %v5236
        %5238 = vmatprep.mubr.bf16.mxu0 %v1781
        %5239 = vmatmul.mubr.bf16.gmra.mrb[0].mxu0 %v1780
        %v5240 = vpop.f32.mrb[0].mxu0
        %v5241 = vadd.f32 %v4888, %v5240
        %v5242 = vpop.f32.mrb[0].mxu0
        %v5243 = vadd.f32 %v4890, %v5242
        %v5244 = vpop.f32.mrb[0].mxu0
        %v5245 = vadd.f32 %v4892, %v5244
        %v5246 = vpop.f32.mrb[0].mxu0
        %v5247 = vadd.f32 %v4894, %v5246
        %5248 = vmatprep.mubr.bf16.mxu0 %v1785
        %5249 = vmatmul.mubr.bf16.gmra.mrb[0].mxu0 %v1784
        %v5250 = vpop.f32.mrb[0].mxu0
        %v5251 = vadd.f32 %v4898, %v5250
        %v5252 = vpop.f32.mrb[0].mxu0
        %v5253 = vadd.f32 %v4900, %v5252
        %v5254 = vpop.f32.mrb[0].mxu0
        %v5255 = vadd.f32 %v4902, %v5254
        %v5256 = vpop.f32.mrb[0].mxu0
        %v5257 = vadd.f32 %v4904, %v5256
        %5258 = vmatprep.mubr.bf16.mxu0 %v1789
        %5259 = vmatmul.mubr.bf16.gmra.mrb[0].mxu0 %v1788
        %v5260 = vpop.f32.mrb[0].mxu0
        %v5261 = vadd.f32 %v4908, %v5260
        %v5262 = vpop.f32.mrb[0].mxu0
        %v5263 = vadd.f32 %v4910, %v5262
        %v5264 = vpop.f32.mrb[0].mxu0
        %v5265 = vadd.f32 %v4912, %v5264
        %v5266 = vpop.f32.mrb[0].mxu0
        %v5267 = vadd.f32 %v4914, %v5266
        %5268 = vmatprep.mubr.bf16.mxu0 %v1793
        %5269 = vmatmul.mubr.bf16.gmra.mrb[0].mxu0 %v1792
        %v5270 = vpop.f32.mrb[0].mxu0
        %v5271 = vadd.f32 %v4918, %v5270
        %v5272 = vpop.f32.mrb[0].mxu0
        %v5273 = vadd.f32 %v4920, %v5272
        %v5274 = vpop.f32.mrb[0].mxu0
        %v5275 = vadd.f32 %v4922, %v5274
        %v5276 = vpop.f32.mrb[0].mxu0
        %v5277 = vadd.f32 %v4924, %v5276
        %5278 = vmatprep.mubr.bf16.mxu0 %v1797
        %5279 = vmatmul.mubr.bf16.gmra.mrb[0].mxu0 %v1796
        %v5280 = vpop.f32.mrb[0].mxu0
        %v5281 = vadd.f32 %v4928, %v5280
        %v5282 = vpop.f32.mrb[0].mxu0
        %v5283 = vadd.f32 %v4930, %v5282
        %v5284 = vpop.f32.mrb[0].mxu0
        %v5285 = vadd.f32 %v4932, %v5284
        %v5286 = vpop.f32.mrb[0].mxu0
        %v5287 = vadd.f32 %v4934, %v5286
        %5288 = vmatprep.mubr.bf16.mxu0 %v1801
        %5289 = vmatmul.mubr.bf16.gmra.mrb[0].mxu0 %v1800
        %v5290 = vpop.f32.mrb[0].mxu0
        %v5291 = vadd.f32 %v4938, %v5290
        %v5292 = vpop.f32.mrb[0].mxu0
        %v5293 = vadd.f32 %v4940, %v5292
        %v5294 = vpop.f32.mrb[0].mxu0
        %v5295 = vadd.f32 %v4942, %v5294
        %v5296 = vpop.f32.mrb[0].mxu0
        %v5297 = vadd.f32 %v4944, %v5296
        %5298 = vmatprep.mubr.bf16.mxu0 %v1805
        %5299 = vmatmul.mubr.bf16.gmra.mrb[0].mxu0 %v1804
        %v5300 = vpop.f32.mrb[0].mxu0
        %v5301 = vadd.f32 %v4948, %v5300
        %v5302 = vpop.f32.mrb[0].mxu0
        %v5303 = vadd.f32 %v4950, %v5302
        %v5304 = vpop.f32.mrb[0].mxu0
        %v5305 = vadd.f32 %v4952, %v5304
        %v5306 = vpop.f32.mrb[0].mxu0
        %v5307 = vadd.f32 %v4954, %v5306
        %5308 = vmatprep.mubr.bf16.mxu0 %v1809
        %5309 = vmatmul.mubr.bf16.gmra.mrb[0].mxu0 %v1808
        %v5310 = vpop.f32.mrb[0].mxu0
        %v5311 = vadd.f32 %v4958, %v5310
        %v5312 = vpop.f32.mrb[0].mxu0
        %v5313 = vadd.f32 %v4960, %v5312
        %v5314 = vpop.f32.mrb[0].mxu0
        %v5315 = vadd.f32 %v4962, %v5314
        %v5316 = vpop.f32.mrb[0].mxu0
        %v5317 = vadd.f32 %v4964, %v5316
        %5318 = vmatprep.mubr.bf16.mxu0 %v1813
        %5319 = vmatmul.mubr.bf16.gmra.mrb[0].mxu0 %v1812
        %v5320 = vpop.f32.mrb[0].mxu0
        %v5321 = vadd.f32 %v4968, %v5320
        %v5322 = vpop.f32.mrb[0].mxu0
        %v5323 = vadd.f32 %v4970, %v5322
        %v5324 = vpop.f32.mrb[0].mxu0
        %v5325 = vadd.f32 %v4972, %v5324
        %v5326 = vpop.f32.mrb[0].mxu0
        %v5327 = vadd.f32 %v4974, %v5326
        %5328 = vmatprep.mubr.bf16.mxu0 %v1817
        %5329 = vmatmul.mubr.bf16.gmra.mrb[0].mxu0 %v1816
        %v5330 = vpop.f32.mrb[0].mxu0
        %v5331 = vadd.f32 %v4978, %v5330
        %v5332 = vpop.f32.mrb[0].mxu0
        %v5333 = vadd.f32 %v4980, %v5332
        %v5334 = vpop.f32.mrb[0].mxu0
        %v5335 = vadd.f32 %v4982, %v5334
        %v5336 = vpop.f32.mrb[0].mxu0
        %v5337 = vadd.f32 %v4984, %v5336
        %5338 = vmatprep.mubr.bf16.mxu0 %v1821
        %5339 = vmatmul.mubr.bf16.gmra.mrb[0].mxu0 %v1820
        %v5340 = vpop.f32.mrb[0].mxu0
        %v5341 = vadd.f32 %v4988, %v5340
        %v5342 = vpop.f32.mrb[0].mxu0
        %v5343 = vadd.f32 %v4990, %v5342
        %v5344 = vpop.f32.mrb[0].mxu0
        %v5345 = vadd.f32 %v4992, %v5344
        %v5346 = vpop.f32.mrb[0].mxu0
        %v5347 = vadd.f32 %v4994, %v5346
        %5348 = vmatprep.mubr.bf16.mxu0 %v1825
        %5349 = vmatmul.mubr.bf16.gmra.mrb[0].mxu0 %v1824
        %v5350 = vpop.f32.mrb[0].mxu0
        %v5351 = vadd.f32 %v4998, %v5350
        %v5352 = vpop.f32.mrb[0].mxu0
        %v5353 = vadd.f32 %v5000, %v5352
        %v5354 = vpop.f32.mrb[0].mxu0
        %v5355 = vadd.f32 %v5002, %v5354
        %v5356 = vpop.f32.mrb[0].mxu0
        %v5357 = vadd.f32 %v5004, %v5356
        %5358 = vmatprep.mubr.bf16.mxu0 %v1829
        %5359 = vmatmul.mubr.bf16.gmra.mrb[0].mxu0 %v1828
        %v5360 = vpop.f32.mrb[0].mxu0
        %v5361 = vadd.f32 %v5008, %v5360
        %v5362 = vpop.f32.mrb[0].mxu0
        %v5363 = vadd.f32 %v5010, %v5362
        %v5364 = vpop.f32.mrb[0].mxu0
        %v5365 = vadd.f32 %v5012, %v5364
        %v5366 = vpop.f32.mrb[0].mxu0
        %v5367 = vadd.f32 %v5014, %v5366
        %5368 = vmatprep.mubr.bf16.mxu0 %v1833
        %5369 = vmatmul.mubr.bf16.gmra.mrb[0].mxu0 %v1832
        %v5370 = vpop.f32.mrb[0].mxu0
        %v5371 = vadd.f32 %v5018, %v5370
        %v5372 = vpop.f32.mrb[0].mxu0
        %v5373 = vadd.f32 %v5020, %v5372
        %v5374 = vpop.f32.mrb[0].mxu0
        %v5375 = vadd.f32 %v5022, %v5374
        %v5376 = vpop.f32.mrb[0].mxu0
        %v5377 = vadd.f32 %v5024, %v5376
        %5378 = vmatprep.mubr.bf16.mxu0 %v1837
        %5379 = vmatmul.mubr.bf16.gmra.mrb[0].mxu0 %v1836
        %v5380 = vpop.f32.mrb[0].mxu0
        %v5381 = vadd.f32 %v5028, %v5380
        %v5382 = vpop.f32.mrb[0].mxu0
        %v5383 = vadd.f32 %v5030, %v5382
        %v5384 = vpop.f32.mrb[0].mxu0
        %v5385 = vadd.f32 %v5032, %v5384
        %v5386 = vpop.f32.mrb[0].mxu0
        %v5387 = vadd.f32 %v5034, %v5386
        %5388 = vmatprep.mubr.bf16.mxu0 %v1841
        %5389 = vmatmul.mubr.bf16.gmra.mrb[0].mxu0 %v1840
        %v5390 = vpop.f32.mrb[0].mxu0
        %v5391 = vadd.f32 %v5038, %v5390
        %v5392 = vpop.f32.mrb[0].mxu0
        %v5393 = vadd.f32 %v5040, %v5392
        %v5394 = vpop.f32.mrb[0].mxu0
        %v5395 = vadd.f32 %v5042, %v5394
        %v5396 = vpop.f32.mrb[0].mxu0
        %v5397 = vadd.f32 %v5044, %v5396
        %5398 = vmatprep.mubr.bf16.mxu0 %v1845
        %5399 = vmatmul.mubr.bf16.gmra.mrb[0].mxu0 %v1844
        %v5400 = vpop.f32.mrb[0].mxu0
        %v5401 = vadd.f32 %v5048, %v5400
        %v5402 = vpop.f32.mrb[0].mxu0
        %v5403 = vadd.f32 %v5050, %v5402
        %v5404 = vpop.f32.mrb[0].mxu0
        %v5405 = vadd.f32 %v5052, %v5404
        %v5406 = vpop.f32.mrb[0].mxu0
        %v5407 = vadd.f32 %v5054, %v5406
        %5408 = vdwg.mxu0
        %5409 = vmatprep.subr.bf16.mxu0 0
        %5410 = vmatpush1.bf16.msra.mxu0 %v2849
        %5411 = vmatprep.subr.bf16.mxu0 0
        %5412 = vmatpush1.bf16.msra.mxu0 %v2856
        %5413 = vmatprep.subr.bf16.mxu0 0
        %5414 = vmatpush1.bf16.msra.mxu0 %v2863
        %5415 = vmatprep.subr.bf16.mxu0 0
        %5416 = vmatpush1.bf16.msra.mxu0 %v2870
        %5417 = vmatprep.subr.bf16.mxu0 0
        %5418 = vmatpush1.bf16.msra.mxu0 %v2877
        %5419 = vmatprep.subr.bf16.mxu0 0
        %5420 = vmatpush1.bf16.msra.mxu0 %v2884
        %5421 = vmatprep.subr.bf16.mxu0 0
        %5422 = vmatpush1.bf16.msra.mxu0 %v2891
        %5423 = vmatprep.subr.bf16.mxu0 0
        %5424 = vmatpush1.bf16.msra.mxu0 %v2898
        %5425 = vmatprep.subr.bf16.mxu0 0
        %5426 = vmatpush1.bf16.msra.mxu0 %v2905
        %5427 = vmatprep.subr.bf16.mxu0 0
        %5428 = vmatpush1.bf16.msra.mxu0 %v2912
        %5429 = vmatprep.subr.bf16.mxu0 0
        %5430 = vmatpush1.bf16.msra.mxu0 %v2919
        %5431 = vmatprep.subr.bf16.mxu0 0
        %5432 = vmatpush1.bf16.msra.mxu0 %v2926
        %5433 = vmatprep.subr.bf16.mxu0 0
        %5434 = vmatpush1.bf16.msra.mxu0 %v2933
        %5435 = vmatprep.subr.bf16.mxu0 0
        %5436 = vmatpush1.bf16.msra.mxu0 %v2940
        %5437 = vmatprep.subr.bf16.mxu0 0
        %5438 = vmatpush1.bf16.msra.mxu0 %v2947
        %5439 = vmatprep.subr.bf16.mxu0 0
        %5440 = vmatpush1.bf16.msra.mxu0 %v2954
        %5441 = vmatprep.mubr.bf16.mxu0 %v1719
        %5442 = vmatmul.mubr.bf16.gmra.mrb[0].mxu0 %v1718
        %v5443 = vpop.f32.mrb[0].mxu0
        %v5444 = vadd.f32 %v2131, %v5443
        %v5445 = vpop.f32.mrb[0].mxu0
        %v5446 = vpop.f32.mrb[0].mxu0
        %v5447 = vadd.f32 %v2131, %v5446
        %v5448 = vpop.f32.mrb[0].mxu0
        %5449 = vmatprep.mubr.bf16.mxu0 %v1723
        %5450 = vmatmul.mubr.bf16.gmra.mrb[0].mxu0 %v1722
        %v5451 = vpop.f32.mrb[0].mxu0
        %v5452 = vadd.f32 %v2131, %v5451
        %v5453 = vpop.f32.mrb[0].mxu0
        %v5454 = vpop.f32.mrb[0].mxu0
        %v5455 = vadd.f32 %v2131, %v5454
        %v5456 = vpop.f32.mrb[0].mxu0
        %5457 = vmatprep.mubr.bf16.mxu0 %v1727
        %5458 = vmatmul.mubr.bf16.gmra.mrb[0].mxu0 %v1726
        %v5459 = vpop.f32.mrb[0].mxu0
        %v5460 = vadd.f32 %v2131, %v5459
        %v5461 = vpop.f32.mrb[0].mxu0
        %v5462 = vpop.f32.mrb[0].mxu0
        %v5463 = vadd.f32 %v2131, %v5462
        %v5464 = vpop.f32.mrb[0].mxu0
        %5465 = vmatprep.mubr.bf16.mxu0 %v1731
        %5466 = vmatmul.mubr.bf16.gmra.mrb[0].mxu0 %v1730
        %v5467 = vpop.f32.mrb[0].mxu0
        %v5468 = vadd.f32 %v2131, %v5467
        %v5469 = vpop.f32.mrb[0].mxu0
        %v5470 = vpop.f32.mrb[0].mxu0
        %v5471 = vadd.f32 %v2131, %v5470
        %v5472 = vpop.f32.mrb[0].mxu0
        %5473 = vmatprep.mubr.bf16.mxu0 %v1735
        %5474 = vmatmul.mubr.bf16.gmra.mrb[0].mxu0 %v1734
        %v5475 = vpop.f32.mrb[0].mxu0
        %v5476 = vadd.f32 %v2131, %v5475
        %v5477 = vpop.f32.mrb[0].mxu0
        %v5478 = vpop.f32.mrb[0].mxu0
        %v5479 = vadd.f32 %v2131, %v5478
        %v5480 = vpop.f32.mrb[0].mxu0
        %5481 = vmatprep.mubr.bf16.mxu0 %v1739
        %5482 = vmatmul.mubr.bf16.gmra.mrb[0].mxu0 %v1738
        %v5483 = vpop.f32.mrb[0].mxu0
        %v5484 = vadd.f32 %v2131, %v5483
        %v5485 = vpop.f32.mrb[0].mxu0
        %v5486 = vpop.f32.mrb[0].mxu0
        %v5487 = vadd.f32 %v2131, %v5486
        %v5488 = vpop.f32.mrb[0].mxu0
        %5489 = vmatprep.mubr.bf16.mxu0 %v1743
        %5490 = vmatmul.mubr.bf16.gmra.mrb[0].mxu0 %v1742
        %v5491 = vpop.f32.mrb[0].mxu0
        %v5492 = vadd.f32 %v2131, %v5491
        %v5493 = vpop.f32.mrb[0].mxu0
        %v5494 = vpop.f32.mrb[0].mxu0
        %v5495 = vadd.f32 %v2131, %v5494
        %v5496 = vpop.f32.mrb[0].mxu0
        %5497 = vmatprep.mubr.bf16.mxu0 %v1747
        %5498 = vmatmul.mubr.bf16.gmra.mrb[0].mxu0 %v1746
        %v5499 = vpop.f32.mrb[0].mxu0
        %v5500 = vadd.f32 %v2131, %v5499
        %v5501 = vpop.f32.mrb[0].mxu0
        %v5502 = vpop.f32.mrb[0].mxu0
        %v5503 = vadd.f32 %v2131, %v5502
        %v5504 = vpop.f32.mrb[0].mxu0
        %5505 = vmatprep.mubr.bf16.mxu0 %v1751
        %5506 = vmatmul.mubr.bf16.gmra.mrb[0].mxu0 %v1750
        %v5507 = vpop.f32.mrb[0].mxu0
        %v5508 = vadd.f32 %v2131, %v5507
        %v5509 = vpop.f32.mrb[0].mxu0
        %v5510 = vpop.f32.mrb[0].mxu0
        %v5511 = vadd.f32 %v2131, %v5510
        %v5512 = vpop.f32.mrb[0].mxu0
        %5513 = vmatprep.mubr.bf16.mxu0 %v1755
        %5514 = vmatmul.mubr.bf16.gmra.mrb[0].mxu0 %v1754
        %v5515 = vpop.f32.mrb[0].mxu0
        %v5516 = vadd.f32 %v2131, %v5515
        %v5517 = vpop.f32.mrb[0].mxu0
        %v5518 = vpop.f32.mrb[0].mxu0
        %v5519 = vadd.f32 %v2131, %v5518
        %v5520 = vpop.f32.mrb[0].mxu0
        %5521 = vmatprep.mubr.bf16.mxu0 %v1759
        %5522 = vmatmul.mubr.bf16.gmra.mrb[0].mxu0 %v1758
        %v5523 = vpop.f32.mrb[0].mxu0
        %v5524 = vadd.f32 %v2131, %v5523
        %v5525 = vpop.f32.mrb[0].mxu0
        %v5526 = vpop.f32.mrb[0].mxu0
        %v5527 = vadd.f32 %v2131, %v5526
        %v5528 = vpop.f32.mrb[0].mxu0
        %5529 = vmatprep.mubr.bf16.mxu0 %v1763
        %5530 = vmatmul.mubr.bf16.gmra.mrb[0].mxu0 %v1762
        %v5531 = vpop.f32.mrb[0].mxu0
        %v5532 = vadd.f32 %v2131, %v5531
        %v5533 = vpop.f32.mrb[0].mxu0
        %v5534 = vpop.f32.mrb[0].mxu0
        %v5535 = vadd.f32 %v2131, %v5534
        %v5536 = vpop.f32.mrb[0].mxu0
        %5537 = vmatprep.mubr.bf16.mxu0 %v1767
        %5538 = vmatmul.mubr.bf16.gmra.mrb[0].mxu0 %v1766
        %v5539 = vpop.f32.mrb[0].mxu0
        %v5540 = vadd.f32 %v2131, %v5539
        %v5541 = vpop.f32.mrb[0].mxu0
        %v5542 = vpop.f32.mrb[0].mxu0
        %v5543 = vadd.f32 %v2131, %v5542
        %v5544 = vpop.f32.mrb[0].mxu0
        %5545 = vmatprep.mubr.bf16.mxu0 %v1771
        %5546 = vmatmul.mubr.bf16.gmra.mrb[0].mxu0 %v1770
        %v5547 = vpop.f32.mrb[0].mxu0
        %v5548 = vadd.f32 %v2131, %v5547
        %v5549 = vpop.f32.mrb[0].mxu0
        %v5550 = vpop.f32.mrb[0].mxu0
        %v5551 = vadd.f32 %v2131, %v5550
        %v5552 = vpop.f32.mrb[0].mxu0
        %5553 = vmatprep.mubr.bf16.mxu0 %v1775
        %5554 = vmatmul.mubr.bf16.gmra.mrb[0].mxu0 %v1774
        %v5555 = vpop.f32.mrb[0].mxu0
        %v5556 = vadd.f32 %v2131, %v5555
        %v5557 = vpop.f32.mrb[0].mxu0
        %v5558 = vpop.f32.mrb[0].mxu0
        %v5559 = vadd.f32 %v2131, %v5558
        %v5560 = vpop.f32.mrb[0].mxu0
        %5561 = vmatprep.mubr.bf16.mxu0 %v1779
        %5562 = vmatmul.mubr.bf16.gmra.mrb[0].mxu0 %v1778
        %v5563 = vpop.f32.mrb[0].mxu0
        %v5564 = vadd.f32 %v2131, %v5563
        %v5565 = vpop.f32.mrb[0].mxu0
        %v5566 = vpop.f32.mrb[0].mxu0
        %v5567 = vadd.f32 %v2131, %v5566
        %v5568 = vpop.f32.mrb[0].mxu0
        %5569 = vmatprep.mubr.bf16.mxu0 %v1783
        %5570 = vmatmul.mubr.bf16.gmra.mrb[0].mxu0 %v1782
        %v5571 = vpop.f32.mrb[0].mxu0
        %v5572 = vadd.f32 %v2131, %v5571
        %v5573 = vpop.f32.mrb[0].mxu0
        %v5574 = vpop.f32.mrb[0].mxu0
        %v5575 = vadd.f32 %v2131, %v5574
        %v5576 = vpop.f32.mrb[0].mxu0
        %5577 = vmatprep.mubr.bf16.mxu0 %v1787
        %5578 = vmatmul.mubr.bf16.gmra.mrb[0].mxu0 %v1786
        %v5579 = vpop.f32.mrb[0].mxu0
        %v5580 = vadd.f32 %v2131, %v5579
        %v5581 = vpop.f32.mrb[0].mxu0
        %v5582 = vpop.f32.mrb[0].mxu0
        %v5583 = vadd.f32 %v2131, %v5582
        %v5584 = vpop.f32.mrb[0].mxu0
        %5585 = vmatprep.mubr.bf16.mxu0 %v1791
        %5586 = vmatmul.mubr.bf16.gmra.mrb[0].mxu0 %v1790
        %v5587 = vpop.f32.mrb[0].mxu0
        %v5588 = vadd.f32 %v2131, %v5587
        %v5589 = vpop.f32.mrb[0].mxu0
        %v5590 = vpop.f32.mrb[0].mxu0
        %v5591 = vadd.f32 %v2131, %v5590
        %v5592 = vpop.f32.mrb[0].mxu0
        %5593 = vmatprep.mubr.bf16.mxu0 %v1795
        %5594 = vmatmul.mubr.bf16.gmra.mrb[0].mxu0 %v1794
        %v5595 = vpop.f32.mrb[0].mxu0
        %v5596 = vadd.f32 %v2131, %v5595
        %v5597 = vpop.f32.mrb[0].mxu0
        %v5598 = vpop.f32.mrb[0].mxu0
        %v5599 = vadd.f32 %v2131, %v5598
        %v5600 = vpop.f32.mrb[0].mxu0
        %5601 = vmatprep.mubr.bf16.mxu0 %v1799
        %5602 = vmatmul.mubr.bf16.gmra.mrb[0].mxu0 %v1798
        %v5603 = vpop.f32.mrb[0].mxu0
        %v5604 = vadd.f32 %v2131, %v5603
        %v5605 = vpop.f32.mrb[0].mxu0
        %v5606 = vpop.f32.mrb[0].mxu0
        %v5607 = vadd.f32 %v2131, %v5606
        %v5608 = vpop.f32.mrb[0].mxu0
        %5609 = vmatprep.mubr.bf16.mxu0 %v1803
        %5610 = vmatmul.mubr.bf16.gmra.mrb[0].mxu0 %v1802
        %v5611 = vpop.f32.mrb[0].mxu0
        %v5612 = vadd.f32 %v2131, %v5611
        %v5613 = vpop.f32.mrb[0].mxu0
        %v5614 = vpop.f32.mrb[0].mxu0
        %v5615 = vadd.f32 %v2131, %v5614
        %v5616 = vpop.f32.mrb[0].mxu0
        %5617 = vmatprep.mubr.bf16.mxu0 %v1807
        %5618 = vmatmul.mubr.bf16.gmra.mrb[0].mxu0 %v1806
        %v5619 = vpop.f32.mrb[0].mxu0
        %v5620 = vadd.f32 %v2131, %v5619
        %v5621 = vpop.f32.mrb[0].mxu0
        %v5622 = vpop.f32.mrb[0].mxu0
        %v5623 = vadd.f32 %v2131, %v5622
        %v5624 = vpop.f32.mrb[0].mxu0
        %5625 = vmatprep.mubr.bf16.mxu0 %v1811
        %5626 = vmatmul.mubr.bf16.gmra.mrb[0].mxu0 %v1810
        %v5627 = vpop.f32.mrb[0].mxu0
        %v5628 = vadd.f32 %v2131, %v5627
        %v5629 = vpop.f32.mrb[0].mxu0
        %v5630 = vpop.f32.mrb[0].mxu0
        %v5631 = vadd.f32 %v2131, %v5630
        %v5632 = vpop.f32.mrb[0].mxu0
        %5633 = vmatprep.mubr.bf16.mxu0 %v1815
        %5634 = vmatmul.mubr.bf16.gmra.mrb[0].mxu0 %v1814
        %v5635 = vpop.f32.mrb[0].mxu0
        %v5636 = vadd.f32 %v2131, %v5635
        %v5637 = vpop.f32.mrb[0].mxu0
        %v5638 = vpop.f32.mrb[0].mxu0
        %v5639 = vadd.f32 %v2131, %v5638
        %v5640 = vpop.f32.mrb[0].mxu0
        %5641 = vmatprep.mubr.bf16.mxu0 %v1819
        %5642 = vmatmul.mubr.bf16.gmra.mrb[0].mxu0 %v1818
        %v5643 = vpop.f32.mrb[0].mxu0
        %v5644 = vadd.f32 %v2131, %v5643
        %v5645 = vpop.f32.mrb[0].mxu0
        %v5646 = vpop.f32.mrb[0].mxu0
        %v5647 = vadd.f32 %v2131, %v5646
        %v5648 = vpop.f32.mrb[0].mxu0
        %5649 = vmatprep.mubr.bf16.mxu0 %v1823
        %5650 = vmatmul.mubr.bf16.gmra.mrb[0].mxu0 %v1822
        %v5651 = vpop.f32.mrb[0].mxu0
        %v5652 = vadd.f32 %v2131, %v5651
        %v5653 = vpop.f32.mrb[0].mxu0
        %v5654 = vpop.f32.mrb[0].mxu0
        %v5655 = vadd.f32 %v2131, %v5654
        %v5656 = vpop.f32.mrb[0].mxu0
        %5657 = vmatprep.mubr.bf16.mxu0 %v1827
        %5658 = vmatmul.mubr.bf16.gmra.mrb[0].mxu0 %v1826
        %v5659 = vpop.f32.mrb[0].mxu0
        %v5660 = vadd.f32 %v2131, %v5659
        %v5661 = vpop.f32.mrb[0].mxu0
        %v5662 = vpop.f32.mrb[0].mxu0
        %v5663 = vadd.f32 %v2131, %v5662
        %v5664 = vpop.f32.mrb[0].mxu0
        %5665 = vmatprep.mubr.bf16.mxu0 %v1831
        %5666 = vmatmul.mubr.bf16.gmra.mrb[0].mxu0 %v1830
        %v5667 = vpop.f32.mrb[0].mxu0
        %v5668 = vadd.f32 %v2131, %v5667
        %v5669 = vpop.f32.mrb[0].mxu0
        %v5670 = vpop.f32.mrb[0].mxu0
        %v5671 = vadd.f32 %v2131, %v5670
        %v5672 = vpop.f32.mrb[0].mxu0
        %5673 = vmatprep.mubr.bf16.mxu0 %v1835
        %5674 = vmatmul.mubr.bf16.gmra.mrb[0].mxu0 %v1834
        %v5675 = vpop.f32.mrb[0].mxu0
        %v5676 = vadd.f32 %v2131, %v5675
        %v5677 = vpop.f32.mrb[0].mxu0
        %v5678 = vpop.f32.mrb[0].mxu0
        %v5679 = vadd.f32 %v2131, %v5678
        %v5680 = vpop.f32.mrb[0].mxu0
        %5681 = vmatprep.mubr.bf16.mxu0 %v1839
        %5682 = vmatmul.mubr.bf16.gmra.mrb[0].mxu0 %v1838
        %v5683 = vpop.f32.mrb[0].mxu0
        %v5684 = vadd.f32 %v2131, %v5683
        %v5685 = vpop.f32.mrb[0].mxu0
        %v5686 = vpop.f32.mrb[0].mxu0
        %v5687 = vadd.f32 %v2131, %v5686
        %v5688 = vpop.f32.mrb[0].mxu0
        %5689 = vmatprep.mubr.bf16.mxu0 %v1843
        %5690 = vmatmul.mubr.bf16.gmra.mrb[0].mxu0 %v1842
        %v5691 = vpop.f32.mrb[0].mxu0
        %v5692 = vadd.f32 %v2131, %v5691
        %v5693 = vpop.f32.mrb[0].mxu0
        %v5694 = vpop.f32.mrb[0].mxu0
        %v5695 = vadd.f32 %v2131, %v5694
        %v5696 = vpop.f32.mrb[0].mxu0
        %5697 = vdwg.mxu0
        %5698 = vmatprep.subr.bf16.mxu0 0
        %5699 = vmatpush1.bf16.msra.mxu0 %v2961
        %5700 = vmatprep.subr.bf16.mxu0 0
        %5701 = vmatpush1.bf16.msra.mxu0 %v2968
        %5702 = vmatprep.subr.bf16.mxu0 0
        %5703 = vmatpush1.bf16.msra.mxu0 %v2975
        %5704 = vmatprep.subr.bf16.mxu0 0
        %5705 = vmatpush1.bf16.msra.mxu0 %v2982
        %5706 = vmatprep.subr.bf16.mxu0 0
        %5707 = vmatpush1.bf16.msra.mxu0 %v2989
        %5708 = vmatprep.subr.bf16.mxu0 0
        %5709 = vmatpush1.bf16.msra.mxu0 %v2996
        %5710 = vmatprep.subr.bf16.mxu0 0
        %5711 = vmatpush1.bf16.msra.mxu0 %v3003
        %5712 = vmatprep.subr.bf16.mxu0 0
        %5713 = vmatpush1.bf16.msra.mxu0 %v3010
        %5714 = vmatprep.subr.bf16.mxu0 0
        %5715 = vmatpush1.bf16.msra.mxu0 %v3017
        %5716 = vmatprep.subr.bf16.mxu0 0
        %5717 = vmatpush1.bf16.msra.mxu0 %v3024
        %5718 = vmatprep.subr.bf16.mxu0 0
        %5719 = vmatpush1.bf16.msra.mxu0 %v3031
        %5720 = vmatprep.subr.bf16.mxu0 0
        %5721 = vmatpush1.bf16.msra.mxu0 %v3038
        %5722 = vmatprep.subr.bf16.mxu0 0
        %5723 = vmatpush1.bf16.msra.mxu0 %v3045
        %5724 = vmatprep.subr.bf16.mxu0 0
        %5725 = vmatpush1.bf16.msra.mxu0 %v3052
        %5726 = vmatprep.subr.bf16.mxu0 0
        %5727 = vmatpush1.bf16.msra.mxu0 %v3059
        %5728 = vmatprep.subr.bf16.mxu0 0
        %5729 = vmatpush1.bf16.msra.mxu0 %v3066
        %5730 = vmatprep.mubr.bf16.mxu0 %v1721
        %5731 = vmatmul.mubr.bf16.gmra.mrb[0].mxu0 %v1720
        %v5732 = vpop.f32.mrb[0].mxu0
        %v5733 = vadd.f32 %v5444, %v5732
        %v5734 = vpop.f32.mrb[0].mxu0
        %v5735 = vpop.f32.mrb[0].mxu0
        %v5736 = vadd.f32 %v5447, %v5735
        %v5737 = vpop.f32.mrb[0].mxu0
        %5738 = vmatprep.mubr.bf16.mxu0 %v1725
        %5739 = vmatmul.mubr.bf16.gmra.mrb[0].mxu0 %v1724
        %v5740 = vpop.f32.mrb[0].mxu0
        %v5741 = vadd.f32 %v5452, %v5740
        %v5742 = vpop.f32.mrb[0].mxu0
        %v5743 = vpop.f32.mrb[0].mxu0
        %v5744 = vadd.f32 %v5455, %v5743
        %v5745 = vpop.f32.mrb[0].mxu0
        %5746 = vmatprep.mubr.bf16.mxu0 %v1729
        %5747 = vmatmul.mubr.bf16.gmra.mrb[0].mxu0 %v1728
        %v5748 = vpop.f32.mrb[0].mxu0
        %v5749 = vadd.f32 %v5460, %v5748
        %v5750 = vpop.f32.mrb[0].mxu0
        %v5751 = vpop.f32.mrb[0].mxu0
        %v5752 = vadd.f32 %v5463, %v5751
        %v5753 = vpop.f32.mrb[0].mxu0
        %5754 = vmatprep.mubr.bf16.mxu0 %v1733
        %5755 = vmatmul.mubr.bf16.gmra.mrb[0].mxu0 %v1732
        %v5756 = vpop.f32.mrb[0].mxu0
        %v5757 = vadd.f32 %v5468, %v5756
        %v5758 = vpop.f32.mrb[0].mxu0
        %v5759 = vpop.f32.mrb[0].mxu0
        %v5760 = vadd.f32 %v5471, %v5759
        %v5761 = vpop.f32.mrb[0].mxu0
        %5762 = vmatprep.mubr.bf16.mxu0 %v1737
        %5763 = vmatmul.mubr.bf16.gmra.mrb[0].mxu0 %v1736
        %v5764 = vpop.f32.mrb[0].mxu0
        %v5765 = vadd.f32 %v5476, %v5764
        %v5766 = vpop.f32.mrb[0].mxu0
        %v5767 = vpop.f32.mrb[0].mxu0
        %v5768 = vadd.f32 %v5479, %v5767
        %v5769 = vpop.f32.mrb[0].mxu0
        %5770 = vmatprep.mubr.bf16.mxu0 %v1741
        %5771 = vmatmul.mubr.bf16.gmra.mrb[0].mxu0 %v1740
        %v5772 = vpop.f32.mrb[0].mxu0
        %v5773 = vadd.f32 %v5484, %v5772
        %v5774 = vpop.f32.mrb[0].mxu0
        %v5775 = vpop.f32.mrb[0].mxu0
        %v5776 = vadd.f32 %v5487, %v5775
        %v5777 = vpop.f32.mrb[0].mxu0
        %5778 = vmatprep.mubr.bf16.mxu0 %v1745
        %5779 = vmatmul.mubr.bf16.gmra.mrb[0].mxu0 %v1744
        %v5780 = vpop.f32.mrb[0].mxu0
        %v5781 = vadd.f32 %v5492, %v5780
        %v5782 = vpop.f32.mrb[0].mxu0
        %v5783 = vpop.f32.mrb[0].mxu0
        %v5784 = vadd.f32 %v5495, %v5783
        %v5785 = vpop.f32.mrb[0].mxu0
        %5786 = vmatprep.mubr.bf16.mxu0 %v1749
        %5787 = vmatmul.mubr.bf16.gmra.mrb[0].mxu0 %v1748
        %v5788 = vpop.f32.mrb[0].mxu0
        %v5789 = vadd.f32 %v5500, %v5788
        %v5790 = vpop.f32.mrb[0].mxu0
        %v5791 = vpop.f32.mrb[0].mxu0
        %v5792 = vadd.f32 %v5503, %v5791
        %v5793 = vpop.f32.mrb[0].mxu0
        %5794 = vmatprep.mubr.bf16.mxu0 %v1753
        %5795 = vmatmul.mubr.bf16.gmra.mrb[0].mxu0 %v1752
        %v5796 = vpop.f32.mrb[0].mxu0
        %v5797 = vadd.f32 %v5508, %v5796
        %v5798 = vpop.f32.mrb[0].mxu0
        %v5799 = vpop.f32.mrb[0].mxu0
        %v5800 = vadd.f32 %v5511, %v5799
        %v5801 = vpop.f32.mrb[0].mxu0
        %5802 = vmatprep.mubr.bf16.mxu0 %v1757
        %5803 = vmatmul.mubr.bf16.gmra.mrb[0].mxu0 %v1756
        %v5804 = vpop.f32.mrb[0].mxu0
        %v5805 = vadd.f32 %v5516, %v5804
        %v5806 = vpop.f32.mrb[0].mxu0
        %v5807 = vpop.f32.mrb[0].mxu0
        %v5808 = vadd.f32 %v5519, %v5807
        %v5809 = vpop.f32.mrb[0].mxu0
        %5810 = vmatprep.mubr.bf16.mxu0 %v1761
        %5811 = vmatmul.mubr.bf16.gmra.mrb[0].mxu0 %v1760
        %v5812 = vpop.f32.mrb[0].mxu0
        %v5813 = vadd.f32 %v5524, %v5812
        %v5814 = vpop.f32.mrb[0].mxu0
        %v5815 = vpop.f32.mrb[0].mxu0
        %v5816 = vadd.f32 %v5527, %v5815
        %v5817 = vpop.f32.mrb[0].mxu0
        %5818 = vmatprep.mubr.bf16.mxu0 %v1765
        %5819 = vmatmul.mubr.bf16.gmra.mrb[0].mxu0 %v1764
        %v5820 = vpop.f32.mrb[0].mxu0
        %v5821 = vadd.f32 %v5532, %v5820
        %v5822 = vpop.f32.mrb[0].mxu0
        %v5823 = vpop.f32.mrb[0].mxu0
        %v5824 = vadd.f32 %v5535, %v5823
        %v5825 = vpop.f32.mrb[0].mxu0
        %5826 = vmatprep.mubr.bf16.mxu0 %v1769
        %5827 = vmatmul.mubr.bf16.gmra.mrb[0].mxu0 %v1768
        %v5828 = vpop.f32.mrb[0].mxu0
        %v5829 = vadd.f32 %v5540, %v5828
        %v5830 = vpop.f32.mrb[0].mxu0
        %v5831 = vpop.f32.mrb[0].mxu0
        %v5832 = vadd.f32 %v5543, %v5831
        %v5833 = vpop.f32.mrb[0].mxu0
        %5834 = vmatprep.mubr.bf16.mxu0 %v1773
        %5835 = vmatmul.mubr.bf16.gmra.mrb[0].mxu0 %v1772
        %v5836 = vpop.f32.mrb[0].mxu0
        %v5837 = vadd.f32 %v5548, %v5836
        %v5838 = vpop.f32.mrb[0].mxu0
        %v5839 = vpop.f32.mrb[0].mxu0
        %v5840 = vadd.f32 %v5551, %v5839
        %v5841 = vpop.f32.mrb[0].mxu0
        %5842 = vmatprep.mubr.bf16.mxu0 %v1777
        %5843 = vmatmul.mubr.bf16.gmra.mrb[0].mxu0 %v1776
        %v5844 = vpop.f32.mrb[0].mxu0
        %v5845 = vadd.f32 %v5556, %v5844
        %v5846 = vpop.f32.mrb[0].mxu0
        %v5847 = vpop.f32.mrb[0].mxu0
        %v5848 = vadd.f32 %v5559, %v5847
        %v5849 = vpop.f32.mrb[0].mxu0
        %5850 = vmatprep.mubr.bf16.mxu0 %v1781
        %5851 = vmatmul.mubr.bf16.gmra.mrb[0].mxu0 %v1780
        %v5852 = vpop.f32.mrb[0].mxu0
        %v5853 = vadd.f32 %v5564, %v5852
        %v5854 = vpop.f32.mrb[0].mxu0
        %v5855 = vpop.f32.mrb[0].mxu0
        %v5856 = vadd.f32 %v5567, %v5855
        %v5857 = vpop.f32.mrb[0].mxu0
        %5858 = vmatprep.mubr.bf16.mxu0 %v1785
        %5859 = vmatmul.mubr.bf16.gmra.mrb[0].mxu0 %v1784
        %v5860 = vpop.f32.mrb[0].mxu0
        %v5861 = vadd.f32 %v5572, %v5860
        %v5862 = vpop.f32.mrb[0].mxu0
        %v5863 = vpop.f32.mrb[0].mxu0
        %v5864 = vadd.f32 %v5575, %v5863
        %v5865 = vpop.f32.mrb[0].mxu0
        %5866 = vmatprep.mubr.bf16.mxu0 %v1789
        %5867 = vmatmul.mubr.bf16.gmra.mrb[0].mxu0 %v1788
        %v5868 = vpop.f32.mrb[0].mxu0
        %v5869 = vadd.f32 %v5580, %v5868
        %v5870 = vpop.f32.mrb[0].mxu0
        %v5871 = vpop.f32.mrb[0].mxu0
        %v5872 = vadd.f32 %v5583, %v5871
        %v5873 = vpop.f32.mrb[0].mxu0
        %5874 = vmatprep.mubr.bf16.mxu0 %v1793
        %5875 = vmatmul.mubr.bf16.gmra.mrb[0].mxu0 %v1792
        %v5876 = vpop.f32.mrb[0].mxu0
        %v5877 = vadd.f32 %v5588, %v5876
        %v5878 = vpop.f32.mrb[0].mxu0
        %v5879 = vpop.f32.mrb[0].mxu0
        %v5880 = vadd.f32 %v5591, %v5879
        %v5881 = vpop.f32.mrb[0].mxu0
        %5882 = vmatprep.mubr.bf16.mxu0 %v1797
        %5883 = vmatmul.mubr.bf16.gmra.mrb[0].mxu0 %v1796
        %v5884 = vpop.f32.mrb[0].mxu0
        %v5885 = vadd.f32 %v5596, %v5884
        %v5886 = vpop.f32.mrb[0].mxu0
        %v5887 = vpop.f32.mrb[0].mxu0
        %v5888 = vadd.f32 %v5599, %v5887
        %v5889 = vpop.f32.mrb[0].mxu0
        %5890 = vmatprep.mubr.bf16.mxu0 %v1801
        %5891 = vmatmul.mubr.bf16.gmra.mrb[0].mxu0 %v1800
        %v5892 = vpop.f32.mrb[0].mxu0
        %v5893 = vadd.f32 %v5604, %v5892
        %v5894 = vpop.f32.mrb[0].mxu0
        %v5895 = vpop.f32.mrb[0].mxu0
        %v5896 = vadd.f32 %v5607, %v5895
        %v5897 = vpop.f32.mrb[0].mxu0
        %5898 = vmatprep.mubr.bf16.mxu0 %v1805
        %5899 = vmatmul.mubr.bf16.gmra.mrb[0].mxu0 %v1804
        %v5900 = vpop.f32.mrb[0].mxu0
        %v5901 = vadd.f32 %v5612, %v5900
        %v5902 = vpop.f32.mrb[0].mxu0
        %v5903 = vpop.f32.mrb[0].mxu0
        %v5904 = vadd.f32 %v5615, %v5903
        %v5905 = vpop.f32.mrb[0].mxu0
        %5906 = vmatprep.mubr.bf16.mxu0 %v1809
        %5907 = vmatmul.mubr.bf16.gmra.mrb[0].mxu0 %v1808
        %v5908 = vpop.f32.mrb[0].mxu0
        %v5909 = vadd.f32 %v5620, %v5908
        %v5910 = vpop.f32.mrb[0].mxu0
        %v5911 = vpop.f32.mrb[0].mxu0
        %v5912 = vadd.f32 %v5623, %v5911
        %v5913 = vpop.f32.mrb[0].mxu0
        %5914 = vmatprep.mubr.bf16.mxu0 %v1813
        %5915 = vmatmul.mubr.bf16.gmra.mrb[0].mxu0 %v1812
        %v5916 = vpop.f32.mrb[0].mxu0
        %v5917 = vadd.f32 %v5628, %v5916
        %v5918 = vpop.f32.mrb[0].mxu0
        %v5919 = vpop.f32.mrb[0].mxu0
        %v5920 = vadd.f32 %v5631, %v5919
        %v5921 = vpop.f32.mrb[0].mxu0
        %5922 = vmatprep.mubr.bf16.mxu0 %v1817
        %5923 = vmatmul.mubr.bf16.gmra.mrb[0].mxu0 %v1816
        %v5924 = vpop.f32.mrb[0].mxu0
        %v5925 = vadd.f32 %v5636, %v5924
        %v5926 = vpop.f32.mrb[0].mxu0
        %v5927 = vpop.f32.mrb[0].mxu0
        %v5928 = vadd.f32 %v5639, %v5927
        %v5929 = vpop.f32.mrb[0].mxu0
        %5930 = vmatprep.mubr.bf16.mxu0 %v1821
        %5931 = vmatmul.mubr.bf16.gmra.mrb[0].mxu0 %v1820
        %v5932 = vpop.f32.mrb[0].mxu0
        %v5933 = vadd.f32 %v5644, %v5932
        %v5934 = vpop.f32.mrb[0].mxu0
        %v5935 = vpop.f32.mrb[0].mxu0
        %v5936 = vadd.f32 %v5647, %v5935
        %v5937 = vpop.f32.mrb[0].mxu0
        %5938 = vmatprep.mubr.bf16.mxu0 %v1825
        %5939 = vmatmul.mubr.bf16.gmra.mrb[0].mxu0 %v1824
        %v5940 = vpop.f32.mrb[0].mxu0
        %v5941 = vadd.f32 %v5652, %v5940
        %v5942 = vpop.f32.mrb[0].mxu0
        %v5943 = vpop.f32.mrb[0].mxu0
        %v5944 = vadd.f32 %v5655, %v5943
        %v5945 = vpop.f32.mrb[0].mxu0
        %5946 = vmatprep.mubr.bf16.mxu0 %v1829
        %5947 = vmatmul.mubr.bf16.gmra.mrb[0].mxu0 %v1828
        %v5948 = vpop.f32.mrb[0].mxu0
        %v5949 = vadd.f32 %v5660, %v5948
        %v5950 = vpop.f32.mrb[0].mxu0
        %v5951 = vpop.f32.mrb[0].mxu0
        %v5952 = vadd.f32 %v5663, %v5951
        %v5953 = vpop.f32.mrb[0].mxu0
        %5954 = vmatprep.mubr.bf16.mxu0 %v1833
        %5955 = vmatmul.mubr.bf16.gmra.mrb[0].mxu0 %v1832
        %v5956 = vpop.f32.mrb[0].mxu0
        %v5957 = vadd.f32 %v5668, %v5956
        %v5958 = vpop.f32.mrb[0].mxu0
        %v5959 = vpop.f32.mrb[0].mxu0
        %v5960 = vadd.f32 %v5671, %v5959
        %v5961 = vpop.f32.mrb[0].mxu0
        %5962 = vmatprep.mubr.bf16.mxu0 %v1837
        %5963 = vmatmul.mubr.bf16.gmra.mrb[0].mxu0 %v1836
        %v5964 = vpop.f32.mrb[0].mxu0
        %v5965 = vadd.f32 %v5676, %v5964
        %v5966 = vpop.f32.mrb[0].mxu0
        %v5967 = vpop.f32.mrb[0].mxu0
        %v5968 = vadd.f32 %v5679, %v5967
        %v5969 = vpop.f32.mrb[0].mxu0
        %5970 = vmatprep.mubr.bf16.mxu0 %v1841
        %5971 = vmatmul.mubr.bf16.gmra.mrb[0].mxu0 %v1840
        %v5972 = vpop.f32.mrb[0].mxu0
        %v5973 = vadd.f32 %v5684, %v5972
        %v5974 = vpop.f32.mrb[0].mxu0
        %v5975 = vpop.f32.mrb[0].mxu0
        %v5976 = vadd.f32 %v5687, %v5975
        %v5977 = vpop.f32.mrb[0].mxu0
        %5978 = vmatprep.mubr.bf16.mxu0 %v1845
        %5979 = vmatmul.mubr.bf16.gmra.mrb[0].mxu0 %v1844
        %v5980 = vpop.f32.mrb[0].mxu0
        %v5981 = vadd.f32 %v5692, %v5980
        %v5982 = vpop.f32.mrb[0].mxu0
        %v5983 = vpop.f32.mrb[0].mxu0
        %v5984 = vadd.f32 %v5695, %v5983
        %v5985 = vpop.f32.mrb[0].mxu0
        %5986 = vdwg.mxu0
        %v5987 = vxor.u32 %v3679, 2147483648
        %v5988 = vxor.u32 %v3681, 2147483648
        %v5989 = vxor.u32 %v4385, 2147483648
        %v5990 = vxor.u32 %v4387, 2147483648
        %v5991 = vxor.u32 %v5091, 2147483648
        %v5992 = vxor.u32 %v5093, 2147483648
        %v5993 = vxor.u32 %v5733, 2147483648
        %v5994 = vxor.u32 %v3683, 2147483648
        %v5995 = vxor.u32 %v3685, 2147483648
        %v5996 = vxor.u32 %v4389, 2147483648
        %v5997 = vxor.u32 %v4391, 2147483648
        %v5998 = vxor.u32 %v5095, 2147483648
        %v5999 = vxor.u32 %v5097, 2147483648
        %v6000 = vxor.u32 %v5736, 2147483648
        %v6001 = vxor.u32 %v3689, 2147483648
        %v6002 = vxor.u32 %v3691, 2147483648
        %v6003 = vxor.u32 %v4395, 2147483648
        %v6004 = vxor.u32 %v4397, 2147483648
        %v6005 = vxor.u32 %v5101, 2147483648
        %v6006 = vxor.u32 %v5103, 2147483648
        %v6007 = vxor.u32 %v5741, 2147483648
        %v6008 = vxor.u32 %v3693, 2147483648
        %v6009 = vxor.u32 %v3695, 2147483648
        %v6010 = vxor.u32 %v4399, 2147483648
        %v6011 = vxor.u32 %v4401, 2147483648
        %v6012 = vxor.u32 %v5105, 2147483648
        %v6013 = vxor.u32 %v5107, 2147483648
        %v6014 = vxor.u32 %v5744, 2147483648
        %v6015 = vxor.u32 %v3699, 2147483648
        %v6016 = vxor.u32 %v3701, 2147483648
        %v6017 = vxor.u32 %v4405, 2147483648
        %v6018 = vxor.u32 %v4407, 2147483648
        %v6019 = vxor.u32 %v5111, 2147483648
        %v6020 = vxor.u32 %v5113, 2147483648
        %v6021 = vxor.u32 %v5749, 2147483648
        %v6022 = vxor.u32 %v3703, 2147483648
        %v6023 = vxor.u32 %v3705, 2147483648
        %v6024 = vxor.u32 %v4409, 2147483648
        %v6025 = vxor.u32 %v4411, 2147483648
        %v6026 = vxor.u32 %v5115, 2147483648
        %v6027 = vxor.u32 %v5117, 2147483648
        %v6028 = vxor.u32 %v5752, 2147483648
        %v6029 = vxor.u32 %v3709, 2147483648
        %v6030 = vxor.u32 %v3711, 2147483648
        %v6031 = vxor.u32 %v4415, 2147483648
        %v6032 = vxor.u32 %v4417, 2147483648
        %v6033 = vxor.u32 %v5121, 2147483648
        %v6034 = vxor.u32 %v5123, 2147483648
        %v6035 = vxor.u32 %v5757, 2147483648
        %v6036 = vxor.u32 %v3713, 2147483648
        %v6037 = vxor.u32 %v3715, 2147483648
        %v6038 = vxor.u32 %v4419, 2147483648
        %v6039 = vxor.u32 %v4421, 2147483648
        %v6040 = vxor.u32 %v5125, 2147483648
        %v6041 = vxor.u32 %v5127, 2147483648
        %v6042 = vxor.u32 %v5760, 2147483648
        %v6043 = vxor.u32 %v3719, 2147483648
        %v6044 = vxor.u32 %v3721, 2147483648
        %v6045 = vxor.u32 %v4425, 2147483648
        %v6046 = vxor.u32 %v4427, 2147483648
        %v6047 = vxor.u32 %v5131, 2147483648
        %v6048 = vxor.u32 %v5133, 2147483648
        %v6049 = vxor.u32 %v5765, 2147483648
        %v6050 = vxor.u32 %v3723, 2147483648
        %v6051 = vxor.u32 %v3725, 2147483648
        %v6052 = vxor.u32 %v4429, 2147483648
        %v6053 = vxor.u32 %v4431, 2147483648
        %v6054 = vxor.u32 %v5135, 2147483648
        %v6055 = vxor.u32 %v5137, 2147483648
        %v6056 = vxor.u32 %v5768, 2147483648
        %v6057 = vxor.u32 %v3729, 2147483648
        %v6058 = vxor.u32 %v3731, 2147483648
        %v6059 = vxor.u32 %v4435, 2147483648
        %v6060 = vxor.u32 %v4437, 2147483648
        %v6061 = vxor.u32 %v5141, 2147483648
        %v6062 = vxor.u32 %v5143, 2147483648
        %v6063 = vxor.u32 %v5773, 2147483648
        %v6064 = vxor.u32 %v3733, 2147483648
        %v6065 = vxor.u32 %v3735, 2147483648
        %v6066 = vxor.u32 %v4439, 2147483648
        %v6067 = vxor.u32 %v4441, 2147483648
        %v6068 = vxor.u32 %v5145, 2147483648
        %v6069 = vxor.u32 %v5147, 2147483648
        %v6070 = vxor.u32 %v5776, 2147483648
        %v6071 = vxor.u32 %v3739, 2147483648
        %v6072 = vxor.u32 %v3741, 2147483648
        %v6073 = vxor.u32 %v4445, 2147483648
        %v6074 = vxor.u32 %v4447, 2147483648
        %v6075 = vxor.u32 %v5151, 2147483648
        %v6076 = vxor.u32 %v5153, 2147483648
        %v6077 = vxor.u32 %v5781, 2147483648
        %v6078 = vxor.u32 %v3743, 2147483648
        %v6079 = vxor.u32 %v3745, 2147483648
        %v6080 = vxor.u32 %v4449, 2147483648
        %v6081 = vxor.u32 %v4451, 2147483648
        %v6082 = vxor.u32 %v5155, 2147483648
        %v6083 = vxor.u32 %v5157, 2147483648
        %v6084 = vxor.u32 %v5784, 2147483648
        %v6085 = vxor.u32 %v3749, 2147483648
        %v6086 = vxor.u32 %v3751, 2147483648
        %v6087 = vxor.u32 %v4455, 2147483648
        %v6088 = vxor.u32 %v4457, 2147483648
        %v6089 = vxor.u32 %v5161, 2147483648
        %v6090 = vxor.u32 %v5163, 2147483648
        %v6091 = vxor.u32 %v5789, 2147483648
        %v6092 = vxor.u32 %v3753, 2147483648
        %v6093 = vxor.u32 %v3755, 2147483648
        %v6094 = vxor.u32 %v4459, 2147483648
        %v6095 = vxor.u32 %v4461, 2147483648
        %v6096 = vxor.u32 %v5165, 2147483648
        %v6097 = vxor.u32 %v5167, 2147483648
        %v6098 = vxor.u32 %v5792, 2147483648
        %v6099 = vxor.u32 %v3759, 2147483648
        %v6100 = vxor.u32 %v3761, 2147483648
        %v6101 = vxor.u32 %v4465, 2147483648
        %v6102 = vxor.u32 %v4467, 2147483648
        %v6103 = vxor.u32 %v5171, 2147483648
        %v6104 = vxor.u32 %v5173, 2147483648
        %v6105 = vxor.u32 %v5797, 2147483648
        %v6106 = vxor.u32 %v3763, 2147483648
        %v6107 = vxor.u32 %v3765, 2147483648
        %v6108 = vxor.u32 %v4469, 2147483648
        %v6109 = vxor.u32 %v4471, 2147483648
        %v6110 = vxor.u32 %v5175, 2147483648
        %v6111 = vxor.u32 %v5177, 2147483648
        %v6112 = vxor.u32 %v5800, 2147483648
        %v6113 = vxor.u32 %v3769, 2147483648
        %v6114 = vxor.u32 %v3771, 2147483648
        %v6115 = vxor.u32 %v4475, 2147483648
        %v6116 = vxor.u32 %v4477, 2147483648
        %v6117 = vxor.u32 %v5181, 2147483648
        %v6118 = vxor.u32 %v5183, 2147483648
        %v6119 = vxor.u32 %v5805, 2147483648
        %v6120 = vxor.u32 %v3773, 2147483648
        %v6121 = vxor.u32 %v3775, 2147483648
        %v6122 = vxor.u32 %v4479, 2147483648
        %v6123 = vxor.u32 %v4481, 2147483648
        %v6124 = vxor.u32 %v5185, 2147483648
        %v6125 = vxor.u32 %v5187, 2147483648
        %v6126 = vxor.u32 %v5808, 2147483648
        %v6127 = vxor.u32 %v3779, 2147483648
        %v6128 = vxor.u32 %v3781, 2147483648
        %v6129 = vxor.u32 %v4485, 2147483648
        %v6130 = vxor.u32 %v4487, 2147483648
        %v6131 = vxor.u32 %v5191, 2147483648
        %v6132 = vxor.u32 %v5193, 2147483648
        %v6133 = vxor.u32 %v5813, 2147483648
        %v6134 = vxor.u32 %v3783, 2147483648
        %v6135 = vxor.u32 %v3785, 2147483648
        %v6136 = vxor.u32 %v4489, 2147483648
        %v6137 = vxor.u32 %v4491, 2147483648
        %v6138 = vxor.u32 %v5195, 2147483648
        %v6139 = vxor.u32 %v5197, 2147483648
        %v6140 = vxor.u32 %v5816, 2147483648
        %v6141 = vxor.u32 %v3789, 2147483648
        %v6142 = vxor.u32 %v3791, 2147483648
        %v6143 = vxor.u32 %v4495, 2147483648
        %v6144 = vxor.u32 %v4497, 2147483648
        %v6145 = vxor.u32 %v5201, 2147483648
        %v6146 = vxor.u32 %v5203, 2147483648
        %v6147 = vxor.u32 %v5821, 2147483648
        %v6148 = vxor.u32 %v3793, 2147483648
        %v6149 = vxor.u32 %v3795, 2147483648
        %v6150 = vxor.u32 %v4499, 2147483648
        %v6151 = vxor.u32 %v4501, 2147483648
        %v6152 = vxor.u32 %v5205, 2147483648
        %v6153 = vxor.u32 %v5207, 2147483648
        %v6154 = vxor.u32 %v5824, 2147483648
        %v6155 = vxor.u32 %v3799, 2147483648
        %v6156 = vxor.u32 %v3801, 2147483648
        %v6157 = vxor.u32 %v4505, 2147483648
        %v6158 = vxor.u32 %v4507, 2147483648
        %v6159 = vxor.u32 %v5211, 2147483648
        %v6160 = vxor.u32 %v5213, 2147483648
        %v6161 = vxor.u32 %v5829, 2147483648
        %v6162 = vxor.u32 %v3803, 2147483648
        %v6163 = vxor.u32 %v3805, 2147483648
        %v6164 = vxor.u32 %v4509, 2147483648
        %v6165 = vxor.u32 %v4511, 2147483648
        %v6166 = vxor.u32 %v5215, 2147483648
        %v6167 = vxor.u32 %v5217, 2147483648
        %v6168 = vxor.u32 %v5832, 2147483648
        %v6169 = vxor.u32 %v3809, 2147483648
        %v6170 = vxor.u32 %v3811, 2147483648
        %v6171 = vxor.u32 %v4515, 2147483648
        %v6172 = vxor.u32 %v4517, 2147483648
        %v6173 = vxor.u32 %v5221, 2147483648
        %v6174 = vxor.u32 %v5223, 2147483648
        %v6175 = vxor.u32 %v5837, 2147483648
        %v6176 = vxor.u32 %v3813, 2147483648
        %v6177 = vxor.u32 %v3815, 2147483648
        %v6178 = vxor.u32 %v4519, 2147483648
        %v6179 = vxor.u32 %v4521, 2147483648
        %v6180 = vxor.u32 %v5225, 2147483648
        %v6181 = vxor.u32 %v5227, 2147483648
        %v6182 = vxor.u32 %v5840, 2147483648
        %v6183 = vxor.u32 %v3819, 2147483648
        %v6184 = vxor.u32 %v3821, 2147483648
        %v6185 = vxor.u32 %v4525, 2147483648
        %v6186 = vxor.u32 %v4527, 2147483648
        %v6187 = vxor.u32 %v5231, 2147483648
        %v6188 = vxor.u32 %v5233, 2147483648
        %v6189 = vxor.u32 %v5845, 2147483648
        %v6190 = vxor.u32 %v3823, 2147483648
        %v6191 = vxor.u32 %v3825, 2147483648
        %v6192 = vxor.u32 %v4529, 2147483648
        %v6193 = vxor.u32 %v4531, 2147483648
        %v6194 = vxor.u32 %v5235, 2147483648
        %v6195 = vxor.u32 %v5237, 2147483648
        %v6196 = vxor.u32 %v5848, 2147483648
        %v6197 = vxor.u32 %v3829, 2147483648
        %v6198 = vxor.u32 %v3831, 2147483648
        %v6199 = vxor.u32 %v4535, 2147483648
        %v6200 = vxor.u32 %v4537, 2147483648
        %v6201 = vxor.u32 %v5241, 2147483648
        %v6202 = vxor.u32 %v5243, 2147483648
        %v6203 = vxor.u32 %v5853, 2147483648
        %v6204 = vxor.u32 %v3833, 2147483648
        %v6205 = vxor.u32 %v3835, 2147483648
        %v6206 = vxor.u32 %v4539, 2147483648
        %v6207 = vxor.u32 %v4541, 2147483648
        %v6208 = vxor.u32 %v5245, 2147483648
        %v6209 = vxor.u32 %v5247, 2147483648
        %v6210 = vxor.u32 %v5856, 2147483648
        %v6211 = vxor.u32 %v3839, 2147483648
        %v6212 = vxor.u32 %v3841, 2147483648
        %v6213 = vxor.u32 %v4545, 2147483648
        %v6214 = vxor.u32 %v4547, 2147483648
        %v6215 = vxor.u32 %v5251, 2147483648
        %v6216 = vxor.u32 %v5253, 2147483648
        %v6217 = vxor.u32 %v5861, 2147483648
        %v6218 = vxor.u32 %v3843, 2147483648
        %v6219 = vxor.u32 %v3845, 2147483648
        %v6220 = vxor.u32 %v4549, 2147483648
        %v6221 = vxor.u32 %v4551, 2147483648
        %v6222 = vxor.u32 %v5255, 2147483648
        %v6223 = vxor.u32 %v5257, 2147483648
        %v6224 = vxor.u32 %v5864, 2147483648
        %v6225 = vxor.u32 %v3849, 2147483648
        %v6226 = vxor.u32 %v3851, 2147483648
        %v6227 = vxor.u32 %v4555, 2147483648
        %v6228 = vxor.u32 %v4557, 2147483648
        %v6229 = vxor.u32 %v5261, 2147483648
        %v6230 = vxor.u32 %v5263, 2147483648
        %v6231 = vxor.u32 %v5869, 2147483648
        %v6232 = vxor.u32 %v3853, 2147483648
        %v6233 = vxor.u32 %v3855, 2147483648
        %v6234 = vxor.u32 %v4559, 2147483648
        %v6235 = vxor.u32 %v4561, 2147483648
        %v6236 = vxor.u32 %v5265, 2147483648
        %v6237 = vxor.u32 %v5267, 2147483648
        %v6238 = vxor.u32 %v5872, 2147483648
        %v6239 = vxor.u32 %v3859, 2147483648
        %v6240 = vxor.u32 %v3861, 2147483648
        %v6241 = vxor.u32 %v4565, 2147483648
        %v6242 = vxor.u32 %v4567, 2147483648
        %v6243 = vxor.u32 %v5271, 2147483648
        %v6244 = vxor.u32 %v5273, 2147483648
        %v6245 = vxor.u32 %v5877, 2147483648
        %v6246 = vxor.u32 %v3863, 2147483648
        %v6247 = vxor.u32 %v3865, 2147483648
        %v6248 = vxor.u32 %v4569, 2147483648
        %v6249 = vxor.u32 %v4571, 2147483648
        %v6250 = vxor.u32 %v5275, 2147483648
        %v6251 = vxor.u32 %v5277, 2147483648
        %v6252 = vxor.u32 %v5880, 2147483648
        %v6253 = vxor.u32 %v3869, 2147483648
        %v6254 = vxor.u32 %v3871, 2147483648
        %v6255 = vxor.u32 %v4575, 2147483648
        %v6256 = vxor.u32 %v4577, 2147483648
        %v6257 = vxor.u32 %v5281, 2147483648
        %v6258 = vxor.u32 %v5283, 2147483648
        %v6259 = vxor.u32 %v5885, 2147483648
        %v6260 = vxor.u32 %v3873, 2147483648
        %v6261 = vxor.u32 %v3875, 2147483648
        %v6262 = vxor.u32 %v4579, 2147483648
        %v6263 = vxor.u32 %v4581, 2147483648
        %v6264 = vxor.u32 %v5285, 2147483648
        %v6265 = vxor.u32 %v5287, 2147483648
        %v6266 = vxor.u32 %v5888, 2147483648
        %v6267 = vxor.u32 %v3879, 2147483648
        %v6268 = vxor.u32 %v3881, 2147483648
        %v6269 = vxor.u32 %v4585, 2147483648
        %v6270 = vxor.u32 %v4587, 2147483648
        %v6271 = vxor.u32 %v5291, 2147483648
        %v6272 = vxor.u32 %v5293, 2147483648
        %v6273 = vxor.u32 %v5893, 2147483648
        %v6274 = vxor.u32 %v3883, 2147483648
        %v6275 = vxor.u32 %v3885, 2147483648
        %v6276 = vxor.u32 %v4589, 2147483648
        %v6277 = vxor.u32 %v4591, 2147483648
        %v6278 = vxor.u32 %v5295, 2147483648
        %v6279 = vxor.u32 %v5297, 2147483648
        %v6280 = vxor.u32 %v5896, 2147483648
        %v6281 = vxor.u32 %v3889, 2147483648
        %v6282 = vxor.u32 %v3891, 2147483648
        %v6283 = vxor.u32 %v4595, 2147483648
        %v6284 = vxor.u32 %v4597, 2147483648
        %v6285 = vxor.u32 %v5301, 2147483648
        %v6286 = vxor.u32 %v5303, 2147483648
        %v6287 = vxor.u32 %v5901, 2147483648
        %v6288 = vxor.u32 %v3893, 2147483648
        %v6289 = vxor.u32 %v3895, 2147483648
        %v6290 = vxor.u32 %v4599, 2147483648
        %v6291 = vxor.u32 %v4601, 2147483648
        %v6292 = vxor.u32 %v5305, 2147483648
        %v6293 = vxor.u32 %v5307, 2147483648
        %v6294 = vxor.u32 %v5904, 2147483648
        %v6295 = vxor.u32 %v3899, 2147483648
        %v6296 = vxor.u32 %v3901, 2147483648
        %v6297 = vxor.u32 %v4605, 2147483648
        %v6298 = vxor.u32 %v4607, 2147483648
        %v6299 = vxor.u32 %v5311, 2147483648
        %v6300 = vxor.u32 %v5313, 2147483648
        %v6301 = vxor.u32 %v5909, 2147483648
        %v6302 = vxor.u32 %v3903, 2147483648
        %v6303 = vxor.u32 %v3905, 2147483648
        %v6304 = vxor.u32 %v4609, 2147483648
        %v6305 = vxor.u32 %v4611, 2147483648
        %v6306 = vxor.u32 %v5315, 2147483648
        %v6307 = vxor.u32 %v5317, 2147483648
        %v6308 = vxor.u32 %v5912, 2147483648
        %v6309 = vxor.u32 %v3909, 2147483648
        %v6310 = vxor.u32 %v3911, 2147483648
        %v6311 = vxor.u32 %v4615, 2147483648
        %v6312 = vxor.u32 %v4617, 2147483648
        %v6313 = vxor.u32 %v5321, 2147483648
        %v6314 = vxor.u32 %v5323, 2147483648
        %v6315 = vxor.u32 %v5917, 2147483648
        %v6316 = vxor.u32 %v3913, 2147483648
        %v6317 = vxor.u32 %v3915, 2147483648
        %v6318 = vxor.u32 %v4619, 2147483648
        %v6319 = vxor.u32 %v4621, 2147483648
        %v6320 = vxor.u32 %v5325, 2147483648
        %v6321 = vxor.u32 %v5327, 2147483648
        %v6322 = vxor.u32 %v5920, 2147483648
        %v6323 = vxor.u32 %v3919, 2147483648
        %v6324 = vxor.u32 %v3921, 2147483648
        %v6325 = vxor.u32 %v4625, 2147483648
        %v6326 = vxor.u32 %v4627, 2147483648
        %v6327 = vxor.u32 %v5331, 2147483648
        %v6328 = vxor.u32 %v5333, 2147483648
        %v6329 = vxor.u32 %v5925, 2147483648
        %v6330 = vxor.u32 %v3923, 2147483648
        %v6331 = vxor.u32 %v3925, 2147483648
        %v6332 = vxor.u32 %v4629, 2147483648
        %v6333 = vxor.u32 %v4631, 2147483648
        %v6334 = vxor.u32 %v5335, 2147483648
        %v6335 = vxor.u32 %v5337, 2147483648
        %v6336 = vxor.u32 %v5928, 2147483648
        %v6337 = vxor.u32 %v3929, 2147483648
        %v6338 = vxor.u32 %v3931, 2147483648
        %v6339 = vxor.u32 %v4635, 2147483648
        %v6340 = vxor.u32 %v4637, 2147483648
        %v6341 = vxor.u32 %v5341, 2147483648
        %v6342 = vxor.u32 %v5343, 2147483648
        %v6343 = vxor.u32 %v5933, 2147483648
        %v6344 = vxor.u32 %v3933, 2147483648
        %v6345 = vxor.u32 %v3935, 2147483648
        %v6346 = vxor.u32 %v4639, 2147483648
        %v6347 = vxor.u32 %v4641, 2147483648
        %v6348 = vxor.u32 %v5345, 2147483648
        %v6349 = vxor.u32 %v5347, 2147483648
        %v6350 = vxor.u32 %v5936, 2147483648
        %v6351 = vxor.u32 %v3939, 2147483648
        %v6352 = vxor.u32 %v3941, 2147483648
        %v6353 = vxor.u32 %v4645, 2147483648
        %v6354 = vxor.u32 %v4647, 2147483648
        %v6355 = vxor.u32 %v5351, 2147483648
        %v6356 = vxor.u32 %v5353, 2147483648
        %v6357 = vxor.u32 %v5941, 2147483648
        %v6358 = vxor.u32 %v3943, 2147483648
        %v6359 = vxor.u32 %v3945, 2147483648
        %v6360 = vxor.u32 %v4649, 2147483648
        %v6361 = vxor.u32 %v4651, 2147483648
        %v6362 = vxor.u32 %v5355, 2147483648
        %v6363 = vxor.u32 %v5357, 2147483648
        %v6364 = vxor.u32 %v5944, 2147483648
        %v6365 = vxor.u32 %v3949, 2147483648
        %v6366 = vxor.u32 %v3951, 2147483648
        %v6367 = vxor.u32 %v4655, 2147483648
        %v6368 = vxor.u32 %v4657, 2147483648
        %v6369 = vxor.u32 %v5361, 2147483648
        %v6370 = vxor.u32 %v5363, 2147483648
        %v6371 = vxor.u32 %v5949, 2147483648
        %v6372 = vxor.u32 %v3953, 2147483648
        %v6373 = vxor.u32 %v3955, 2147483648
        %v6374 = vxor.u32 %v4659, 2147483648
        %v6375 = vxor.u32 %v4661, 2147483648
        %v6376 = vxor.u32 %v5365, 2147483648
        %v6377 = vxor.u32 %v5367, 2147483648
        %v6378 = vxor.u32 %v5952, 2147483648
        %v6379 = vxor.u32 %v3959, 2147483648
        %v6380 = vxor.u32 %v3961, 2147483648
        %v6381 = vxor.u32 %v4665, 2147483648
        %v6382 = vxor.u32 %v4667, 2147483648
        %v6383 = vxor.u32 %v5371, 2147483648
        %v6384 = vxor.u32 %v5373, 2147483648
        %v6385 = vxor.u32 %v5957, 2147483648
        %v6386 = vxor.u32 %v3963, 2147483648
        %v6387 = vxor.u32 %v3965, 2147483648
        %v6388 = vxor.u32 %v4669, 2147483648
        %v6389 = vxor.u32 %v4671, 2147483648
        %v6390 = vxor.u32 %v5375, 2147483648
        %v6391 = vxor.u32 %v5377, 2147483648
        %v6392 = vxor.u32 %v5960, 2147483648
        %v6393 = vxor.u32 %v3969, 2147483648
        %v6394 = vxor.u32 %v3971, 2147483648
        %v6395 = vxor.u32 %v4675, 2147483648
        %v6396 = vxor.u32 %v4677, 2147483648
        %v6397 = vxor.u32 %v5381, 2147483648
        %v6398 = vxor.u32 %v5383, 2147483648
        %v6399 = vxor.u32 %v5965, 2147483648
        %v6400 = vxor.u32 %v3973, 2147483648
        %v6401 = vxor.u32 %v3975, 2147483648
        %v6402 = vxor.u32 %v4679, 2147483648
        %v6403 = vxor.u32 %v4681, 2147483648
        %v6404 = vxor.u32 %v5385, 2147483648
        %v6405 = vxor.u32 %v5387, 2147483648
        %v6406 = vxor.u32 %v5968, 2147483648
        %v6407 = vxor.u32 %v3979, 2147483648
        %v6408 = vxor.u32 %v3981, 2147483648
        %v6409 = vxor.u32 %v4685, 2147483648
        %v6410 = vxor.u32 %v4687, 2147483648
        %v6411 = vxor.u32 %v5391, 2147483648
        %v6412 = vxor.u32 %v5393, 2147483648
        %v6413 = vxor.u32 %v5973, 2147483648
        %v6414 = vxor.u32 %v3983, 2147483648
        %v6415 = vxor.u32 %v3985, 2147483648
        %v6416 = vxor.u32 %v4689, 2147483648
        %v6417 = vxor.u32 %v4691, 2147483648
        %v6418 = vxor.u32 %v5395, 2147483648
        %v6419 = vxor.u32 %v5397, 2147483648
        %v6420 = vxor.u32 %v5976, 2147483648
        %v6421 = vxor.u32 %v3989, 2147483648
        %v6422 = vxor.u32 %v3991, 2147483648
        %v6423 = vxor.u32 %v4695, 2147483648
        %v6424 = vxor.u32 %v4697, 2147483648
        %v6425 = vxor.u32 %v5401, 2147483648
        %v6426 = vxor.u32 %v5403, 2147483648
        %v6427 = vxor.u32 %v5981, 2147483648
        %v6428 = vxor.u32 %v3993, 2147483648
        %v6429 = vxor.u32 %v3995, 2147483648
        %v6430 = vxor.u32 %v4699, 2147483648
        %v6431 = vxor.u32 %v4701, 2147483648
        %v6432 = vxor.u32 %v5405, 2147483648
        %v6433 = vxor.u32 %v5407, 2147483648
        %v6434 = vxor.u32 %v5984, 2147483648
        %v6435 = vmul.f32 %v5987, 1.442695
        %v6436 = vpow.pop %v6435
        %v6437 = vmul.f32 %v5988, 1.442695
        %v6438 = vpow.pop %v6437
        %v6439 = vmul.f32 %v5989, 1.442695
        %v6440 = vpow.pop %v6439
        %v6441 = vmul.f32 %v5990, 1.442695
        %v6442 = vpow.pop %v6441
        %v6443 = vmul.f32 %v5991, 1.442695
        %v6444 = vpow.pop %v6443
        %v6445 = vmul.f32 %v5992, 1.442695
        %v6446 = vpow.pop %v6445
        %v6447 = vmul.f32 %v5993, 1.442695
        %v6448 = vpow.pop %v6447
        %v6449 = vmul.f32 %v5994, 1.442695
        %v6450 = vpow.pop %v6449
        %v6451 = vmul.f32 %v5995, 1.442695
        %v6452 = vpow.pop %v6451
        %v6453 = vmul.f32 %v5996, 1.442695
        %v6454 = vpow.pop %v6453
        %v6455 = vmul.f32 %v5997, 1.442695
        %v6456 = vpow.pop %v6455
        %v6457 = vmul.f32 %v5998, 1.442695
        %v6458 = vpow.pop %v6457
        %v6459 = vmul.f32 %v5999, 1.442695
        %v6460 = vpow.pop %v6459
        %v6461 = vmul.f32 %v6000, 1.442695
        %v6462 = vpow.pop %v6461
        %v6463 = vmul.f32 %v6001, 1.442695
        %v6464 = vpow.pop %v6463
        %v6465 = vmul.f32 %v6002, 1.442695
        %v6466 = vpow.pop %v6465
        %v6467 = vmul.f32 %v6003, 1.442695
        %v6468 = vpow.pop %v6467
        %v6469 = vmul.f32 %v6004, 1.442695
        %v6470 = vpow.pop %v6469
        %v6471 = vmul.f32 %v6005, 1.442695
        %v6472 = vpow.pop %v6471
        %v6473 = vmul.f32 %v6006, 1.442695
        %v6474 = vpow.pop %v6473
        %v6475 = vmul.f32 %v6007, 1.442695
        %v6476 = vpow.pop %v6475
        %v6477 = vmul.f32 %v6008, 1.442695
        %v6478 = vpow.pop %v6477
        %v6479 = vmul.f32 %v6009, 1.442695
        %v6480 = vpow.pop %v6479
        %v6481 = vmul.f32 %v6010, 1.442695
        %v6482 = vpow.pop %v6481
        %v6483 = vmul.f32 %v6011, 1.442695
        %v6484 = vpow.pop %v6483
        %v6485 = vmul.f32 %v6012, 1.442695
        %v6486 = vpow.pop %v6485
        %v6487 = vmul.f32 %v6013, 1.442695
        %v6488 = vpow.pop %v6487
        %v6489 = vmul.f32 %v6014, 1.442695
        %v6490 = vpow.pop %v6489
        %v6491 = vmul.f32 %v6015, 1.442695
        %v6492 = vpow.pop %v6491
        %v6493 = vmul.f32 %v6016, 1.442695
        %v6494 = vpow.pop %v6493
        %v6495 = vmul.f32 %v6017, 1.442695
        %v6496 = vpow.pop %v6495
        %v6497 = vmul.f32 %v6018, 1.442695
        %v6498 = vpow.pop %v6497
        %v6499 = vmul.f32 %v6019, 1.442695
        %v6500 = vpow.pop %v6499
        %v6501 = vmul.f32 %v6020, 1.442695
        %v6502 = vpow.pop %v6501
        %v6503 = vmul.f32 %v6021, 1.442695
        %v6504 = vpow.pop %v6503
        %v6505 = vmul.f32 %v6022, 1.442695
        %v6506 = vpow.pop %v6505
        %v6507 = vmul.f32 %v6023, 1.442695
        %v6508 = vpow.pop %v6507
        %v6509 = vmul.f32 %v6024, 1.442695
        %v6510 = vpow.pop %v6509
        %v6511 = vmul.f32 %v6025, 1.442695
        %v6512 = vpow.pop %v6511
        %v6513 = vmul.f32 %v6026, 1.442695
        %v6514 = vpow.pop %v6513
        %v6515 = vmul.f32 %v6027, 1.442695
        %v6516 = vpow.pop %v6515
        %v6517 = vmul.f32 %v6028, 1.442695
        %v6518 = vpow.pop %v6517
        %v6519 = vmul.f32 %v6029, 1.442695
        %v6520 = vpow.pop %v6519
        %v6521 = vmul.f32 %v6030, 1.442695
        %v6522 = vpow.pop %v6521
        %v6523 = vmul.f32 %v6031, 1.442695
        %v6524 = vpow.pop %v6523
        %v6525 = vmul.f32 %v6032, 1.442695
        %v6526 = vpow.pop %v6525
        %v6527 = vmul.f32 %v6033, 1.442695
        %v6528 = vpow.pop %v6527
        %v6529 = vmul.f32 %v6034, 1.442695
        %v6530 = vpow.pop %v6529
        %v6531 = vmul.f32 %v6035, 1.442695
        %v6532 = vpow.pop %v6531
        %v6533 = vmul.f32 %v6036, 1.442695
        %v6534 = vpow.pop %v6533
        %v6535 = vmul.f32 %v6037, 1.442695
        %v6536 = vpow.pop %v6535
        %v6537 = vmul.f32 %v6038, 1.442695
        %v6538 = vpow.pop %v6537
        %v6539 = vmul.f32 %v6039, 1.442695
        %v6540 = vpow.pop %v6539
        %v6541 = vmul.f32 %v6040, 1.442695
        %v6542 = vpow.pop %v6541
        %v6543 = vmul.f32 %v6041, 1.442695
        %v6544 = vpow.pop %v6543
        %v6545 = vmul.f32 %v6042, 1.442695
        %v6546 = vpow.pop %v6545
        %v6547 = vmul.f32 %v6043, 1.442695
        %v6548 = vpow.pop %v6547
        %v6549 = vmul.f32 %v6044, 1.442695
        %v6550 = vpow.pop %v6549
        %v6551 = vmul.f32 %v6045, 1.442695
        %v6552 = vpow.pop %v6551
        %v6553 = vmul.f32 %v6046, 1.442695
        %v6554 = vpow.pop %v6553
        %v6555 = vmul.f32 %v6047, 1.442695
        %v6556 = vpow.pop %v6555
        %v6557 = vmul.f32 %v6048, 1.442695
        %v6558 = vpow.pop %v6557
        %v6559 = vmul.f32 %v6049, 1.442695
        %v6560 = vpow.pop %v6559
        %v6561 = vmul.f32 %v6050, 1.442695
        %v6562 = vpow.pop %v6561
        %v6563 = vmul.f32 %v6051, 1.442695
        %v6564 = vpow.pop %v6563
        %v6565 = vmul.f32 %v6052, 1.442695
        %v6566 = vpow.pop %v6565
        %v6567 = vmul.f32 %v6053, 1.442695
        %v6568 = vpow.pop %v6567
        %v6569 = vmul.f32 %v6054, 1.442695
        %v6570 = vpow.pop %v6569
        %v6571 = vmul.f32 %v6055, 1.442695
        %v6572 = vpow.pop %v6571
        %v6573 = vmul.f32 %v6056, 1.442695
        %v6574 = vpow.pop %v6573
        %v6575 = vmul.f32 %v6057, 1.442695
        %v6576 = vpow.pop %v6575
        %v6577 = vmul.f32 %v6058, 1.442695
        %v6578 = vpow.pop %v6577
        %v6579 = vmul.f32 %v6059, 1.442695
        %v6580 = vpow.pop %v6579
        %v6581 = vmul.f32 %v6060, 1.442695
        %v6582 = vpow.pop %v6581
        %v6583 = vmul.f32 %v6061, 1.442695
        %v6584 = vpow.pop %v6583
        %v6585 = vmul.f32 %v6062, 1.442695
        %v6586 = vpow.pop %v6585
        %v6587 = vmul.f32 %v6063, 1.442695
        %v6588 = vpow.pop %v6587
        %v6589 = vmul.f32 %v6064, 1.442695
        %v6590 = vpow.pop %v6589
        %v6591 = vmul.f32 %v6065, 1.442695
        %v6592 = vpow.pop %v6591
        %v6593 = vmul.f32 %v6066, 1.442695
        %v6594 = vpow.pop %v6593
        %v6595 = vmul.f32 %v6067, 1.442695
        %v6596 = vpow.pop %v6595
        %v6597 = vmul.f32 %v6068, 1.442695
        %v6598 = vpow.pop %v6597
        %v6599 = vmul.f32 %v6069, 1.442695
        %v6600 = vpow.pop %v6599
        %v6601 = vmul.f32 %v6070, 1.442695
        %v6602 = vpow.pop %v6601
        %v6603 = vmul.f32 %v6071, 1.442695
        %v6604 = vpow.pop %v6603
        %v6605 = vmul.f32 %v6072, 1.442695
        %v6606 = vpow.pop %v6605
        %v6607 = vmul.f32 %v6073, 1.442695
        %v6608 = vpow.pop %v6607
        %v6609 = vmul.f32 %v6074, 1.442695
        %v6610 = vpow.pop %v6609
        %v6611 = vmul.f32 %v6075, 1.442695
        %v6612 = vpow.pop %v6611
        %v6613 = vmul.f32 %v6076, 1.442695
        %v6614 = vpow.pop %v6613
        %v6615 = vmul.f32 %v6077, 1.442695
        %v6616 = vpow.pop %v6615
        %v6617 = vmul.f32 %v6078, 1.442695
        %v6618 = vpow.pop %v6617
        %v6619 = vmul.f32 %v6079, 1.442695
        %v6620 = vpow.pop %v6619
        %v6621 = vmul.f32 %v6080, 1.442695
        %v6622 = vpow.pop %v6621
        %v6623 = vmul.f32 %v6081, 1.442695
        %v6624 = vpow.pop %v6623
        %v6625 = vmul.f32 %v6082, 1.442695
        %v6626 = vpow.pop %v6625
        %v6627 = vmul.f32 %v6083, 1.442695
        %v6628 = vpow.pop %v6627
        %v6629 = vmul.f32 %v6084, 1.442695
        %v6630 = vpow.pop %v6629
        %v6631 = vmul.f32 %v6085, 1.442695
        %v6632 = vpow.pop %v6631
        %v6633 = vmul.f32 %v6086, 1.442695
        %v6634 = vpow.pop %v6633
        %v6635 = vmul.f32 %v6087, 1.442695
        %v6636 = vpow.pop %v6635
        %v6637 = vmul.f32 %v6088, 1.442695
        %v6638 = vpow.pop %v6637
        %v6639 = vmul.f32 %v6089, 1.442695
        %v6640 = vpow.pop %v6639
        %v6641 = vmul.f32 %v6090, 1.442695
        %v6642 = vpow.pop %v6641
        %v6643 = vmul.f32 %v6091, 1.442695
        %v6644 = vpow.pop %v6643
        %v6645 = vmul.f32 %v6092, 1.442695
        %v6646 = vpow.pop %v6645
        %v6647 = vmul.f32 %v6093, 1.442695
        %v6648 = vpow.pop %v6647
        %v6649 = vmul.f32 %v6094, 1.442695
        %v6650 = vpow.pop %v6649
        %v6651 = vmul.f32 %v6095, 1.442695
        %v6652 = vpow.pop %v6651
        %v6653 = vmul.f32 %v6096, 1.442695
        %v6654 = vpow.pop %v6653
        %v6655 = vmul.f32 %v6097, 1.442695
        %v6656 = vpow.pop %v6655
        %v6657 = vmul.f32 %v6098, 1.442695
        %v6658 = vpow.pop %v6657
        %v6659 = vmul.f32 %v6099, 1.442695
        %v6660 = vpow.pop %v6659
        %v6661 = vmul.f32 %v6100, 1.442695
        %v6662 = vpow.pop %v6661
        %v6663 = vmul.f32 %v6101, 1.442695
        %v6664 = vpow.pop %v6663
        %v6665 = vmul.f32 %v6102, 1.442695
        %v6666 = vpow.pop %v6665
        %v6667 = vmul.f32 %v6103, 1.442695
        %v6668 = vpow.pop %v6667
        %v6669 = vmul.f32 %v6104, 1.442695
        %v6670 = vpow.pop %v6669
        %v6671 = vmul.f32 %v6105, 1.442695
        %v6672 = vpow.pop %v6671
        %v6673 = vmul.f32 %v6106, 1.442695
        %v6674 = vpow.pop %v6673
        %v6675 = vmul.f32 %v6107, 1.442695
        %v6676 = vpow.pop %v6675
        %v6677 = vmul.f32 %v6108, 1.442695
        %v6678 = vpow.pop %v6677
        %v6679 = vmul.f32 %v6109, 1.442695
        %v6680 = vpow.pop %v6679
        %v6681 = vmul.f32 %v6110, 1.442695
        %v6682 = vpow.pop %v6681
        %v6683 = vmul.f32 %v6111, 1.442695
        %v6684 = vpow.pop %v6683
        %v6685 = vmul.f32 %v6112, 1.442695
        %v6686 = vpow.pop %v6685
        %v6687 = vmul.f32 %v6113, 1.442695
        %v6688 = vpow.pop %v6687
        %v6689 = vmul.f32 %v6114, 1.442695
        %v6690 = vpow.pop %v6689
        %v6691 = vmul.f32 %v6115, 1.442695
        %v6692 = vpow.pop %v6691
        %v6693 = vmul.f32 %v6116, 1.442695
        %v6694 = vpow.pop %v6693
        %v6695 = vmul.f32 %v6117, 1.442695
        %v6696 = vpow.pop %v6695
        %v6697 = vmul.f32 %v6118, 1.442695
        %v6698 = vpow.pop %v6697
        %v6699 = vmul.f32 %v6119, 1.442695
        %v6700 = vpow.pop %v6699
        %v6701 = vmul.f32 %v6120, 1.442695
        %v6702 = vpow.pop %v6701
        %v6703 = vmul.f32 %v6121, 1.442695
        %v6704 = vpow.pop %v6703
        %v6705 = vmul.f32 %v6122, 1.442695
        %v6706 = vpow.pop %v6705
        %v6707 = vmul.f32 %v6123, 1.442695
        %v6708 = vpow.pop %v6707
        %v6709 = vmul.f32 %v6124, 1.442695
        %v6710 = vpow.pop %v6709
        %v6711 = vmul.f32 %v6125, 1.442695
        %v6712 = vpow.pop %v6711
        %v6713 = vmul.f32 %v6126, 1.442695
        %v6714 = vpow.pop %v6713
        %v6715 = vmul.f32 %v6127, 1.442695
        %v6716 = vpow.pop %v6715
        %v6717 = vmul.f32 %v6128, 1.442695
        %v6718 = vpow.pop %v6717
        %v6719 = vmul.f32 %v6129, 1.442695
        %v6720 = vpow.pop %v6719
        %v6721 = vmul.f32 %v6130, 1.442695
        %v6722 = vpow.pop %v6721
        %v6723 = vmul.f32 %v6131, 1.442695
        %v6724 = vpow.pop %v6723
        %v6725 = vmul.f32 %v6132, 1.442695
        %v6726 = vpow.pop %v6725
        %v6727 = vmul.f32 %v6133, 1.442695
        %v6728 = vpow.pop %v6727
        %v6729 = vmul.f32 %v6134, 1.442695
        %v6730 = vpow.pop %v6729
        %v6731 = vmul.f32 %v6135, 1.442695
        %v6732 = vpow.pop %v6731
        %v6733 = vmul.f32 %v6136, 1.442695
        %v6734 = vpow.pop %v6733
        %v6735 = vmul.f32 %v6137, 1.442695
        %v6736 = vpow.pop %v6735
        %v6737 = vmul.f32 %v6138, 1.442695
        %v6738 = vpow.pop %v6737
        %v6739 = vmul.f32 %v6139, 1.442695
        %v6740 = vpow.pop %v6739
        %v6741 = vmul.f32 %v6140, 1.442695
        %v6742 = vpow.pop %v6741
        %v6743 = vmul.f32 %v6141, 1.442695
        %v6744 = vpow.pop %v6743
        %v6745 = vmul.f32 %v6142, 1.442695
        %v6746 = vpow.pop %v6745
        %v6747 = vmul.f32 %v6143, 1.442695
        %v6748 = vpow.pop %v6747
        %v6749 = vmul.f32 %v6144, 1.442695
        %v6750 = vpow.pop %v6749
        %v6751 = vmul.f32 %v6145, 1.442695
        %v6752 = vpow.pop %v6751
        %v6753 = vmul.f32 %v6146, 1.442695
        %v6754 = vpow.pop %v6753
        %v6755 = vmul.f32 %v6147, 1.442695
        %v6756 = vpow.pop %v6755
        %v6757 = vmul.f32 %v6148, 1.442695
        %v6758 = vpow.pop %v6757
        %v6759 = vmul.f32 %v6149, 1.442695
        %v6760 = vpow.pop %v6759
        %v6761 = vmul.f32 %v6150, 1.442695
        %v6762 = vpow.pop %v6761
        %v6763 = vmul.f32 %v6151, 1.442695
        %v6764 = vpow.pop %v6763
        %v6765 = vmul.f32 %v6152, 1.442695
        %v6766 = vpow.pop %v6765
        %v6767 = vmul.f32 %v6153, 1.442695
        %v6768 = vpow.pop %v6767
        %v6769 = vmul.f32 %v6154, 1.442695
        %v6770 = vpow.pop %v6769
        %v6771 = vmul.f32 %v6155, 1.442695
        %v6772 = vpow.pop %v6771
        %v6773 = vmul.f32 %v6156, 1.442695
        %v6774 = vpow.pop %v6773
        %v6775 = vmul.f32 %v6157, 1.442695
        %v6776 = vpow.pop %v6775
        %v6777 = vmul.f32 %v6158, 1.442695
        %v6778 = vpow.pop %v6777
        %v6779 = vmul.f32 %v6159, 1.442695
        %v6780 = vpow.pop %v6779
        %v6781 = vmul.f32 %v6160, 1.442695
        %v6782 = vpow.pop %v6781
        %v6783 = vmul.f32 %v6161, 1.442695
        %v6784 = vpow.pop %v6783
        %v6785 = vmul.f32 %v6162, 1.442695
        %v6786 = vpow.pop %v6785
        %v6787 = vmul.f32 %v6163, 1.442695
        %v6788 = vpow.pop %v6787
        %v6789 = vmul.f32 %v6164, 1.442695
        %v6790 = vpow.pop %v6789
        %v6791 = vmul.f32 %v6165, 1.442695
        %v6792 = vpow.pop %v6791
        %v6793 = vmul.f32 %v6166, 1.442695
        %v6794 = vpow.pop %v6793
        %v6795 = vmul.f32 %v6167, 1.442695
        %v6796 = vpow.pop %v6795
        %v6797 = vmul.f32 %v6168, 1.442695
        %v6798 = vpow.pop %v6797
        %v6799 = vmul.f32 %v6169, 1.442695
        %v6800 = vpow.pop %v6799
        %v6801 = vmul.f32 %v6170, 1.442695
        %v6802 = vpow.pop %v6801
        %v6803 = vmul.f32 %v6171, 1.442695
        %v6804 = vpow.pop %v6803
        %v6805 = vmul.f32 %v6172, 1.442695
        %v6806 = vpow.pop %v6805
        %v6807 = vmul.f32 %v6173, 1.442695
        %v6808 = vpow.pop %v6807
        %v6809 = vmul.f32 %v6174, 1.442695
        %v6810 = vpow.pop %v6809
        %v6811 = vmul.f32 %v6175, 1.442695
        %v6812 = vpow.pop %v6811
        %v6813 = vmul.f32 %v6176, 1.442695
        %v6814 = vpow.pop %v6813
        %v6815 = vmul.f32 %v6177, 1.442695
        %v6816 = vpow.pop %v6815
        %v6817 = vmul.f32 %v6178, 1.442695
        %v6818 = vpow.pop %v6817
        %v6819 = vmul.f32 %v6179, 1.442695
        %v6820 = vpow.pop %v6819
        %v6821 = vmul.f32 %v6180, 1.442695
        %v6822 = vpow.pop %v6821
        %v6823 = vmul.f32 %v6181, 1.442695
        %v6824 = vpow.pop %v6823
        %v6825 = vmul.f32 %v6182, 1.442695
        %v6826 = vpow.pop %v6825
        %v6827 = vmul.f32 %v6183, 1.442695
        %v6828 = vpow.pop %v6827
        %v6829 = vmul.f32 %v6184, 1.442695
        %v6830 = vpow.pop %v6829
        %v6831 = vmul.f32 %v6185, 1.442695
        %v6832 = vpow.pop %v6831
        %v6833 = vmul.f32 %v6186, 1.442695
        %v6834 = vpow.pop %v6833
        %v6835 = vmul.f32 %v6187, 1.442695
        %v6836 = vpow.pop %v6835
        %v6837 = vmul.f32 %v6188, 1.442695
        %v6838 = vpow.pop %v6837
        %v6839 = vmul.f32 %v6189, 1.442695
        %v6840 = vpow.pop %v6839
        %v6841 = vmul.f32 %v6190, 1.442695
        %v6842 = vpow.pop %v6841
        %v6843 = vmul.f32 %v6191, 1.442695
        %v6844 = vpow.pop %v6843
        %v6845 = vmul.f32 %v6192, 1.442695
        %v6846 = vpow.pop %v6845
        %v6847 = vmul.f32 %v6193, 1.442695
        %v6848 = vpow.pop %v6847
        %v6849 = vmul.f32 %v6194, 1.442695
        %v6850 = vpow.pop %v6849
        %v6851 = vmul.f32 %v6195, 1.442695
        %v6852 = vpow.pop %v6851
        %v6853 = vmul.f32 %v6196, 1.442695
        %v6854 = vpow.pop %v6853
        %v6855 = vmul.f32 %v6197, 1.442695
        %v6856 = vpow.pop %v6855
        %v6857 = vmul.f32 %v6198, 1.442695
        %v6858 = vpow.pop %v6857
        %v6859 = vmul.f32 %v6199, 1.442695
        %v6860 = vpow.pop %v6859
        %v6861 = vmul.f32 %v6200, 1.442695
        %v6862 = vpow.pop %v6861
        %v6863 = vmul.f32 %v6201, 1.442695
        %v6864 = vpow.pop %v6863
        %v6865 = vmul.f32 %v6202, 1.442695
        %v6866 = vpow.pop %v6865
        %v6867 = vmul.f32 %v6203, 1.442695
        %v6868 = vpow.pop %v6867
        %v6869 = vmul.f32 %v6204, 1.442695
        %v6870 = vpow.pop %v6869
        %v6871 = vmul.f32 %v6205, 1.442695
        %v6872 = vpow.pop %v6871
        %v6873 = vmul.f32 %v6206, 1.442695
        %v6874 = vpow.pop %v6873
        %v6875 = vmul.f32 %v6207, 1.442695
        %v6876 = vpow.pop %v6875
        %v6877 = vmul.f32 %v6208, 1.442695
        %v6878 = vpow.pop %v6877
        %v6879 = vmul.f32 %v6209, 1.442695
        %v6880 = vpow.pop %v6879
        %v6881 = vmul.f32 %v6210, 1.442695
        %v6882 = vpow.pop %v6881
        %v6883 = vmul.f32 %v6211, 1.442695
        %v6884 = vpow.pop %v6883
        %v6885 = vmul.f32 %v6212, 1.442695
        %v6886 = vpow.pop %v6885
        %v6887 = vmul.f32 %v6213, 1.442695
        %v6888 = vpow.pop %v6887
        %v6889 = vmul.f32 %v6214, 1.442695
        %v6890 = vpow.pop %v6889
        %v6891 = vmul.f32 %v6215, 1.442695
        %v6892 = vpow.pop %v6891
        %v6893 = vmul.f32 %v6216, 1.442695
        %v6894 = vpow.pop %v6893
        %v6895 = vmul.f32 %v6217, 1.442695
        %v6896 = vpow.pop %v6895
        %v6897 = vmul.f32 %v6218, 1.442695
        %v6898 = vpow.pop %v6897
        %v6899 = vmul.f32 %v6219, 1.442695
        %v6900 = vpow.pop %v6899
        %v6901 = vmul.f32 %v6220, 1.442695
        %v6902 = vpow.pop %v6901
        %v6903 = vmul.f32 %v6221, 1.442695
        %v6904 = vpow.pop %v6903
        %v6905 = vmul.f32 %v6222, 1.442695
        %v6906 = vpow.pop %v6905
        %v6907 = vmul.f32 %v6223, 1.442695
        %v6908 = vpow.pop %v6907
        %v6909 = vmul.f32 %v6224, 1.442695
        %v6910 = vpow.pop %v6909
        %v6911 = vmul.f32 %v6225, 1.442695
        %v6912 = vpow.pop %v6911
        %v6913 = vmul.f32 %v6226, 1.442695
        %v6914 = vpow.pop %v6913
        %v6915 = vmul.f32 %v6227, 1.442695
        %v6916 = vpow.pop %v6915
        %v6917 = vmul.f32 %v6228, 1.442695
        %v6918 = vpow.pop %v6917
        %v6919 = vmul.f32 %v6229, 1.442695
        %v6920 = vpow.pop %v6919
        %v6921 = vmul.f32 %v6230, 1.442695
        %v6922 = vpow.pop %v6921
        %v6923 = vmul.f32 %v6231, 1.442695
        %v6924 = vpow.pop %v6923
        %v6925 = vmul.f32 %v6232, 1.442695
        %v6926 = vpow.pop %v6925
        %v6927 = vmul.f32 %v6233, 1.442695
        %v6928 = vpow.pop %v6927
        %v6929 = vmul.f32 %v6234, 1.442695
        %v6930 = vpow.pop %v6929
        %v6931 = vmul.f32 %v6235, 1.442695
        %v6932 = vpow.pop %v6931
        %v6933 = vmul.f32 %v6236, 1.442695
        %v6934 = vpow.pop %v6933
        %v6935 = vmul.f32 %v6237, 1.442695
        %v6936 = vpow.pop %v6935
        %v6937 = vmul.f32 %v6238, 1.442695
        %v6938 = vpow.pop %v6937
        %v6939 = vmul.f32 %v6239, 1.442695
        %v6940 = vpow.pop %v6939
        %v6941 = vmul.f32 %v6240, 1.442695
        %v6942 = vpow.pop %v6941
        %v6943 = vmul.f32 %v6241, 1.442695
        %v6944 = vpow.pop %v6943
        %v6945 = vmul.f32 %v6242, 1.442695
        %v6946 = vpow.pop %v6945
        %v6947 = vmul.f32 %v6243, 1.442695
        %v6948 = vpow.pop %v6947
        %v6949 = vmul.f32 %v6244, 1.442695
        %v6950 = vpow.pop %v6949
        %v6951 = vmul.f32 %v6245, 1.442695
        %v6952 = vpow.pop %v6951
        %v6953 = vmul.f32 %v6246, 1.442695
        %v6954 = vpow.pop %v6953
        %v6955 = vmul.f32 %v6247, 1.442695
        %v6956 = vpow.pop %v6955
        %v6957 = vmul.f32 %v6248, 1.442695
        %v6958 = vpow.pop %v6957
        %v6959 = vmul.f32 %v6249, 1.442695
        %v6960 = vpow.pop %v6959
        %v6961 = vmul.f32 %v6250, 1.442695
        %v6962 = vpow.pop %v6961
        %v6963 = vmul.f32 %v6251, 1.442695
        %v6964 = vpow.pop %v6963
        %v6965 = vmul.f32 %v6252, 1.442695
        %v6966 = vpow.pop %v6965
        %v6967 = vmul.f32 %v6253, 1.442695
        %v6968 = vpow.pop %v6967
        %v6969 = vmul.f32 %v6254, 1.442695
        %v6970 = vpow.pop %v6969
        %v6971 = vmul.f32 %v6255, 1.442695
        %v6972 = vpow.pop %v6971
        %v6973 = vmul.f32 %v6256, 1.442695
        %v6974 = vpow.pop %v6973
        %v6975 = vmul.f32 %v6257, 1.442695
        %v6976 = vpow.pop %v6975
        %v6977 = vmul.f32 %v6258, 1.442695
        %v6978 = vpow.pop %v6977
        %v6979 = vmul.f32 %v6259, 1.442695
        %v6980 = vpow.pop %v6979
        %v6981 = vmul.f32 %v6260, 1.442695
        %v6982 = vpow.pop %v6981
        %v6983 = vmul.f32 %v6261, 1.442695
        %v6984 = vpow.pop %v6983
        %v6985 = vmul.f32 %v6262, 1.442695
        %v6986 = vpow.pop %v6985
        %v6987 = vmul.f32 %v6263, 1.442695
        %v6988 = vpow.pop %v6987
        %v6989 = vmul.f32 %v6264, 1.442695
        %v6990 = vpow.pop %v6989
        %v6991 = vmul.f32 %v6265, 1.442695
        %v6992 = vpow.pop %v6991
        %v6993 = vmul.f32 %v6266, 1.442695
        %v6994 = vpow.pop %v6993
        %v6995 = vmul.f32 %v6267, 1.442695
        %v6996 = vpow.pop %v6995
        %v6997 = vmul.f32 %v6268, 1.442695
        %v6998 = vpow.pop %v6997
        %v6999 = vmul.f32 %v6269, 1.442695
        %v7000 = vpow.pop %v6999
        %v7001 = vmul.f32 %v6270, 1.442695
        %v7002 = vpow.pop %v7001
        %v7003 = vmul.f32 %v6271, 1.442695
        %v7004 = vpow.pop %v7003
        %v7005 = vmul.f32 %v6272, 1.442695
        %v7006 = vpow.pop %v7005
        %v7007 = vmul.f32 %v6273, 1.442695
        %v7008 = vpow.pop %v7007
        %v7009 = vmul.f32 %v6274, 1.442695
        %v7010 = vpow.pop %v7009
        %v7011 = vmul.f32 %v6275, 1.442695
        %v7012 = vpow.pop %v7011
        %v7013 = vmul.f32 %v6276, 1.442695
        %v7014 = vpow.pop %v7013
        %v7015 = vmul.f32 %v6277, 1.442695
        %v7016 = vpow.pop %v7015
        %v7017 = vmul.f32 %v6278, 1.442695
        %v7018 = vpow.pop %v7017
        %v7019 = vmul.f32 %v6279, 1.442695
        %v7020 = vpow.pop %v7019
        %v7021 = vmul.f32 %v6280, 1.442695
        %v7022 = vpow.pop %v7021
        %v7023 = vmul.f32 %v6281, 1.442695
        %v7024 = vpow.pop %v7023
        %v7025 = vmul.f32 %v6282, 1.442695
        %v7026 = vpow.pop %v7025
        %v7027 = vmul.f32 %v6283, 1.442695
        %v7028 = vpow.pop %v7027
        %v7029 = vmul.f32 %v6284, 1.442695
        %v7030 = vpow.pop %v7029
        %v7031 = vmul.f32 %v6285, 1.442695
        %v7032 = vpow.pop %v7031
        %v7033 = vmul.f32 %v6286, 1.442695
        %v7034 = vpow.pop %v7033
        %v7035 = vmul.f32 %v6287, 1.442695
        %v7036 = vpow.pop %v7035
        %v7037 = vmul.f32 %v6288, 1.442695
        %v7038 = vpow.pop %v7037
        %v7039 = vmul.f32 %v6289, 1.442695
        %v7040 = vpow.pop %v7039
        %v7041 = vmul.f32 %v6290, 1.442695
        %v7042 = vpow.pop %v7041
        %v7043 = vmul.f32 %v6291, 1.442695
        %v7044 = vpow.pop %v7043
        %v7045 = vmul.f32 %v6292, 1.442695
        %v7046 = vpow.pop %v7045
        %v7047 = vmul.f32 %v6293, 1.442695
        %v7048 = vpow.pop %v7047
        %v7049 = vmul.f32 %v6294, 1.442695
        %v7050 = vpow.pop %v7049
        %v7051 = vmul.f32 %v6295, 1.442695
        %v7052 = vpow.pop %v7051
        %v7053 = vmul.f32 %v6296, 1.442695
        %v7054 = vpow.pop %v7053
        %v7055 = vmul.f32 %v6297, 1.442695
        %v7056 = vpow.pop %v7055
        %v7057 = vmul.f32 %v6298, 1.442695
        %v7058 = vpow.pop %v7057
        %v7059 = vmul.f32 %v6299, 1.442695
        %v7060 = vpow.pop %v7059
        %v7061 = vmul.f32 %v6300, 1.442695
        %v7062 = vpow.pop %v7061
        %v7063 = vmul.f32 %v6301, 1.442695
        %v7064 = vpow.pop %v7063
        %v7065 = vmul.f32 %v6302, 1.442695
        %v7066 = vpow.pop %v7065
        %v7067 = vmul.f32 %v6303, 1.442695
        %v7068 = vpow.pop %v7067
        %v7069 = vmul.f32 %v6304, 1.442695
        %v7070 = vpow.pop %v7069
        %v7071 = vmul.f32 %v6305, 1.442695
        %v7072 = vpow.pop %v7071
        %v7073 = vmul.f32 %v6306, 1.442695
        %v7074 = vpow.pop %v7073
        %v7075 = vmul.f32 %v6307, 1.442695
        %v7076 = vpow.pop %v7075
        %v7077 = vmul.f32 %v6308, 1.442695
        %v7078 = vpow.pop %v7077
        %v7079 = vmul.f32 %v6309, 1.442695
        %v7080 = vpow.pop %v7079
        %v7081 = vmul.f32 %v6310, 1.442695
        %v7082 = vpow.pop %v7081
        %v7083 = vmul.f32 %v6311, 1.442695
        %v7084 = vpow.pop %v7083
        %v7085 = vmul.f32 %v6312, 1.442695
        %v7086 = vpow.pop %v7085
        %v7087 = vmul.f32 %v6313, 1.442695
        %v7088 = vpow.pop %v7087
        %v7089 = vmul.f32 %v6314, 1.442695
        %v7090 = vpow.pop %v7089
        %v7091 = vmul.f32 %v6315, 1.442695
        %v7092 = vpow.pop %v7091
        %v7093 = vmul.f32 %v6316, 1.442695
        %v7094 = vpow.pop %v7093
        %v7095 = vmul.f32 %v6317, 1.442695
        %v7096 = vpow.pop %v7095
        %v7097 = vmul.f32 %v6318, 1.442695
        %v7098 = vpow.pop %v7097
        %v7099 = vmul.f32 %v6319, 1.442695
        %v7100 = vpow.pop %v7099
        %v7101 = vmul.f32 %v6320, 1.442695
        %v7102 = vpow.pop %v7101
        %v7103 = vmul.f32 %v6321, 1.442695
        %v7104 = vpow.pop %v7103
        %v7105 = vmul.f32 %v6322, 1.442695
        %v7106 = vpow.pop %v7105
        %v7107 = vmul.f32 %v6323, 1.442695
        %v7108 = vpow.pop %v7107
        %v7109 = vmul.f32 %v6324, 1.442695
        %v7110 = vpow.pop %v7109
        %v7111 = vmul.f32 %v6325, 1.442695
        %v7112 = vpow.pop %v7111
        %v7113 = vmul.f32 %v6326, 1.442695
        %v7114 = vpow.pop %v7113
        %v7115 = vmul.f32 %v6327, 1.442695
        %v7116 = vpow.pop %v7115
        %v7117 = vmul.f32 %v6328, 1.442695
        %v7118 = vpow.pop %v7117
        %v7119 = vmul.f32 %v6329, 1.442695
        %v7120 = vpow.pop %v7119
        %v7121 = vmul.f32 %v6330, 1.442695
        %v7122 = vpow.pop %v7121
        %v7123 = vmul.f32 %v6331, 1.442695
        %v7124 = vpow.pop %v7123
        %v7125 = vmul.f32 %v6332, 1.442695
        %v7126 = vpow.pop %v7125
        %v7127 = vmul.f32 %v6333, 1.442695
        %v7128 = vpow.pop %v7127
        %v7129 = vmul.f32 %v6334, 1.442695
        %v7130 = vpow.pop %v7129
        %v7131 = vmul.f32 %v6335, 1.442695
        %v7132 = vpow.pop %v7131
        %v7133 = vmul.f32 %v6336, 1.442695
        %v7134 = vpow.pop %v7133
        %v7135 = vmul.f32 %v6337, 1.442695
        %v7136 = vpow.pop %v7135
        %v7137 = vmul.f32 %v6338, 1.442695
        %v7138 = vpow.pop %v7137
        %v7139 = vmul.f32 %v6339, 1.442695
        %v7140 = vpow.pop %v7139
        %v7141 = vmul.f32 %v6340, 1.442695
        %v7142 = vpow.pop %v7141
        %v7143 = vmul.f32 %v6341, 1.442695
        %v7144 = vpow.pop %v7143
        %v7145 = vmul.f32 %v6342, 1.442695
        %v7146 = vpow.pop %v7145
        %v7147 = vmul.f32 %v6343, 1.442695
        %v7148 = vpow.pop %v7147
        %v7149 = vmul.f32 %v6344, 1.442695
        %v7150 = vpow.pop %v7149
        %v7151 = vmul.f32 %v6345, 1.442695
        %v7152 = vpow.pop %v7151
        %v7153 = vmul.f32 %v6346, 1.442695
        %v7154 = vpow.pop %v7153
        %v7155 = vmul.f32 %v6347, 1.442695
        %v7156 = vpow.pop %v7155
        %v7157 = vmul.f32 %v6348, 1.442695
        %v7158 = vpow.pop %v7157
        %v7159 = vmul.f32 %v6349, 1.442695
        %v7160 = vpow.pop %v7159
        %v7161 = vmul.f32 %v6350, 1.442695
        %v7162 = vpow.pop %v7161
        %v7163 = vmul.f32 %v6351, 1.442695
        %v7164 = vpow.pop %v7163
        %v7165 = vmul.f32 %v6352, 1.442695
        %v7166 = vpow.pop %v7165
        %v7167 = vmul.f32 %v6353, 1.442695
        %v7168 = vpow.pop %v7167
        %v7169 = vmul.f32 %v6354, 1.442695
        %v7170 = vpow.pop %v7169
        %v7171 = vmul.f32 %v6355, 1.442695
        %v7172 = vpow.pop %v7171
        %v7173 = vmul.f32 %v6356, 1.442695
        %v7174 = vpow.pop %v7173
        %v7175 = vmul.f32 %v6357, 1.442695
        %v7176 = vpow.pop %v7175
        %v7177 = vmul.f32 %v6358, 1.442695
        %v7178 = vpow.pop %v7177
        %v7179 = vmul.f32 %v6359, 1.442695
        %v7180 = vpow.pop %v7179
        %v7181 = vmul.f32 %v6360, 1.442695
        %v7182 = vpow.pop %v7181
        %v7183 = vmul.f32 %v6361, 1.442695
        %v7184 = vpow.pop %v7183
        %v7185 = vmul.f32 %v6362, 1.442695
        %v7186 = vpow.pop %v7185
        %v7187 = vmul.f32 %v6363, 1.442695
        %v7188 = vpow.pop %v7187
        %v7189 = vmul.f32 %v6364, 1.442695
        %v7190 = vpow.pop %v7189
        %v7191 = vmul.f32 %v6365, 1.442695
        %v7192 = vpow.pop %v7191
        %v7193 = vmul.f32 %v6366, 1.442695
        %v7194 = vpow.pop %v7193
        %v7195 = vmul.f32 %v6367, 1.442695
        %v7196 = vpow.pop %v7195
        %v7197 = vmul.f32 %v6368, 1.442695
        %v7198 = vpow.pop %v7197
        %v7199 = vmul.f32 %v6369, 1.442695
        %v7200 = vpow.pop %v7199
        %v7201 = vmul.f32 %v6370, 1.442695
        %v7202 = vpow.pop %v7201
        %v7203 = vmul.f32 %v6371, 1.442695
        %v7204 = vpow.pop %v7203
        %v7205 = vmul.f32 %v6372, 1.442695
        %v7206 = vpow.pop %v7205
        %v7207 = vmul.f32 %v6373, 1.442695
        %v7208 = vpow.pop %v7207
        %v7209 = vmul.f32 %v6374, 1.442695
        %v7210 = vpow.pop %v7209
        %v7211 = vmul.f32 %v6375, 1.442695
        %v7212 = vpow.pop %v7211
        %v7213 = vmul.f32 %v6376, 1.442695
        %v7214 = vpow.pop %v7213
        %v7215 = vmul.f32 %v6377, 1.442695
        %v7216 = vpow.pop %v7215
        %v7217 = vmul.f32 %v6378, 1.442695
        %v7218 = vpow.pop %v7217
        %v7219 = vmul.f32 %v6379, 1.442695
        %v7220 = vpow.pop %v7219
        %v7221 = vmul.f32 %v6380, 1.442695
        %v7222 = vpow.pop %v7221
        %v7223 = vmul.f32 %v6381, 1.442695
        %v7224 = vpow.pop %v7223
        %v7225 = vmul.f32 %v6382, 1.442695
        %v7226 = vpow.pop %v7225
        %v7227 = vmul.f32 %v6383, 1.442695
        %v7228 = vpow.pop %v7227
        %v7229 = vmul.f32 %v6384, 1.442695
        %v7230 = vpow.pop %v7229
        %v7231 = vmul.f32 %v6385, 1.442695
        %v7232 = vpow.pop %v7231
        %v7233 = vmul.f32 %v6386, 1.442695
        %v7234 = vpow.pop %v7233
        %v7235 = vmul.f32 %v6387, 1.442695
        %v7236 = vpow.pop %v7235
        %v7237 = vmul.f32 %v6388, 1.442695
        %v7238 = vpow.pop %v7237
        %v7239 = vmul.f32 %v6389, 1.442695
        %v7240 = vpow.pop %v7239
        %v7241 = vmul.f32 %v6390, 1.442695
        %v7242 = vpow.pop %v7241
        %v7243 = vmul.f32 %v6391, 1.442695
        %v7244 = vpow.pop %v7243
        %v7245 = vmul.f32 %v6392, 1.442695
        %v7246 = vpow.pop %v7245
        %v7247 = vmul.f32 %v6393, 1.442695
        %v7248 = vpow.pop %v7247
        %v7249 = vmul.f32 %v6394, 1.442695
        %v7250 = vpow.pop %v7249
        %v7251 = vmul.f32 %v6395, 1.442695
        %v7252 = vpow.pop %v7251
        %v7253 = vmul.f32 %v6396, 1.442695
        %v7254 = vpow.pop %v7253
        %v7255 = vmul.f32 %v6397, 1.442695
        %v7256 = vpow.pop %v7255
        %v7257 = vmul.f32 %v6398, 1.442695
        %v7258 = vpow.pop %v7257
        %v7259 = vmul.f32 %v6399, 1.442695
        %v7260 = vpow.pop %v7259
        %v7261 = vmul.f32 %v6400, 1.442695
        %v7262 = vpow.pop %v7261
        %v7263 = vmul.f32 %v6401, 1.442695
        %v7264 = vpow.pop %v7263
        %v7265 = vmul.f32 %v6402, 1.442695
        %v7266 = vpow.pop %v7265
        %v7267 = vmul.f32 %v6403, 1.442695
        %v7268 = vpow.pop %v7267
        %v7269 = vmul.f32 %v6404, 1.442695
        %v7270 = vpow.pop %v7269
        %v7271 = vmul.f32 %v6405, 1.442695
        %v7272 = vpow.pop %v7271
        %v7273 = vmul.f32 %v6406, 1.442695
        %v7274 = vpow.pop %v7273
        %v7275 = vmul.f32 %v6407, 1.442695
        %v7276 = vpow.pop %v7275
        %v7277 = vmul.f32 %v6408, 1.442695
        %v7278 = vpow.pop %v7277
        %v7279 = vmul.f32 %v6409, 1.442695
        %v7280 = vpow.pop %v7279
        %v7281 = vmul.f32 %v6410, 1.442695
        %v7282 = vpow.pop %v7281
        %v7283 = vmul.f32 %v6411, 1.442695
        %v7284 = vpow.pop %v7283
        %v7285 = vmul.f32 %v6412, 1.442695
        %v7286 = vpow.pop %v7285
        %v7287 = vmul.f32 %v6413, 1.442695
        %v7288 = vpow.pop %v7287
        %v7289 = vmul.f32 %v6414, 1.442695
        %v7290 = vpow.pop %v7289
        %v7291 = vmul.f32 %v6415, 1.442695
        %v7292 = vpow.pop %v7291
        %v7293 = vmul.f32 %v6416, 1.442695
        %v7294 = vpow.pop %v7293
        %v7295 = vmul.f32 %v6417, 1.442695
        %v7296 = vpow.pop %v7295
        %v7297 = vmul.f32 %v6418, 1.442695
        %v7298 = vpow.pop %v7297
        %v7299 = vmul.f32 %v6419, 1.442695
        %v7300 = vpow.pop %v7299
        %v7301 = vmul.f32 %v6420, 1.442695
        %v7302 = vpow.pop %v7301
        %v7303 = vmul.f32 %v6421, 1.442695
        %v7304 = vpow.pop %v7303
        %v7305 = vmul.f32 %v6422, 1.442695
        %v7306 = vpow.pop %v7305
        %v7307 = vmul.f32 %v6423, 1.442695
        %v7308 = vpow.pop %v7307
        %v7309 = vmul.f32 %v6424, 1.442695
        %v7310 = vpow.pop %v7309
        %v7311 = vmul.f32 %v6425, 1.442695
        %v7312 = vpow.pop %v7311
        %v7313 = vmul.f32 %v6426, 1.442695
        %v7314 = vpow.pop %v7313
        %v7315 = vmul.f32 %v6427, 1.442695
        %v7316 = vpow.pop %v7315
        %v7317 = vmul.f32 %v6428, 1.442695
        %v7318 = vpow.pop %v7317
        %v7319 = vmul.f32 %v6429, 1.442695
        %v7320 = vpow.pop %v7319
        %v7321 = vmul.f32 %v6430, 1.442695
        %v7322 = vpow.pop %v7321
        %v7323 = vmul.f32 %v6431, 1.442695
        %v7324 = vpow.pop %v7323
        %v7325 = vmul.f32 %v6432, 1.442695
        %v7326 = vpow.pop %v7325
        %v7327 = vmul.f32 %v6433, 1.442695
        %v7328 = vpow.pop %v7327
        %v7329 = vmul.f32 %v6434, 1.442695
        %v7330 = vpow.pop %v7329
        %v7331 = vadd.f32 %v6436, 1.0
        %v7332 = vadd.f32 %v6438, 1.0
        %v7333 = vadd.f32 %v6440, 1.0
        %v7334 = vadd.f32 %v6442, 1.0
        %v7335 = vadd.f32 %v6444, 1.0
        %v7336 = vadd.f32 %v6446, 1.0
        %v7337 = vadd.f32 %v6448, 1.0
        %v7338 = vadd.f32 %v6450, 1.0
        %v7339 = vadd.f32 %v6452, 1.0
        %v7340 = vadd.f32 %v6454, 1.0
        %v7341 = vadd.f32 %v6456, 1.0
        %v7342 = vadd.f32 %v6458, 1.0
        %v7343 = vadd.f32 %v6460, 1.0
        %v7344 = vadd.f32 %v6462, 1.0
        %v7345 = vadd.f32 %v6464, 1.0
        %v7346 = vadd.f32 %v6466, 1.0
        %v7347 = vadd.f32 %v6468, 1.0
        %v7348 = vadd.f32 %v6470, 1.0
        %v7349 = vadd.f32 %v6472, 1.0
        %v7350 = vadd.f32 %v6474, 1.0
        %v7351 = vadd.f32 %v6476, 1.0
        %v7352 = vadd.f32 %v6478, 1.0
        %v7353 = vadd.f32 %v6480, 1.0
        %v7354 = vadd.f32 %v6482, 1.0
        %v7355 = vadd.f32 %v6484, 1.0
        %v7356 = vadd.f32 %v6486, 1.0
        %v7357 = vadd.f32 %v6488, 1.0
        %v7358 = vadd.f32 %v6490, 1.0
        %v7359 = vadd.f32 %v6492, 1.0
        %v7360 = vadd.f32 %v6494, 1.0
        %v7361 = vadd.f32 %v6496, 1.0
        %v7362 = vadd.f32 %v6498, 1.0
        %v7363 = vadd.f32 %v6500, 1.0
        %v7364 = vadd.f32 %v6502, 1.0
        %v7365 = vadd.f32 %v6504, 1.0
        %v7366 = vadd.f32 %v6506, 1.0
        %v7367 = vadd.f32 %v6508, 1.0
        %v7368 = vadd.f32 %v6510, 1.0
        %v7369 = vadd.f32 %v6512, 1.0
        %v7370 = vadd.f32 %v6514, 1.0
        %v7371 = vadd.f32 %v6516, 1.0
        %v7372 = vadd.f32 %v6518, 1.0
        %v7373 = vadd.f32 %v6520, 1.0
        %v7374 = vadd.f32 %v6522, 1.0
        %v7375 = vadd.f32 %v6524, 1.0
        %v7376 = vadd.f32 %v6526, 1.0
        %v7377 = vadd.f32 %v6528, 1.0
        %v7378 = vadd.f32 %v6530, 1.0
        %v7379 = vadd.f32 %v6532, 1.0
        %v7380 = vadd.f32 %v6534, 1.0
        %v7381 = vadd.f32 %v6536, 1.0
        %v7382 = vadd.f32 %v6538, 1.0
        %v7383 = vadd.f32 %v6540, 1.0
        %v7384 = vadd.f32 %v6542, 1.0
        %v7385 = vadd.f32 %v6544, 1.0
        %v7386 = vadd.f32 %v6546, 1.0
        %v7387 = vadd.f32 %v6548, 1.0
        %v7388 = vadd.f32 %v6550, 1.0
        %v7389 = vadd.f32 %v6552, 1.0
        %v7390 = vadd.f32 %v6554, 1.0
        %v7391 = vadd.f32 %v6556, 1.0
        %v7392 = vadd.f32 %v6558, 1.0
        %v7393 = vadd.f32 %v6560, 1.0
        %v7394 = vadd.f32 %v6562, 1.0
        %v7395 = vadd.f32 %v6564, 1.0
        %v7396 = vadd.f32 %v6566, 1.0
        %v7397 = vadd.f32 %v6568, 1.0
        %v7398 = vadd.f32 %v6570, 1.0
        %v7399 = vadd.f32 %v6572, 1.0
        %v7400 = vadd.f32 %v6574, 1.0
        %v7401 = vadd.f32 %v6576, 1.0
        %v7402 = vadd.f32 %v6578, 1.0
        %v7403 = vadd.f32 %v6580, 1.0
        %v7404 = vadd.f32 %v6582, 1.0
        %v7405 = vadd.f32 %v6584, 1.0
        %v7406 = vadd.f32 %v6586, 1.0
        %v7407 = vadd.f32 %v6588, 1.0
        %v7408 = vadd.f32 %v6590, 1.0
        %v7409 = vadd.f32 %v6592, 1.0
        %v7410 = vadd.f32 %v6594, 1.0
        %v7411 = vadd.f32 %v6596, 1.0
        %v7412 = vadd.f32 %v6598, 1.0
        %v7413 = vadd.f32 %v6600, 1.0
        %v7414 = vadd.f32 %v6602, 1.0
        %v7415 = vadd.f32 %v6604, 1.0
        %v7416 = vadd.f32 %v6606, 1.0
        %v7417 = vadd.f32 %v6608, 1.0
        %v7418 = vadd.f32 %v6610, 1.0
        %v7419 = vadd.f32 %v6612, 1.0
        %v7420 = vadd.f32 %v6614, 1.0
        %v7421 = vadd.f32 %v6616, 1.0
        %v7422 = vadd.f32 %v6618, 1.0
        %v7423 = vadd.f32 %v6620, 1.0
        %v7424 = vadd.f32 %v6622, 1.0
        %v7425 = vadd.f32 %v6624, 1.0
        %v7426 = vadd.f32 %v6626, 1.0
        %v7427 = vadd.f32 %v6628, 1.0
        %v7428 = vadd.f32 %v6630, 1.0
        %v7429 = vadd.f32 %v6632, 1.0
        %v7430 = vadd.f32 %v6634, 1.0
        %v7431 = vadd.f32 %v6636, 1.0
        %v7432 = vadd.f32 %v6638, 1.0
        %v7433 = vadd.f32 %v6640, 1.0
        %v7434 = vadd.f32 %v6642, 1.0
        %v7435 = vadd.f32 %v6644, 1.0
        %v7436 = vadd.f32 %v6646, 1.0
        %v7437 = vadd.f32 %v6648, 1.0
        %v7438 = vadd.f32 %v6650, 1.0
        %v7439 = vadd.f32 %v6652, 1.0
        %v7440 = vadd.f32 %v6654, 1.0
        %v7441 = vadd.f32 %v6656, 1.0
        %v7442 = vadd.f32 %v6658, 1.0
        %v7443 = vadd.f32 %v6660, 1.0
        %v7444 = vadd.f32 %v6662, 1.0
        %v7445 = vadd.f32 %v6664, 1.0
        %v7446 = vadd.f32 %v6666, 1.0
        %v7447 = vadd.f32 %v6668, 1.0
        %v7448 = vadd.f32 %v6670, 1.0
        %v7449 = vadd.f32 %v6672, 1.0
        %v7450 = vadd.f32 %v6674, 1.0
        %v7451 = vadd.f32 %v6676, 1.0
        %v7452 = vadd.f32 %v6678, 1.0
        %v7453 = vadd.f32 %v6680, 1.0
        %v7454 = vadd.f32 %v6682, 1.0
        %v7455 = vadd.f32 %v6684, 1.0
        %v7456 = vadd.f32 %v6686, 1.0
        %v7457 = vadd.f32 %v6688, 1.0
        %v7458 = vadd.f32 %v6690, 1.0
        %v7459 = vadd.f32 %v6692, 1.0
        %v7460 = vadd.f32 %v6694, 1.0
        %v7461 = vadd.f32 %v6696, 1.0
        %v7462 = vadd.f32 %v6698, 1.0
        %v7463 = vadd.f32 %v6700, 1.0
        %v7464 = vadd.f32 %v6702, 1.0
        %v7465 = vadd.f32 %v6704, 1.0
        %v7466 = vadd.f32 %v6706, 1.0
        %v7467 = vadd.f32 %v6708, 1.0
        %v7468 = vadd.f32 %v6710, 1.0
        %v7469 = vadd.f32 %v6712, 1.0
        %v7470 = vadd.f32 %v6714, 1.0
        %v7471 = vadd.f32 %v6716, 1.0
        %v7472 = vadd.f32 %v6718, 1.0
        %v7473 = vadd.f32 %v6720, 1.0
        %v7474 = vadd.f32 %v6722, 1.0
        %v7475 = vadd.f32 %v6724, 1.0
        %v7476 = vadd.f32 %v6726, 1.0
        %v7477 = vadd.f32 %v6728, 1.0
        %v7478 = vadd.f32 %v6730, 1.0
        %v7479 = vadd.f32 %v6732, 1.0
        %v7480 = vadd.f32 %v6734, 1.0
        %v7481 = vadd.f32 %v6736, 1.0
        %v7482 = vadd.f32 %v6738, 1.0
        %v7483 = vadd.f32 %v6740, 1.0
        %v7484 = vadd.f32 %v6742, 1.0
        %v7485 = vadd.f32 %v6744, 1.0
        %v7486 = vadd.f32 %v6746, 1.0
        %v7487 = vadd.f32 %v6748, 1.0
        %v7488 = vadd.f32 %v6750, 1.0
        %v7489 = vadd.f32 %v6752, 1.0
        %v7490 = vadd.f32 %v6754, 1.0
        %v7491 = vadd.f32 %v6756, 1.0
        %v7492 = vadd.f32 %v6758, 1.0
        %v7493 = vadd.f32 %v6760, 1.0
        %v7494 = vadd.f32 %v6762, 1.0
        %v7495 = vadd.f32 %v6764, 1.0
        %v7496 = vadd.f32 %v6766, 1.0
        %v7497 = vadd.f32 %v6768, 1.0
        %v7498 = vadd.f32 %v6770, 1.0
        %v7499 = vadd.f32 %v6772, 1.0
        %v7500 = vadd.f32 %v6774, 1.0
        %v7501 = vadd.f32 %v6776, 1.0
        %v7502 = vadd.f32 %v6778, 1.0
        %v7503 = vadd.f32 %v6780, 1.0
        %v7504 = vadd.f32 %v6782, 1.0
        %v7505 = vadd.f32 %v6784, 1.0
        %v7506 = vadd.f32 %v6786, 1.0
        %v7507 = vadd.f32 %v6788, 1.0
        %v7508 = vadd.f32 %v6790, 1.0
        %v7509 = vadd.f32 %v6792, 1.0
        %v7510 = vadd.f32 %v6794, 1.0
        %v7511 = vadd.f32 %v6796, 1.0
        %v7512 = vadd.f32 %v6798, 1.0
        %v7513 = vadd.f32 %v6800, 1.0
        %v7514 = vadd.f32 %v6802, 1.0
        %v7515 = vadd.f32 %v6804, 1.0
        %v7516 = vadd.f32 %v6806, 1.0
        %v7517 = vadd.f32 %v6808, 1.0
        %v7518 = vadd.f32 %v6810, 1.0
        %v7519 = vadd.f32 %v6812, 1.0
        %v7520 = vadd.f32 %v6814, 1.0
        %v7521 = vadd.f32 %v6816, 1.0
        %v7522 = vadd.f32 %v6818, 1.0
        %v7523 = vadd.f32 %v6820, 1.0
        %v7524 = vadd.f32 %v6822, 1.0
        %v7525 = vadd.f32 %v6824, 1.0
        %v7526 = vadd.f32 %v6826, 1.0
        %v7527 = vadd.f32 %v6828, 1.0
        %v7528 = vadd.f32 %v6830, 1.0
        %v7529 = vadd.f32 %v6832, 1.0
        %v7530 = vadd.f32 %v6834, 1.0
        %v7531 = vadd.f32 %v6836, 1.0
        %v7532 = vadd.f32 %v6838, 1.0
        %v7533 = vadd.f32 %v6840, 1.0
        %v7534 = vadd.f32 %v6842, 1.0
        %v7535 = vadd.f32 %v6844, 1.0
        %v7536 = vadd.f32 %v6846, 1.0
        %v7537 = vadd.f32 %v6848, 1.0
        %v7538 = vadd.f32 %v6850, 1.0
        %v7539 = vadd.f32 %v6852, 1.0
        %v7540 = vadd.f32 %v6854, 1.0
        %v7541 = vadd.f32 %v6856, 1.0
        %v7542 = vadd.f32 %v6858, 1.0
        %v7543 = vadd.f32 %v6860, 1.0
        %v7544 = vadd.f32 %v6862, 1.0
        %v7545 = vadd.f32 %v6864, 1.0
        %v7546 = vadd.f32 %v6866, 1.0
        %v7547 = vadd.f32 %v6868, 1.0
        %v7548 = vadd.f32 %v6870, 1.0
        %v7549 = vadd.f32 %v6872, 1.0
        %v7550 = vadd.f32 %v6874, 1.0
        %v7551 = vadd.f32 %v6876, 1.0
        %v7552 = vadd.f32 %v6878, 1.0
        %v7553 = vadd.f32 %v6880, 1.0
        %v7554 = vadd.f32 %v6882, 1.0
        %v7555 = vadd.f32 %v6884, 1.0
        %v7556 = vadd.f32 %v6886, 1.0
        %v7557 = vadd.f32 %v6888, 1.0
        %v7558 = vadd.f32 %v6890, 1.0
        %v7559 = vadd.f32 %v6892, 1.0
        %v7560 = vadd.f32 %v6894, 1.0
        %v7561 = vadd.f32 %v6896, 1.0
        %v7562 = vadd.f32 %v6898, 1.0
        %v7563 = vadd.f32 %v6900, 1.0
        %v7564 = vadd.f32 %v6902, 1.0
        %v7565 = vadd.f32 %v6904, 1.0
        %v7566 = vadd.f32 %v6906, 1.0
        %v7567 = vadd.f32 %v6908, 1.0
        %v7568 = vadd.f32 %v6910, 1.0
        %v7569 = vadd.f32 %v6912, 1.0
        %v7570 = vadd.f32 %v6914, 1.0
        %v7571 = vadd.f32 %v6916, 1.0
        %v7572 = vadd.f32 %v6918, 1.0
        %v7573 = vadd.f32 %v6920, 1.0
        %v7574 = vadd.f32 %v6922, 1.0
        %v7575 = vadd.f32 %v6924, 1.0
        %v7576 = vadd.f32 %v6926, 1.0
        %v7577 = vadd.f32 %v6928, 1.0
        %v7578 = vadd.f32 %v6930, 1.0
        %v7579 = vadd.f32 %v6932, 1.0
        %v7580 = vadd.f32 %v6934, 1.0
        %v7581 = vadd.f32 %v6936, 1.0
        %v7582 = vadd.f32 %v6938, 1.0
        %v7583 = vadd.f32 %v6940, 1.0
        %v7584 = vadd.f32 %v6942, 1.0
        %v7585 = vadd.f32 %v6944, 1.0
        %v7586 = vadd.f32 %v6946, 1.0
        %v7587 = vadd.f32 %v6948, 1.0
        %v7588 = vadd.f32 %v6950, 1.0
        %v7589 = vadd.f32 %v6952, 1.0
        %v7590 = vadd.f32 %v6954, 1.0
        %v7591 = vadd.f32 %v6956, 1.0
        %v7592 = vadd.f32 %v6958, 1.0
        %v7593 = vadd.f32 %v6960, 1.0
        %v7594 = vadd.f32 %v6962, 1.0
        %v7595 = vadd.f32 %v6964, 1.0
        %v7596 = vadd.f32 %v6966, 1.0
        %v7597 = vadd.f32 %v6968, 1.0
        %v7598 = vadd.f32 %v6970, 1.0
        %v7599 = vadd.f32 %v6972, 1.0
        %v7600 = vadd.f32 %v6974, 1.0
        %v7601 = vadd.f32 %v6976, 1.0
        %v7602 = vadd.f32 %v6978, 1.0
        %v7603 = vadd.f32 %v6980, 1.0
        %v7604 = vadd.f32 %v6982, 1.0
        %v7605 = vadd.f32 %v6984, 1.0
        %v7606 = vadd.f32 %v6986, 1.0
        %v7607 = vadd.f32 %v6988, 1.0
        %v7608 = vadd.f32 %v6990, 1.0
        %v7609 = vadd.f32 %v6992, 1.0
        %v7610 = vadd.f32 %v6994, 1.0
        %v7611 = vadd.f32 %v6996, 1.0
        %v7612 = vadd.f32 %v6998, 1.0
        %v7613 = vadd.f32 %v7000, 1.0
        %v7614 = vadd.f32 %v7002, 1.0
        %v7615 = vadd.f32 %v7004, 1.0
        %v7616 = vadd.f32 %v7006, 1.0
        %v7617 = vadd.f32 %v7008, 1.0
        %v7618 = vadd.f32 %v7010, 1.0
        %v7619 = vadd.f32 %v7012, 1.0
        %v7620 = vadd.f32 %v7014, 1.0
        %v7621 = vadd.f32 %v7016, 1.0
        %v7622 = vadd.f32 %v7018, 1.0
        %v7623 = vadd.f32 %v7020, 1.0
        %v7624 = vadd.f32 %v7022, 1.0
        %v7625 = vadd.f32 %v7024, 1.0
        %v7626 = vadd.f32 %v7026, 1.0
        %v7627 = vadd.f32 %v7028, 1.0
        %v7628 = vadd.f32 %v7030, 1.0
        %v7629 = vadd.f32 %v7032, 1.0
        %v7630 = vadd.f32 %v7034, 1.0
        %v7631 = vadd.f32 %v7036, 1.0
        %v7632 = vadd.f32 %v7038, 1.0
        %v7633 = vadd.f32 %v7040, 1.0
        %v7634 = vadd.f32 %v7042, 1.0
        %v7635 = vadd.f32 %v7044, 1.0
        %v7636 = vadd.f32 %v7046, 1.0
        %v7637 = vadd.f32 %v7048, 1.0
        %v7638 = vadd.f32 %v7050, 1.0
        %v7639 = vadd.f32 %v7052, 1.0
        %v7640 = vadd.f32 %v7054, 1.0
        %v7641 = vadd.f32 %v7056, 1.0
        %v7642 = vadd.f32 %v7058, 1.0
        %v7643 = vadd.f32 %v7060, 1.0
        %v7644 = vadd.f32 %v7062, 1.0
        %v7645 = vadd.f32 %v7064, 1.0
        %v7646 = vadd.f32 %v7066, 1.0
        %v7647 = vadd.f32 %v7068, 1.0
        %v7648 = vadd.f32 %v7070, 1.0
        %v7649 = vadd.f32 %v7072, 1.0
        %v7650 = vadd.f32 %v7074, 1.0
        %v7651 = vadd.f32 %v7076, 1.0
        %v7652 = vadd.f32 %v7078, 1.0
        %v7653 = vadd.f32 %v7080, 1.0
        %v7654 = vadd.f32 %v7082, 1.0
        %v7655 = vadd.f32 %v7084, 1.0
        %v7656 = vadd.f32 %v7086, 1.0
        %v7657 = vadd.f32 %v7088, 1.0
        %v7658 = vadd.f32 %v7090, 1.0
        %v7659 = vadd.f32 %v7092, 1.0
        %v7660 = vadd.f32 %v7094, 1.0
        %v7661 = vadd.f32 %v7096, 1.0
        %v7662 = vadd.f32 %v7098, 1.0
        %v7663 = vadd.f32 %v7100, 1.0
        %v7664 = vadd.f32 %v7102, 1.0
        %v7665 = vadd.f32 %v7104, 1.0
        %v7666 = vadd.f32 %v7106, 1.0
        %v7667 = vadd.f32 %v7108, 1.0
        %v7668 = vadd.f32 %v7110, 1.0
        %v7669 = vadd.f32 %v7112, 1.0
        %v7670 = vadd.f32 %v7114, 1.0
        %v7671 = vadd.f32 %v7116, 1.0
        %v7672 = vadd.f32 %v7118, 1.0
        %v7673 = vadd.f32 %v7120, 1.0
        %v7674 = vadd.f32 %v7122, 1.0
        %v7675 = vadd.f32 %v7124, 1.0
        %v7676 = vadd.f32 %v7126, 1.0
        %v7677 = vadd.f32 %v7128, 1.0
        %v7678 = vadd.f32 %v7130, 1.0
        %v7679 = vadd.f32 %v7132, 1.0
        %v7680 = vadd.f32 %v7134, 1.0
        %v7681 = vadd.f32 %v7136, 1.0
        %v7682 = vadd.f32 %v7138, 1.0
        %v7683 = vadd.f32 %v7140, 1.0
        %v7684 = vadd.f32 %v7142, 1.0
        %v7685 = vadd.f32 %v7144, 1.0
        %v7686 = vadd.f32 %v7146, 1.0
        %v7687 = vadd.f32 %v7148, 1.0
        %v7688 = vadd.f32 %v7150, 1.0
        %v7689 = vadd.f32 %v7152, 1.0
        %v7690 = vadd.f32 %v7154, 1.0
        %v7691 = vadd.f32 %v7156, 1.0
        %v7692 = vadd.f32 %v7158, 1.0
        %v7693 = vadd.f32 %v7160, 1.0
        %v7694 = vadd.f32 %v7162, 1.0
        %v7695 = vadd.f32 %v7164, 1.0
        %v7696 = vadd.f32 %v7166, 1.0
        %v7697 = vadd.f32 %v7168, 1.0
        %v7698 = vadd.f32 %v7170, 1.0
        %v7699 = vadd.f32 %v7172, 1.0
        %v7700 = vadd.f32 %v7174, 1.0
        %v7701 = vadd.f32 %v7176, 1.0
        %v7702 = vadd.f32 %v7178, 1.0
        %v7703 = vadd.f32 %v7180, 1.0
        %v7704 = vadd.f32 %v7182, 1.0
        %v7705 = vadd.f32 %v7184, 1.0
        %v7706 = vadd.f32 %v7186, 1.0
        %v7707 = vadd.f32 %v7188, 1.0
        %v7708 = vadd.f32 %v7190, 1.0
        %v7709 = vadd.f32 %v7192, 1.0
        %v7710 = vadd.f32 %v7194, 1.0
        %v7711 = vadd.f32 %v7196, 1.0
        %v7712 = vadd.f32 %v7198, 1.0
        %v7713 = vadd.f32 %v7200, 1.0
        %v7714 = vadd.f32 %v7202, 1.0
        %v7715 = vadd.f32 %v7204, 1.0
        %v7716 = vadd.f32 %v7206, 1.0
        %v7717 = vadd.f32 %v7208, 1.0
        %v7718 = vadd.f32 %v7210, 1.0
        %v7719 = vadd.f32 %v7212, 1.0
        %v7720 = vadd.f32 %v7214, 1.0
        %v7721 = vadd.f32 %v7216, 1.0
        %v7722 = vadd.f32 %v7218, 1.0
        %v7723 = vadd.f32 %v7220, 1.0
        %v7724 = vadd.f32 %v7222, 1.0
        %v7725 = vadd.f32 %v7224, 1.0
        %v7726 = vadd.f32 %v7226, 1.0
        %v7727 = vadd.f32 %v7228, 1.0
        %v7728 = vadd.f32 %v7230, 1.0
        %v7729 = vadd.f32 %v7232, 1.0
        %v7730 = vadd.f32 %v7234, 1.0
        %v7731 = vadd.f32 %v7236, 1.0
        %v7732 = vadd.f32 %v7238, 1.0
        %v7733 = vadd.f32 %v7240, 1.0
        %v7734 = vadd.f32 %v7242, 1.0
        %v7735 = vadd.f32 %v7244, 1.0
        %v7736 = vadd.f32 %v7246, 1.0
        %v7737 = vadd.f32 %v7248, 1.0
        %v7738 = vadd.f32 %v7250, 1.0
        %v7739 = vadd.f32 %v7252, 1.0
        %v7740 = vadd.f32 %v7254, 1.0
        %v7741 = vadd.f32 %v7256, 1.0
        %v7742 = vadd.f32 %v7258, 1.0
        %v7743 = vadd.f32 %v7260, 1.0
        %v7744 = vadd.f32 %v7262, 1.0
        %v7745 = vadd.f32 %v7264, 1.0
        %v7746 = vadd.f32 %v7266, 1.0
        %v7747 = vadd.f32 %v7268, 1.0
        %v7748 = vadd.f32 %v7270, 1.0
        %v7749 = vadd.f32 %v7272, 1.0
        %v7750 = vadd.f32 %v7274, 1.0
        %v7751 = vadd.f32 %v7276, 1.0
        %v7752 = vadd.f32 %v7278, 1.0
        %v7753 = vadd.f32 %v7280, 1.0
        %v7754 = vadd.f32 %v7282, 1.0
        %v7755 = vadd.f32 %v7284, 1.0
        %v7756 = vadd.f32 %v7286, 1.0
        %v7757 = vadd.f32 %v7288, 1.0
        %v7758 = vadd.f32 %v7290, 1.0
        %v7759 = vadd.f32 %v7292, 1.0
        %v7760 = vadd.f32 %v7294, 1.0
        %v7761 = vadd.f32 %v7296, 1.0
        %v7762 = vadd.f32 %v7298, 1.0
        %v7763 = vadd.f32 %v7300, 1.0
        %v7764 = vadd.f32 %v7302, 1.0
        %v7765 = vadd.f32 %v7304, 1.0
        %v7766 = vadd.f32 %v7306, 1.0
        %v7767 = vadd.f32 %v7308, 1.0
        %v7768 = vadd.f32 %v7310, 1.0
        %v7769 = vadd.f32 %v7312, 1.0
        %v7770 = vadd.f32 %v7314, 1.0
        %v7771 = vadd.f32 %v7316, 1.0
        %v7772 = vadd.f32 %v7318, 1.0
        %v7773 = vadd.f32 %v7320, 1.0
        %v7774 = vadd.f32 %v7322, 1.0
        %v7775 = vadd.f32 %v7324, 1.0
        %v7776 = vadd.f32 %v7326, 1.0
        %v7777 = vadd.f32 %v7328, 1.0
        %v7778 = vadd.f32 %v7330, 1.0
        %v7779 = vrcp.pop %v7331
        %v7780 = vmul.f32 1.0, %v7779
        %v7781 = vrcp.pop %v7332
        %v7782 = vmul.f32 1.0, %v7781
        %v7783 = vrcp.pop %v7333
        %v7784 = vmul.f32 1.0, %v7783
        %v7785 = vrcp.pop %v7334
        %v7786 = vmul.f32 1.0, %v7785
        %v7787 = vrcp.pop %v7335
        %v7788 = vmul.f32 1.0, %v7787
        %v7789 = vrcp.pop %v7336
        %v7790 = vmul.f32 1.0, %v7789
        %v7791 = vrcp.pop %v7337
        %v7792 = vmul.f32 1.0, %v7791
        %v7793 = vrcp.pop %v7338
        %v7794 = vmul.f32 1.0, %v7793
        %v7795 = vrcp.pop %v7339
        %v7796 = vmul.f32 1.0, %v7795
        %v7797 = vrcp.pop %v7340
        %v7798 = vmul.f32 1.0, %v7797
        %v7799 = vrcp.pop %v7341
        %v7800 = vmul.f32 1.0, %v7799
        %v7801 = vrcp.pop %v7342
        %v7802 = vmul.f32 1.0, %v7801
        %v7803 = vrcp.pop %v7343
        %v7804 = vmul.f32 1.0, %v7803
        %v7805 = vrcp.pop %v7344
        %v7806 = vmul.f32 1.0, %v7805
        %v7807 = vrcp.pop %v7345
        %v7808 = vmul.f32 1.0, %v7807
        %v7809 = vrcp.pop %v7346
        %v7810 = vmul.f32 1.0, %v7809
        %v7811 = vrcp.pop %v7347
        %v7812 = vmul.f32 1.0, %v7811
        %v7813 = vrcp.pop %v7348
        %v7814 = vmul.f32 1.0, %v7813
        %v7815 = vrcp.pop %v7349
        %v7816 = vmul.f32 1.0, %v7815
        %v7817 = vrcp.pop %v7350
        %v7818 = vmul.f32 1.0, %v7817
        %v7819 = vrcp.pop %v7351
        %v7820 = vmul.f32 1.0, %v7819
        %v7821 = vrcp.pop %v7352
        %v7822 = vmul.f32 1.0, %v7821
        %v7823 = vrcp.pop %v7353
        %v7824 = vmul.f32 1.0, %v7823
        %v7825 = vrcp.pop %v7354
        %v7826 = vmul.f32 1.0, %v7825
        %v7827 = vrcp.pop %v7355
        %v7828 = vmul.f32 1.0, %v7827
        %v7829 = vrcp.pop %v7356
        %v7830 = vmul.f32 1.0, %v7829
        %v7831 = vrcp.pop %v7357
        %v7832 = vmul.f32 1.0, %v7831
        %v7833 = vrcp.pop %v7358
        %v7834 = vmul.f32 1.0, %v7833
        %v7835 = vrcp.pop %v7359
        %v7836 = vmul.f32 1.0, %v7835
        %v7837 = vrcp.pop %v7360
        %v7838 = vmul.f32 1.0, %v7837
        %v7839 = vrcp.pop %v7361
        %v7840 = vmul.f32 1.0, %v7839
        %v7841 = vrcp.pop %v7362
        %v7842 = vmul.f32 1.0, %v7841
        %v7843 = vrcp.pop %v7363
        %v7844 = vmul.f32 1.0, %v7843
        %v7845 = vrcp.pop %v7364
        %v7846 = vmul.f32 1.0, %v7845
        %v7847 = vrcp.pop %v7365
        %v7848 = vmul.f32 1.0, %v7847
        %v7849 = vrcp.pop %v7366
        %v7850 = vmul.f32 1.0, %v7849
        %v7851 = vrcp.pop %v7367
        %v7852 = vmul.f32 1.0, %v7851
        %v7853 = vrcp.pop %v7368
        %v7854 = vmul.f32 1.0, %v7853
        %v7855 = vrcp.pop %v7369
        %v7856 = vmul.f32 1.0, %v7855
        %v7857 = vrcp.pop %v7370
        %v7858 = vmul.f32 1.0, %v7857
        %v7859 = vrcp.pop %v7371
        %v7860 = vmul.f32 1.0, %v7859
        %v7861 = vrcp.pop %v7372
        %v7862 = vmul.f32 1.0, %v7861
        %v7863 = vrcp.pop %v7373
        %v7864 = vmul.f32 1.0, %v7863
        %v7865 = vrcp.pop %v7374
        %v7866 = vmul.f32 1.0, %v7865
        %v7867 = vrcp.pop %v7375
        %v7868 = vmul.f32 1.0, %v7867
        %v7869 = vrcp.pop %v7376
        %v7870 = vmul.f32 1.0, %v7869
        %v7871 = vrcp.pop %v7377
        %v7872 = vmul.f32 1.0, %v7871
        %v7873 = vrcp.pop %v7378
        %v7874 = vmul.f32 1.0, %v7873
        %v7875 = vrcp.pop %v7379
        %v7876 = vmul.f32 1.0, %v7875
        %v7877 = vrcp.pop %v7380
        %v7878 = vmul.f32 1.0, %v7877
        %v7879 = vrcp.pop %v7381
        %v7880 = vmul.f32 1.0, %v7879
        %v7881 = vrcp.pop %v7382
        %v7882 = vmul.f32 1.0, %v7881
        %v7883 = vrcp.pop %v7383
        %v7884 = vmul.f32 1.0, %v7883
        %v7885 = vrcp.pop %v7384
        %v7886 = vmul.f32 1.0, %v7885
        %v7887 = vrcp.pop %v7385
        %v7888 = vmul.f32 1.0, %v7887
        %v7889 = vrcp.pop %v7386
        %v7890 = vmul.f32 1.0, %v7889
        %v7891 = vrcp.pop %v7387
        %v7892 = vmul.f32 1.0, %v7891
        %v7893 = vrcp.pop %v7388
        %v7894 = vmul.f32 1.0, %v7893
        %v7895 = vrcp.pop %v7389
        %v7896 = vmul.f32 1.0, %v7895
        %v7897 = vrcp.pop %v7390
        %v7898 = vmul.f32 1.0, %v7897
        %v7899 = vrcp.pop %v7391
        %v7900 = vmul.f32 1.0, %v7899
        %v7901 = vrcp.pop %v7392
        %v7902 = vmul.f32 1.0, %v7901
        %v7903 = vrcp.pop %v7393
        %v7904 = vmul.f32 1.0, %v7903
        %v7905 = vrcp.pop %v7394
        %v7906 = vmul.f32 1.0, %v7905
        %v7907 = vrcp.pop %v7395
        %v7908 = vmul.f32 1.0, %v7907
        %v7909 = vrcp.pop %v7396
        %v7910 = vmul.f32 1.0, %v7909
        %v7911 = vrcp.pop %v7397
        %v7912 = vmul.f32 1.0, %v7911
        %v7913 = vrcp.pop %v7398
        %v7914 = vmul.f32 1.0, %v7913
        %v7915 = vrcp.pop %v7399
        %v7916 = vmul.f32 1.0, %v7915
        %v7917 = vrcp.pop %v7400
        %v7918 = vmul.f32 1.0, %v7917
        %v7919 = vrcp.pop %v7401
        %v7920 = vmul.f32 1.0, %v7919
        %v7921 = vrcp.pop %v7402
        %v7922 = vmul.f32 1.0, %v7921
        %v7923 = vrcp.pop %v7403
        %v7924 = vmul.f32 1.0, %v7923
        %v7925 = vrcp.pop %v7404
        %v7926 = vmul.f32 1.0, %v7925
        %v7927 = vrcp.pop %v7405
        %v7928 = vmul.f32 1.0, %v7927
        %v7929 = vrcp.pop %v7406
        %v7930 = vmul.f32 1.0, %v7929
        %v7931 = vrcp.pop %v7407
        %v7932 = vmul.f32 1.0, %v7931
        %v7933 = vrcp.pop %v7408
        %v7934 = vmul.f32 1.0, %v7933
        %v7935 = vrcp.pop %v7409
        %v7936 = vmul.f32 1.0, %v7935
        %v7937 = vrcp.pop %v7410
        %v7938 = vmul.f32 1.0, %v7937
        %v7939 = vrcp.pop %v7411
        %v7940 = vmul.f32 1.0, %v7939
        %v7941 = vrcp.pop %v7412
        %v7942 = vmul.f32 1.0, %v7941
        %v7943 = vrcp.pop %v7413
        %v7944 = vmul.f32 1.0, %v7943
        %v7945 = vrcp.pop %v7414
        %v7946 = vmul.f32 1.0, %v7945
        %v7947 = vrcp.pop %v7415
        %v7948 = vmul.f32 1.0, %v7947
        %v7949 = vrcp.pop %v7416
        %v7950 = vmul.f32 1.0, %v7949
        %v7951 = vrcp.pop %v7417
        %v7952 = vmul.f32 1.0, %v7951
        %v7953 = vrcp.pop %v7418
        %v7954 = vmul.f32 1.0, %v7953
        %v7955 = vrcp.pop %v7419
        %v7956 = vmul.f32 1.0, %v7955
        %v7957 = vrcp.pop %v7420
        %v7958 = vmul.f32 1.0, %v7957
        %v7959 = vrcp.pop %v7421
        %v7960 = vmul.f32 1.0, %v7959
        %v7961 = vrcp.pop %v7422
        %v7962 = vmul.f32 1.0, %v7961
        %v7963 = vrcp.pop %v7423
        %v7964 = vmul.f32 1.0, %v7963
        %v7965 = vrcp.pop %v7424
        %v7966 = vmul.f32 1.0, %v7965
        %v7967 = vrcp.pop %v7425
        %v7968 = vmul.f32 1.0, %v7967
        %v7969 = vrcp.pop %v7426
        %v7970 = vmul.f32 1.0, %v7969
        %v7971 = vrcp.pop %v7427
        %v7972 = vmul.f32 1.0, %v7971
        %v7973 = vrcp.pop %v7428
        %v7974 = vmul.f32 1.0, %v7973
        %v7975 = vrcp.pop %v7429
        %v7976 = vmul.f32 1.0, %v7975
        %v7977 = vrcp.pop %v7430
        %v7978 = vmul.f32 1.0, %v7977
        %v7979 = vrcp.pop %v7431
        %v7980 = vmul.f32 1.0, %v7979
        %v7981 = vrcp.pop %v7432
        %v7982 = vmul.f32 1.0, %v7981
        %v7983 = vrcp.pop %v7433
        %v7984 = vmul.f32 1.0, %v7983
        %v7985 = vrcp.pop %v7434
        %v7986 = vmul.f32 1.0, %v7985
        %v7987 = vrcp.pop %v7435
        %v7988 = vmul.f32 1.0, %v7987
        %v7989 = vrcp.pop %v7436
        %v7990 = vmul.f32 1.0, %v7989
        %v7991 = vrcp.pop %v7437
        %v7992 = vmul.f32 1.0, %v7991
        %v7993 = vrcp.pop %v7438
        %v7994 = vmul.f32 1.0, %v7993
        %v7995 = vrcp.pop %v7439
        %v7996 = vmul.f32 1.0, %v7995
        %v7997 = vrcp.pop %v7440
        %v7998 = vmul.f32 1.0, %v7997
        %v7999 = vrcp.pop %v7441
        %v8000 = vmul.f32 1.0, %v7999
        %v8001 = vrcp.pop %v7442
        %v8002 = vmul.f32 1.0, %v8001
        %v8003 = vrcp.pop %v7443
        %v8004 = vmul.f32 1.0, %v8003
        %v8005 = vrcp.pop %v7444
        %v8006 = vmul.f32 1.0, %v8005
        %v8007 = vrcp.pop %v7445
        %v8008 = vmul.f32 1.0, %v8007
        %v8009 = vrcp.pop %v7446
        %v8010 = vmul.f32 1.0, %v8009
        %v8011 = vrcp.pop %v7447
        %v8012 = vmul.f32 1.0, %v8011
        %v8013 = vrcp.pop %v7448
        %v8014 = vmul.f32 1.0, %v8013
        %v8015 = vrcp.pop %v7449
        %v8016 = vmul.f32 1.0, %v8015
        %v8017 = vrcp.pop %v7450
        %v8018 = vmul.f32 1.0, %v8017
        %v8019 = vrcp.pop %v7451
        %v8020 = vmul.f32 1.0, %v8019
        %v8021 = vrcp.pop %v7452
        %v8022 = vmul.f32 1.0, %v8021
        %v8023 = vrcp.pop %v7453
        %v8024 = vmul.f32 1.0, %v8023
        %v8025 = vrcp.pop %v7454
        %v8026 = vmul.f32 1.0, %v8025
        %v8027 = vrcp.pop %v7455
        %v8028 = vmul.f32 1.0, %v8027
        %v8029 = vrcp.pop %v7456
        %v8030 = vmul.f32 1.0, %v8029
        %v8031 = vrcp.pop %v7457
        %v8032 = vmul.f32 1.0, %v8031
        %v8033 = vrcp.pop %v7458
        %v8034 = vmul.f32 1.0, %v8033
        %v8035 = vrcp.pop %v7459
        %v8036 = vmul.f32 1.0, %v8035
        %v8037 = vrcp.pop %v7460
        %v8038 = vmul.f32 1.0, %v8037
        %v8039 = vrcp.pop %v7461
        %v8040 = vmul.f32 1.0, %v8039
        %v8041 = vrcp.pop %v7462
        %v8042 = vmul.f32 1.0, %v8041
        %v8043 = vrcp.pop %v7463
        %v8044 = vmul.f32 1.0, %v8043
        %v8045 = vrcp.pop %v7464
        %v8046 = vmul.f32 1.0, %v8045
        %v8047 = vrcp.pop %v7465
        %v8048 = vmul.f32 1.0, %v8047
        %v8049 = vrcp.pop %v7466
        %v8050 = vmul.f32 1.0, %v8049
        %v8051 = vrcp.pop %v7467
        %v8052 = vmul.f32 1.0, %v8051
        %v8053 = vrcp.pop %v7468
        %v8054 = vmul.f32 1.0, %v8053
        %v8055 = vrcp.pop %v7469
        %v8056 = vmul.f32 1.0, %v8055
        %v8057 = vrcp.pop %v7470
        %v8058 = vmul.f32 1.0, %v8057
        %v8059 = vrcp.pop %v7471
        %v8060 = vmul.f32 1.0, %v8059
        %v8061 = vrcp.pop %v7472
        %v8062 = vmul.f32 1.0, %v8061
        %v8063 = vrcp.pop %v7473
        %v8064 = vmul.f32 1.0, %v8063
        %v8065 = vrcp.pop %v7474
        %v8066 = vmul.f32 1.0, %v8065
        %v8067 = vrcp.pop %v7475
        %v8068 = vmul.f32 1.0, %v8067
        %v8069 = vrcp.pop %v7476
        %v8070 = vmul.f32 1.0, %v8069
        %v8071 = vrcp.pop %v7477
        %v8072 = vmul.f32 1.0, %v8071
        %v8073 = vrcp.pop %v7478
        %v8074 = vmul.f32 1.0, %v8073
        %v8075 = vrcp.pop %v7479
        %v8076 = vmul.f32 1.0, %v8075
        %v8077 = vrcp.pop %v7480
        %v8078 = vmul.f32 1.0, %v8077
        %v8079 = vrcp.pop %v7481
        %v8080 = vmul.f32 1.0, %v8079
        %v8081 = vrcp.pop %v7482
        %v8082 = vmul.f32 1.0, %v8081
        %v8083 = vrcp.pop %v7483
        %v8084 = vmul.f32 1.0, %v8083
        %v8085 = vrcp.pop %v7484
        %v8086 = vmul.f32 1.0, %v8085
        %v8087 = vrcp.pop %v7485
        %v8088 = vmul.f32 1.0, %v8087
        %v8089 = vrcp.pop %v7486
        %v8090 = vmul.f32 1.0, %v8089
        %v8091 = vrcp.pop %v7487
        %v8092 = vmul.f32 1.0, %v8091
        %v8093 = vrcp.pop %v7488
        %v8094 = vmul.f32 1.0, %v8093
        %v8095 = vrcp.pop %v7489
        %v8096 = vmul.f32 1.0, %v8095
        %v8097 = vrcp.pop %v7490
        %v8098 = vmul.f32 1.0, %v8097
        %v8099 = vrcp.pop %v7491
        %v8100 = vmul.f32 1.0, %v8099
        %v8101 = vrcp.pop %v7492
        %v8102 = vmul.f32 1.0, %v8101
        %v8103 = vrcp.pop %v7493
        %v8104 = vmul.f32 1.0, %v8103
        %v8105 = vrcp.pop %v7494
        %v8106 = vmul.f32 1.0, %v8105
        %v8107 = vrcp.pop %v7495
        %v8108 = vmul.f32 1.0, %v8107
        %v8109 = vrcp.pop %v7496
        %v8110 = vmul.f32 1.0, %v8109
        %v8111 = vrcp.pop %v7497
        %v8112 = vmul.f32 1.0, %v8111
        %v8113 = vrcp.pop %v7498
        %v8114 = vmul.f32 1.0, %v8113
        %v8115 = vrcp.pop %v7499
        %v8116 = vmul.f32 1.0, %v8115
        %v8117 = vrcp.pop %v7500
        %v8118 = vmul.f32 1.0, %v8117
        %v8119 = vrcp.pop %v7501
        %v8120 = vmul.f32 1.0, %v8119
        %v8121 = vrcp.pop %v7502
        %v8122 = vmul.f32 1.0, %v8121
        %v8123 = vrcp.pop %v7503
        %v8124 = vmul.f32 1.0, %v8123
        %v8125 = vrcp.pop %v7504
        %v8126 = vmul.f32 1.0, %v8125
        %v8127 = vrcp.pop %v7505
        %v8128 = vmul.f32 1.0, %v8127
        %v8129 = vrcp.pop %v7506
        %v8130 = vmul.f32 1.0, %v8129
        %v8131 = vrcp.pop %v7507
        %v8132 = vmul.f32 1.0, %v8131
        %v8133 = vrcp.pop %v7508
        %v8134 = vmul.f32 1.0, %v8133
        %v8135 = vrcp.pop %v7509
        %v8136 = vmul.f32 1.0, %v8135
        %v8137 = vrcp.pop %v7510
        %v8138 = vmul.f32 1.0, %v8137
        %v8139 = vrcp.pop %v7511
        %v8140 = vmul.f32 1.0, %v8139
        %v8141 = vrcp.pop %v7512
        %v8142 = vmul.f32 1.0, %v8141
        %v8143 = vrcp.pop %v7513
        %v8144 = vmul.f32 1.0, %v8143
        %v8145 = vrcp.pop %v7514
        %v8146 = vmul.f32 1.0, %v8145
        %v8147 = vrcp.pop %v7515
        %v8148 = vmul.f32 1.0, %v8147
        %v8149 = vrcp.pop %v7516
        %v8150 = vmul.f32 1.0, %v8149
        %v8151 = vrcp.pop %v7517
        %v8152 = vmul.f32 1.0, %v8151
        %v8153 = vrcp.pop %v7518
        %v8154 = vmul.f32 1.0, %v8153
        %v8155 = vrcp.pop %v7519
        %v8156 = vmul.f32 1.0, %v8155
        %v8157 = vrcp.pop %v7520
        %v8158 = vmul.f32 1.0, %v8157
        %v8159 = vrcp.pop %v7521
        %v8160 = vmul.f32 1.0, %v8159
        %v8161 = vrcp.pop %v7522
        %v8162 = vmul.f32 1.0, %v8161
        %v8163 = vrcp.pop %v7523
        %v8164 = vmul.f32 1.0, %v8163
        %v8165 = vrcp.pop %v7524
        %v8166 = vmul.f32 1.0, %v8165
        %v8167 = vrcp.pop %v7525
        %v8168 = vmul.f32 1.0, %v8167
        %v8169 = vrcp.pop %v7526
        %v8170 = vmul.f32 1.0, %v8169
        %v8171 = vrcp.pop %v7527
        %v8172 = vmul.f32 1.0, %v8171
        %v8173 = vrcp.pop %v7528
        %v8174 = vmul.f32 1.0, %v8173
        %v8175 = vrcp.pop %v7529
        %v8176 = vmul.f32 1.0, %v8175
        %v8177 = vrcp.pop %v7530
        %v8178 = vmul.f32 1.0, %v8177
        %v8179 = vrcp.pop %v7531
        %v8180 = vmul.f32 1.0, %v8179
        %v8181 = vrcp.pop %v7532
        %v8182 = vmul.f32 1.0, %v8181
        %v8183 = vrcp.pop %v7533
        %v8184 = vmul.f32 1.0, %v8183
        %v8185 = vrcp.pop %v7534
        %v8186 = vmul.f32 1.0, %v8185
        %v8187 = vrcp.pop %v7535
        %v8188 = vmul.f32 1.0, %v8187
        %v8189 = vrcp.pop %v7536
        %v8190 = vmul.f32 1.0, %v8189
        %v8191 = vrcp.pop %v7537
        %v8192 = vmul.f32 1.0, %v8191
        %v8193 = vrcp.pop %v7538
        %v8194 = vmul.f32 1.0, %v8193
        %v8195 = vrcp.pop %v7539
        %v8196 = vmul.f32 1.0, %v8195
        %v8197 = vrcp.pop %v7540
        %v8198 = vmul.f32 1.0, %v8197
        %v8199 = vrcp.pop %v7541
        %v8200 = vmul.f32 1.0, %v8199
        %v8201 = vrcp.pop %v7542
        %v8202 = vmul.f32 1.0, %v8201
        %v8203 = vrcp.pop %v7543
        %v8204 = vmul.f32 1.0, %v8203
        %v8205 = vrcp.pop %v7544
        %v8206 = vmul.f32 1.0, %v8205
        %v8207 = vrcp.pop %v7545
        %v8208 = vmul.f32 1.0, %v8207
        %v8209 = vrcp.pop %v7546
        %v8210 = vmul.f32 1.0, %v8209
        %v8211 = vrcp.pop %v7547
        %v8212 = vmul.f32 1.0, %v8211
        %v8213 = vrcp.pop %v7548
        %v8214 = vmul.f32 1.0, %v8213
        %v8215 = vrcp.pop %v7549
        %v8216 = vmul.f32 1.0, %v8215
        %v8217 = vrcp.pop %v7550
        %v8218 = vmul.f32 1.0, %v8217
        %v8219 = vrcp.pop %v7551
        %v8220 = vmul.f32 1.0, %v8219
        %v8221 = vrcp.pop %v7552
        %v8222 = vmul.f32 1.0, %v8221
        %v8223 = vrcp.pop %v7553
        %v8224 = vmul.f32 1.0, %v8223
        %v8225 = vrcp.pop %v7554
        %v8226 = vmul.f32 1.0, %v8225
        %v8227 = vrcp.pop %v7555
        %v8228 = vmul.f32 1.0, %v8227
        %v8229 = vrcp.pop %v7556
        %v8230 = vmul.f32 1.0, %v8229
        %v8231 = vrcp.pop %v7557
        %v8232 = vmul.f32 1.0, %v8231
        %v8233 = vrcp.pop %v7558
        %v8234 = vmul.f32 1.0, %v8233
        %v8235 = vrcp.pop %v7559
        %v8236 = vmul.f32 1.0, %v8235
        %v8237 = vrcp.pop %v7560
        %v8238 = vmul.f32 1.0, %v8237
        %v8239 = vrcp.pop %v7561
        %v8240 = vmul.f32 1.0, %v8239
        %v8241 = vrcp.pop %v7562
        %v8242 = vmul.f32 1.0, %v8241
        %v8243 = vrcp.pop %v7563
        %v8244 = vmul.f32 1.0, %v8243
        %v8245 = vrcp.pop %v7564
        %v8246 = vmul.f32 1.0, %v8245
        %v8247 = vrcp.pop %v7565
        %v8248 = vmul.f32 1.0, %v8247
        %v8249 = vrcp.pop %v7566
        %v8250 = vmul.f32 1.0, %v8249
        %v8251 = vrcp.pop %v7567
        %v8252 = vmul.f32 1.0, %v8251
        %v8253 = vrcp.pop %v7568
        %v8254 = vmul.f32 1.0, %v8253
        %v8255 = vrcp.pop %v7569
        %v8256 = vmul.f32 1.0, %v8255
        %v8257 = vrcp.pop %v7570
        %v8258 = vmul.f32 1.0, %v8257
        %v8259 = vrcp.pop %v7571
        %v8260 = vmul.f32 1.0, %v8259
        %v8261 = vrcp.pop %v7572
        %v8262 = vmul.f32 1.0, %v8261
        %v8263 = vrcp.pop %v7573
        %v8264 = vmul.f32 1.0, %v8263
        %v8265 = vrcp.pop %v7574
        %v8266 = vmul.f32 1.0, %v8265
        %v8267 = vrcp.pop %v7575
        %v8268 = vmul.f32 1.0, %v8267
        %v8269 = vrcp.pop %v7576
        %v8270 = vmul.f32 1.0, %v8269
        %v8271 = vrcp.pop %v7577
        %v8272 = vmul.f32 1.0, %v8271
        %v8273 = vrcp.pop %v7578
        %v8274 = vmul.f32 1.0, %v8273
        %v8275 = vrcp.pop %v7579
        %v8276 = vmul.f32 1.0, %v8275
        %v8277 = vrcp.pop %v7580
        %v8278 = vmul.f32 1.0, %v8277
        %v8279 = vrcp.pop %v7581
        %v8280 = vmul.f32 1.0, %v8279
        %v8281 = vrcp.pop %v7582
        %v8282 = vmul.f32 1.0, %v8281
        %v8283 = vrcp.pop %v7583
        %v8284 = vmul.f32 1.0, %v8283
        %v8285 = vrcp.pop %v7584
        %v8286 = vmul.f32 1.0, %v8285
        %v8287 = vrcp.pop %v7585
        %v8288 = vmul.f32 1.0, %v8287
        %v8289 = vrcp.pop %v7586
        %v8290 = vmul.f32 1.0, %v8289
        %v8291 = vrcp.pop %v7587
        %v8292 = vmul.f32 1.0, %v8291
        %v8293 = vrcp.pop %v7588
        %v8294 = vmul.f32 1.0, %v8293
        %v8295 = vrcp.pop %v7589
        %v8296 = vmul.f32 1.0, %v8295
        %v8297 = vrcp.pop %v7590
        %v8298 = vmul.f32 1.0, %v8297
        %v8299 = vrcp.pop %v7591
        %v8300 = vmul.f32 1.0, %v8299
        %v8301 = vrcp.pop %v7592
        %v8302 = vmul.f32 1.0, %v8301
        %v8303 = vrcp.pop %v7593
        %v8304 = vmul.f32 1.0, %v8303
        %v8305 = vrcp.pop %v7594
        %v8306 = vmul.f32 1.0, %v8305
        %v8307 = vrcp.pop %v7595
        %v8308 = vmul.f32 1.0, %v8307
        %v8309 = vrcp.pop %v7596
        %v8310 = vmul.f32 1.0, %v8309
        %v8311 = vrcp.pop %v7597
        %v8312 = vmul.f32 1.0, %v8311
        %v8313 = vrcp.pop %v7598
        %v8314 = vmul.f32 1.0, %v8313
        %v8315 = vrcp.pop %v7599
        %v8316 = vmul.f32 1.0, %v8315
        %v8317 = vrcp.pop %v7600
        %v8318 = vmul.f32 1.0, %v8317
        %v8319 = vrcp.pop %v7601
        %v8320 = vmul.f32 1.0, %v8319
        %v8321 = vrcp.pop %v7602
        %v8322 = vmul.f32 1.0, %v8321
        %v8323 = vrcp.pop %v7603
        %v8324 = vmul.f32 1.0, %v8323
        %v8325 = vrcp.pop %v7604
        %v8326 = vmul.f32 1.0, %v8325
        %v8327 = vrcp.pop %v7605
        %v8328 = vmul.f32 1.0, %v8327
        %v8329 = vrcp.pop %v7606
        %v8330 = vmul.f32 1.0, %v8329
        %v8331 = vrcp.pop %v7607
        %v8332 = vmul.f32 1.0, %v8331
        %v8333 = vrcp.pop %v7608
        %v8334 = vmul.f32 1.0, %v8333
        %v8335 = vrcp.pop %v7609
        %v8336 = vmul.f32 1.0, %v8335
        %v8337 = vrcp.pop %v7610
        %v8338 = vmul.f32 1.0, %v8337
        %v8339 = vrcp.pop %v7611
        %v8340 = vmul.f32 1.0, %v8339
        %v8341 = vrcp.pop %v7612
        %v8342 = vmul.f32 1.0, %v8341
        %v8343 = vrcp.pop %v7613
        %v8344 = vmul.f32 1.0, %v8343
        %v8345 = vrcp.pop %v7614
        %v8346 = vmul.f32 1.0, %v8345
        %v8347 = vrcp.pop %v7615
        %v8348 = vmul.f32 1.0, %v8347
        %v8349 = vrcp.pop %v7616
        %v8350 = vmul.f32 1.0, %v8349
        %v8351 = vrcp.pop %v7617
        %v8352 = vmul.f32 1.0, %v8351
        %v8353 = vrcp.pop %v7618
        %v8354 = vmul.f32 1.0, %v8353
        %v8355 = vrcp.pop %v7619
        %v8356 = vmul.f32 1.0, %v8355
        %v8357 = vrcp.pop %v7620
        %v8358 = vmul.f32 1.0, %v8357
        %v8359 = vrcp.pop %v7621
        %v8360 = vmul.f32 1.0, %v8359
        %v8361 = vrcp.pop %v7622
        %v8362 = vmul.f32 1.0, %v8361
        %v8363 = vrcp.pop %v7623
        %v8364 = vmul.f32 1.0, %v8363
        %v8365 = vrcp.pop %v7624
        %v8366 = vmul.f32 1.0, %v8365
        %v8367 = vrcp.pop %v7625
        %v8368 = vmul.f32 1.0, %v8367
        %v8369 = vrcp.pop %v7626
        %v8370 = vmul.f32 1.0, %v8369
        %v8371 = vrcp.pop %v7627
        %v8372 = vmul.f32 1.0, %v8371
        %v8373 = vrcp.pop %v7628
        %v8374 = vmul.f32 1.0, %v8373
        %v8375 = vrcp.pop %v7629
        %v8376 = vmul.f32 1.0, %v8375
        %v8377 = vrcp.pop %v7630
        %v8378 = vmul.f32 1.0, %v8377
        %v8379 = vrcp.pop %v7631
        %v8380 = vmul.f32 1.0, %v8379
        %v8381 = vrcp.pop %v7632
        %v8382 = vmul.f32 1.0, %v8381
        %v8383 = vrcp.pop %v7633
        %v8384 = vmul.f32 1.0, %v8383
        %v8385 = vrcp.pop %v7634
        %v8386 = vmul.f32 1.0, %v8385
        %v8387 = vrcp.pop %v7635
        %v8388 = vmul.f32 1.0, %v8387
        %v8389 = vrcp.pop %v7636
        %v8390 = vmul.f32 1.0, %v8389
        %v8391 = vrcp.pop %v7637
        %v8392 = vmul.f32 1.0, %v8391
        %v8393 = vrcp.pop %v7638
        %v8394 = vmul.f32 1.0, %v8393
        %v8395 = vrcp.pop %v7639
        %v8396 = vmul.f32 1.0, %v8395
        %v8397 = vrcp.pop %v7640
        %v8398 = vmul.f32 1.0, %v8397
        %v8399 = vrcp.pop %v7641
        %v8400 = vmul.f32 1.0, %v8399
        %v8401 = vrcp.pop %v7642
        %v8402 = vmul.f32 1.0, %v8401
        %v8403 = vrcp.pop %v7643
        %v8404 = vmul.f32 1.0, %v8403
        %v8405 = vrcp.pop %v7644
        %v8406 = vmul.f32 1.0, %v8405
        %v8407 = vrcp.pop %v7645
        %v8408 = vmul.f32 1.0, %v8407
        %v8409 = vrcp.pop %v7646
        %v8410 = vmul.f32 1.0, %v8409
        %v8411 = vrcp.pop %v7647
        %v8412 = vmul.f32 1.0, %v8411
        %v8413 = vrcp.pop %v7648
        %v8414 = vmul.f32 1.0, %v8413
        %v8415 = vrcp.pop %v7649
        %v8416 = vmul.f32 1.0, %v8415
        %v8417 = vrcp.pop %v7650
        %v8418 = vmul.f32 1.0, %v8417
        %v8419 = vrcp.pop %v7651
        %v8420 = vmul.f32 1.0, %v8419
        %v8421 = vrcp.pop %v7652
        %v8422 = vmul.f32 1.0, %v8421
        %v8423 = vrcp.pop %v7653
        %v8424 = vmul.f32 1.0, %v8423
        %v8425 = vrcp.pop %v7654
        %v8426 = vmul.f32 1.0, %v8425
        %v8427 = vrcp.pop %v7655
        %v8428 = vmul.f32 1.0, %v8427
        %v8429 = vrcp.pop %v7656
        %v8430 = vmul.f32 1.0, %v8429
        %v8431 = vrcp.pop %v7657
        %v8432 = vmul.f32 1.0, %v8431
        %v8433 = vrcp.pop %v7658
        %v8434 = vmul.f32 1.0, %v8433
        %v8435 = vrcp.pop %v7659
        %v8436 = vmul.f32 1.0, %v8435
        %v8437 = vrcp.pop %v7660
        %v8438 = vmul.f32 1.0, %v8437
        %v8439 = vrcp.pop %v7661
        %v8440 = vmul.f32 1.0, %v8439
        %v8441 = vrcp.pop %v7662
        %v8442 = vmul.f32 1.0, %v8441
        %v8443 = vrcp.pop %v7663
        %v8444 = vmul.f32 1.0, %v8443
        %v8445 = vrcp.pop %v7664
        %v8446 = vmul.f32 1.0, %v8445
        %v8447 = vrcp.pop %v7665
        %v8448 = vmul.f32 1.0, %v8447
        %v8449 = vrcp.pop %v7666
        %v8450 = vmul.f32 1.0, %v8449
        %v8451 = vrcp.pop %v7667
        %v8452 = vmul.f32 1.0, %v8451
        %v8453 = vrcp.pop %v7668
        %v8454 = vmul.f32 1.0, %v8453
        %v8455 = vrcp.pop %v7669
        %v8456 = vmul.f32 1.0, %v8455
        %v8457 = vrcp.pop %v7670
        %v8458 = vmul.f32 1.0, %v8457
        %v8459 = vrcp.pop %v7671
        %v8460 = vmul.f32 1.0, %v8459
        %v8461 = vrcp.pop %v7672
        %v8462 = vmul.f32 1.0, %v8461
        %v8463 = vrcp.pop %v7673
        %v8464 = vmul.f32 1.0, %v8463
        %v8465 = vrcp.pop %v7674
        %v8466 = vmul.f32 1.0, %v8465
        %v8467 = vrcp.pop %v7675
        %v8468 = vmul.f32 1.0, %v8467
        %v8469 = vrcp.pop %v7676
        %v8470 = vmul.f32 1.0, %v8469
        %v8471 = vrcp.pop %v7677
        %v8472 = vmul.f32 1.0, %v8471
        %v8473 = vrcp.pop %v7678
        %v8474 = vmul.f32 1.0, %v8473
        %v8475 = vrcp.pop %v7679
        %v8476 = vmul.f32 1.0, %v8475
        %v8477 = vrcp.pop %v7680
        %v8478 = vmul.f32 1.0, %v8477
        %v8479 = vrcp.pop %v7681
        %v8480 = vmul.f32 1.0, %v8479
        %v8481 = vrcp.pop %v7682
        %v8482 = vmul.f32 1.0, %v8481
        %v8483 = vrcp.pop %v7683
        %v8484 = vmul.f32 1.0, %v8483
        %v8485 = vrcp.pop %v7684
        %v8486 = vmul.f32 1.0, %v8485
        %v8487 = vrcp.pop %v7685
        %v8488 = vmul.f32 1.0, %v8487
        %v8489 = vrcp.pop %v7686
        %v8490 = vmul.f32 1.0, %v8489
        %v8491 = vrcp.pop %v7687
        %v8492 = vmul.f32 1.0, %v8491
        %v8493 = vrcp.pop %v7688
        %v8494 = vmul.f32 1.0, %v8493
        %v8495 = vrcp.pop %v7689
        %v8496 = vmul.f32 1.0, %v8495
        %v8497 = vrcp.pop %v7690
        %v8498 = vmul.f32 1.0, %v8497
        %v8499 = vrcp.pop %v7691
        %v8500 = vmul.f32 1.0, %v8499
        %v8501 = vrcp.pop %v7692
        %v8502 = vmul.f32 1.0, %v8501
        %v8503 = vrcp.pop %v7693
        %v8504 = vmul.f32 1.0, %v8503
        %v8505 = vrcp.pop %v7694
        %v8506 = vmul.f32 1.0, %v8505
        %v8507 = vrcp.pop %v7695
        %v8508 = vmul.f32 1.0, %v8507
        %v8509 = vrcp.pop %v7696
        %v8510 = vmul.f32 1.0, %v8509
        %v8511 = vrcp.pop %v7697
        %v8512 = vmul.f32 1.0, %v8511
        %v8513 = vrcp.pop %v7698
        %v8514 = vmul.f32 1.0, %v8513
        %v8515 = vrcp.pop %v7699
        %v8516 = vmul.f32 1.0, %v8515
        %v8517 = vrcp.pop %v7700
        %v8518 = vmul.f32 1.0, %v8517
        %v8519 = vrcp.pop %v7701
        %v8520 = vmul.f32 1.0, %v8519
        %v8521 = vrcp.pop %v7702
        %v8522 = vmul.f32 1.0, %v8521
        %v8523 = vrcp.pop %v7703
        %v8524 = vmul.f32 1.0, %v8523
        %v8525 = vrcp.pop %v7704
        %v8526 = vmul.f32 1.0, %v8525
        %v8527 = vrcp.pop %v7705
        %v8528 = vmul.f32 1.0, %v8527
        %v8529 = vrcp.pop %v7706
        %v8530 = vmul.f32 1.0, %v8529
        %v8531 = vrcp.pop %v7707
        %v8532 = vmul.f32 1.0, %v8531
        %v8533 = vrcp.pop %v7708
        %v8534 = vmul.f32 1.0, %v8533
        %v8535 = vrcp.pop %v7709
        %v8536 = vmul.f32 1.0, %v8535
        %v8537 = vrcp.pop %v7710
        %v8538 = vmul.f32 1.0, %v8537
        %v8539 = vrcp.pop %v7711
        %v8540 = vmul.f32 1.0, %v8539
        %v8541 = vrcp.pop %v7712
        %v8542 = vmul.f32 1.0, %v8541
        %v8543 = vrcp.pop %v7713
        %v8544 = vmul.f32 1.0, %v8543
        %v8545 = vrcp.pop %v7714
        %v8546 = vmul.f32 1.0, %v8545
        %v8547 = vrcp.pop %v7715
        %v8548 = vmul.f32 1.0, %v8547
        %v8549 = vrcp.pop %v7716
        %v8550 = vmul.f32 1.0, %v8549
        %v8551 = vrcp.pop %v7717
        %v8552 = vmul.f32 1.0, %v8551
        %v8553 = vrcp.pop %v7718
        %v8554 = vmul.f32 1.0, %v8553
        %v8555 = vrcp.pop %v7719
        %v8556 = vmul.f32 1.0, %v8555
        %v8557 = vrcp.pop %v7720
        %v8558 = vmul.f32 1.0, %v8557
        %v8559 = vrcp.pop %v7721
        %v8560 = vmul.f32 1.0, %v8559
        %v8561 = vrcp.pop %v7722
        %v8562 = vmul.f32 1.0, %v8561
        %v8563 = vrcp.pop %v7723
        %v8564 = vmul.f32 1.0, %v8563
        %v8565 = vrcp.pop %v7724
        %v8566 = vmul.f32 1.0, %v8565
        %v8567 = vrcp.pop %v7725
        %v8568 = vmul.f32 1.0, %v8567
        %v8569 = vrcp.pop %v7726
        %v8570 = vmul.f32 1.0, %v8569
        %v8571 = vrcp.pop %v7727
        %v8572 = vmul.f32 1.0, %v8571
        %v8573 = vrcp.pop %v7728
        %v8574 = vmul.f32 1.0, %v8573
        %v8575 = vrcp.pop %v7729
        %v8576 = vmul.f32 1.0, %v8575
        %v8577 = vrcp.pop %v7730
        %v8578 = vmul.f32 1.0, %v8577
        %v8579 = vrcp.pop %v7731
        %v8580 = vmul.f32 1.0, %v8579
        %v8581 = vrcp.pop %v7732
        %v8582 = vmul.f32 1.0, %v8581
        %v8583 = vrcp.pop %v7733
        %v8584 = vmul.f32 1.0, %v8583
        %v8585 = vrcp.pop %v7734
        %v8586 = vmul.f32 1.0, %v8585
        %v8587 = vrcp.pop %v7735
        %v8588 = vmul.f32 1.0, %v8587
        %v8589 = vrcp.pop %v7736
        %v8590 = vmul.f32 1.0, %v8589
        %v8591 = vrcp.pop %v7737
        %v8592 = vmul.f32 1.0, %v8591
        %v8593 = vrcp.pop %v7738
        %v8594 = vmul.f32 1.0, %v8593
        %v8595 = vrcp.pop %v7739
        %v8596 = vmul.f32 1.0, %v8595
        %v8597 = vrcp.pop %v7740
        %v8598 = vmul.f32 1.0, %v8597
        %v8599 = vrcp.pop %v7741
        %v8600 = vmul.f32 1.0, %v8599
        %v8601 = vrcp.pop %v7742
        %v8602 = vmul.f32 1.0, %v8601
        %v8603 = vrcp.pop %v7743
        %v8604 = vmul.f32 1.0, %v8603
        %v8605 = vrcp.pop %v7744
        %v8606 = vmul.f32 1.0, %v8605
        %v8607 = vrcp.pop %v7745
        %v8608 = vmul.f32 1.0, %v8607
        %v8609 = vrcp.pop %v7746
        %v8610 = vmul.f32 1.0, %v8609
        %v8611 = vrcp.pop %v7747
        %v8612 = vmul.f32 1.0, %v8611
        %v8613 = vrcp.pop %v7748
        %v8614 = vmul.f32 1.0, %v8613
        %v8615 = vrcp.pop %v7749
        %v8616 = vmul.f32 1.0, %v8615
        %v8617 = vrcp.pop %v7750
        %v8618 = vmul.f32 1.0, %v8617
        %v8619 = vrcp.pop %v7751
        %v8620 = vmul.f32 1.0, %v8619
        %v8621 = vrcp.pop %v7752
        %v8622 = vmul.f32 1.0, %v8621
        %v8623 = vrcp.pop %v7753
        %v8624 = vmul.f32 1.0, %v8623
        %v8625 = vrcp.pop %v7754
        %v8626 = vmul.f32 1.0, %v8625
        %v8627 = vrcp.pop %v7755
        %v8628 = vmul.f32 1.0, %v8627
        %v8629 = vrcp.pop %v7756
        %v8630 = vmul.f32 1.0, %v8629
        %v8631 = vrcp.pop %v7757
        %v8632 = vmul.f32 1.0, %v8631
        %v8633 = vrcp.pop %v7758
        %v8634 = vmul.f32 1.0, %v8633
        %v8635 = vrcp.pop %v7759
        %v8636 = vmul.f32 1.0, %v8635
        %v8637 = vrcp.pop %v7760
        %v8638 = vmul.f32 1.0, %v8637
        %v8639 = vrcp.pop %v7761
        %v8640 = vmul.f32 1.0, %v8639
        %v8641 = vrcp.pop %v7762
        %v8642 = vmul.f32 1.0, %v8641
        %v8643 = vrcp.pop %v7763
        %v8644 = vmul.f32 1.0, %v8643
        %v8645 = vrcp.pop %v7764
        %v8646 = vmul.f32 1.0, %v8645
        %v8647 = vrcp.pop %v7765
        %v8648 = vmul.f32 1.0, %v8647
        %v8649 = vrcp.pop %v7766
        %v8650 = vmul.f32 1.0, %v8649
        %v8651 = vrcp.pop %v7767
        %v8652 = vmul.f32 1.0, %v8651
        %v8653 = vrcp.pop %v7768
        %v8654 = vmul.f32 1.0, %v8653
        %v8655 = vrcp.pop %v7769
        %v8656 = vmul.f32 1.0, %v8655
        %v8657 = vrcp.pop %v7770
        %v8658 = vmul.f32 1.0, %v8657
        %v8659 = vrcp.pop %v7771
        %v8660 = vmul.f32 1.0, %v8659
        %v8661 = vrcp.pop %v7772
        %v8662 = vmul.f32 1.0, %v8661
        %v8663 = vrcp.pop %v7773
        %v8664 = vmul.f32 1.0, %v8663
        %v8665 = vrcp.pop %v7774
        %v8666 = vmul.f32 1.0, %v8665
        %v8667 = vrcp.pop %v7775
        %v8668 = vmul.f32 1.0, %v8667
        %v8669 = vrcp.pop %v7776
        %v8670 = vmul.f32 1.0, %v8669
        %v8671 = vrcp.pop %v7777
        %v8672 = vmul.f32 1.0, %v8671
        %v8673 = vrcp.pop %v7778
        %v8674 = vmul.f32 1.0, %v8673
        %8675 = vst [vmem:[%s283] sm:$0xff] %v7780
        %8676 = vst [vmem:[%s283 + $0x8] sm:$0xff] %v7782
        %8677 = vst [vmem:[%s283 + $0x10] sm:$0xff] %v7784
        %8678 = vst [vmem:[%s283 + $0x18] sm:$0xff] %v7786
        %8679 = vst [vmem:[%s283 + $0x20] sm:$0xff] %v7788
        %8680 = vst [vmem:[%s283 + $0x28] sm:$0xff] %v7790
        %8681 = vst [vmem:[%s283 + $0x30] sm:$0xff] %v7792
        %8682 = vst [vmem:[%s283 + $0x38] sm:$0xff] %v7794
        %8683 = vst [vmem:[%s283 + $0x40] sm:$0xff] %v7796
        %8684 = vst [vmem:[%s283 + $0x48] sm:$0xff] %v7798
        %8685 = vst [vmem:[%s283 + $0x50] sm:$0xff] %v7800
        %8686 = vst [vmem:[%s283 + $0x58] sm:$0xff] %v7802
        %8687 = vst [vmem:[%s283 + $0x60] sm:$0xff] %v7804
        %8688 = vst [vmem:[%s283 + $0x68] sm:$0xff] %v7806
        %8689 = vst [vmem:[%s283 + $0x70] sm:$0xff] %v7808
        %8690 = vst [vmem:[%s283 + $0x78] sm:$0xff] %v7810
        %8691 = vst [vmem:[%s283 + $0x80] sm:$0xff] %v7812
        %8692 = vst [vmem:[%s283 + $0x88] sm:$0xff] %v7814
        %8693 = vst [vmem:[%s283 + $0x90] sm:$0xff] %v7816
        %8694 = vst [vmem:[%s283 + $0x98] sm:$0xff] %v7818
        %8695 = vst [vmem:[%s283 + $0xa0] sm:$0xff] %v7820
        %8696 = vst [vmem:[%s283 + $0xa8] sm:$0xff] %v7822
        %8697 = vst [vmem:[%s283 + $0xb0] sm:$0xff] %v7824
        %8698 = vst [vmem:[%s283 + $0xb8] sm:$0xff] %v7826
        %8699 = vst [vmem:[%s283 + $0xc0] sm:$0xff] %v7828
        %8700 = vst [vmem:[%s283 + $0xc8] sm:$0xff] %v7830
        %8701 = vst [vmem:[%s283 + $0xd0] sm:$0xff] %v7832
        %8702 = vst [vmem:[%s283 + $0xd8] sm:$0xff] %v7834
        %8703 = vst [vmem:[%s283 + $0xe0] sm:$0xff] %v7836
        %8704 = vst [vmem:[%s283 + $0xe8] sm:$0xff] %v7838
        %8705 = vst [vmem:[%s283 + $0xf0] sm:$0xff] %v7840
        %8706 = vst [vmem:[%s283 + $0xf8] sm:$0xff] %v7842
        %8707 = vst [vmem:[%s283 + $0x100] sm:$0xff] %v7844
        %8708 = vst [vmem:[%s283 + $0x108] sm:$0xff] %v7846
        %8709 = vst [vmem:[%s283 + $0x110] sm:$0xff] %v7848
        %8710 = vst [vmem:[%s283 + $0x118] sm:$0xff] %v7850
        %8711 = vst [vmem:[%s283 + $0x120] sm:$0xff] %v7852
        %8712 = vst [vmem:[%s283 + $0x128] sm:$0xff] %v7854
        %8713 = vst [vmem:[%s283 + $0x130] sm:$0xff] %v7856
        %8714 = vst [vmem:[%s283 + $0x138] sm:$0xff] %v7858
        %8715 = vst [vmem:[%s283 + $0x140] sm:$0xff] %v7860
        %8716 = vst [vmem:[%s283 + $0x148] sm:$0xff] %v7862
        %8717 = vst [vmem:[%s283 + $0x150] sm:$0xff] %v7864
        %8718 = vst [vmem:[%s283 + $0x158] sm:$0xff] %v7866
        %8719 = vst [vmem:[%s283 + $0x160] sm:$0xff] %v7868
        %8720 = vst [vmem:[%s283 + $0x168] sm:$0xff] %v7870
        %8721 = vst [vmem:[%s283 + $0x170] sm:$0xff] %v7872
        %8722 = vst [vmem:[%s283 + $0x178] sm:$0xff] %v7874
        %8723 = vst [vmem:[%s283 + $0x180] sm:$0xff] %v7876
        %8724 = vst [vmem:[%s283 + $0x188] sm:$0xff] %v7878
        %8725 = vst [vmem:[%s283 + $0x190] sm:$0xff] %v7880
        %8726 = vst [vmem:[%s283 + $0x198] sm:$0xff] %v7882
        %8727 = vst [vmem:[%s283 + $0x1a0] sm:$0xff] %v7884
        %8728 = vst [vmem:[%s283 + $0x1a8] sm:$0xff] %v7886
        %8729 = vst [vmem:[%s283 + $0x1b0] sm:$0xff] %v7888
        %8730 = vst [vmem:[%s283 + $0x1b8] sm:$0xff] %v7890
        %8731 = vst [vmem:[%s283 + $0x1c0] sm:$0xff] %v7892
        %8732 = vst [vmem:[%s283 + $0x1c8] sm:$0xff] %v7894
        %8733 = vst [vmem:[%s283 + $0x1d0] sm:$0xff] %v7896
        %8734 = vst [vmem:[%s283 + $0x1d8] sm:$0xff] %v7898
        %8735 = vst [vmem:[%s283 + $0x1e0] sm:$0xff] %v7900
        %8736 = vst [vmem:[%s283 + $0x1e8] sm:$0xff] %v7902
        %8737 = vst [vmem:[%s283 + $0x1f0] sm:$0xff] %v7904
        %8738 = vst [vmem:[%s283 + $0x1f8] sm:$0xff] %v7906
        %8739 = vst [vmem:[%s283 + $0x200] sm:$0xff] %v7908
        %8740 = vst [vmem:[%s283 + $0x208] sm:$0xff] %v7910
        %8741 = vst [vmem:[%s283 + $0x210] sm:$0xff] %v7912
        %8742 = vst [vmem:[%s283 + $0x218] sm:$0xff] %v7914
        %8743 = vst [vmem:[%s283 + $0x220] sm:$0xff] %v7916
        %8744 = vst [vmem:[%s283 + $0x228] sm:$0xff] %v7918
        %8745 = vst [vmem:[%s283 + $0x230] sm:$0xff] %v7920
        %8746 = vst [vmem:[%s283 + $0x238] sm:$0xff] %v7922
        %8747 = vst [vmem:[%s283 + $0x240] sm:$0xff] %v7924
        %8748 = vst [vmem:[%s283 + $0x248] sm:$0xff] %v7926
        %8749 = vst [vmem:[%s283 + $0x250] sm:$0xff] %v7928
        %8750 = vst [vmem:[%s283 + $0x258] sm:$0xff] %v7930
        %8751 = vst [vmem:[%s283 + $0x260] sm:$0xff] %v7932
        %8752 = vst [vmem:[%s283 + $0x268] sm:$0xff] %v7934
        %8753 = vst [vmem:[%s283 + $0x270] sm:$0xff] %v7936
        %8754 = vst [vmem:[%s283 + $0x278] sm:$0xff] %v7938
        %8755 = vst [vmem:[%s283 + $0x280] sm:$0xff] %v7940
        %8756 = vst [vmem:[%s283 + $0x288] sm:$0xff] %v7942
        %8757 = vst [vmem:[%s283 + $0x290] sm:$0xff] %v7944
        %8758 = vst [vmem:[%s283 + $0x298] sm:$0xff] %v7946
        %8759 = vst [vmem:[%s283 + $0x2a0] sm:$0xff] %v7948
        %8760 = vst [vmem:[%s283 + $0x2a8] sm:$0xff] %v7950
        %8761 = vst [vmem:[%s283 + $0x2b0] sm:$0xff] %v7952
        %8762 = vst [vmem:[%s283 + $0x2b8] sm:$0xff] %v7954
        %8763 = vst [vmem:[%s283 + $0x2c0] sm:$0xff] %v7956
        %8764 = vst [vmem:[%s283 + $0x2c8] sm:$0xff] %v7958
        %8765 = vst [vmem:[%s283 + $0x2d0] sm:$0xff] %v7960
        %8766 = vst [vmem:[%s283 + $0x2d8] sm:$0xff] %v7962
        %8767 = vst [vmem:[%s283 + $0x2e0] sm:$0xff] %v7964
        %8768 = vst [vmem:[%s283 + $0x2e8] sm:$0xff] %v7966
        %8769 = vst [vmem:[%s283 + $0x2f0] sm:$0xff] %v7968
        %8770 = vst [vmem:[%s283 + $0x2f8] sm:$0xff] %v7970
        %8771 = vst [vmem:[%s283 + $0x300] sm:$0xff] %v7972
        %8772 = vst [vmem:[%s283 + $0x308] sm:$0xff] %v7974
        %8773 = vst [vmem:[%s283 + $0x310] sm:$0xff] %v7976
        %8774 = vst [vmem:[%s283 + $0x318] sm:$0xff] %v7978
        %8775 = vst [vmem:[%s283 + $0x320] sm:$0xff] %v7980
        %8776 = vst [vmem:[%s283 + $0x328] sm:$0xff] %v7982
        %8777 = vst [vmem:[%s283 + $0x330] sm:$0xff] %v7984
        %8778 = vst [vmem:[%s283 + $0x338] sm:$0xff] %v7986
        %8779 = vst [vmem:[%s283 + $0x340] sm:$0xff] %v7988
        %8780 = vst [vmem:[%s283 + $0x348] sm:$0xff] %v7990
        %8781 = vst [vmem:[%s283 + $0x350] sm:$0xff] %v7992
        %8782 = vst [vmem:[%s283 + $0x358] sm:$0xff] %v7994
        %8783 = vst [vmem:[%s283 + $0x360] sm:$0xff] %v7996
        %8784 = vst [vmem:[%s283 + $0x368] sm:$0xff] %v7998
        %8785 = vst [vmem:[%s283 + $0x370] sm:$0xff] %v8000
        %8786 = vst [vmem:[%s283 + $0x378] sm:$0xff] %v8002
        %8787 = vst [vmem:[%s283 + $0x380] sm:$0xff] %v8004
        %8788 = vst [vmem:[%s283 + $0x388] sm:$0xff] %v8006
        %8789 = vst [vmem:[%s283 + $0x390] sm:$0xff] %v8008
        %8790 = vst [vmem:[%s283 + $0x398] sm:$0xff] %v8010
        %8791 = vst [vmem:[%s283 + $0x3a0] sm:$0xff] %v8012
        %8792 = vst [vmem:[%s283 + $0x3a8] sm:$0xff] %v8014
        %8793 = vst [vmem:[%s283 + $0x3b0] sm:$0xff] %v8016
        %8794 = vst [vmem:[%s283 + $0x3b8] sm:$0xff] %v8018
        %8795 = vst [vmem:[%s283 + $0x3c0] sm:$0xff] %v8020
        %8796 = vst [vmem:[%s283 + $0x3c8] sm:$0xff] %v8022
        %8797 = vst [vmem:[%s283 + $0x3d0] sm:$0xff] %v8024
        %8798 = vst [vmem:[%s283 + $0x3d8] sm:$0xff] %v8026
        %8799 = vst [vmem:[%s283 + $0x3e0] sm:$0xff] %v8028
        %8800 = vst [vmem:[%s283 + $0x3e8] sm:$0xff] %v8030
        %8801 = vst [vmem:[%s283 + $0x3f0] sm:$0xff] %v8032
        %8802 = vst [vmem:[%s283 + $0x3f8] sm:$0xff] %v8034
        %8803 = vst [vmem:[%s283 + $0x400] sm:$0xff] %v8036
        %8804 = vst [vmem:[%s283 + $0x408] sm:$0xff] %v8038
        %8805 = vst [vmem:[%s283 + $0x410] sm:$0xff] %v8040
        %8806 = vst [vmem:[%s283 + $0x418] sm:$0xff] %v8042
        %8807 = vst [vmem:[%s283 + $0x420] sm:$0xff] %v8044
        %8808 = vst [vmem:[%s283 + $0x428] sm:$0xff] %v8046
        %8809 = vst [vmem:[%s283 + $0x430] sm:$0xff] %v8048
        %8810 = vst [vmem:[%s283 + $0x438] sm:$0xff] %v8050
        %8811 = vst [vmem:[%s283 + $0x440] sm:$0xff] %v8052
        %8812 = vst [vmem:[%s283 + $0x448] sm:$0xff] %v8054
        %8813 = vst [vmem:[%s283 + $0x450] sm:$0xff] %v8056
        %8814 = vst [vmem:[%s283 + $0x458] sm:$0xff] %v8058
        %8815 = vst [vmem:[%s283 + $0x460] sm:$0xff] %v8060
        %8816 = vst [vmem:[%s283 + $0x468] sm:$0xff] %v8062
        %8817 = vst [vmem:[%s283 + $0x470] sm:$0xff] %v8064
        %8818 = vst [vmem:[%s283 + $0x478] sm:$0xff] %v8066
        %8819 = vst [vmem:[%s283 + $0x480] sm:$0xff] %v8068
        %8820 = vst [vmem:[%s283 + $0x488] sm:$0xff] %v8070
        %8821 = vst [vmem:[%s283 + $0x490] sm:$0xff] %v8072
        %8822 = vst [vmem:[%s283 + $0x498] sm:$0xff] %v8074
        %8823 = vst [vmem:[%s283 + $0x4a0] sm:$0xff] %v8076
        %8824 = vst [vmem:[%s283 + $0x4a8] sm:$0xff] %v8078
        %8825 = vst [vmem:[%s283 + $0x4b0] sm:$0xff] %v8080
        %8826 = vst [vmem:[%s283 + $0x4b8] sm:$0xff] %v8082
        %8827 = vst [vmem:[%s283 + $0x4c0] sm:$0xff] %v8084
        %8828 = vst [vmem:[%s283 + $0x4c8] sm:$0xff] %v8086
        %8829 = vst [vmem:[%s283 + $0x4d0] sm:$0xff] %v8088
        %8830 = vst [vmem:[%s283 + $0x4d8] sm:$0xff] %v8090
        %8831 = vst [vmem:[%s283 + $0x4e0] sm:$0xff] %v8092
        %8832 = vst [vmem:[%s283 + $0x4e8] sm:$0xff] %v8094
        %8833 = vst [vmem:[%s283 + $0x4f0] sm:$0xff] %v8096
        %8834 = vst [vmem:[%s283 + $0x4f8] sm:$0xff] %v8098
        %8835 = vst [vmem:[%s283 + $0x500] sm:$0xff] %v8100
        %8836 = vst [vmem:[%s283 + $0x508] sm:$0xff] %v8102
        %8837 = vst [vmem:[%s283 + $0x510] sm:$0xff] %v8104
        %8838 = vst [vmem:[%s283 + $0x518] sm:$0xff] %v8106
        %8839 = vst [vmem:[%s283 + $0x520] sm:$0xff] %v8108
        %8840 = vst [vmem:[%s283 + $0x528] sm:$0xff] %v8110
        %8841 = vst [vmem:[%s283 + $0x530] sm:$0xff] %v8112
        %8842 = vst [vmem:[%s283 + $0x538] sm:$0xff] %v8114
        %8843 = vst [vmem:[%s283 + $0x540] sm:$0xff] %v8116
        %8844 = vst [vmem:[%s283 + $0x548] sm:$0xff] %v8118
        %8845 = vst [vmem:[%s283 + $0x550] sm:$0xff] %v8120
        %8846 = vst [vmem:[%s283 + $0x558] sm:$0xff] %v8122
        %8847 = vst [vmem:[%s283 + $0x560] sm:$0xff] %v8124
        %8848 = vst [vmem:[%s283 + $0x568] sm:$0xff] %v8126
        %8849 = vst [vmem:[%s283 + $0x570] sm:$0xff] %v8128
        %8850 = vst [vmem:[%s283 + $0x578] sm:$0xff] %v8130
        %8851 = vst [vmem:[%s283 + $0x580] sm:$0xff] %v8132
        %8852 = vst [vmem:[%s283 + $0x588] sm:$0xff] %v8134
        %8853 = vst [vmem:[%s283 + $0x590] sm:$0xff] %v8136
        %8854 = vst [vmem:[%s283 + $0x598] sm:$0xff] %v8138
        %8855 = vst [vmem:[%s283 + $0x5a0] sm:$0xff] %v8140
        %8856 = vst [vmem:[%s283 + $0x5a8] sm:$0xff] %v8142
        %8857 = vst [vmem:[%s283 + $0x5b0] sm:$0xff] %v8144
        %8858 = vst [vmem:[%s283 + $0x5b8] sm:$0xff] %v8146
        %8859 = vst [vmem:[%s283 + $0x5c0] sm:$0xff] %v8148
        %8860 = vst [vmem:[%s283 + $0x5c8] sm:$0xff] %v8150
        %8861 = vst [vmem:[%s283 + $0x5d0] sm:$0xff] %v8152
        %8862 = vst [vmem:[%s283 + $0x5d8] sm:$0xff] %v8154
        %8863 = vst [vmem:[%s283 + $0x5e0] sm:$0xff] %v8156
        %8864 = vst [vmem:[%s283 + $0x5e8] sm:$0xff] %v8158
        %8865 = vst [vmem:[%s283 + $0x5f0] sm:$0xff] %v8160
        %8866 = vst [vmem:[%s283 + $0x5f8] sm:$0xff] %v8162
        %8867 = vst [vmem:[%s283 + $0x600] sm:$0xff] %v8164
        %8868 = vst [vmem:[%s283 + $0x608] sm:$0xff] %v8166
        %8869 = vst [vmem:[%s283 + $0x610] sm:$0xff] %v8168
        %8870 = vst [vmem:[%s283 + $0x618] sm:$0xff] %v8170
        %8871 = vst [vmem:[%s283 + $0x620] sm:$0xff] %v8172
        %8872 = vst [vmem:[%s283 + $0x628] sm:$0xff] %v8174
        %8873 = vst [vmem:[%s283 + $0x630] sm:$0xff] %v8176
        %8874 = vst [vmem:[%s283 + $0x638] sm:$0xff] %v8178
        %8875 = vst [vmem:[%s283 + $0x640] sm:$0xff] %v8180
        %8876 = vst [vmem:[%s283 + $0x648] sm:$0xff] %v8182
        %8877 = vst [vmem:[%s283 + $0x650] sm:$0xff] %v8184
        %8878 = vst [vmem:[%s283 + $0x658] sm:$0xff] %v8186
        %8879 = vst [vmem:[%s283 + $0x660] sm:$0xff] %v8188
        %8880 = vst [vmem:[%s283 + $0x668] sm:$0xff] %v8190
        %8881 = vst [vmem:[%s283 + $0x670] sm:$0xff] %v8192
        %8882 = vst [vmem:[%s283 + $0x678] sm:$0xff] %v8194
        %8883 = vst [vmem:[%s283 + $0x680] sm:$0xff] %v8196
        %8884 = vst [vmem:[%s283 + $0x688] sm:$0xff] %v8198
        %8885 = vst [vmem:[%s283 + $0x690] sm:$0xff] %v8200
        %8886 = vst [vmem:[%s283 + $0x698] sm:$0xff] %v8202
        %8887 = vst [vmem:[%s283 + $0x6a0] sm:$0xff] %v8204
        %8888 = vst [vmem:[%s283 + $0x6a8] sm:$0xff] %v8206
        %8889 = vst [vmem:[%s283 + $0x6b0] sm:$0xff] %v8208
        %8890 = vst [vmem:[%s283 + $0x6b8] sm:$0xff] %v8210
        %8891 = vst [vmem:[%s283 + $0x6c0] sm:$0xff] %v8212
        %8892 = vst [vmem:[%s283 + $0x6c8] sm:$0xff] %v8214
        %8893 = vst [vmem:[%s283 + $0x6d0] sm:$0xff] %v8216
        %8894 = vst [vmem:[%s283 + $0x6d8] sm:$0xff] %v8218
        %8895 = vst [vmem:[%s283 + $0x6e0] sm:$0xff] %v8220
        %8896 = vst [vmem:[%s283 + $0x6e8] sm:$0xff] %v8222
        %8897 = vst [vmem:[%s283 + $0x6f0] sm:$0xff] %v8224
        %8898 = vst [vmem:[%s283 + $0x6f8] sm:$0xff] %v8226
        %8899 = vst [vmem:[%s283 + $0x700] sm:$0xff] %v8228
        %8900 = vst [vmem:[%s283 + $0x708] sm:$0xff] %v8230
        %8901 = vst [vmem:[%s283 + $0x710] sm:$0xff] %v8232
        %8902 = vst [vmem:[%s283 + $0x718] sm:$0xff] %v8234
        %8903 = vst [vmem:[%s283 + $0x720] sm:$0xff] %v8236
        %8904 = vst [vmem:[%s283 + $0x728] sm:$0xff] %v8238
        %8905 = vst [vmem:[%s283 + $0x730] sm:$0xff] %v8240
        %8906 = vst [vmem:[%s283 + $0x738] sm:$0xff] %v8242
        %8907 = vst [vmem:[%s283 + $0x740] sm:$0xff] %v8244
        %8908 = vst [vmem:[%s283 + $0x748] sm:$0xff] %v8246
        %8909 = vst [vmem:[%s283 + $0x750] sm:$0xff] %v8248
        %8910 = vst [vmem:[%s283 + $0x758] sm:$0xff] %v8250
        %8911 = vst [vmem:[%s283 + $0x760] sm:$0xff] %v8252
        %8912 = vst [vmem:[%s283 + $0x768] sm:$0xff] %v8254
        %8913 = vst [vmem:[%s283 + $0x770] sm:$0xff] %v8256
        %8914 = vst [vmem:[%s283 + $0x778] sm:$0xff] %v8258
        %8915 = vst [vmem:[%s283 + $0x780] sm:$0xff] %v8260
        %8916 = vst [vmem:[%s283 + $0x788] sm:$0xff] %v8262
        %8917 = vst [vmem:[%s283 + $0x790] sm:$0xff] %v8264
        %8918 = vst [vmem:[%s283 + $0x798] sm:$0xff] %v8266
        %8919 = vst [vmem:[%s283 + $0x7a0] sm:$0xff] %v8268
        %8920 = vst [vmem:[%s283 + $0x7a8] sm:$0xff] %v8270
        %8921 = vst [vmem:[%s283 + $0x7b0] sm:$0xff] %v8272
        %8922 = vst [vmem:[%s283 + $0x7b8] sm:$0xff] %v8274
        %8923 = vst [vmem:[%s283 + $0x7c0] sm:$0xff] %v8276
        %8924 = vst [vmem:[%s283 + $0x7c8] sm:$0xff] %v8278
        %8925 = vst [vmem:[%s283 + $0x7d0] sm:$0xff] %v8280
        %8926 = vst [vmem:[%s283 + $0x7d8] sm:$0xff] %v8282
        %8927 = vst [vmem:[%s283 + $0x7e0] sm:$0xff] %v8284
        %8928 = vst [vmem:[%s283 + $0x7e8] sm:$0xff] %v8286
        %8929 = vst [vmem:[%s283 + $0x7f0] sm:$0xff] %v8288
        %8930 = vst [vmem:[%s283 + $0x7f8] sm:$0xff] %v8290
        %8931 = vst [vmem:[%s283 + $0x800] sm:$0xff] %v8292
        %8932 = vst [vmem:[%s283 + $0x808] sm:$0xff] %v8294
        %8933 = vst [vmem:[%s283 + $0x810] sm:$0xff] %v8296
        %8934 = vst [vmem:[%s283 + $0x818] sm:$0xff] %v8298
        %8935 = vst [vmem:[%s283 + $0x820] sm:$0xff] %v8300
        %8936 = vst [vmem:[%s283 + $0x828] sm:$0xff] %v8302
        %8937 = vst [vmem:[%s283 + $0x830] sm:$0xff] %v8304
        %8938 = vst [vmem:[%s283 + $0x838] sm:$0xff] %v8306
        %8939 = vst [vmem:[%s283 + $0x840] sm:$0xff] %v8308
        %8940 = vst [vmem:[%s283 + $0x848] sm:$0xff] %v8310
        %8941 = vst [vmem:[%s283 + $0x850] sm:$0xff] %v8312
        %8942 = vst [vmem:[%s283 + $0x858] sm:$0xff] %v8314
        %8943 = vst [vmem:[%s283 + $0x860] sm:$0xff] %v8316
        %8944 = vst [vmem:[%s283 + $0x868] sm:$0xff] %v8318
        %8945 = vst [vmem:[%s283 + $0x870] sm:$0xff] %v8320
        %8946 = vst [vmem:[%s283 + $0x878] sm:$0xff] %v8322
        %8947 = vst [vmem:[%s283 + $0x880] sm:$0xff] %v8324
        %8948 = vst [vmem:[%s283 + $0x888] sm:$0xff] %v8326
        %8949 = vst [vmem:[%s283 + $0x890] sm:$0xff] %v8328
        %8950 = vst [vmem:[%s283 + $0x898] sm:$0xff] %v8330
        %8951 = vst [vmem:[%s283 + $0x8a0] sm:$0xff] %v8332
        %8952 = vst [vmem:[%s283 + $0x8a8] sm:$0xff] %v8334
        %8953 = vst [vmem:[%s283 + $0x8b0] sm:$0xff] %v8336
        %8954 = vst [vmem:[%s283 + $0x8b8] sm:$0xff] %v8338
        %8955 = vst [vmem:[%s283 + $0x8c0] sm:$0xff] %v8340
        %8956 = vst [vmem:[%s283 + $0x8c8] sm:$0xff] %v8342
        %8957 = vst [vmem:[%s283 + $0x8d0] sm:$0xff] %v8344
        %8958 = vst [vmem:[%s283 + $0x8d8] sm:$0xff] %v8346
        %8959 = vst [vmem:[%s283 + $0x8e0] sm:$0xff] %v8348
        %8960 = vst [vmem:[%s283 + $0x8e8] sm:$0xff] %v8350
        %8961 = vst [vmem:[%s283 + $0x8f0] sm:$0xff] %v8352
        %8962 = vst [vmem:[%s283 + $0x8f8] sm:$0xff] %v8354
        %8963 = vst [vmem:[%s283 + $0x900] sm:$0xff] %v8356
        %8964 = vst [vmem:[%s283 + $0x908] sm:$0xff] %v8358
        %8965 = vst [vmem:[%s283 + $0x910] sm:$0xff] %v8360
        %8966 = vst [vmem:[%s283 + $0x918] sm:$0xff] %v8362
        %8967 = vst [vmem:[%s283 + $0x920] sm:$0xff] %v8364
        %8968 = vst [vmem:[%s283 + $0x928] sm:$0xff] %v8366
        %8969 = vst [vmem:[%s283 + $0x930] sm:$0xff] %v8368
        %8970 = vst [vmem:[%s283 + $0x938] sm:$0xff] %v8370
        %8971 = vst [vmem:[%s283 + $0x940] sm:$0xff] %v8372
        %8972 = vst [vmem:[%s283 + $0x948] sm:$0xff] %v8374
        %8973 = vst [vmem:[%s283 + $0x950] sm:$0xff] %v8376
        %8974 = vst [vmem:[%s283 + $0x958] sm:$0xff] %v8378
        %8975 = vst [vmem:[%s283 + $0x960] sm:$0xff] %v8380
        %8976 = vst [vmem:[%s283 + $0x968] sm:$0xff] %v8382
        %8977 = vst [vmem:[%s283 + $0x970] sm:$0xff] %v8384
        %8978 = vst [vmem:[%s283 + $0x978] sm:$0xff] %v8386
        %8979 = vst [vmem:[%s283 + $0x980] sm:$0xff] %v8388
        %8980 = vst [vmem:[%s283 + $0x988] sm:$0xff] %v8390
        %8981 = vst [vmem:[%s283 + $0x990] sm:$0xff] %v8392
        %8982 = vst [vmem:[%s283 + $0x998] sm:$0xff] %v8394
        %8983 = vst [vmem:[%s283 + $0x9a0] sm:$0xff] %v8396
        %8984 = vst [vmem:[%s283 + $0x9a8] sm:$0xff] %v8398
        %8985 = vst [vmem:[%s283 + $0x9b0] sm:$0xff] %v8400
        %8986 = vst [vmem:[%s283 + $0x9b8] sm:$0xff] %v8402
        %8987 = vst [vmem:[%s283 + $0x9c0] sm:$0xff] %v8404
        %8988 = vst [vmem:[%s283 + $0x9c8] sm:$0xff] %v8406
        %8989 = vst [vmem:[%s283 + $0x9d0] sm:$0xff] %v8408
        %8990 = vst [vmem:[%s283 + $0x9d8] sm:$0xff] %v8410
        %8991 = vst [vmem:[%s283 + $0x9e0] sm:$0xff] %v8412
        %8992 = vst [vmem:[%s283 + $0x9e8] sm:$0xff] %v8414
        %8993 = vst [vmem:[%s283 + $0x9f0] sm:$0xff] %v8416
        %8994 = vst [vmem:[%s283 + $0x9f8] sm:$0xff] %v8418
        %8995 = vst [vmem:[%s283 + $0xa00] sm:$0xff] %v8420
        %8996 = vst [vmem:[%s283 + $0xa08] sm:$0xff] %v8422
        %8997 = vst [vmem:[%s283 + $0xa10] sm:$0xff] %v8424
        %8998 = vst [vmem:[%s283 + $0xa18] sm:$0xff] %v8426
        %8999 = vst [vmem:[%s283 + $0xa20] sm:$0xff] %v8428
        %9000 = vst [vmem:[%s283 + $0xa28] sm:$0xff] %v8430
        %9001 = vst [vmem:[%s283 + $0xa30] sm:$0xff] %v8432
        %9002 = vst [vmem:[%s283 + $0xa38] sm:$0xff] %v8434
        %9003 = vst [vmem:[%s283 + $0xa40] sm:$0xff] %v8436
        %9004 = vst [vmem:[%s283 + $0xa48] sm:$0xff] %v8438
        %9005 = vst [vmem:[%s283 + $0xa50] sm:$0xff] %v8440
        %9006 = vst [vmem:[%s283 + $0xa58] sm:$0xff] %v8442
        %9007 = vst [vmem:[%s283 + $0xa60] sm:$0xff] %v8444
        %9008 = vst [vmem:[%s283 + $0xa68] sm:$0xff] %v8446
        %9009 = vst [vmem:[%s283 + $0xa70] sm:$0xff] %v8448
        %9010 = vst [vmem:[%s283 + $0xa78] sm:$0xff] %v8450
        %9011 = vst [vmem:[%s283 + $0xa80] sm:$0xff] %v8452
        %9012 = vst [vmem:[%s283 + $0xa88] sm:$0xff] %v8454
        %9013 = vst [vmem:[%s283 + $0xa90] sm:$0xff] %v8456
        %9014 = vst [vmem:[%s283 + $0xa98] sm:$0xff] %v8458
        %9015 = vst [vmem:[%s283 + $0xaa0] sm:$0xff] %v8460
        %9016 = vst [vmem:[%s283 + $0xaa8] sm:$0xff] %v8462
        %9017 = vst [vmem:[%s283 + $0xab0] sm:$0xff] %v8464
        %9018 = vst [vmem:[%s283 + $0xab8] sm:$0xff] %v8466
        %9019 = vst [vmem:[%s283 + $0xac0] sm:$0xff] %v8468
        %9020 = vst [vmem:[%s283 + $0xac8] sm:$0xff] %v8470
        %9021 = vst [vmem:[%s283 + $0xad0] sm:$0xff] %v8472
        %9022 = vst [vmem:[%s283 + $0xad8] sm:$0xff] %v8474
        %9023 = vst [vmem:[%s283 + $0xae0] sm:$0xff] %v8476
        %9024 = vst [vmem:[%s283 + $0xae8] sm:$0xff] %v8478
        %9025 = vst [vmem:[%s283 + $0xaf0] sm:$0xff] %v8480
        %9026 = vst [vmem:[%s283 + $0xaf8] sm:$0xff] %v8482
        %9027 = vst [vmem:[%s283 + $0xb00] sm:$0xff] %v8484
        %9028 = vst [vmem:[%s283 + $0xb08] sm:$0xff] %v8486
        %9029 = vst [vmem:[%s283 + $0xb10] sm:$0xff] %v8488
        %9030 = vst [vmem:[%s283 + $0xb18] sm:$0xff] %v8490
        %9031 = vst [vmem:[%s283 + $0xb20] sm:$0xff] %v8492
        %9032 = vst [vmem:[%s283 + $0xb28] sm:$0xff] %v8494
        %9033 = vst [vmem:[%s283 + $0xb30] sm:$0xff] %v8496
        %9034 = vst [vmem:[%s283 + $0xb38] sm:$0xff] %v8498
        %9035 = vst [vmem:[%s283 + $0xb40] sm:$0xff] %v8500
        %9036 = vst [vmem:[%s283 + $0xb48] sm:$0xff] %v8502
        %9037 = vst [vmem:[%s283 + $0xb50] sm:$0xff] %v8504
        %9038 = vst [vmem:[%s283 + $0xb58] sm:$0xff] %v8506
        %9039 = vst [vmem:[%s283 + $0xb60] sm:$0xff] %v8508
        %9040 = vst [vmem:[%s283 + $0xb68] sm:$0xff] %v8510
        %9041 = vst [vmem:[%s283 + $0xb70] sm:$0xff] %v8512
        %9042 = vst [vmem:[%s283 + $0xb78] sm:$0xff] %v8514
        %9043 = vst [vmem:[%s283 + $0xb80] sm:$0xff] %v8516
        %9044 = vst [vmem:[%s283 + $0xb88] sm:$0xff] %v8518
        %9045 = vst [vmem:[%s283 + $0xb90] sm:$0xff] %v8520
        %9046 = vst [vmem:[%s283 + $0xb98] sm:$0xff] %v8522
        %9047 = vst [vmem:[%s283 + $0xba0] sm:$0xff] %v8524
        %9048 = vst [vmem:[%s283 + $0xba8] sm:$0xff] %v8526
        %9049 = vst [vmem:[%s283 + $0xbb0] sm:$0xff] %v8528
        %9050 = vst [vmem:[%s283 + $0xbb8] sm:$0xff] %v8530
        %9051 = vst [vmem:[%s283 + $0xbc0] sm:$0xff] %v8532
        %9052 = vst [vmem:[%s283 + $0xbc8] sm:$0xff] %v8534
        %9053 = vst [vmem:[%s283 + $0xbd0] sm:$0xff] %v8536
        %9054 = vst [vmem:[%s283 + $0xbd8] sm:$0xff] %v8538
        %9055 = vst [vmem:[%s283 + $0xbe0] sm:$0xff] %v8540
        %9056 = vst [vmem:[%s283 + $0xbe8] sm:$0xff] %v8542
        %9057 = vst [vmem:[%s283 + $0xbf0] sm:$0xff] %v8544
        %9058 = vst [vmem:[%s283 + $0xbf8] sm:$0xff] %v8546
        %9059 = vst [vmem:[%s283 + $0xc00] sm:$0xff] %v8548
        %9060 = vst [vmem:[%s283 + $0xc08] sm:$0xff] %v8550
        %9061 = vst [vmem:[%s283 + $0xc10] sm:$0xff] %v8552
        %9062 = vst [vmem:[%s283 + $0xc18] sm:$0xff] %v8554
        %9063 = vst [vmem:[%s283 + $0xc20] sm:$0xff] %v8556
        %9064 = vst [vmem:[%s283 + $0xc28] sm:$0xff] %v8558
        %9065 = vst [vmem:[%s283 + $0xc30] sm:$0xff] %v8560
        %9066 = vst [vmem:[%s283 + $0xc38] sm:$0xff] %v8562
        %9067 = vst [vmem:[%s283 + $0xc40] sm:$0xff] %v8564
        %9068 = vst [vmem:[%s283 + $0xc48] sm:$0xff] %v8566
        %9069 = vst [vmem:[%s283 + $0xc50] sm:$0xff] %v8568
        %9070 = vst [vmem:[%s283 + $0xc58] sm:$0xff] %v8570
        %9071 = vst [vmem:[%s283 + $0xc60] sm:$0xff] %v8572
        %9072 = vst [vmem:[%s283 + $0xc68] sm:$0xff] %v8574
        %9073 = vst [vmem:[%s283 + $0xc70] sm:$0xff] %v8576
        %9074 = vst [vmem:[%s283 + $0xc78] sm:$0xff] %v8578
        %9075 = vst [vmem:[%s283 + $0xc80] sm:$0xff] %v8580
        %9076 = vst [vmem:[%s283 + $0xc88] sm:$0xff] %v8582
        %9077 = vst [vmem:[%s283 + $0xc90] sm:$0xff] %v8584
        %9078 = vst [vmem:[%s283 + $0xc98] sm:$0xff] %v8586
        %9079 = vst [vmem:[%s283 + $0xca0] sm:$0xff] %v8588
        %9080 = vst [vmem:[%s283 + $0xca8] sm:$0xff] %v8590
        %9081 = vst [vmem:[%s283 + $0xcb0] sm:$0xff] %v8592
        %9082 = vst [vmem:[%s283 + $0xcb8] sm:$0xff] %v8594
        %9083 = vst [vmem:[%s283 + $0xcc0] sm:$0xff] %v8596
        %9084 = vst [vmem:[%s283 + $0xcc8] sm:$0xff] %v8598
        %9085 = vst [vmem:[%s283 + $0xcd0] sm:$0xff] %v8600
        %9086 = vst [vmem:[%s283 + $0xcd8] sm:$0xff] %v8602
        %9087 = vst [vmem:[%s283 + $0xce0] sm:$0xff] %v8604
        %9088 = vst [vmem:[%s283 + $0xce8] sm:$0xff] %v8606
        %9089 = vst [vmem:[%s283 + $0xcf0] sm:$0xff] %v8608
        %9090 = vst [vmem:[%s283 + $0xcf8] sm:$0xff] %v8610
        %9091 = vst [vmem:[%s283 + $0xd00] sm:$0xff] %v8612
        %9092 = vst [vmem:[%s283 + $0xd08] sm:$0xff] %v8614
        %9093 = vst [vmem:[%s283 + $0xd10] sm:$0xff] %v8616
        %9094 = vst [vmem:[%s283 + $0xd18] sm:$0xff] %v8618
        %9095 = vst [vmem:[%s283 + $0xd20] sm:$0xff] %v8620
        %9096 = vst [vmem:[%s283 + $0xd28] sm:$0xff] %v8622
        %9097 = vst [vmem:[%s283 + $0xd30] sm:$0xff] %v8624
        %9098 = vst [vmem:[%s283 + $0xd38] sm:$0xff] %v8626
        %9099 = vst [vmem:[%s283 + $0xd40] sm:$0xff] %v8628
        %9100 = vst [vmem:[%s283 + $0xd48] sm:$0xff] %v8630
        %9101 = vst [vmem:[%s283 + $0xd50] sm:$0xff] %v8632
        %9102 = vst [vmem:[%s283 + $0xd58] sm:$0xff] %v8634
        %9103 = vst [vmem:[%s283 + $0xd60] sm:$0xff] %v8636
        %9104 = vst [vmem:[%s283 + $0xd68] sm:$0xff] %v8638
        %9105 = vst [vmem:[%s283 + $0xd70] sm:$0xff] %v8640
        %9106 = vst [vmem:[%s283 + $0xd78] sm:$0xff] %v8642
        %9107 = vst [vmem:[%s283 + $0xd80] sm:$0xff] %v8644
        %9108 = vst [vmem:[%s283 + $0xd88] sm:$0xff] %v8646
        %9109 = vst [vmem:[%s283 + $0xd90] sm:$0xff] %v8648
        %9110 = vst [vmem:[%s283 + $0xd98] sm:$0xff] %v8650
        %9111 = vst [vmem:[%s283 + $0xda0] sm:$0xff] %v8652
        %9112 = vst [vmem:[%s283 + $0xda8] sm:$0xff] %v8654
        %9113 = vst [vmem:[%s283 + $0xdb0] sm:$0xff] %v8656
        %9114 = vst [vmem:[%s283 + $0xdb8] sm:$0xff] %v8658
        %9115 = vst [vmem:[%s283 + $0xdc0] sm:$0xff] %v8660
        %9116 = vst [vmem:[%s283 + $0xdc8] sm:$0xff] %v8662
        %9117 = vst [vmem:[%s283 + $0xdd0] sm:$0xff] %v8664
        %9118 = vst [vmem:[%s283 + $0xdd8] sm:$0xff] %v8666
        %9119 = vst [vmem:[%s283 + $0xde0] sm:$0xff] %v8668
        %9120 = vst [vmem:[%s283 + $0xde8] sm:$0xff] %v8670
        %9121 = vst [vmem:[%s283 + $0xdf0] sm:$0xff] %v8672
        %9122 = vst [vmem:[%s283 + $0xdf8] sm:$0xff] %v8674
        %s9123 = smul.u32 64, %s19
        %p9124 = scmp.lt.s32.totalorder %s9123, 127
        %s9125 = scalar_select %p9124, %s9123, 127
        %s9126 = smul.addr %s9125, 7
        %s9127 = smul.addr %s9126, 8
        %s9128 = scalar_lea.vmem %s5, %s9127
        // Predicated region
        $region57: #{vae_decoder_forward.1} parent=39 // pred_check
          %p9129 = pneg %p147
        $region58: #{vae_decoder_forward.1} parent=39 // pred_check_branch
          %9131 = sbr.rel (%p9129) target = $region60
        $region59: #{vae_decoder_forward.1} parent=39 // pred_region
          %s9132 = smul.u32 64, %s19
        $region60: #{vae_decoder_forward.1} parent=39 // pred_fallthru
          _
      $region40: #{vae_decoder_forward.1} parent=5 // pred_fallthru
        _
      %p9133 = scmp.le.s32.totalorder 2, %s14
      // Predicated region
      $region61: #{vae_decoder_forward.1} parent=5 // pred_check
        %p9134 = pneg %p9133
      $region62: #{vae_decoder_forward.1} parent=5 // pred_check_branch
        %9136 = sbr.rel (%p9134) target = $region64
      $region63: #{vae_decoder_forward.1} parent=5 // pred_region
        %s9137 = ssub.s32 %s14, 2
        // Predicated region
        $region65: #{vae_decoder_forward.1} parent=63 // pred_check
          %p9138 = pneg %p153
        $region66: #{vae_decoder_forward.1} parent=63 // pred_check_branch
          %9140 = sbr.rel (%p9138) target = $region68
        $region67: #{vae_decoder_forward.1} parent=63 // pred_region
          %s9141 = smul.u32 64, %s20
          %p9142 = scmp.lt.s32.totalorder %s9141, 127
          %s9143 = scalar_select %p9142, %s9141, 127
          %s9144 = smul.addr %s9143, 7
          %s9145 = smul.addr %s9144, 8
          %s9146 = scalar_lea.vmem %s5, %s9145
        $region68: #{vae_decoder_forward.1} parent=63 // pred_fallthru
          _
      $region64: #{vae_decoder_forward.1} parent=5 // pred_fallthru
        _
    $region6: #{vae_decoder_forward.1} parent=1 // loop_footer
      %s18 = sadd.s32 1, %s14
    $region7: #{vae_decoder_forward.1} parent=1 // loop_footer_branch
      %13 = sbr.rel target = $region3
    $region8: #{vae_decoder_forward.1} parent=1 // loop_exit
      _
    %9147 = vsyncpa [#allocation3], 1
    %s9148 = scalar_lea.sflag [#allocation3], 1
    %9149 = vsyncpa %s9148, 1
    %9150 = vsyncpa [#allocation5], 1
    %9151 = vsyncpa [#allocation8], 1

</llo_original>
